<compile_context>
chip_gen: v7x
topology: tpu7x:2x2x1
jax: 0.10.0
libtpu: 0.0.40
codegen_flags: <defaults>
</compile_context>

<pallas_src>
from functools import partial

import jax
import jax.numpy as jnp
from jax.experimental import pallas as pl
from jax.experimental.pallas import tpu as pltpu

# ---------------- config (opt dict) ----------------
IMG_SIZE = 16
LATENT_DIM = 32
CHANNELS = 3
INIT_SIZE = IMG_SIZE // 4          # 4
BN_EPS = 0.8
LRELU_SLOPE = 0.2
C1 = 32                            # conv1 in/out channels
C2 = 16                            # conv2 out channels


# ---------------- in-kernel helpers ----------------
def _bn_lrelu(x, gamma, beta):
    """BatchNorm2d (training mode, biased var, eps=0.8) + LeakyReLU(0.2).

    x: (N*H*W, C) f32; stats over axis 0 (== N, H, W). One-pass sum / sum-sq.
    """
    n = x.shape[0]
    s = jnp.sum(x, axis=0, keepdims=True)
    ss = jnp.sum(x * x, axis=0, keepdims=True)
    mean = s * (1.0 / n)
    var = ss * (1.0 / n) - mean * mean
    y = (x - mean) * jax.lax.rsqrt(var + BN_EPS) * gamma + beta
    return jnp.where(y > 0, y, LRELU_SLOPE * y)


def _im2col_3x3(pad_ref, B, H, W, Cin):
    """Gather the 9 taps of a 3x3/stride-1 conv from a zero-padded VMEM scratch
    into a single (B*H*W, 9*Cin) patch matrix (columns ordered ky, kx, cin)."""
    taps = []
    for ky in range(3):
        for kx in range(3):
            taps.append(pad_ref[:, ky:ky + H, kx:kx + W, :].reshape(B * H * W, Cin))
    return jnp.concatenate(taps, axis=-1)


# ---------------- fused generator kernel ----------------
def generator_kernel(z_ref, w1_ref, b1_ref,
                     wc1_ref, bc1_ref, g1_ref, bt1_ref,
                     wc2_ref, bc2_ref, g2_ref, bt2_ref,
                     wc3t_ref, bc3t_ref,
                     o_ref,
                     pad1_ref, pad2_ref, pad3_ref,
                     *, B):
    bf16 = jnp.bfloat16
    f32 = jnp.float32

    # ---- l1: Linear(latent -> 32 * 4 * 4), columns in (h0, w0, c) order ----
    y1 = jnp.dot(z_ref[...].astype(bf16), w1_ref[...].astype(bf16),
                 preferred_element_type=f32) + b1_ref[...]            # (B, 512)

    # ---- view(B,32,4,4) + Upsample(2x) 4->8 + zero pad=1 -> pad1 (B,10,10,32) ----
    pad1_ref[...] = jnp.zeros_like(pad1_ref)
    for h0 in range(INIT_SIZE):
        for w0 in range(INIT_SIZE):
            c0 = (h0 * INIT_SIZE + w0) * C1
            px = y1[:, c0:c0 + C1]                                    # (B, 32)
            pad1_ref[:, 1 + 2 * h0:3 + 2 * h0, 1 + 2 * w0:3 + 2 * w0, :] = (
                jnp.broadcast_to(px[:, None, None, :], (B, 2, 2, C1)))

    # ---- conv1 3x3 32->32 @ 8x8  + BN(eps=0.8) + LeakyReLU(0.2) ----
    H1 = W1 = 2 * INIT_SIZE                                           # 8
    patches1 = _im2col_3x3(pad1_ref, B, H1, W1, C1)                   # (B*64, 288)
    a1 = jnp.dot(patches1.astype(bf16), wc1_ref[...].astype(bf16),
                 preferred_element_type=f32) + bc1_ref[...]           # (B*64, 32)
    act1 = _bn_lrelu(a1, g1_ref[...], bt1_ref[...])

    # ---- Upsample(2x) 8->16 + zero pad=1 -> pad2 (B,18,18,32) ----
    pad2_ref[...] = jnp.zeros_like(pad2_ref)
    act1_4d = act1.reshape(B, H1, W1, C1)
    for h in range(H1):
        for w in range(W1):
            px = act1_4d[:, h, w, :]                                  # (B, 32)
            pad2_ref[:, 1 + 2 * h:3 + 2 * h, 1 + 2 * w:3 + 2 * w, :] = (
                jnp.broadcast_to(px[:, None, None, :], (B, 2, 2, C1)))

    # ---- conv2 3x3 32->16 @ 16x16 + BN(eps=0.8) + LeakyReLU(0.2) ----
    H2 = W2 = IMG_SIZE                                                # 16
    patches2 = _im2col_3x3(pad2_ref, B, H2, W2, C1)                   # (B*256, 288)
    a2 = jnp.dot(patches2.astype(bf16), wc2_ref[...].astype(bf16),
                 preferred_element_type=f32) + bc2_ref[...]           # (B*256, 16)
    act2 = _bn_lrelu(a2, g2_ref[...], bt2_ref[...])

    # ---- zero pad=1 (no upsample) -> pad3 (B,18,18,16) ----
    pad3_ref[...] = jnp.zeros_like(pad3_ref)
    pad3_ref[:, 1:H2 + 1, 1:W2 + 1, :] = act2.reshape(B, H2, W2, C2)

    # ---- conv3 3x3 16->channels + tanh; channel-major (lane-dense) output ----
    patches3 = _im2col_3x3(pad3_ref, B, H2, W2, C2)                   # (B*256, 144)
    # out_t[c, n] = sum_k wc3t[c, k] * patches3[n, k]      (A @ B^T on the MXU)
    out_t = jax.lax.dot_general(
        wc3t_ref[...].astype(bf16), patches3.astype(bf16),
        dimension_numbers=(((1,), (1,)), ((), ())),
        preferred_element_type=f32)                                   # (C, B*256)
    out_t = jnp.tanh(out_t + bc3t_ref[...])
    hw = H2 * W2
    for b in range(B):
        o_ref[b] = out_t[:, b * hw:(b + 1) * hw]                      # (C, 256)


# ---------------- pallas_call wrapper ----------------
def _vmem_spec():
    return pl.BlockSpec(memory_space=pltpu.MemorySpace.VMEM)


@jax.jit
def generator_forward(z, p):
    B = z.shape[0]
    hw = IMG_SIZE * IMG_SIZE
    out = pl.pallas_call(
        partial(generator_kernel, B=B),
        out_shape=jax.ShapeDtypeStruct((B, CHANNELS, hw), jnp.float32),
        in_specs=[_vmem_spec() for _ in range(13)],
        out_specs=_vmem_spec(),
        scratch_shapes=[
            pltpu.VMEM((B, 2 * INIT_SIZE + 2, 2 * INIT_SIZE + 2, C1), jnp.float32),
            pltpu.VMEM((B, IMG_SIZE + 2, IMG_SIZE + 2, C1), jnp.float32),
            pltpu.VMEM((B, IMG_SIZE + 2, IMG_SIZE + 2, C2), jnp.float32),
        ],
    )(z, p["w1"], p["b1"],
      p["wc1"], p["bc1"], p["g1"], p["bt1"],
      p["wc2"], p["bc2"], p["g2"], p["bt2"],
      p["wc3t"], p["bc3t"])
    # (B, C, H*W) is already NCHW element order -> free trailing-dim reshape.
    return out.reshape(B, CHANNELS, IMG_SIZE, IMG_SIZE)


# ---------------- parameters ----------------
def init_params(key):
    ks = jax.random.split(key, 8)
    p = {}
    O = C1 * INIT_SIZE ** 2                            # 512
    p["w1"] = jax.random.normal(ks[0], (LATENT_DIM, O), jnp.float32) * 0.05
    p["b1"] = jax.random.normal(ks[1], (1, O), jnp.float32) * 0.05
    p["wc1"] = jax.random.normal(ks[2], (9 * C1, C1), jnp.float32) * 0.05
    p["bc1"] = jax.random.normal(ks[3], (1, C1), jnp.float32) * 0.05
    p["g1"], p["bt1"] = jnp.ones((1, C1), jnp.float32), jnp.zeros((1, C1), jnp.float32)
    p["wc2"] = jax.random.normal(ks[4], (9 * C1, C2), jnp.float32) * 0.05
    p["bc2"] = jax.random.normal(ks[5], (1, C2), jnp.float32) * 0.05
    p["g2"], p["bt2"] = jnp.ones((1, C2), jnp.float32), jnp.zeros((1, C2), jnp.float32)
    p["wc3t"] = jax.random.normal(ks[6], (CHANNELS, 9 * C2), jnp.float32) * 0.05
    p["bc3t"] = jax.random.normal(ks[7], (CHANNELS, 1), jnp.float32) * 0.05
    return p


# ---------------- pure-JAX f32 reference (correctness check) ----------------
def reference_forward(z, p):
    B = z.shape[0]
    out = z @ p["w1"] + p["b1"]
    x = out.reshape(B, INIT_SIZE, INIT_SIZE, C1)       # NHWC (w1 columns are (h,w,c))

    def conv(x, wflat, cin, cout):
        w4 = wflat.reshape(3, 3, cin, cout)
        return jax.lax.conv_general_dilated(
            x, w4, (1, 1), "SAME", dimension_numbers=("NHWC", "HWIO", "NHWC"))

    def bn_lrelu(x, b, g, bt):
        x = x + b.reshape(1, 1, 1, -1)
        m = x.mean(axis=(0, 1, 2), keepdims=True)
        v = ((x - m) ** 2).mean(axis=(0, 1, 2), keepdims=True)
        y = (x - m) * jax.lax.rsqrt(v + BN_EPS) * g.reshape(1, 1, 1, -1) + bt.reshape(1, 1, 1, -1)
        return jnp.where(y > 0, y, LRELU_SLOPE * y)

    up = lambda a: jnp.repeat(jnp.repeat(a, 2, axis=1), 2, axis=2)

    x = bn_lrelu(conv(up(x), p["wc1"], C1, C1), p["bc1"], p["g1"], p["bt1"])
    x = bn_lrelu(conv(up(x), p["wc2"], C1, C2), p["bc2"], p["g2"], p["bt2"])
    w3 = p["wc3t"].T.reshape(3, 3, C2, CHANNELS)
    x = jnp.tanh(
        jax.lax.conv_general_dilated(
            x, w3, (1, 1), "SAME", dimension_numbers=("NHWC", "HWIO", "NHWC"))
        + p["bc3t"].reshape(1, 1, 1, CHANNELS))
    return x.transpose(0, 3, 1, 2)                     # NCHW


if __name__ == "__main__":
    key = jax.random.PRNGKey(0)
    kp, kz = jax.random.split(key)
    params = init_params(kp)
    B = 2
    z = jax.random.normal(kz, (B, LATENT_DIM), jnp.float32)

    img = generator_forward(z, params)
    jax.block_until_ready(img)
    assert img.shape == (B, CHANNELS, IMG_SIZE, IMG_SIZE), img.shape

    ref = reference_forward(z, params)
    err = float(jnp.max(jnp.abs(img - ref)))
    # bf16 matmul operands with f32 accumulation -> small tolerance vs f32 reference.
    assert jnp.allclose(img, ref, rtol=2e-2, atol=2e-2), f"max abs err = {err}"

    print("KERNEL_OK")
</pallas_src>

<mosaic_0001>
module attributes {stable_mosaic.version = 11 : i64} {
  func.func @generator_kernel(%arg0: memref<2x32xf32, #tpu.memory_space<vmem>>, %arg1: memref<32x512xf32, #tpu.memory_space<vmem>>, %arg2: memref<1x512xf32, #tpu.memory_space<vmem>>, %arg3: memref<288x32xf32, #tpu.memory_space<vmem>>, %arg4: memref<1x32xf32, #tpu.memory_space<vmem>>, %arg5: memref<1x32xf32, #tpu.memory_space<vmem>>, %arg6: memref<1x32xf32, #tpu.memory_space<vmem>>, %arg7: memref<288x16xf32, #tpu.memory_space<vmem>>, %arg8: memref<1x16xf32, #tpu.memory_space<vmem>>, %arg9: memref<1x16xf32, #tpu.memory_space<vmem>>, %arg10: memref<1x16xf32, #tpu.memory_space<vmem>>, %arg11: memref<3x144xf32, #tpu.memory_space<vmem>>, %arg12: memref<3x1xf32, #tpu.memory_space<vmem>>, %arg13: memref<2x3x256xf32, #tpu.memory_space<vmem>>, %arg14: memref<2x10x10x32xf32, #tpu.memory_space<vmem>>, %arg15: memref<2x18x18x32xf32, #tpu.memory_space<vmem>>, %arg16: memref<2x18x18x16xf32, #tpu.memory_space<vmem>>) attributes {dimension_semantics = [], scalar_prefetch = 0 : i64, scratch_operands = 3 : i64, tpu.core_type = #tpu.core_type<tc>} {
    %c0 = arith.constant 0 : index
    %c0_0 = arith.constant 0 : index
    %0 = vector.load %arg0[%c0, %c0_0] : memref<2x32xf32, #tpu.memory_space<vmem>>, vector<2x32xf32>
    %1 = arith.truncf %0 : vector<2x32xf32> to vector<2x32xbf16>
    %c0_1 = arith.constant 0 : index
    %c0_2 = arith.constant 0 : index
    %2 = vector.load %arg1[%c0_1, %c0_2] : memref<32x512xf32, #tpu.memory_space<vmem>>, vector<32x512xf32>
    %3 = arith.truncf %2 : vector<32x512xf32> to vector<32x512xbf16>
    %cst = arith.constant dense<0.000000e+00> : vector<2x512xf32>
    %4 = tpu.matmul %1, %3, %cst {dimension_numbers = #tpu.dot_dimension_numbers<[1], [0], [0], [1], [0, 0, 1, 1], [], []>} : vector<2x32xbf16>, vector<32x512xbf16>, vector<2x512xf32> -> vector<2x512xf32>
    %c0_3 = arith.constant 0 : index
    %c0_4 = arith.constant 0 : index
    %5 = vector.load %arg2[%c0_3, %c0_4] : memref<1x512xf32, #tpu.memory_space<vmem>>, vector<1x512xf32>
    %6 = vector.broadcast %5 : vector<1x512xf32> to vector<2x512xf32>
    %7 = arith.addf %4, %6 : vector<2x512xf32>
    %cst_5 = arith.constant 0.000000e+00 : f32
    %8 = vector.broadcast %cst_5 : f32 to vector<2x10x10x32xf32>
    %c0_6 = arith.constant 0 : index
    %c0_7 = arith.constant 0 : index
    %c0_8 = arith.constant 0 : index
    %c0_9 = arith.constant 0 : index
    %9 = vector.load %arg14[%c0_6, %c0_7, %c0_8, %c0_9] : memref<2x10x10x32xf32, #tpu.memory_space<vmem>>, vector<2x10x10x32xf32>
    tpu.vector_store %arg14[%c0_6, %c0_7, %c0_8, %c0_9], %8 {strides = array<i32>} : memref<2x10x10x32xf32, #tpu.memory_space<vmem>>, vector<2x10x10x32xf32>,
    %10 = vector.extract_strided_slice %7 {offsets = [0, 0], sizes = [2, 32], strides = [1, 1]} : vector<2x512xf32> to vector<2x32xf32>
    %11 = vector.shape_cast %10 : vector<2x32xf32> to vector<2x1x1x32xf32>
    %12 = vector.shape_cast %11 : vector<2x1x1x32xf32> to vector<2x1x1x32xf32>
    %13 = vector.broadcast %12 : vector<2x1x1x32xf32> to vector<2x2x2x32xf32>
    %c0_10 = arith.constant 0 : index
    %c1 = arith.constant 1 : index
    %c1_11 = arith.constant 1 : index
    %c0_12 = arith.constant 0 : index
    %14 = vector.load %arg14[%c0_10, %c1, %c1_11, %c0_12] : memref<2x10x10x32xf32, #tpu.memory_space<vmem>>, vector<2x2x2x32xf32>
    tpu.vector_store %arg14[%c0_10, %c1, %c1_11, %c0_12], %13 {strides = array<i32>} : memref<2x10x10x32xf32, #tpu.memory_space<vmem>>, vector<2x2x2x32xf32>,
    %15 = vector.extract_strided_slice %7 {offsets = [0, 32], sizes = [2, 32], strides = [1, 1]} : vector<2x512xf32> to vector<2x32xf32>
    %16 = vector.shape_cast %15 : vector<2x32xf32> to vector<2x1x1x32xf32>
    %17 = vector.shape_cast %16 : vector<2x1x1x32xf32> to vector<2x1x1x32xf32>
    %18 = vector.broadcast %17 : vector<2x1x1x32xf32> to vector<2x2x2x32xf32>
    %c0_13 = arith.constant 0 : index
    %c1_14 = arith.constant 1 : index
    %c3 = arith.constant 3 : index
    %c0_15 = arith.constant 0 : index
    %19 = vector.load %arg14[%c0_13, %c1_14, %c3, %c0_15] : memref<2x10x10x32xf32, #tpu.memory_space<vmem>>, vector<2x2x2x32xf32>
    tpu.vector_store %arg14[%c0_13, %c1_14, %c3, %c0_15], %18 {strides = array<i32>} : memref<2x10x10x32xf32, #tpu.memory_space<vmem>>, vector<2x2x2x32xf32>,
    %20 = vector.extract_strided_slice %7 {offsets = [0, 64], sizes = [2, 32], strides = [1, 1]} : vector<2x512xf32> to vector<2x32xf32>
    %21 = vector.shape_cast %20 : vector<2x32xf32> to vector<2x1x1x32xf32>
    %22 = vector.shape_cast %21 : vector<2x1x1x32xf32> to vector<2x1x1x32xf32>
    %23 = vector.broadcast %22 : vector<2x1x1x32xf32> to vector<2x2x2x32xf32>
    %c0_16 = arith.constant 0 : index
    %c1_17 = arith.constant 1 : index
    %c5 = arith.constant 5 : index
    %c0_18 = arith.constant 0 : index
    %24 = vector.load %arg14[%c0_16, %c1_17, %c5, %c0_18] : memref<2x10x10x32xf32, #tpu.memory_space<vmem>>, vector<2x2x2x32xf32>
    tpu.vector_store %arg14[%c0_16, %c1_17, %c5, %c0_18], %23 {strides = array<i32>} : memref<2x10x10x32xf32, #tpu.memory_space<vmem>>, vector<2x2x2x32xf32>,
    %25 = vector.extract_strided_slice %7 {offsets = [0, 96], sizes = [2, 32], strides = [1, 1]} : vector<2x512xf32> to vector<2x32xf32>
    %26 = vector.shape_cast %25 : vector<2x32xf32> to vector<2x1x1x32xf32>
    %27 = vector.shape_cast %26 : vector<2x1x1x32xf32> to vector<2x1x1x32xf32>
    %28 = vector.broadcast %27 : vector<2x1x1x32xf32> to vector<2x2x2x32xf32>
    %c0_19 = arith.constant 0 : index
    %c1_20 = arith.constant 1 : index
    %c7 = arith.constant 7 : index
    %c0_21 = arith.constant 0 : index
    %29 = vector.load %arg14[%c0_19, %c1_20, %c7, %c0_21] : memref<2x10x10x32xf32, #tpu.memory_space<vmem>>, vector<2x2x2x32xf32>
    tpu.vector_store %arg14[%c0_19, %c1_20, %c7, %c0_21], %28 {strides = array<i32>} : memref<2x10x10x32xf32, #tpu.memory_space<vmem>>, vector<2x2x2x32xf32>,
    %30 = vector.extract_strided_slice %7 {offsets = [0, 128], sizes = [2, 32], strides = [1, 1]} : vector<2x512xf32> to vector<2x32xf32>
    %31 = vector.shape_cast %30 : vector<2x32xf32> to vector<2x1x1x32xf32>
    %32 = vector.shape_cast %31 : vector<2x1x1x32xf32> to vector<2x1x1x32xf32>
    %33 = vector.broadcast %32 : vector<2x1x1x32xf32> to vector<2x2x2x32xf32>
    %c0_22 = arith.constant 0 : index
    %c3_23 = arith.constant 3 : index
    %c1_24 = arith.constant 1 : index
    %c0_25 = arith.constant 0 : index
    %34 = vector.load %arg14[%c0_22, %c3_23, %c1_24, %c0_25] : memref<2x10x10x32xf32, #tpu.memory_space<vmem>>, vector<2x2x2x32xf32>
    tpu.vector_store %arg14[%c0_22, %c3_23, %c1_24, %c0_25], %33 {strides = array<i32>} : memref<2x10x10x32xf32, #tpu.memory_space<vmem>>, vector<2x2x2x32xf32>,
    %35 = vector.extract_strided_slice %7 {offsets = [0, 160], sizes = [2, 32], strides = [1, 1]} : vector<2x512xf32> to vector<2x32xf32>
    %36 = vector.shape_cast %35 : vector<2x32xf32> to vector<2x1x1x32xf32>
    %37 = vector.shape_cast %36 : vector<2x1x1x32xf32> to vector<2x1x1x32xf32>
    %38 = vector.broadcast %37 : vector<2x1x1x32xf32> to vector<2x2x2x32xf32>
    %c0_26 = arith.constant 0 : index
    %c3_27 = arith.constant 3 : index
    %c3_28 = arith.constant 3 : index
    %c0_29 = arith.constant 0 : index
    %39 = vector.load %arg14[%c0_26, %c3_27, %c3_28, %c0_29] : memref<2x10x10x32xf32, #tpu.memory_space<vmem>>, vector<2x2x2x32xf32>
    tpu.vector_store %arg14[%c0_26, %c3_27, %c3_28, %c0_29], %38 {strides = array<i32>} : memref<2x10x10x32xf32, #tpu.memory_space<vmem>>, vector<2x2x2x32xf32>,
    %40 = vector.extract_strided_slice %7 {offsets = [0, 192], sizes = [2, 32], strides = [1, 1]} : vector<2x512xf32> to vector<2x32xf32>
    %41 = vector.shape_cast %40 : vector<2x32xf32> to vector<2x1x1x32xf32>
    %42 = vector.shape_cast %41 : vector<2x1x1x32xf32> to vector<2x1x1x32xf32>
    %43 = vector.broadcast %42 : vector<2x1x1x32xf32> to vector<2x2x2x32xf32>
    %c0_30 = arith.constant 0 : index
    %c3_31 = arith.constant 3 : index
    %c5_32 = arith.constant 5 : index
    %c0_33 = arith.constant 0 : index
    %44 = vector.load %arg14[%c0_30, %c3_31, %c5_32, %c0_33] : memref<2x10x10x32xf32, #tpu.memory_space<vmem>>, vector<2x2x2x32xf32>
    tpu.vector_store %arg14[%c0_30, %c3_31, %c5_32, %c0_33], %43 {strides = array<i32>} : memref<2x10x10x32xf32, #tpu.memory_space<vmem>>, vector<2x2x2x32xf32>,
    %45 = vector.extract_strided_slice %7 {offsets = [0, 224], sizes = [2, 32], strides = [1, 1]} : vector<2x512xf32> to vector<2x32xf32>
    %46 = vector.shape_cast %45 : vector<2x32xf32> to vector<2x1x1x32xf32>
    %47 = vector.shape_cast %46 : vector<2x1x1x32xf32> to vector<2x1x1x32xf32>
    %48 = vector.broadcast %47 : vector<2x1x1x32xf32> to vector<2x2x2x32xf32>
    %c0_34 = arith.constant 0 : index
    %c3_35 = arith.constant 3 : index
    %c7_36 = arith.constant 7 : index
    %c0_37 = arith.constant 0 : index
    %49 = vector.load %arg14[%c0_34, %c3_35, %c7_36, %c0_37] : memref<2x10x10x32xf32, #tpu.memory_space<vmem>>, vector<2x2x2x32xf32>
    tpu.vector_store %arg14[%c0_34, %c3_35, %c7_36, %c0_37], %48 {strides = array<i32>} : memref<2x10x10x32xf32, #tpu.memory_space<vmem>>, vector<2x2x2x32xf32>,
    %50 = vector.extract_strided_slice %7 {offsets = [0, 256], sizes = [2, 32], strides = [1, 1]} : vector<2x512xf32> to vector<2x32xf32>
    %51 = vector.shape_cast %50 : vector<2x32xf32> to vector<2x1x1x32xf32>
    %52 = vector.shape_cast %51 : vector<2x1x1x32xf32> to vector<2x1x1x32xf32>
    %53 = vector.broadcast %52 : vector<2x1x1x32xf32> to vector<2x2x2x32xf32>
    %c0_38 = arith.constant 0 : index
    %c5_39 = arith.constant 5 : index
    %c1_40 = arith.constant 1 : index
    %c0_41 = arith.constant 0 : index
    %54 = vector.load %arg14[%c0_38, %c5_39, %c1_40, %c0_41] : memref<2x10x10x32xf32, #tpu.memory_space<vmem>>, vector<2x2x2x32xf32>
    tpu.vector_store %arg14[%c0_38, %c5_39, %c1_40, %c0_41], %53 {strides = array<i32>} : memref<2x10x10x32xf32, #tpu.memory_space<vmem>>, vector<2x2x2x32xf32>,
    %55 = vector.extract_strided_slice %7 {offsets = [0, 288], sizes = [2, 32], strides = [1, 1]} : vector<2x512xf32> to vector<2x32xf32>
    %56 = vector.shape_cast %55 : vector<2x32xf32> to vector<2x1x1x32xf32>
    %57 = vector.shape_cast %56 : vector<2x1x1x32xf32> to vector<2x1x1x32xf32>
    %58 = vector.broadcast %57 : vector<2x1x1x32xf32> to vector<2x2x2x32xf32>
    %c0_42 = arith.constant 0 : index
    %c5_43 = arith.constant 5 : index
    %c3_44 = arith.constant 3 : index
    %c0_45 = arith.constant 0 : index
    %59 = vector.load %arg14[%c0_42, %c5_43, %c3_44, %c0_45] : memref<2x10x10x32xf32, #tpu.memory_space<vmem>>, vector<2x2x2x32xf32>
    tpu.vector_store %arg14[%c0_42, %c5_43, %c3_44, %c0_45], %58 {strides = array<i32>} : memref<2x10x10x32xf32, #tpu.memory_space<vmem>>, vector<2x2x2x32xf32>,
    %60 = vector.extract_strided_slice %7 {offsets = [0, 320], sizes = [2, 32], strides = [1, 1]} : vector<2x512xf32> to vector<2x32xf32>
    %61 = vector.shape_cast %60 : vector<2x32xf32> to vector<2x1x1x32xf32>
    %62 = vector.shape_cast %61 : vector<2x1x1x32xf32> to vector<2x1x1x32xf32>
    %63 = vector.broadcast %62 : vector<2x1x1x32xf32> to vector<2x2x2x32xf32>
    %c0_46 = arith.constant 0 : index
    %c5_47 = arith.constant 5 : index
    %c5_48 = arith.constant 5 : index
    %c0_49 = arith.constant 0 : index
    %64 = vector.load %arg14[%c0_46, %c5_47, %c5_48, %c0_49] : memref<2x10x10x32xf32, #tpu.memory_space<vmem>>, vector<2x2x2x32xf32>
    tpu.vector_store %arg14[%c0_46, %c5_47, %c5_48, %c0_49], %63 {strides = array<i32>} : memref<2x10x10x32xf32, #tpu.memory_space<vmem>>, vector<2x2x2x32xf32>,
    %65 = vector.extract_strided_slice %7 {offsets = [0, 352], sizes = [2, 32], strides = [1, 1]} : vector<2x512xf32> to vector<2x32xf32>
    %66 = vector.shape_cast %65 : vector<2x32xf32> to vector<2x1x1x32xf32>
    %67 = vector.shape_cast %66 : vector<2x1x1x32xf32> to vector<2x1x1x32xf32>
    %68 = vector.broadcast %67 : vector<2x1x1x32xf32> to vector<2x2x2x32xf32>
    %c0_50 = arith.constant 0 : index
    %c5_51 = arith.constant 5 : index
    %c7_52 = arith.constant 7 : index
    %c0_53 = arith.constant 0 : index
    %69 = vector.load %arg14[%c0_50, %c5_51, %c7_52, %c0_53] : memref<2x10x10x32xf32, #tpu.memory_space<vmem>>, vector<2x2x2x32xf32>
    tpu.vector_store %arg14[%c0_50, %c5_51, %c7_52, %c0_53], %68 {strides = array<i32>} : memref<2x10x10x32xf32, #tpu.memory_space<vmem>>, vector<2x2x2x32xf32>,
    %70 = vector.extract_strided_slice %7 {offsets = [0, 384], sizes = [2, 32], strides = [1, 1]} : vector<2x512xf32> to vector<2x32xf32>
    %71 = vector.shape_cast %70 : vector<2x32xf32> to vector<2x1x1x32xf32>
    %72 = vector.shape_cast %71 : vector<2x1x1x32xf32> to vector<2x1x1x32xf32>
    %73 = vector.broadcast %72 : vector<2x1x1x32xf32> to vector<2x2x2x32xf32>
    %c0_54 = arith.constant 0 : index
    %c7_55 = arith.constant 7 : index
    %c1_56 = arith.constant 1 : index
    %c0_57 = arith.constant 0 : index
    %74 = vector.load %arg14[%c0_54, %c7_55, %c1_56, %c0_57] : memref<2x10x10x32xf32, #tpu.memory_space<vmem>>, vector<2x2x2x32xf32>
    tpu.vector_store %arg14[%c0_54, %c7_55, %c1_56, %c0_57], %73 {strides = array<i32>} : memref<2x10x10x32xf32, #tpu.memory_space<vmem>>, vector<2x2x2x32xf32>,
    %75 = vector.extract_strided_slice %7 {offsets = [0, 416], sizes = [2, 32], strides = [1, 1]} : vector<2x512xf32> to vector<2x32xf32>
    %76 = vector.shape_cast %75 : vector<2x32xf32> to vector<2x1x1x32xf32>
    %77 = vector.shape_cast %76 : vector<2x1x1x32xf32> to vector<2x1x1x32xf32>
    %78 = vector.broadcast %77 : vector<2x1x1x32xf32> to vector<2x2x2x32xf32>
    %c0_58 = arith.constant 0 : index
    %c7_59 = arith.constant 7 : index
    %c3_60 = arith.constant 3 : index
    %c0_61 = arith.constant 0 : index
    %79 = vector.load %arg14[%c0_58, %c7_59, %c3_60, %c0_61] : memref<2x10x10x32xf32, #tpu.memory_space<vmem>>, vector<2x2x2x32xf32>
    tpu.vector_store %arg14[%c0_58, %c7_59, %c3_60, %c0_61], %78 {strides = array<i32>} : memref<2x10x10x32xf32, #tpu.memory_space<vmem>>, vector<2x2x2x32xf32>,
    %80 = vector.extract_strided_slice %7 {offsets = [0, 448], sizes = [2, 32], strides = [1, 1]} : vector<2x512xf32> to vector<2x32xf32>
    %81 = vector.shape_cast %80 : vector<2x32xf32> to vector<2x1x1x32xf32>
    %82 = vector.shape_cast %81 : vector<2x1x1x32xf32> to vector<2x1x1x32xf32>
    %83 = vector.broadcast %82 : vector<2x1x1x32xf32> to vector<2x2x2x32xf32>
    %c0_62 = arith.constant 0 : index
    %c7_63 = arith.constant 7 : index
    %c5_64 = arith.constant 5 : index
    %c0_65 = arith.constant 0 : index
    %84 = vector.load %arg14[%c0_62, %c7_63, %c5_64, %c0_65] : memref<2x10x10x32xf32, #tpu.memory_space<vmem>>, vector<2x2x2x32xf32>
    tpu.vector_store %arg14[%c0_62, %c7_63, %c5_64, %c0_65], %83 {strides = array<i32>} : memref<2x10x10x32xf32, #tpu.memory_space<vmem>>, vector<2x2x2x32xf32>,
    %85 = vector.extract_strided_slice %7 {offsets = [0, 480], sizes = [2, 32], strides = [1, 1]} : vector<2x512xf32> to vector<2x32xf32>
    %86 = vector.shape_cast %85 : vector<2x32xf32> to vector<2x1x1x32xf32>
    %87 = vector.shape_cast %86 : vector<2x1x1x32xf32> to vector<2x1x1x32xf32>
    %88 = vector.broadcast %87 : vector<2x1x1x32xf32> to vector<2x2x2x32xf32>
    %c0_66 = arith.constant 0 : index
    %c7_67 = arith.constant 7 : index
    %c7_68 = arith.constant 7 : index
    %c0_69 = arith.constant 0 : index
    %89 = vector.load %arg14[%c0_66, %c7_67, %c7_68, %c0_69] : memref<2x10x10x32xf32, #tpu.memory_space<vmem>>, vector<2x2x2x32xf32>
    tpu.vector_store %arg14[%c0_66, %c7_67, %c7_68, %c0_69], %88 {strides = array<i32>} : memref<2x10x10x32xf32, #tpu.memory_space<vmem>>, vector<2x2x2x32xf32>,
    %c0_70 = arith.constant 0 : index
    %c0_71 = arith.constant 0 : index
    %c0_72 = arith.constant 0 : index
    %c0_73 = arith.constant 0 : index
    %90 = vector.load %arg14[%c0_70, %c0_71, %c0_72, %c0_73] : memref<2x10x10x32xf32, #tpu.memory_space<vmem>>, vector<2x8x8x32xf32>
    %91 = vector.shape_cast %90 : vector<2x8x8x32xf32> to vector<128x32xf32>
    %c0_74 = arith.constant 0 : index
    %c0_75 = arith.constant 0 : index
    %c1_76 = arith.constant 1 : index
    %c0_77 = arith.constant 0 : index
    %92 = vector.load %arg14[%c0_74, %c0_75, %c1_76, %c0_77] : memref<2x10x10x32xf32, #tpu.memory_space<vmem>>, vector<2x8x8x32xf32>
    %93 = vector.shape_cast %92 : vector<2x8x8x32xf32> to vector<128x32xf32>
    %c0_78 = arith.constant 0 : index
    %c0_79 = arith.constant 0 : index
    %c2 = arith.constant 2 : index
    %c0_80 = arith.constant 0 : index
    %94 = vector.load %arg14[%c0_78, %c0_79, %c2, %c0_80] : memref<2x10x10x32xf32, #tpu.memory_space<vmem>>, vector<2x8x8x32xf32>
    %95 = vector.shape_cast %94 : vector<2x8x8x32xf32> to vector<128x32xf32>
    %c0_81 = arith.constant 0 : index
    %c1_82 = arith.constant 1 : index
    %c0_83 = arith.constant 0 : index
    %c0_84 = arith.constant 0 : index
    %96 = vector.load %arg14[%c0_81, %c1_82, %c0_83, %c0_84] : memref<2x10x10x32xf32, #tpu.memory_space<vmem>>, vector<2x8x8x32xf32>
    %97 = vector.shape_cast %96 : vector<2x8x8x32xf32> to vector<128x32xf32>
    %c0_85 = arith.constant 0 : index
    %c1_86 = arith.constant 1 : index
    %c1_87 = arith.constant 1 : index
    %c0_88 = arith.constant 0 : index
    %98 = vector.load %arg14[%c0_85, %c1_86, %c1_87, %c0_88] : memref<2x10x10x32xf32, #tpu.memory_space<vmem>>, vector<2x8x8x32xf32>
    %99 = vector.shape_cast %98 : vector<2x8x8x32xf32> to vector<128x32xf32>
    %c0_89 = arith.constant 0 : index
    %c1_90 = arith.constant 1 : index
    %c2_91 = arith.constant 2 : index
    %c0_92 = arith.constant 0 : index
    %100 = vector.load %arg14[%c0_89, %c1_90, %c2_91, %c0_92] : memref<2x10x10x32xf32, #tpu.memory_space<vmem>>, vector<2x8x8x32xf32>
    %101 = vector.shape_cast %100 : vector<2x8x8x32xf32> to vector<128x32xf32>
    %c0_93 = arith.constant 0 : index
    %c2_94 = arith.constant 2 : index
    %c0_95 = arith.constant 0 : index
    %c0_96 = arith.constant 0 : index
    %102 = vector.load %arg14[%c0_93, %c2_94, %c0_95, %c0_96] : memref<2x10x10x32xf32, #tpu.memory_space<vmem>>, vector<2x8x8x32xf32>
    %103 = vector.shape_cast %102 : vector<2x8x8x32xf32> to vector<128x32xf32>
    %c0_97 = arith.constant 0 : index
    %c2_98 = arith.constant 2 : index
    %c1_99 = arith.constant 1 : index
    %c0_100 = arith.constant 0 : index
    %104 = vector.load %arg14[%c0_97, %c2_98, %c1_99, %c0_100] : memref<2x10x10x32xf32, #tpu.memory_space<vmem>>, vector<2x8x8x32xf32>
    %105 = vector.shape_cast %104 : vector<2x8x8x32xf32> to vector<128x32xf32>
    %c0_101 = arith.constant 0 : index
    %c2_102 = arith.constant 2 : index
    %c2_103 = arith.constant 2 : index
    %c0_104 = arith.constant 0 : index
    %106 = vector.load %arg14[%c0_101, %c2_102, %c2_103, %c0_104] : memref<2x10x10x32xf32, #tpu.memory_space<vmem>>, vector<2x8x8x32xf32>
    %107 = vector.shape_cast %106 : vector<2x8x8x32xf32> to vector<128x32xf32>
    %108 = tpu.concatenate %91, %93, %95, %97, %99, %101, %103, %105, %107 in 1 : vector<128x32xf32>, vector<128x32xf32>, vector<128x32xf32>, vector<128x32xf32>, vector<128x32xf32>, vector<128x32xf32>, vector<128x32xf32>, vector<128x32xf32>, vector<128x32xf32> -> vector<128x288xf32>
    %109 = arith.truncf %108 : vector<128x288xf32> to vector<128x288xbf16>
    %c0_105 = arith.constant 0 : index
    %c0_106 = arith.constant 0 : index
    %110 = vector.load %arg3[%c0_105, %c0_106] : memref<288x32xf32, #tpu.memory_space<vmem>>, vector<288x32xf32>
    %111 = arith.truncf %110 : vector<288x32xf32> to vector<288x32xbf16>
    %cst_107 = arith.constant dense<0.000000e+00> : vector<128x32xf32>
    %112 = tpu.matmul %109, %111, %cst_107 {dimension_numbers = #tpu.dot_dimension_numbers<[1], [0], [0], [1], [0, 0, 1, 1], [], []>} : vector<128x288xbf16>, vector<288x32xbf16>, vector<128x32xf32> -> vector<128x32xf32>
    %c0_108 = arith.constant 0 : index
    %c0_109 = arith.constant 0 : index
    %113 = vector.load %arg4[%c0_108, %c0_109] : memref<1x32xf32, #tpu.memory_space<vmem>>, vector<1x32xf32>
    %114 = vector.broadcast %113 : vector<1x32xf32> to vector<128x32xf32>
    %115 = arith.addf %112, %114 : vector<128x32xf32>
    %c0_110 = arith.constant 0 : index
    %c0_111 = arith.constant 0 : index
    %116 = vector.load %arg5[%c0_110, %c0_111] : memref<1x32xf32, #tpu.memory_space<vmem>>, vector<1x32xf32>
    %c0_112 = arith.constant 0 : index
    %c0_113 = arith.constant 0 : index
    %117 = vector.load %arg6[%c0_112, %c0_113] : memref<1x32xf32, #tpu.memory_space<vmem>>, vector<1x32xf32>
    %cst_114 = arith.constant dense<0.000000e+00> : vector<32xf32>
    %118 = vector.multi_reduction <add>, %115, %cst_114 [0] : vector<128x32xf32> to vector<32xf32>
    %119 = vector.shape_cast %118 : vector<32xf32> to vector<1x32xf32>
    %120 = arith.mulf %115, %115 : vector<128x32xf32>
    %cst_115 = arith.constant dense<0.000000e+00> : vector<32xf32>
    %121 = vector.multi_reduction <add>, %120, %cst_115 [0] : vector<128x32xf32> to vector<32xf32>
    %122 = vector.shape_cast %121 : vector<32xf32> to vector<1x32xf32>
    %cst_116 = arith.constant 7.812500e-03 : f32
    %123 = vector.broadcast %cst_116 : f32 to vector<1x32xf32>
    %124 = arith.mulf %119, %123 : vector<1x32xf32>
    %cst_117 = arith.constant 7.812500e-03 : f32
    %125 = vector.broadcast %cst_117 : f32 to vector<1x32xf32>
    %126 = arith.mulf %122, %125 : vector<1x32xf32>
    %127 = arith.mulf %124, %124 : vector<1x32xf32>
    %128 = arith.subf %126, %127 : vector<1x32xf32>
    %129 = vector.broadcast %124 : vector<1x32xf32> to vector<128x32xf32>
    %130 = arith.subf %115, %129 : vector<128x32xf32>
    %cst_118 = arith.constant 8.000000e-01 : f32
    %131 = vector.broadcast %cst_118 : f32 to vector<1x32xf32>
    %132 = arith.addf %128, %131 : vector<1x32xf32>
    %133 = math.rsqrt %132 : vector<1x32xf32>
    %134 = vector.broadcast %133 : vector<1x32xf32> to vector<128x32xf32>
    %135 = arith.mulf %130, %134 : vector<128x32xf32>
    %136 = vector.broadcast %116 : vector<1x32xf32> to vector<128x32xf32>
    %137 = arith.mulf %135, %136 : vector<128x32xf32>
    %138 = vector.broadcast %117 : vector<1x32xf32> to vector<128x32xf32>
    %139 = arith.addf %137, %138 : vector<128x32xf32>
    %cst_119 = arith.constant 0.000000e+00 : f32
    %140 = vector.broadcast %cst_119 : f32 to vector<128x32xf32>
    %141 = arith.cmpf ogt, %139, %140 : vector<128x32xf32>
    %cst_120 = arith.constant 2.000000e-01 : f32
    %142 = vector.broadcast %cst_120 : f32 to vector<128x32xf32>
    %143 = arith.mulf %142, %139 : vector<128x32xf32>
    %144 = arith.select %141, %139, %143 : vector<128x32xi1>, vector<128x32xf32>
    %cst_121 = arith.constant 0.000000e+00 : f32
    %145 = vector.broadcast %cst_121 : f32 to vector<2x18x18x32xf32>
    %c0_122 = arith.constant 0 : index
    %c0_123 = arith.constant 0 : index
    %c0_124 = arith.constant 0 : index
    %c0_125 = arith.constant 0 : index
    %146 = vector.load %arg15[%c0_122, %c0_123, %c0_124, %c0_125] : memref<2x18x18x32xf32, #tpu.memory_space<vmem>>, vector<2x18x18x32xf32>
    tpu.vector_store %arg15[%c0_122, %c0_123, %c0_124, %c0_125], %145 {strides = array<i32>} : memref<2x18x18x32xf32, #tpu.memory_space<vmem>>, vector<2x18x18x32xf32>,
    %147 = vector.shape_cast %144 : vector<128x32xf32> to vector<2x8x8x32xf32>
    %148 = vector.extract_strided_slice %147 {offsets = [0, 0, 0, 0], sizes = [2, 1, 1, 32], strides = [1, 1, 1, 1]} : vector<2x8x8x32xf32> to vector<2x1x1x32xf32>
    %149 = vector.shape_cast %148 : vector<2x1x1x32xf32> to vector<2x32xf32>
    %150 = vector.shape_cast %149 : vector<2x32xf32> to vector<2x1x1x32xf32>
    %151 = vector.shape_cast %150 : vector<2x1x1x32xf32> to vector<2x1x1x32xf32>
    %152 = vector.broadcast %151 : vector<2x1x1x32xf32> to vector<2x2x2x32xf32>
    %c0_126 = arith.constant 0 : index
    %c1_127 = arith.constant 1 : index
    %c1_128 = arith.constant 1 : index
    %c0_129 = arith.constant 0 : index
    %153 = vector.load %arg15[%c0_126, %c1_127, %c1_128, %c0_129] : memref<2x18x18x32xf32, #tpu.memory_space<vmem>>, vector<2x2x2x32xf32>
    tpu.vector_store %arg15[%c0_126, %c1_127, %c1_128, %c0_129], %152 {strides = array<i32>} : memref<2x18x18x32xf32, #tpu.memory_space<vmem>>, vector<2x2x2x32xf32>,
    %154 = vector.extract_strided_slice %147 {offsets = [0, 0, 1, 0], sizes = [2, 1, 1, 32], strides = [1, 1, 1, 1]} : vector<2x8x8x32xf32> to vector<2x1x1x32xf32>
    %155 = vector.shape_cast %154 : vector<2x1x1x32xf32> to vector<2x32xf32>
    %156 = vector.shape_cast %155 : vector<2x32xf32> to vector<2x1x1x32xf32>
    %157 = vector.shape_cast %156 : vector<2x1x1x32xf32> to vector<2x1x1x32xf32>
    %158 = vector.broadcast %157 : vector<2x1x1x32xf32> to vector<2x2x2x32xf32>
    %c0_130 = arith.constant 0 : index
    %c1_131 = arith.constant 1 : index
    %c3_132 = arith.constant 3 : index
    %c0_133 = arith.constant 0 : index
    %159 = vector.load %arg15[%c0_130, %c1_131, %c3_132, %c0_133] : memref<2x18x18x32xf32, #tpu.memory_space<vmem>>, vector<2x2x2x32xf32>
    tpu.vector_store %arg15[%c0_130, %c1_131, %c3_132, %c0_133], %158 {strides = array<i32>} : memref<2x18x18x32xf32, #tpu.memory_space<vmem>>, vector<2x2x2x32xf32>,
    %160 = vector.extract_strided_slice %147 {offsets = [0, 0, 2, 0], sizes = [2, 1, 1, 32], strides = [1, 1, 1, 1]} : vector<2x8x8x32xf32> to vector<2x1x1x32xf32>
    %161 = vector.shape_cast %160 : vector<2x1x1x32xf32> to vector<2x32xf32>
    %162 = vector.shape_cast %161 : vector<2x32xf32> to vector<2x1x1x32xf32>
    %163 = vector.shape_cast %162 : vector<2x1x1x32xf32> to vector<2x1x1x32xf32>
    %164 = vector.broadcast %163 : vector<2x1x1x32xf32> to vector<2x2x2x32xf32>
    %c0_134 = arith.constant 0 : index
    %c1_135 = arith.constant 1 : index
    %c5_136 = arith.constant 5 : index
    %c0_137 = arith.constant 0 : index
    %165 = vector.load %arg15[%c0_134, %c1_135, %c5_136, %c0_137] : memref<2x18x18x32xf32, #tpu.memory_space<vmem>>, vector<2x2x2x32xf32>
    tpu.vector_store %arg15[%c0_134, %c1_135, %c5_136, %c0_137], %164 {strides = array<i32>} : memref<2x18x18x32xf32, #tpu.memory_space<vmem>>, vector<2x2x2x32xf32>,
    %166 = vector.extract_strided_slice %147 {offsets = [0, 0, 3, 0], sizes = [2, 1, 1, 32], strides = [1, 1, 1, 1]} : vector<2x8x8x32xf32> to vector<2x1x1x32xf32>
    %167 = vector.shape_cast %166 : vector<2x1x1x32xf32> to vector<2x32xf32>
    %168 = vector.shape_cast %167 : vector<2x32xf32> to vector<2x1x1x32xf32>
    %169 = vector.shape_cast %168 : vector<2x1x1x32xf32> to vector<2x1x1x32xf32>
    %170 = vector.broadcast %169 : vector<2x1x1x32xf32> to vector<2x2x2x32xf32>
    %c0_138 = arith.constant 0 : index
    %c1_139 = arith.constant 1 : index
    %c7_140 = arith.constant 7 : index
    %c0_141 = arith.constant 0 : index
    %171 = vector.load %arg15[%c0_138, %c1_139, %c7_140, %c0_141] : memref<2x18x18x32xf32, #tpu.memory_space<vmem>>, vector<2x2x2x32xf32>
    tpu.vector_store %arg15[%c0_138, %c1_139, %c7_140, %c0_141], %170 {strides = array<i32>} : memref<2x18x18x32xf32, #tpu.memory_space<vmem>>, vector<2x2x2x32xf32>,
    %172 = vector.extract_strided_slice %147 {offsets = [0, 0, 4, 0], sizes = [2, 1, 1, 32], strides = [1, 1, 1, 1]} : vector<2x8x8x32xf32> to vector<2x1x1x32xf32>
    %173 = vector.shape_cast %172 : vector<2x1x1x32xf32> to vector<2x32xf32>
    %174 = vector.shape_cast %173 : vector<2x32xf32> to vector<2x1x1x32xf32>
    %175 = vector.shape_cast %174 : vector<2x1x1x32xf32> to vector<2x1x1x32xf32>
    %176 = vector.broadcast %175 : vector<2x1x1x32xf32> to vector<2x2x2x32xf32>
    %c0_142 = arith.constant 0 : index
    %c1_143 = arith.constant 1 : index
    %c9 = arith.constant 9 : index
    %c0_144 = arith.constant 0 : index
    %177 = vector.load %arg15[%c0_142, %c1_143, %c9, %c0_144] : memref<2x18x18x32xf32, #tpu.memory_space<vmem>>, vector<2x2x2x32xf32>
    tpu.vector_store %arg15[%c0_142, %c1_143, %c9, %c0_144], %176 {strides = array<i32>} : memref<2x18x18x32xf32, #tpu.memory_space<vmem>>, vector<2x2x2x32xf32>,
    %178 = vector.extract_strided_slice %147 {offsets = [0, 0, 5, 0], sizes = [2, 1, 1, 32], strides = [1, 1, 1, 1]} : vector<2x8x8x32xf32> to vector<2x1x1x32xf32>
    %179 = vector.shape_cast %178 : vector<2x1x1x32xf32> to vector<2x32xf32>
    %180 = vector.shape_cast %179 : vector<2x32xf32> to vector<2x1x1x32xf32>
    %181 = vector.shape_cast %180 : vector<2x1x1x32xf32> to vector<2x1x1x32xf32>
    %182 = vector.broadcast %181 : vector<2x1x1x32xf32> to vector<2x2x2x32xf32>
    %c0_145 = arith.constant 0 : index
    %c1_146 = arith.constant 1 : index
    %c11 = arith.constant 11 : index
    %c0_147 = arith.constant 0 : index
    %183 = vector.load %arg15[%c0_145, %c1_146, %c11, %c0_147] : memref<2x18x18x32xf32, #tpu.memory_space<vmem>>, vector<2x2x2x32xf32>
    tpu.vector_store %arg15[%c0_145, %c1_146, %c11, %c0_147], %182 {strides = array<i32>} : memref<2x18x18x32xf32, #tpu.memory_space<vmem>>, vector<2x2x2x32xf32>,
    %184 = vector.extract_strided_slice %147 {offsets = [0, 0, 6, 0], sizes = [2, 1, 1, 32], strides = [1, 1, 1, 1]} : vector<2x8x8x32xf32> to vector<2x1x1x32xf32>
    %185 = vector.shape_cast %184 : vector<2x1x1x32xf32> to vector<2x32xf32>
    %186 = vector.shape_cast %185 : vector<2x32xf32> to vector<2x1x1x32xf32>
    %187 = vector.shape_cast %186 : vector<2x1x1x32xf32> to vector<2x1x1x32xf32>
    %188 = vector.broadcast %187 : vector<2x1x1x32xf32> to vector<2x2x2x32xf32>
    %c0_148 = arith.constant 0 : index
    %c1_149 = arith.constant 1 : index
    %c13 = arith.constant 13 : index
    %c0_150 = arith.constant 0 : index
    %189 = vector.load %arg15[%c0_148, %c1_149, %c13, %c0_150] : memref<2x18x18x32xf32, #tpu.memory_space<vmem>>, vector<2x2x2x32xf32>
    tpu.vector_store %arg15[%c0_148, %c1_149, %c13, %c0_150], %188 {strides = array<i32>} : memref<2x18x18x32xf32, #tpu.memory_space<vmem>>, vector<2x2x2x32xf32>,
    %190 = vector.extract_strided_slice %147 {offsets = [0, 0, 7, 0], sizes = [2, 1, 1, 32], strides = [1, 1, 1, 1]} : vector<2x8x8x32xf32> to vector<2x1x1x32xf32>
    %191 = vector.shape_cast %190 : vector<2x1x1x32xf32> to vector<2x32xf32>
    %192 = vector.shape_cast %191 : vector<2x32xf32> to vector<2x1x1x32xf32>
    %193 = vector.shape_cast %192 : vector<2x1x1x32xf32> to vector<2x1x1x32xf32>
    %194 = vector.broadcast %193 : vector<2x1x1x32xf32> to vector<2x2x2x32xf32>
    %c0_151 = arith.constant 0 : index
    %c1_152 = arith.constant 1 : index
    %c15 = arith.constant 15 : index
    %c0_153 = arith.constant 0 : index
    %195 = vector.load %arg15[%c0_151, %c1_152, %c15, %c0_153] : memref<2x18x18x32xf32, #tpu.memory_space<vmem>>, vector<2x2x2x32xf32>
    tpu.vector_store %arg15[%c0_151, %c1_152, %c15, %c0_153], %194 {strides = array<i32>} : memref<2x18x18x32xf32, #tpu.memory_space<vmem>>, vector<2x2x2x32xf32>,
    %196 = vector.extract_strided_slice %147 {offsets = [0, 1, 0, 0], sizes = [2, 1, 1, 32], strides = [1, 1, 1, 1]} : vector<2x8x8x32xf32> to vector<2x1x1x32xf32>
    %197 = vector.shape_cast %196 : vector<2x1x1x32xf32> to vector<2x32xf32>
    %198 = vector.shape_cast %197 : vector<2x32xf32> to vector<2x1x1x32xf32>
    %199 = vector.shape_cast %198 : vector<2x1x1x32xf32> to vector<2x1x1x32xf32>
    %200 = vector.broadcast %199 : vector<2x1x1x32xf32> to vector<2x2x2x32xf32>
    %c0_154 = arith.constant 0 : index
    %c3_155 = arith.constant 3 : index
    %c1_156 = arith.constant 1 : index
    %c0_157 = arith.constant 0 : index
    %201 = vector.load %arg15[%c0_154, %c3_155, %c1_156, %c0_157] : memref<2x18x18x32xf32, #tpu.memory_space<vmem>>, vector<2x2x2x32xf32>
    tpu.vector_store %arg15[%c0_154, %c3_155, %c1_156, %c0_157], %200 {strides = array<i32>} : memref<2x18x18x32xf32, #tpu.memory_space<vmem>>, vector<2x2x2x32xf32>,
    %202 = vector.extract_strided_slice %147 {offsets = [0, 1, 1, 0], sizes = [2, 1, 1, 32], strides = [1, 1, 1, 1]} : vector<2x8x8x32xf32> to vector<2x1x1x32xf32>
    %203 = vector.shape_cast %202 : vector<2x1x1x32xf32> to vector<2x32xf32>
    %204 = vector.shape_cast %203 : vector<2x32xf32> to vector<2x1x1x32xf32>
    %205 = vector.shape_cast %204 : vector<2x1x1x32xf32> to vector<2x1x1x32xf32>
    %206 = vector.broadcast %205 : vector<2x1x1x32xf32> to vector<2x2x2x32xf32>
    %c0_158 = arith.constant 0 : index
    %c3_159 = arith.constant 3 : index
    %c3_160 = arith.constant 3 : index
    %c0_161 = arith.constant 0 : index
    %207 = vector.load %arg15[%c0_158, %c3_159, %c3_160, %c0_161] : memref<2x18x18x32xf32, #tpu.memory_space<vmem>>, vector<2x2x2x32xf32>
    tpu.vector_store %arg15[%c0_158, %c3_159, %c3_160, %c0_161], %206 {strides = array<i32>} : memref<2x18x18x32xf32, #tpu.memory_space<vmem>>, vector<2x2x2x32xf32>,
    %208 = vector.extract_strided_slice %147 {offsets = [0, 1, 2, 0], sizes = [2, 1, 1, 32], strides = [1, 1, 1, 1]} : vector<2x8x8x32xf32> to vector<2x1x1x32xf32>
    %209 = vector.shape_cast %208 : vector<2x1x1x32xf32> to vector<2x32xf32>
    %210 = vector.shape_cast %209 : vector<2x32xf32> to vector<2x1x1x32xf32>
    %211 = vector.shape_cast %210 : vector<2x1x1x32xf32> to vector<2x1x1x32xf32>
    %212 = vector.broadcast %211 : vector<2x1x1x32xf32> to vector<2x2x2x32xf32>
    %c0_162 = arith.constant 0 : index
    %c3_163 = arith.constant 3 : index
    %c5_164 = arith.constant 5 : index
    %c0_165 = arith.constant 0 : index
    %213 = vector.load %arg15[%c0_162, %c3_163, %c5_164, %c0_165] : memref<2x18x18x32xf32, #tpu.memory_space<vmem>>, vector<2x2x2x32xf32>
    tpu.vector_store %arg15[%c0_162, %c3_163, %c5_164, %c0_165], %212 {strides = array<i32>} : memref<2x18x18x32xf32, #tpu.memory_space<vmem>>, vector<2x2x2x32xf32>,
    %214 = vector.extract_strided_slice %147 {offsets = [0, 1, 3, 0], sizes = [2, 1, 1, 32], strides = [1, 1, 1, 1]} : vector<2x8x8x32xf32> to vector<2x1x1x32xf32>
    %215 = vector.shape_cast %214 : vector<2x1x1x32xf32> to vector<2x32xf32>
    %216 = vector.shape_cast %215 : vector<2x32xf32> to vector<2x1x1x32xf32>
    %217 = vector.shape_cast %216 : vector<2x1x1x32xf32> to vector<2x1x1x32xf32>
    %218 = vector.broadcast %217 : vector<2x1x1x32xf32> to vector<2x2x2x32xf32>
    %c0_166 = arith.constant 0 : index
    %c3_167 = arith.constant 3 : index
    %c7_168 = arith.constant 7 : index
    %c0_169 = arith.constant 0 : index
    %219 = vector.load %arg15[%c0_166, %c3_167, %c7_168, %c0_169] : memref<2x18x18x32xf32, #tpu.memory_space<vmem>>, vector<2x2x2x32xf32>
    tpu.vector_store %arg15[%c0_166, %c3_167, %c7_168, %c0_169], %218 {strides = array<i32>} : memref<2x18x18x32xf32, #tpu.memory_space<vmem>>, vector<2x2x2x32xf32>,
    %220 = vector.extract_strided_slice %147 {offsets = [0, 1, 4, 0], sizes = [2, 1, 1, 32], strides = [1, 1, 1, 1]} : vector<2x8x8x32xf32> to vector<2x1x1x32xf32>
    %221 = vector.shape_cast %220 : vector<2x1x1x32xf32> to vector<2x32xf32>
    %222 = vector.shape_cast %221 : vector<2x32xf32> to vector<2x1x1x32xf32>
    %223 = vector.shape_cast %222 : vector<2x1x1x32xf32> to vector<2x1x1x32xf32>
    %224 = vector.broadcast %223 : vector<2x1x1x32xf32> to vector<2x2x2x32xf32>
    %c0_170 = arith.constant 0 : index
    %c3_171 = arith.constant 3 : index
    %c9_172 = arith.constant 9 : index
    %c0_173 = arith.constant 0 : index
    %225 = vector.load %arg15[%c0_170, %c3_171, %c9_172, %c0_173] : memref<2x18x18x32xf32, #tpu.memory_space<vmem>>, vector<2x2x2x32xf32>
    tpu.vector_store %arg15[%c0_170, %c3_171, %c9_172, %c0_173], %224 {strides = array<i32>} : memref<2x18x18x32xf32, #tpu.memory_space<vmem>>, vector<2x2x2x32xf32>,
    %226 = vector.extract_strided_slice %147 {offsets = [0, 1, 5, 0], sizes = [2, 1, 1, 32], strides = [1, 1, 1, 1]} : vector<2x8x8x32xf32> to vector<2x1x1x32xf32>
    %227 = vector.shape_cast %226 : vector<2x1x1x32xf32> to vector<2x32xf32>
    %228 = vector.shape_cast %227 : vector<2x32xf32> to vector<2x1x1x32xf32>
    %229 = vector.shape_cast %228 : vector<2x1x1x32xf32> to vector<2x1x1x32xf32>
    %230 = vector.broadcast %229 : vector<2x1x1x32xf32> to vector<2x2x2x32xf32>
    %c0_174 = arith.constant 0 : index
    %c3_175 = arith.constant 3 : index
    %c11_176 = arith.constant 11 : index
    %c0_177 = arith.constant 0 : index
    %231 = vector.load %arg15[%c0_174, %c3_175, %c11_176, %c0_177] : memref<2x18x18x32xf32, #tpu.memory_space<vmem>>, vector<2x2x2x32xf32>
    tpu.vector_store %arg15[%c0_174, %c3_175, %c11_176, %c0_177], %230 {strides = array<i32>} : memref<2x18x18x32xf32, #tpu.memory_space<vmem>>, vector<2x2x2x32xf32>,
    %232 = vector.extract_strided_slice %147 {offsets = [0, 1, 6, 0], sizes = [2, 1, 1, 32], strides = [1, 1, 1, 1]} : vector<2x8x8x32xf32> to vector<2x1x1x32xf32>
    %233 = vector.shape_cast %232 : vector<2x1x1x32xf32> to vector<2x32xf32>
    %234 = vector.shape_cast %233 : vector<2x32xf32> to vector<2x1x1x32xf32>
    %235 = vector.shape_cast %234 : vector<2x1x1x32xf32> to vector<2x1x1x32xf32>
    %236 = vector.broadcast %235 : vector<2x1x1x32xf32> to vector<2x2x2x32xf32>
    %c0_178 = arith.constant 0 : index
    %c3_179 = arith.constant 3 : index
    %c13_180 = arith.constant 13 : index
    %c0_181 = arith.constant 0 : index
    %237 = vector.load %arg15[%c0_178, %c3_179, %c13_180, %c0_181] : memref<2x18x18x32xf32, #tpu.memory_space<vmem>>, vector<2x2x2x32xf32>
    tpu.vector_store %arg15[%c0_178, %c3_179, %c13_180, %c0_181], %236 {strides = array<i32>} : memref<2x18x18x32xf32, #tpu.memory_space<vmem>>, vector<2x2x2x32xf32>,
    %238 = vector.extract_strided_slice %147 {offsets = [0, 1, 7, 0], sizes = [2, 1, 1, 32], strides = [1, 1, 1, 1]} : vector<2x8x8x32xf32> to vector<2x1x1x32xf32>
    %239 = vector.shape_cast %238 : vector<2x1x1x32xf32> to vector<2x32xf32>
    %240 = vector.shape_cast %239 : vector<2x32xf32> to vector<2x1x1x32xf32>
    %241 = vector.shape_cast %240 : vector<2x1x1x32xf32> to vector<2x1x1x32xf32>
    %242 = vector.broadcast %241 : vector<2x1x1x32xf32> to vector<2x2x2x32xf32>
    %c0_182 = arith.constant 0 : index
    %c3_183 = arith.constant 3 : index
    %c15_184 = arith.constant 15 : index
    %c0_185 = arith.constant 0 : index
    %243 = vector.load %arg15[%c0_182, %c3_183, %c15_184, %c0_185] : memref<2x18x18x32xf32, #tpu.memory_space<vmem>>, vector<2x2x2x32xf32>
    tpu.vector_store %arg15[%c0_182, %c3_183, %c15_184, %c0_185], %242 {strides = array<i32>} : memref<2x18x18x32xf32, #tpu.memory_space<vmem>>, vector<2x2x2x32xf32>,
    %244 = vector.extract_strided_slice %147 {offsets = [0, 2, 0, 0], sizes = [2, 1, 1, 32], strides = [1, 1, 1, 1]} : vector<2x8x8x32xf32> to vector<2x1x1x32xf32>
    %245 = vector.shape_cast %244 : vector<2x1x1x32xf32> to vector<2x32xf32>
    %246 = vector.shape_cast %245 : vector<2x32xf32> to vector<2x1x1x32xf32>
    %247 = vector.shape_cast %246 : vector<2x1x1x32xf32> to vector<2x1x1x32xf32>
    %248 = vector.broadcast %247 : vector<2x1x1x32xf32> to vector<2x2x2x32xf32>
    %c0_186 = arith.constant 0 : index
    %c5_187 = arith.constant 5 : index
    %c1_188 = arith.constant 1 : index
    %c0_189 = arith.constant 0 : index
    %249 = vector.load %arg15[%c0_186, %c5_187, %c1_188, %c0_189] : memref<2x18x18x32xf32, #tpu.memory_space<vmem>>, vector<2x2x2x32xf32>
    tpu.vector_store %arg15[%c0_186, %c5_187, %c1_188, %c0_189], %248 {strides = array<i32>} : memref<2x18x18x32xf32, #tpu.memory_space<vmem>>, vector<2x2x2x32xf32>,
    %250 = vector.extract_strided_slice %147 {offsets = [0, 2, 1, 0], sizes = [2, 1, 1, 32], strides = [1, 1, 1, 1]} : vector<2x8x8x32xf32> to vector<2x1x1x32xf32>
    %251 = vector.shape_cast %250 : vector<2x1x1x32xf32> to vector<2x32xf32>
    %252 = vector.shape_cast %251 : vector<2x32xf32> to vector<2x1x1x32xf32>
    %253 = vector.shape_cast %252 : vector<2x1x1x32xf32> to vector<2x1x1x32xf32>
    %254 = vector.broadcast %253 : vector<2x1x1x32xf32> to vector<2x2x2x32xf32>
    %c0_190 = arith.constant 0 : index
    %c5_191 = arith.constant 5 : index
    %c3_192 = arith.constant 3 : index
    %c0_193 = arith.constant 0 : index
    %255 = vector.load %arg15[%c0_190, %c5_191, %c3_192, %c0_193] : memref<2x18x18x32xf32, #tpu.memory_space<vmem>>, vector<2x2x2x32xf32>
    tpu.vector_store %arg15[%c0_190, %c5_191, %c3_192, %c0_193], %254 {strides = array<i32>} : memref<2x18x18x32xf32, #tpu.memory_space<vmem>>, vector<2x2x2x32xf32>,
    %256 = vector.extract_strided_slice %147 {offsets = [0, 2, 2, 0], sizes = [2, 1, 1, 32], strides = [1, 1, 1, 1]} : vector<2x8x8x32xf32> to vector<2x1x1x32xf32>
    %257 = vector.shape_cast %256 : vector<2x1x1x32xf32> to vector<2x32xf32>
    %258 = vector.shape_cast %257 : vector<2x32xf32> to vector<2x1x1x32xf32>
    %259 = vector.shape_cast %258 : vector<2x1x1x32xf32> to vector<2x1x1x32xf32>
    %260 = vector.broadcast %259 : vector<2x1x1x32xf32> to vector<2x2x2x32xf32>
    %c0_194 = arith.constant 0 : index
    %c5_195 = arith.constant 5 : index
    %c5_196 = arith.constant 5 : index
    %c0_197 = arith.constant 0 : index
    %261 = vector.load %arg15[%c0_194, %c5_195, %c5_196, %c0_197] : memref<2x18x18x32xf32, #tpu.memory_space<vmem>>, vector<2x2x2x32xf32>
    tpu.vector_store %arg15[%c0_194, %c5_195, %c5_196, %c0_197], %260 {strides = array<i32>} : memref<2x18x18x32xf32, #tpu.memory_space<vmem>>, vector<2x2x2x32xf32>,
    %262 = vector.extract_strided_slice %147 {offsets = [0, 2, 3, 0], sizes = [2, 1, 1, 32], strides = [1, 1, 1, 1]} : vector<2x8x8x32xf32> to vector<2x1x1x32xf32>
    %263 = vector.shape_cast %262 : vector<2x1x1x32xf32> to vector<2x32xf32>
    %264 = vector.shape_cast %263 : vector<2x32xf32> to vector<2x1x1x32xf32>
    %265 = vector.shape_cast %264 : vector<2x1x1x32xf32> to vector<2x1x1x32xf32>
    %266 = vector.broadcast %265 : vector<2x1x1x32xf32> to vector<2x2x2x32xf32>
    %c0_198 = arith.constant 0 : index
    %c5_199 = arith.constant 5 : index
    %c7_200 = arith.constant 7 : index
    %c0_201 = arith.constant 0 : index
    %267 = vector.load %arg15[%c0_198, %c5_199, %c7_200, %c0_201] : memref<2x18x18x32xf32, #tpu.memory_space<vmem>>, vector<2x2x2x32xf32>
    tpu.vector_store %arg15[%c0_198, %c5_199, %c7_200, %c0_201], %266 {strides = array<i32>} : memref<2x18x18x32xf32, #tpu.memory_space<vmem>>, vector<2x2x2x32xf32>,
    %268 = vector.extract_strided_slice %147 {offsets = [0, 2, 4, 0], sizes = [2, 1, 1, 32], strides = [1, 1, 1, 1]} : vector<2x8x8x32xf32> to vector<2x1x1x32xf32>
    %269 = vector.shape_cast %268 : vector<2x1x1x32xf32> to vector<2x32xf32>
    %270 = vector.shape_cast %269 : vector<2x32xf32> to vector<2x1x1x32xf32>
    %271 = vector.shape_cast %270 : vector<2x1x1x32xf32> to vector<2x1x1x32xf32>
    %272 = vector.broadcast %271 : vector<2x1x1x32xf32> to vector<2x2x2x32xf32>
    %c0_202 = arith.constant 0 : index
    %c5_203 = arith.constant 5 : index
    %c9_204 = arith.constant 9 : index
    %c0_205 = arith.constant 0 : index
    %273 = vector.load %arg15[%c0_202, %c5_203, %c9_204, %c0_205] : memref<2x18x18x32xf32, #tpu.memory_space<vmem>>, vector<2x2x2x32xf32>
    tpu.vector_store %arg15[%c0_202, %c5_203, %c9_204, %c0_205], %272 {strides = array<i32>} : memref<2x18x18x32xf32, #tpu.memory_space<vmem>>, vector<2x2x2x32xf32>,
    %274 = vector.extract_strided_slice %147 {offsets = [0, 2, 5, 0], sizes = [2, 1, 1, 32], strides = [1, 1, 1, 1]} : vector<2x8x8x32xf32> to vector<2x1x1x32xf32>
    %275 = vector.shape_cast %274 : vector<2x1x1x32xf32> to vector<2x32xf32>
    %276 = vector.shape_cast %275 : vector<2x32xf32> to vector<2x1x1x32xf32>
    %277 = vector.shape_cast %276 : vector<2x1x1x32xf32> to vector<2x1x1x32xf32>
    %278 = vector.broadcast %277 : vector<2x1x1x32xf32> to vector<2x2x2x32xf32>
    %c0_206 = arith.constant 0 : index
    %c5_207 = arith.constant 5 : index
    %c11_208 = arith.constant 11 : index
    %c0_209 = arith.constant 0 : index
    %279 = vector.load %arg15[%c0_206, %c5_207, %c11_208, %c0_209] : memref<2x18x18x32xf32, #tpu.memory_space<vmem>>, vector<2x2x2x32xf32>
    tpu.vector_store %arg15[%c0_206, %c5_207, %c11_208, %c0_209], %278 {strides = array<i32>} : memref<2x18x18x32xf32, #tpu.memory_space<vmem>>, vector<2x2x2x32xf32>,
    %280 = vector.extract_strided_slice %147 {offsets = [0, 2, 6, 0], sizes = [2, 1, 1, 32], strides = [1, 1, 1, 1]} : vector<2x8x8x32xf32> to vector<2x1x1x32xf32>
    %281 = vector.shape_cast %280 : vector<2x1x1x32xf32> to vector<2x32xf32>
    %282 = vector.shape_cast %281 : vector<2x32xf32> to vector<2x1x1x32xf32>
    %283 = vector.shape_cast %282 : vector<2x1x1x32xf32> to vector<2x1x1x32xf32>
    %284 = vector.broadcast %283 : vector<2x1x1x32xf32> to vector<2x2x2x32xf32>
    %c0_210 = arith.constant 0 : index
    %c5_211 = arith.constant 5 : index
    %c13_212 = arith.constant 13 : index
    %c0_213 = arith.constant 0 : index
    %285 = vector.load %arg15[%c0_210, %c5_211, %c13_212, %c0_213] : memref<2x18x18x32xf32, #tpu.memory_space<vmem>>, vector<2x2x2x32xf32>
    tpu.vector_store %arg15[%c0_210, %c5_211, %c13_212, %c0_213], %284 {strides = array<i32>} : memref<2x18x18x32xf32, #tpu.memory_space<vmem>>, vector<2x2x2x32xf32>,
    %286 = vector.extract_strided_slice %147 {offsets = [0, 2, 7, 0], sizes = [2, 1, 1, 32], strides = [1, 1, 1, 1]} : vector<2x8x8x32xf32> to vector<2x1x1x32xf32>
    %287 = vector.shape_cast %286 : vector<2x1x1x32xf32> to vector<2x32xf32>
    %288 = vector.shape_cast %287 : vector<2x32xf32> to vector<2x1x1x32xf32>
    %289 = vector.shape_cast %288 : vector<2x1x1x32xf32> to vector<2x1x1x32xf32>
    %290 = vector.broadcast %289 : vector<2x1x1x32xf32> to vector<2x2x2x32xf32>
    %c0_214 = arith.constant 0 : index
    %c5_215 = arith.constant 5 : index
    %c15_216 = arith.constant 15 : index
    %c0_217 = arith.constant 0 : index
    %291 = vector.load %arg15[%c0_214, %c5_215, %c15_216, %c0_217] : memref<2x18x18x32xf32, #tpu.memory_space<vmem>>, vector<2x2x2x32xf32>
    tpu.vector_store %arg15[%c0_214, %c5_215, %c15_216, %c0_217], %290 {strides = array<i32>} : memref<2x18x18x32xf32, #tpu.memory_space<vmem>>, vector<2x2x2x32xf32>,
    %292 = vector.extract_strided_slice %147 {offsets = [0, 3, 0, 0], sizes = [2, 1, 1, 32], strides = [1, 1, 1, 1]} : vector<2x8x8x32xf32> to vector<2x1x1x32xf32>
    %293 = vector.shape_cast %292 : vector<2x1x1x32xf32> to vector<2x32xf32>
    %294 = vector.shape_cast %293 : vector<2x32xf32> to vector<2x1x1x32xf32>
    %295 = vector.shape_cast %294 : vector<2x1x1x32xf32> to vector<2x1x1x32xf32>
    %296 = vector.broadcast %295 : vector<2x1x1x32xf32> to vector<2x2x2x32xf32>
    %c0_218 = arith.constant 0 : index
    %c7_219 = arith.constant 7 : index
    %c1_220 = arith.constant 1 : index
    %c0_221 = arith.constant 0 : index
    %297 = vector.load %arg15[%c0_218, %c7_219, %c1_220, %c0_221] : memref<2x18x18x32xf32, #tpu.memory_space<vmem>>, vector<2x2x2x32xf32>
    tpu.vector_store %arg15[%c0_218, %c7_219, %c1_220, %c0_221], %296 {strides = array<i32>} : memref<2x18x18x32xf32, #tpu.memory_space<vmem>>, vector<2x2x2x32xf32>,
    %298 = vector.extract_strided_slice %147 {offsets = [0, 3, 1, 0], sizes = [2, 1, 1, 32], strides = [1, 1, 1, 1]} : vector<2x8x8x32xf32> to vector<2x1x1x32xf32>
    %299 = vector.shape_cast %298 : vector<2x1x1x32xf32> to vector<2x32xf32>
    %300 = vector.shape_cast %299 : vector<2x32xf32> to vector<2x1x1x32xf32>
    %301 = vector.shape_cast %300 : vector<2x1x1x32xf32> to vector<2x1x1x32xf32>
    %302 = vector.broadcast %301 : vector<2x1x1x32xf32> to vector<2x2x2x32xf32>
    %c0_222 = arith.constant 0 : index
    %c7_223 = arith.constant 7 : index
    %c3_224 = arith.constant 3 : index
    %c0_225 = arith.constant 0 : index
    %303 = vector.load %arg15[%c0_222, %c7_223, %c3_224, %c0_225] : memref<2x18x18x32xf32, #tpu.memory_space<vmem>>, vector<2x2x2x32xf32>
    tpu.vector_store %arg15[%c0_222, %c7_223, %c3_224, %c0_225], %302 {strides = array<i32>} : memref<2x18x18x32xf32, #tpu.memory_space<vmem>>, vector<2x2x2x32xf32>,
    %304 = vector.extract_strided_slice %147 {offsets = [0, 3, 2, 0], sizes = [2, 1, 1, 32], strides = [1, 1, 1, 1]} : vector<2x8x8x32xf32> to vector<2x1x1x32xf32>
    %305 = vector.shape_cast %304 : vector<2x1x1x32xf32> to vector<2x32xf32>
    %306 = vector.shape_cast %305 : vector<2x32xf32> to vector<2x1x1x32xf32>
    %307 = vector.shape_cast %306 : vector<2x1x1x32xf32> to vector<2x1x1x32xf32>
    %308 = vector.broadcast %307 : vector<2x1x1x32xf32> to vector<2x2x2x32xf32>
    %c0_226 = arith.constant 0 : index
    %c7_227 = arith.constant 7 : index
    %c5_228 = arith.constant 5 : index
    %c0_229 = arith.constant 0 : index
    %309 = vector.load %arg15[%c0_226, %c7_227, %c5_228, %c0_229] : memref<2x18x18x32xf32, #tpu.memory_space<vmem>>, vector<2x2x2x32xf32>
    tpu.vector_store %arg15[%c0_226, %c7_227, %c5_228, %c0_229], %308 {strides = array<i32>} : memref<2x18x18x32xf32, #tpu.memory_space<vmem>>, vector<2x2x2x32xf32>,
    %310 = vector.extract_strided_slice %147 {offsets = [0, 3, 3, 0], sizes = [2, 1, 1, 32], strides = [1, 1, 1, 1]} : vector<2x8x8x32xf32> to vector<2x1x1x32xf32>
    %311 = vector.shape_cast %310 : vector<2x1x1x32xf32> to vector<2x32xf32>
    %312 = vector.shape_cast %311 : vector<2x32xf32> to vector<2x1x1x32xf32>
    %313 = vector.shape_cast %312 : vector<2x1x1x32xf32> to vector<2x1x1x32xf32>
    %314 = vector.broadcast %313 : vector<2x1x1x32xf32> to vector<2x2x2x32xf32>
    %c0_230 = arith.constant 0 : index
    %c7_231 = arith.constant 7 : index
    %c7_232 = arith.constant 7 : index
    %c0_233 = arith.constant 0 : index
    %315 = vector.load %arg15[%c0_230, %c7_231, %c7_232, %c0_233] : memref<2x18x18x32xf32, #tpu.memory_space<vmem>>, vector<2x2x2x32xf32>
    tpu.vector_store %arg15[%c0_230, %c7_231, %c7_232, %c0_233], %314 {strides = array<i32>} : memref<2x18x18x32xf32, #tpu.memory_space<vmem>>, vector<2x2x2x32xf32>,
    %316 = vector.extract_strided_slice %147 {offsets = [0, 3, 4, 0], sizes = [2, 1, 1, 32], strides = [1, 1, 1, 1]} : vector<2x8x8x32xf32> to vector<2x1x1x32xf32>
    %317 = vector.shape_cast %316 : vector<2x1x1x32xf32> to vector<2x32xf32>
    %318 = vector.shape_cast %317 : vector<2x32xf32> to vector<2x1x1x32xf32>
    %319 = vector.shape_cast %318 : vector<2x1x1x32xf32> to vector<2x1x1x32xf32>
    %320 = vector.broadcast %319 : vector<2x1x1x32xf32> to vector<2x2x2x32xf32>
    %c0_234 = arith.constant 0 : index
    %c7_235 = arith.constant 7 : index
    %c9_236 = arith.constant 9 : index
    %c0_237 = arith.constant 0 : index
    %321 = vector.load %arg15[%c0_234, %c7_235, %c9_236, %c0_237] : memref<2x18x18x32xf32, #tpu.memory_space<vmem>>, vector<2x2x2x32xf32>
    tpu.vector_store %arg15[%c0_234, %c7_235, %c9_236, %c0_237], %320 {strides = array<i32>} : memref<2x18x18x32xf32, #tpu.memory_space<vmem>>, vector<2x2x2x32xf32>,
    %322 = vector.extract_strided_slice %147 {offsets = [0, 3, 5, 0], sizes = [2, 1, 1, 32], strides = [1, 1, 1, 1]} : vector<2x8x8x32xf32> to vector<2x1x1x32xf32>
    %323 = vector.shape_cast %322 : vector<2x1x1x32xf32> to vector<2x32xf32>
    %324 = vector.shape_cast %323 : vector<2x32xf32> to vector<2x1x1x32xf32>
    %325 = vector.shape_cast %324 : vector<2x1x1x32xf32> to vector<2x1x1x32xf32>
    %326 = vector.broadcast %325 : vector<2x1x1x32xf32> to vector<2x2x2x32xf32>
    %c0_238 = arith.constant 0 : index
    %c7_239 = arith.constant 7 : index
    %c11_240 = arith.constant 11 : index
    %c0_241 = arith.constant 0 : index
    %327 = vector.load %arg15[%c0_238, %c7_239, %c11_240, %c0_241] : memref<2x18x18x32xf32, #tpu.memory_space<vmem>>, vector<2x2x2x32xf32>
    tpu.vector_store %arg15[%c0_238, %c7_239, %c11_240, %c0_241], %326 {strides = array<i32>} : memref<2x18x18x32xf32, #tpu.memory_space<vmem>>, vector<2x2x2x32xf32>,
    %328 = vector.extract_strided_slice %147 {offsets = [0, 3, 6, 0], sizes = [2, 1, 1, 32], strides = [1, 1, 1, 1]} : vector<2x8x8x32xf32> to vector<2x1x1x32xf32>
    %329 = vector.shape_cast %328 : vector<2x1x1x32xf32> to vector<2x32xf32>
    %330 = vector.shape_cast %329 : vector<2x32xf32> to vector<2x1x1x32xf32>
    %331 = vector.shape_cast %330 : vector<2x1x1x32xf32> to vector<2x1x1x32xf32>
    %332 = vector.broadcast %331 : vector<2x1x1x32xf32> to vector<2x2x2x32xf32>
    %c0_242 = arith.constant 0 : index
    %c7_243 = arith.constant 7 : index
    %c13_244 = arith.constant 13 : index
    %c0_245 = arith.constant 0 : index
    %333 = vector.load %arg15[%c0_242, %c7_243, %c13_244, %c0_245] : memref<2x18x18x32xf32, #tpu.memory_space<vmem>>, vector<2x2x2x32xf32>
    tpu.vector_store %arg15[%c0_242, %c7_243, %c13_244, %c0_245], %332 {strides = array<i32>} : memref<2x18x18x32xf32, #tpu.memory_space<vmem>>, vector<2x2x2x32xf32>,
    %334 = vector.extract_strided_slice %147 {offsets = [0, 3, 7, 0], sizes = [2, 1, 1, 32], strides = [1, 1, 1, 1]} : vector<2x8x8x32xf32> to vector<2x1x1x32xf32>
    %335 = vector.shape_cast %334 : vector<2x1x1x32xf32> to vector<2x32xf32>
    %336 = vector.shape_cast %335 : vector<2x32xf32> to vector<2x1x1x32xf32>
    %337 = vector.shape_cast %336 : vector<2x1x1x32xf32> to vector<2x1x1x32xf32>
    %338 = vector.broadcast %337 : vector<2x1x1x32xf32> to vector<2x2x2x32xf32>
    %c0_246 = arith.constant 0 : index
    %c7_247 = arith.constant 7 : index
    %c15_248 = arith.constant 15 : index
    %c0_249 = arith.constant 0 : index
    %339 = vector.load %arg15[%c0_246, %c7_247, %c15_248, %c0_249] : memref<2x18x18x32xf32, #tpu.memory_space<vmem>>, vector<2x2x2x32xf32>
    tpu.vector_store %arg15[%c0_246, %c7_247, %c15_248, %c0_249], %338 {strides = array<i32>} : memref<2x18x18x32xf32, #tpu.memory_space<vmem>>, vector<2x2x2x32xf32>,
    %340 = vector.extract_strided_slice %147 {offsets = [0, 4, 0, 0], sizes = [2, 1, 1, 32], strides = [1, 1, 1, 1]} : vector<2x8x8x32xf32> to vector<2x1x1x32xf32>
    %341 = vector.shape_cast %340 : vector<2x1x1x32xf32> to vector<2x32xf32>
    %342 = vector.shape_cast %341 : vector<2x32xf32> to vector<2x1x1x32xf32>
    %343 = vector.shape_cast %342 : vector<2x1x1x32xf32> to vector<2x1x1x32xf32>
    %344 = vector.broadcast %343 : vector<2x1x1x32xf32> to vector<2x2x2x32xf32>
    %c0_250 = arith.constant 0 : index
    %c9_251 = arith.constant 9 : index
    %c1_252 = arith.constant 1 : index
    %c0_253 = arith.constant 0 : index
    %345 = vector.load %arg15[%c0_250, %c9_251, %c1_252, %c0_253] : memref<2x18x18x32xf32, #tpu.memory_space<vmem>>, vector<2x2x2x32xf32>
    tpu.vector_store %arg15[%c0_250, %c9_251, %c1_252, %c0_253], %344 {strides = array<i32>} : memref<2x18x18x32xf32, #tpu.memory_space<vmem>>, vector<2x2x2x32xf32>,
    %346 = vector.extract_strided_slice %147 {offsets = [0, 4, 1, 0], sizes = [2, 1, 1, 32], strides = [1, 1, 1, 1]} : vector<2x8x8x32xf32> to vector<2x1x1x32xf32>
    %347 = vector.shape_cast %346 : vector<2x1x1x32xf32> to vector<2x32xf32>
    %348 = vector.shape_cast %347 : vector<2x32xf32> to vector<2x1x1x32xf32>
    %349 = vector.shape_cast %348 : vector<2x1x1x32xf32> to vector<2x1x1x32xf32>
    %350 = vector.broadcast %349 : vector<2x1x1x32xf32> to vector<2x2x2x32xf32>
    %c0_254 = arith.constant 0 : index
    %c9_255 = arith.constant 9 : index
    %c3_256 = arith.constant 3 : index
    %c0_257 = arith.constant 0 : index
    %351 = vector.load %arg15[%c0_254, %c9_255, %c3_256, %c0_257] : memref<2x18x18x32xf32, #tpu.memory_space<vmem>>, vector<2x2x2x32xf32>
    tpu.vector_store %arg15[%c0_254, %c9_255, %c3_256, %c0_257], %350 {strides = array<i32>} : memref<2x18x18x32xf32, #tpu.memory_space<vmem>>, vector<2x2x2x32xf32>,
    %352 = vector.extract_strided_slice %147 {offsets = [0, 4, 2, 0], sizes = [2, 1, 1, 32], strides = [1, 1, 1, 1]} : vector<2x8x8x32xf32> to vector<2x1x1x32xf32>
    %353 = vector.shape_cast %352 : vector<2x1x1x32xf32> to vector<2x32xf32>
    %354 = vector.shape_cast %353 : vector<2x32xf32> to vector<2x1x1x32xf32>
    %355 = vector.shape_cast %354 : vector<2x1x1x32xf32> to vector<2x1x1x32xf32>
    %356 = vector.broadcast %355 : vector<2x1x1x32xf32> to vector<2x2x2x32xf32>
    %c0_258 = arith.constant 0 : index
    %c9_259 = arith.constant 9 : index
    %c5_260 = arith.constant 5 : index
    %c0_261 = arith.constant 0 : index
    %357 = vector.load %arg15[%c0_258, %c9_259, %c5_260, %c0_261] : memref<2x18x18x32xf32, #tpu.memory_space<vmem>>, vector<2x2x2x32xf32>
    tpu.vector_store %arg15[%c0_258, %c9_259, %c5_260, %c0_261], %356 {strides = array<i32>} : memref<2x18x18x32xf32, #tpu.memory_space<vmem>>, vector<2x2x2x32xf32>,
    %358 = vector.extract_strided_slice %147 {offsets = [0, 4, 3, 0], sizes = [2, 1, 1, 32], strides = [1, 1, 1, 1]} : vector<2x8x8x32xf32> to vector<2x1x1x32xf32>
    %359 = vector.shape_cast %358 : vector<2x1x1x32xf32> to vector<2x32xf32>
    %360 = vector.shape_cast %359 : vector<2x32xf32> to vector<2x1x1x32xf32>
    %361 = vector.shape_cast %360 : vector<2x1x1x32xf32> to vector<2x1x1x32xf32>
    %362 = vector.broadcast %361 : vector<2x1x1x32xf32> to vector<2x2x2x32xf32>
    %c0_262 = arith.constant 0 : index
    %c9_263 = arith.constant 9 : index
    %c7_264 = arith.constant 7 : index
    %c0_265 = arith.constant 0 : index
    %363 = vector.load %arg15[%c0_262, %c9_263, %c7_264, %c0_265] : memref<2x18x18x32xf32, #tpu.memory_space<vmem>>, vector<2x2x2x32xf32>
    tpu.vector_store %arg15[%c0_262, %c9_263, %c7_264, %c0_265], %362 {strides = array<i32>} : memref<2x18x18x32xf32, #tpu.memory_space<vmem>>, vector<2x2x2x32xf32>,
    %364 = vector.extract_strided_slice %147 {offsets = [0, 4, 4, 0], sizes = [2, 1, 1, 32], strides = [1, 1, 1, 1]} : vector<2x8x8x32xf32> to vector<2x1x1x32xf32>
    %365 = vector.shape_cast %364 : vector<2x1x1x32xf32> to vector<2x32xf32>
    %366 = vector.shape_cast %365 : vector<2x32xf32> to vector<2x1x1x32xf32>
    %367 = vector.shape_cast %366 : vector<2x1x1x32xf32> to vector<2x1x1x32xf32>
    %368 = vector.broadcast %367 : vector<2x1x1x32xf32> to vector<2x2x2x32xf32>
    %c0_266 = arith.constant 0 : index
    %c9_267 = arith.constant 9 : index
    %c9_268 = arith.constant 9 : index
    %c0_269 = arith.constant 0 : index
    %369 = vector.load %arg15[%c0_266, %c9_267, %c9_268, %c0_269] : memref<2x18x18x32xf32, #tpu.memory_space<vmem>>, vector<2x2x2x32xf32>
    tpu.vector_store %arg15[%c0_266, %c9_267, %c9_268, %c0_269], %368 {strides = array<i32>} : memref<2x18x18x32xf32, #tpu.memory_space<vmem>>, vector<2x2x2x32xf32>,
    %370 = vector.extract_strided_slice %147 {offsets = [0, 4, 5, 0], sizes = [2, 1, 1, 32], strides = [1, 1, 1, 1]} : vector<2x8x8x32xf32> to vector<2x1x1x32xf32>
    %371 = vector.shape_cast %370 : vector<2x1x1x32xf32> to vector<2x32xf32>
    %372 = vector.shape_cast %371 : vector<2x32xf32> to vector<2x1x1x32xf32>
    %373 = vector.shape_cast %372 : vector<2x1x1x32xf32> to vector<2x1x1x32xf32>
    %374 = vector.broadcast %373 : vector<2x1x1x32xf32> to vector<2x2x2x32xf32>
    %c0_270 = arith.constant 0 : index
    %c9_271 = arith.constant 9 : index
    %c11_272 = arith.constant 11 : index
    %c0_273 = arith.constant 0 : index
    %375 = vector.load %arg15[%c0_270, %c9_271, %c11_272, %c0_273] : memref<2x18x18x32xf32, #tpu.memory_space<vmem>>, vector<2x2x2x32xf32>
    tpu.vector_store %arg15[%c0_270, %c9_271, %c11_272, %c0_273], %374 {strides = array<i32>} : memref<2x18x18x32xf32, #tpu.memory_space<vmem>>, vector<2x2x2x32xf32>,
    %376 = vector.extract_strided_slice %147 {offsets = [0, 4, 6, 0], sizes = [2, 1, 1, 32], strides = [1, 1, 1, 1]} : vector<2x8x8x32xf32> to vector<2x1x1x32xf32>
    %377 = vector.shape_cast %376 : vector<2x1x1x32xf32> to vector<2x32xf32>
    %378 = vector.shape_cast %377 : vector<2x32xf32> to vector<2x1x1x32xf32>
    %379 = vector.shape_cast %378 : vector<2x1x1x32xf32> to vector<2x1x1x32xf32>
    %380 = vector.broadcast %379 : vector<2x1x1x32xf32> to vector<2x2x2x32xf32>
    %c0_274 = arith.constant 0 : index
    %c9_275 = arith.constant 9 : index
    %c13_276 = arith.constant 13 : index
    %c0_277 = arith.constant 0 : index
    %381 = vector.load %arg15[%c0_274, %c9_275, %c13_276, %c0_277] : memref<2x18x18x32xf32, #tpu.memory_space<vmem>>, vector<2x2x2x32xf32>
    tpu.vector_store %arg15[%c0_274, %c9_275, %c13_276, %c0_277], %380 {strides = array<i32>} : memref<2x18x18x32xf32, #tpu.memory_space<vmem>>, vector<2x2x2x32xf32>,
    %382 = vector.extract_strided_slice %147 {offsets = [0, 4, 7, 0], sizes = [2, 1, 1, 32], strides = [1, 1, 1, 1]} : vector<2x8x8x32xf32> to vector<2x1x1x32xf32>
    %383 = vector.shape_cast %382 : vector<2x1x1x32xf32> to vector<2x32xf32>
    %384 = vector.shape_cast %383 : vector<2x32xf32> to vector<2x1x1x32xf32>
    %385 = vector.shape_cast %384 : vector<2x1x1x32xf32> to vector<2x1x1x32xf32>
    %386 = vector.broadcast %385 : vector<2x1x1x32xf32> to vector<2x2x2x32xf32>
    %c0_278 = arith.constant 0 : index
    %c9_279 = arith.constant 9 : index
    %c15_280 = arith.constant 15 : index
    %c0_281 = arith.constant 0 : index
    %387 = vector.load %arg15[%c0_278, %c9_279, %c15_280, %c0_281] : memref<2x18x18x32xf32, #tpu.memory_space<vmem>>, vector<2x2x2x32xf32>
    tpu.vector_store %arg15[%c0_278, %c9_279, %c15_280, %c0_281], %386 {strides = array<i32>} : memref<2x18x18x32xf32, #tpu.memory_space<vmem>>, vector<2x2x2x32xf32>,
    %388 = vector.extract_strided_slice %147 {offsets = [0, 5, 0, 0], sizes = [2, 1, 1, 32], strides = [1, 1, 1, 1]} : vector<2x8x8x32xf32> to vector<2x1x1x32xf32>
    %389 = vector.shape_cast %388 : vector<2x1x1x32xf32> to vector<2x32xf32>
    %390 = vector.shape_cast %389 : vector<2x32xf32> to vector<2x1x1x32xf32>
    %391 = vector.shape_cast %390 : vector<2x1x1x32xf32> to vector<2x1x1x32xf32>
    %392 = vector.broadcast %391 : vector<2x1x1x32xf32> to vector<2x2x2x32xf32>
    %c0_282 = arith.constant 0 : index
    %c11_283 = arith.constant 11 : index
    %c1_284 = arith.constant 1 : index
    %c0_285 = arith.constant 0 : index
    %393 = vector.load %arg15[%c0_282, %c11_283, %c1_284, %c0_285] : memref<2x18x18x32xf32, #tpu.memory_space<vmem>>, vector<2x2x2x32xf32>
    tpu.vector_store %arg15[%c0_282, %c11_283, %c1_284, %c0_285], %392 {strides = array<i32>} : memref<2x18x18x32xf32, #tpu.memory_space<vmem>>, vector<2x2x2x32xf32>,
    %394 = vector.extract_strided_slice %147 {offsets = [0, 5, 1, 0], sizes = [2, 1, 1, 32], strides = [1, 1, 1, 1]} : vector<2x8x8x32xf32> to vector<2x1x1x32xf32>
    %395 = vector.shape_cast %394 : vector<2x1x1x32xf32> to vector<2x32xf32>
    %396 = vector.shape_cast %395 : vector<2x32xf32> to vector<2x1x1x32xf32>
    %397 = vector.shape_cast %396 : vector<2x1x1x32xf32> to vector<2x1x1x32xf32>
    %398 = vector.broadcast %397 : vector<2x1x1x32xf32> to vector<2x2x2x32xf32>
    %c0_286 = arith.constant 0 : index
    %c11_287 = arith.constant 11 : index
    %c3_288 = arith.constant 3 : index
    %c0_289 = arith.constant 0 : index
    %399 = vector.load %arg15[%c0_286, %c11_287, %c3_288, %c0_289] : memref<2x18x18x32xf32, #tpu.memory_space<vmem>>, vector<2x2x2x32xf32>
    tpu.vector_store %arg15[%c0_286, %c11_287, %c3_288, %c0_289], %398 {strides = array<i32>} : memref<2x18x18x32xf32, #tpu.memory_space<vmem>>, vector<2x2x2x32xf32>,
    %400 = vector.extract_strided_slice %147 {offsets = [0, 5, 2, 0], sizes = [2, 1, 1, 32], strides = [1, 1, 1, 1]} : vector<2x8x8x32xf32> to vector<2x1x1x32xf32>
    %401 = vector.shape_cast %400 : vector<2x1x1x32xf32> to vector<2x32xf32>
    %402 = vector.shape_cast %401 : vector<2x32xf32> to vector<2x1x1x32xf32>
    %403 = vector.shape_cast %402 : vector<2x1x1x32xf32> to vector<2x1x1x32xf32>
    %404 = vector.broadcast %403 : vector<2x1x1x32xf32> to vector<2x2x2x32xf32>
    %c0_290 = arith.constant 0 : index
    %c11_291 = arith.constant 11 : index
    %c5_292 = arith.constant 5 : index
    %c0_293 = arith.constant 0 : index
    %405 = vector.load %arg15[%c0_290, %c11_291, %c5_292, %c0_293] : memref<2x18x18x32xf32, #tpu.memory_space<vmem>>, vector<2x2x2x32xf32>
    tpu.vector_store %arg15[%c0_290, %c11_291, %c5_292, %c0_293], %404 {strides = array<i32>} : memref<2x18x18x32xf32, #tpu.memory_space<vmem>>, vector<2x2x2x32xf32>,
    %406 = vector.extract_strided_slice %147 {offsets = [0, 5, 3, 0], sizes = [2, 1, 1, 32], strides = [1, 1, 1, 1]} : vector<2x8x8x32xf32> to vector<2x1x1x32xf32>
    %407 = vector.shape_cast %406 : vector<2x1x1x32xf32> to vector<2x32xf32>
    %408 = vector.shape_cast %407 : vector<2x32xf32> to vector<2x1x1x32xf32>
    %409 = vector.shape_cast %408 : vector<2x1x1x32xf32> to vector<2x1x1x32xf32>
    %410 = vector.broadcast %409 : vector<2x1x1x32xf32> to vector<2x2x2x32xf32>
    %c0_294 = arith.constant 0 : index
    %c11_295 = arith.constant 11 : index
    %c7_296 = arith.constant 7 : index
    %c0_297 = arith.constant 0 : index
    %411 = vector.load %arg15[%c0_294, %c11_295, %c7_296, %c0_297] : memref<2x18x18x32xf32, #tpu.memory_space<vmem>>, vector<2x2x2x32xf32>
    tpu.vector_store %arg15[%c0_294, %c11_295, %c7_296, %c0_297], %410 {strides = array<i32>} : memref<2x18x18x32xf32, #tpu.memory_space<vmem>>, vector<2x2x2x32xf32>,
    %412 = vector.extract_strided_slice %147 {offsets = [0, 5, 4, 0], sizes = [2, 1, 1, 32], strides = [1, 1, 1, 1]} : vector<2x8x8x32xf32> to vector<2x1x1x32xf32>
    %413 = vector.shape_cast %412 : vector<2x1x1x32xf32> to vector<2x32xf32>
    %414 = vector.shape_cast %413 : vector<2x32xf32> to vector<2x1x1x32xf32>
    %415 = vector.shape_cast %414 : vector<2x1x1x32xf32> to vector<2x1x1x32xf32>
    %416 = vector.broadcast %415 : vector<2x1x1x32xf32> to vector<2x2x2x32xf32>
    %c0_298 = arith.constant 0 : index
    %c11_299 = arith.constant 11 : index
    %c9_300 = arith.constant 9 : index
    %c0_301 = arith.constant 0 : index
    %417 = vector.load %arg15[%c0_298, %c11_299, %c9_300, %c0_301] : memref<2x18x18x32xf32, #tpu.memory_space<vmem>>, vector<2x2x2x32xf32>
    tpu.vector_store %arg15[%c0_298, %c11_299, %c9_300, %c0_301], %416 {strides = array<i32>} : memref<2x18x18x32xf32, #tpu.memory_space<vmem>>, vector<2x2x2x32xf32>,
    %418 = vector.extract_strided_slice %147 {offsets = [0, 5, 5, 0], sizes = [2, 1, 1, 32], strides = [1, 1, 1, 1]} : vector<2x8x8x32xf32> to vector<2x1x1x32xf32>
    %419 = vector.shape_cast %418 : vector<2x1x1x32xf32> to vector<2x32xf32>
    %420 = vector.shape_cast %419 : vector<2x32xf32> to vector<2x1x1x32xf32>
    %421 = vector.shape_cast %420 : vector<2x1x1x32xf32> to vector<2x1x1x32xf32>
    %422 = vector.broadcast %421 : vector<2x1x1x32xf32> to vector<2x2x2x32xf32>
    %c0_302 = arith.constant 0 : index
    %c11_303 = arith.constant 11 : index
    %c11_304 = arith.constant 11 : index
    %c0_305 = arith.constant 0 : index
    %423 = vector.load %arg15[%c0_302, %c11_303, %c11_304, %c0_305] : memref<2x18x18x32xf32, #tpu.memory_space<vmem>>, vector<2x2x2x32xf32>
    tpu.vector_store %arg15[%c0_302, %c11_303, %c11_304, %c0_305], %422 {strides = array<i32>} : memref<2x18x18x32xf32, #tpu.memory_space<vmem>>, vector<2x2x2x32xf32>,
    %424 = vector.extract_strided_slice %147 {offsets = [0, 5, 6, 0], sizes = [2, 1, 1, 32], strides = [1, 1, 1, 1]} : vector<2x8x8x32xf32> to vector<2x1x1x32xf32>
    %425 = vector.shape_cast %424 : vector<2x1x1x32xf32> to vector<2x32xf32>
    %426 = vector.shape_cast %425 : vector<2x32xf32> to vector<2x1x1x32xf32>
    %427 = vector.shape_cast %426 : vector<2x1x1x32xf32> to vector<2x1x1x32xf32>
    %428 = vector.broadcast %427 : vector<2x1x1x32xf32> to vector<2x2x2x32xf32>
    %c0_306 = arith.constant 0 : index
    %c11_307 = arith.constant 11 : index
    %c13_308 = arith.constant 13 : index
    %c0_309 = arith.constant 0 : index
    %429 = vector.load %arg15[%c0_306, %c11_307, %c13_308, %c0_309] : memref<2x18x18x32xf32, #tpu.memory_space<vmem>>, vector<2x2x2x32xf32>
    tpu.vector_store %arg15[%c0_306, %c11_307, %c13_308, %c0_309], %428 {strides = array<i32>} : memref<2x18x18x32xf32, #tpu.memory_space<vmem>>, vector<2x2x2x32xf32>,
    %430 = vector.extract_strided_slice %147 {offsets = [0, 5, 7, 0], sizes = [2, 1, 1, 32], strides = [1, 1, 1, 1]} : vector<2x8x8x32xf32> to vector<2x1x1x32xf32>
    %431 = vector.shape_cast %430 : vector<2x1x1x32xf32> to vector<2x32xf32>
    %432 = vector.shape_cast %431 : vector<2x32xf32> to vector<2x1x1x32xf32>
    %433 = vector.shape_cast %432 : vector<2x1x1x32xf32> to vector<2x1x1x32xf32>
    %434 = vector.broadcast %433 : vector<2x1x1x32xf32> to vector<2x2x2x32xf32>
    %c0_310 = arith.constant 0 : index
    %c11_311 = arith.constant 11 : index
    %c15_312 = arith.constant 15 : index
    %c0_313 = arith.constant 0 : index
    %435 = vector.load %arg15[%c0_310, %c11_311, %c15_312, %c0_313] : memref<2x18x18x32xf32, #tpu.memory_space<vmem>>, vector<2x2x2x32xf32>
    tpu.vector_store %arg15[%c0_310, %c11_311, %c15_312, %c0_313], %434 {strides = array<i32>} : memref<2x18x18x32xf32, #tpu.memory_space<vmem>>, vector<2x2x2x32xf32>,
    %436 = vector.extract_strided_slice %147 {offsets = [0, 6, 0, 0], sizes = [2, 1, 1, 32], strides = [1, 1, 1, 1]} : vector<2x8x8x32xf32> to vector<2x1x1x32xf32>
    %437 = vector.shape_cast %436 : vector<2x1x1x32xf32> to vector<2x32xf32>
    %438 = vector.shape_cast %437 : vector<2x32xf32> to vector<2x1x1x32xf32>
    %439 = vector.shape_cast %438 : vector<2x1x1x32xf32> to vector<2x1x1x32xf32>
    %440 = vector.broadcast %439 : vector<2x1x1x32xf32> to vector<2x2x2x32xf32>
    %c0_314 = arith.constant 0 : index
    %c13_315 = arith.constant 13 : index
    %c1_316 = arith.constant 1 : index
    %c0_317 = arith.constant 0 : index
    %441 = vector.load %arg15[%c0_314, %c13_315, %c1_316, %c0_317] : memref<2x18x18x32xf32, #tpu.memory_space<vmem>>, vector<2x2x2x32xf32>
    tpu.vector_store %arg15[%c0_314, %c13_315, %c1_316, %c0_317], %440 {strides = array<i32>} : memref<2x18x18x32xf32, #tpu.memory_space<vmem>>, vector<2x2x2x32xf32>,
    %442 = vector.extract_strided_slice %147 {offsets = [0, 6, 1, 0], sizes = [2, 1, 1, 32], strides = [1, 1, 1, 1]} : vector<2x8x8x32xf32> to vector<2x1x1x32xf32>
    %443 = vector.shape_cast %442 : vector<2x1x1x32xf32> to vector<2x32xf32>
    %444 = vector.shape_cast %443 : vector<2x32xf32> to vector<2x1x1x32xf32>
    %445 = vector.shape_cast %444 : vector<2x1x1x32xf32> to vector<2x1x1x32xf32>
    %446 = vector.broadcast %445 : vector<2x1x1x32xf32> to vector<2x2x2x32xf32>
    %c0_318 = arith.constant 0 : index
    %c13_319 = arith.constant 13 : index
    %c3_320 = arith.constant 3 : index
    %c0_321 = arith.constant 0 : index
    %447 = vector.load %arg15[%c0_318, %c13_319, %c3_320, %c0_321] : memref<2x18x18x32xf32, #tpu.memory_space<vmem>>, vector<2x2x2x32xf32>
    tpu.vector_store %arg15[%c0_318, %c13_319, %c3_320, %c0_321], %446 {strides = array<i32>} : memref<2x18x18x32xf32, #tpu.memory_space<vmem>>, vector<2x2x2x32xf32>,
    %448 = vector.extract_strided_slice %147 {offsets = [0, 6, 2, 0], sizes = [2, 1, 1, 32], strides = [1, 1, 1, 1]} : vector<2x8x8x32xf32> to vector<2x1x1x32xf32>
    %449 = vector.shape_cast %448 : vector<2x1x1x32xf32> to vector<2x32xf32>
    %450 = vector.shape_cast %449 : vector<2x32xf32> to vector<2x1x1x32xf32>
    %451 = vector.shape_cast %450 : vector<2x1x1x32xf32> to vector<2x1x1x32xf32>
    %452 = vector.broadcast %451 : vector<2x1x1x32xf32> to vector<2x2x2x32xf32>
    %c0_322 = arith.constant 0 : index
    %c13_323 = arith.constant 13 : index
    %c5_324 = arith.constant 5 : index
    %c0_325 = arith.constant 0 : index
    %453 = vector.load %arg15[%c0_322, %c13_323, %c5_324, %c0_325] : memref<2x18x18x32xf32, #tpu.memory_space<vmem>>, vector<2x2x2x32xf32>
    tpu.vector_store %arg15[%c0_322, %c13_323, %c5_324, %c0_325], %452 {strides = array<i32>} : memref<2x18x18x32xf32, #tpu.memory_space<vmem>>, vector<2x2x2x32xf32>,
    %454 = vector.extract_strided_slice %147 {offsets = [0, 6, 3, 0], sizes = [2, 1, 1, 32], strides = [1, 1, 1, 1]} : vector<2x8x8x32xf32> to vector<2x1x1x32xf32>
    %455 = vector.shape_cast %454 : vector<2x1x1x32xf32> to vector<2x32xf32>
    %456 = vector.shape_cast %455 : vector<2x32xf32> to vector<2x1x1x32xf32>
    %457 = vector.shape_cast %456 : vector<2x1x1x32xf32> to vector<2x1x1x32xf32>
    %458 = vector.broadcast %457 : vector<2x1x1x32xf32> to vector<2x2x2x32xf32>
    %c0_326 = arith.constant 0 : index
    %c13_327 = arith.constant 13 : index
    %c7_328 = arith.constant 7 : index
    %c0_329 = arith.constant 0 : index
    %459 = vector.load %arg15[%c0_326, %c13_327, %c7_328, %c0_329] : memref<2x18x18x32xf32, #tpu.memory_space<vmem>>, vector<2x2x2x32xf32>
    tpu.vector_store %arg15[%c0_326, %c13_327, %c7_328, %c0_329], %458 {strides = array<i32>} : memref<2x18x18x32xf32, #tpu.memory_space<vmem>>, vector<2x2x2x32xf32>,
    %460 = vector.extract_strided_slice %147 {offsets = [0, 6, 4, 0], sizes = [2, 1, 1, 32], strides = [1, 1, 1, 1]} : vector<2x8x8x32xf32> to vector<2x1x1x32xf32>
    %461 = vector.shape_cast %460 : vector<2x1x1x32xf32> to vector<2x32xf32>
    %462 = vector.shape_cast %461 : vector<2x32xf32> to vector<2x1x1x32xf32>
    %463 = vector.shape_cast %462 : vector<2x1x1x32xf32> to vector<2x1x1x32xf32>
    %464 = vector.broadcast %463 : vector<2x1x1x32xf32> to vector<2x2x2x32xf32>
    %c0_330 = arith.constant 0 : index
    %c13_331 = arith.constant 13 : index
    %c9_332 = arith.constant 9 : index
    %c0_333 = arith.constant 0 : index
    %465 = vector.load %arg15[%c0_330, %c13_331, %c9_332, %c0_333] : memref<2x18x18x32xf32, #tpu.memory_space<vmem>>, vector<2x2x2x32xf32>
    tpu.vector_store %arg15[%c0_330, %c13_331, %c9_332, %c0_333], %464 {strides = array<i32>} : memref<2x18x18x32xf32, #tpu.memory_space<vmem>>, vector<2x2x2x32xf32>,
    %466 = vector.extract_strided_slice %147 {offsets = [0, 6, 5, 0], sizes = [2, 1, 1, 32], strides = [1, 1, 1, 1]} : vector<2x8x8x32xf32> to vector<2x1x1x32xf32>
    %467 = vector.shape_cast %466 : vector<2x1x1x32xf32> to vector<2x32xf32>
    %468 = vector.shape_cast %467 : vector<2x32xf32> to vector<2x1x1x32xf32>
    %469 = vector.shape_cast %468 : vector<2x1x1x32xf32> to vector<2x1x1x32xf32>
    %470 = vector.broadcast %469 : vector<2x1x1x32xf32> to vector<2x2x2x32xf32>
    %c0_334 = arith.constant 0 : index
    %c13_335 = arith.constant 13 : index
    %c11_336 = arith.constant 11 : index
    %c0_337 = arith.constant 0 : index
    %471 = vector.load %arg15[%c0_334, %c13_335, %c11_336, %c0_337] : memref<2x18x18x32xf32, #tpu.memory_space<vmem>>, vector<2x2x2x32xf32>
    tpu.vector_store %arg15[%c0_334, %c13_335, %c11_336, %c0_337], %470 {strides = array<i32>} : memref<2x18x18x32xf32, #tpu.memory_space<vmem>>, vector<2x2x2x32xf32>,
    %472 = vector.extract_strided_slice %147 {offsets = [0, 6, 6, 0], sizes = [2, 1, 1, 32], strides = [1, 1, 1, 1]} : vector<2x8x8x32xf32> to vector<2x1x1x32xf32>
    %473 = vector.shape_cast %472 : vector<2x1x1x32xf32> to vector<2x32xf32>
    %474 = vector.shape_cast %473 : vector<2x32xf32> to vector<2x1x1x32xf32>
    %475 = vector.shape_cast %474 : vector<2x1x1x32xf32> to vector<2x1x1x32xf32>
    %476 = vector.broadcast %475 : vector<2x1x1x32xf32> to vector<2x2x2x32xf32>
    %c0_338 = arith.constant 0 : index
    %c13_339 = arith.constant 13 : index
    %c13_340 = arith.constant 13 : index
    %c0_341 = arith.constant 0 : index
    %477 = vector.load %arg15[%c0_338, %c13_339, %c13_340, %c0_341] : memref<2x18x18x32xf32, #tpu.memory_space<vmem>>, vector<2x2x2x32xf32>
    tpu.vector_store %arg15[%c0_338, %c13_339, %c13_340, %c0_341], %476 {strides = array<i32>} : memref<2x18x18x32xf32, #tpu.memory_space<vmem>>, vector<2x2x2x32xf32>,
    %478 = vector.extract_strided_slice %147 {offsets = [0, 6, 7, 0], sizes = [2, 1, 1, 32], strides = [1, 1, 1, 1]} : vector<2x8x8x32xf32> to vector<2x1x1x32xf32>
    %479 = vector.shape_cast %478 : vector<2x1x1x32xf32> to vector<2x32xf32>
    %480 = vector.shape_cast %479 : vector<2x32xf32> to vector<2x1x1x32xf32>
    %481 = vector.shape_cast %480 : vector<2x1x1x32xf32> to vector<2x1x1x32xf32>
    %482 = vector.broadcast %481 : vector<2x1x1x32xf32> to vector<2x2x2x32xf32>
    %c0_342 = arith.constant 0 : index
    %c13_343 = arith.constant 13 : index
    %c15_344 = arith.constant 15 : index
    %c0_345 = arith.constant 0 : index
    %483 = vector.load %arg15[%c0_342, %c13_343, %c15_344, %c0_345] : memref<2x18x18x32xf32, #tpu.memory_space<vmem>>, vector<2x2x2x32xf32>
    tpu.vector_store %arg15[%c0_342, %c13_343, %c15_344, %c0_345], %482 {strides = array<i32>} : memref<2x18x18x32xf32, #tpu.memory_space<vmem>>, vector<2x2x2x32xf32>,
    %484 = vector.extract_strided_slice %147 {offsets = [0, 7, 0, 0], sizes = [2, 1, 1, 32], strides = [1, 1, 1, 1]} : vector<2x8x8x32xf32> to vector<2x1x1x32xf32>
    %485 = vector.shape_cast %484 : vector<2x1x1x32xf32> to vector<2x32xf32>
    %486 = vector.shape_cast %485 : vector<2x32xf32> to vector<2x1x1x32xf32>
    %487 = vector.shape_cast %486 : vector<2x1x1x32xf32> to vector<2x1x1x32xf32>
    %488 = vector.broadcast %487 : vector<2x1x1x32xf32> to vector<2x2x2x32xf32>
    %c0_346 = arith.constant 0 : index
    %c15_347 = arith.constant 15 : index
    %c1_348 = arith.constant 1 : index
    %c0_349 = arith.constant 0 : index
    %489 = vector.load %arg15[%c0_346, %c15_347, %c1_348, %c0_349] : memref<2x18x18x32xf32, #tpu.memory_space<vmem>>, vector<2x2x2x32xf32>
    tpu.vector_store %arg15[%c0_346, %c15_347, %c1_348, %c0_349], %488 {strides = array<i32>} : memref<2x18x18x32xf32, #tpu.memory_space<vmem>>, vector<2x2x2x32xf32>,
    %490 = vector.extract_strided_slice %147 {offsets = [0, 7, 1, 0], sizes = [2, 1, 1, 32], strides = [1, 1, 1, 1]} : vector<2x8x8x32xf32> to vector<2x1x1x32xf32>
    %491 = vector.shape_cast %490 : vector<2x1x1x32xf32> to vector<2x32xf32>
    %492 = vector.shape_cast %491 : vector<2x32xf32> to vector<2x1x1x32xf32>
    %493 = vector.shape_cast %492 : vector<2x1x1x32xf32> to vector<2x1x1x32xf32>
    %494 = vector.broadcast %493 : vector<2x1x1x32xf32> to vector<2x2x2x32xf32>
    %c0_350 = arith.constant 0 : index
    %c15_351 = arith.constant 15 : index
    %c3_352 = arith.constant 3 : index
    %c0_353 = arith.constant 0 : index
    %495 = vector.load %arg15[%c0_350, %c15_351, %c3_352, %c0_353] : memref<2x18x18x32xf32, #tpu.memory_space<vmem>>, vector<2x2x2x32xf32>
    tpu.vector_store %arg15[%c0_350, %c15_351, %c3_352, %c0_353], %494 {strides = array<i32>} : memref<2x18x18x32xf32, #tpu.memory_space<vmem>>, vector<2x2x2x32xf32>,
    %496 = vector.extract_strided_slice %147 {offsets = [0, 7, 2, 0], sizes = [2, 1, 1, 32], strides = [1, 1, 1, 1]} : vector<2x8x8x32xf32> to vector<2x1x1x32xf32>
    %497 = vector.shape_cast %496 : vector<2x1x1x32xf32> to vector<2x32xf32>
    %498 = vector.shape_cast %497 : vector<2x32xf32> to vector<2x1x1x32xf32>
    %499 = vector.shape_cast %498 : vector<2x1x1x32xf32> to vector<2x1x1x32xf32>
    %500 = vector.broadcast %499 : vector<2x1x1x32xf32> to vector<2x2x2x32xf32>
    %c0_354 = arith.constant 0 : index
    %c15_355 = arith.constant 15 : index
    %c5_356 = arith.constant 5 : index
    %c0_357 = arith.constant 0 : index
    %501 = vector.load %arg15[%c0_354, %c15_355, %c5_356, %c0_357] : memref<2x18x18x32xf32, #tpu.memory_space<vmem>>, vector<2x2x2x32xf32>
    tpu.vector_store %arg15[%c0_354, %c15_355, %c5_356, %c0_357], %500 {strides = array<i32>} : memref<2x18x18x32xf32, #tpu.memory_space<vmem>>, vector<2x2x2x32xf32>,
    %502 = vector.extract_strided_slice %147 {offsets = [0, 7, 3, 0], sizes = [2, 1, 1, 32], strides = [1, 1, 1, 1]} : vector<2x8x8x32xf32> to vector<2x1x1x32xf32>
    %503 = vector.shape_cast %502 : vector<2x1x1x32xf32> to vector<2x32xf32>
    %504 = vector.shape_cast %503 : vector<2x32xf32> to vector<2x1x1x32xf32>
    %505 = vector.shape_cast %504 : vector<2x1x1x32xf32> to vector<2x1x1x32xf32>
    %506 = vector.broadcast %505 : vector<2x1x1x32xf32> to vector<2x2x2x32xf32>
    %c0_358 = arith.constant 0 : index
    %c15_359 = arith.constant 15 : index
    %c7_360 = arith.constant 7 : index
    %c0_361 = arith.constant 0 : index
    %507 = vector.load %arg15[%c0_358, %c15_359, %c7_360, %c0_361] : memref<2x18x18x32xf32, #tpu.memory_space<vmem>>, vector<2x2x2x32xf32>
    tpu.vector_store %arg15[%c0_358, %c15_359, %c7_360, %c0_361], %506 {strides = array<i32>} : memref<2x18x18x32xf32, #tpu.memory_space<vmem>>, vector<2x2x2x32xf32>,
    %508 = vector.extract_strided_slice %147 {offsets = [0, 7, 4, 0], sizes = [2, 1, 1, 32], strides = [1, 1, 1, 1]} : vector<2x8x8x32xf32> to vector<2x1x1x32xf32>
    %509 = vector.shape_cast %508 : vector<2x1x1x32xf32> to vector<2x32xf32>
    %510 = vector.shape_cast %509 : vector<2x32xf32> to vector<2x1x1x32xf32>
    %511 = vector.shape_cast %510 : vector<2x1x1x32xf32> to vector<2x1x1x32xf32>
    %512 = vector.broadcast %511 : vector<2x1x1x32xf32> to vector<2x2x2x32xf32>
    %c0_362 = arith.constant 0 : index
    %c15_363 = arith.constant 15 : index
    %c9_364 = arith.constant 9 : index
    %c0_365 = arith.constant 0 : index
    %513 = vector.load %arg15[%c0_362, %c15_363, %c9_364, %c0_365] : memref<2x18x18x32xf32, #tpu.memory_space<vmem>>, vector<2x2x2x32xf32>
    tpu.vector_store %arg15[%c0_362, %c15_363, %c9_364, %c0_365], %512 {strides = array<i32>} : memref<2x18x18x32xf32, #tpu.memory_space<vmem>>, vector<2x2x2x32xf32>,
    %514 = vector.extract_strided_slice %147 {offsets = [0, 7, 5, 0], sizes = [2, 1, 1, 32], strides = [1, 1, 1, 1]} : vector<2x8x8x32xf32> to vector<2x1x1x32xf32>
    %515 = vector.shape_cast %514 : vector<2x1x1x32xf32> to vector<2x32xf32>
    %516 = vector.shape_cast %515 : vector<2x32xf32> to vector<2x1x1x32xf32>
    %517 = vector.shape_cast %516 : vector<2x1x1x32xf32> to vector<2x1x1x32xf32>
    %518 = vector.broadcast %517 : vector<2x1x1x32xf32> to vector<2x2x2x32xf32>
    %c0_366 = arith.constant 0 : index
    %c15_367 = arith.constant 15 : index
    %c11_368 = arith.constant 11 : index
    %c0_369 = arith.constant 0 : index
    %519 = vector.load %arg15[%c0_366, %c15_367, %c11_368, %c0_369] : memref<2x18x18x32xf32, #tpu.memory_space<vmem>>, vector<2x2x2x32xf32>
    tpu.vector_store %arg15[%c0_366, %c15_367, %c11_368, %c0_369], %518 {strides = array<i32>} : memref<2x18x18x32xf32, #tpu.memory_space<vmem>>, vector<2x2x2x32xf32>,
    %520 = vector.extract_strided_slice %147 {offsets = [0, 7, 6, 0], sizes = [2, 1, 1, 32], strides = [1, 1, 1, 1]} : vector<2x8x8x32xf32> to vector<2x1x1x32xf32>
    %521 = vector.shape_cast %520 : vector<2x1x1x32xf32> to vector<2x32xf32>
    %522 = vector.shape_cast %521 : vector<2x32xf32> to vector<2x1x1x32xf32>
    %523 = vector.shape_cast %522 : vector<2x1x1x32xf32> to vector<2x1x1x32xf32>
    %524 = vector.broadcast %523 : vector<2x1x1x32xf32> to vector<2x2x2x32xf32>
    %c0_370 = arith.constant 0 : index
    %c15_371 = arith.constant 15 : index
    %c13_372 = arith.constant 13 : index
    %c0_373 = arith.constant 0 : index
    %525 = vector.load %arg15[%c0_370, %c15_371, %c13_372, %c0_373] : memref<2x18x18x32xf32, #tpu.memory_space<vmem>>, vector<2x2x2x32xf32>
    tpu.vector_store %arg15[%c0_370, %c15_371, %c13_372, %c0_373], %524 {strides = array<i32>} : memref<2x18x18x32xf32, #tpu.memory_space<vmem>>, vector<2x2x2x32xf32>,
    %526 = vector.extract_strided_slice %147 {offsets = [0, 7, 7, 0], sizes = [2, 1, 1, 32], strides = [1, 1, 1, 1]} : vector<2x8x8x32xf32> to vector<2x1x1x32xf32>
    %527 = vector.shape_cast %526 : vector<2x1x1x32xf32> to vector<2x32xf32>
    %528 = vector.shape_cast %527 : vector<2x32xf32> to vector<2x1x1x32xf32>
    %529 = vector.shape_cast %528 : vector<2x1x1x32xf32> to vector<2x1x1x32xf32>
    %530 = vector.broadcast %529 : vector<2x1x1x32xf32> to vector<2x2x2x32xf32>
    %c0_374 = arith.constant 0 : index
    %c15_375 = arith.constant 15 : index
    %c15_376 = arith.constant 15 : index
    %c0_377 = arith.constant 0 : index
    %531 = vector.load %arg15[%c0_374, %c15_375, %c15_376, %c0_377] : memref<2x18x18x32xf32, #tpu.memory_space<vmem>>, vector<2x2x2x32xf32>
    tpu.vector_store %arg15[%c0_374, %c15_375, %c15_376, %c0_377], %530 {strides = array<i32>} : memref<2x18x18x32xf32, #tpu.memory_space<vmem>>, vector<2x2x2x32xf32>,
    %c0_378 = arith.constant 0 : index
    %c0_379 = arith.constant 0 : index
    %c0_380 = arith.constant 0 : index
    %c0_381 = arith.constant 0 : index
    %532 = vector.load %arg15[%c0_378, %c0_379, %c0_380, %c0_381] : memref<2x18x18x32xf32, #tpu.memory_space<vmem>>, vector<2x16x16x32xf32>
    %533 = vector.shape_cast %532 : vector<2x16x16x32xf32> to vector<512x32xf32>
    %c0_382 = arith.constant 0 : index
    %c0_383 = arith.constant 0 : index
    %c1_384 = arith.constant 1 : index
    %c0_385 = arith.constant 0 : index
    %534 = vector.load %arg15[%c0_382, %c0_383, %c1_384, %c0_385] : memref<2x18x18x32xf32, #tpu.memory_space<vmem>>, vector<2x16x16x32xf32>
    %535 = vector.shape_cast %534 : vector<2x16x16x32xf32> to vector<512x32xf32>
    %c0_386 = arith.constant 0 : index
    %c0_387 = arith.constant 0 : index
    %c2_388 = arith.constant 2 : index
    %c0_389 = arith.constant 0 : index
    %536 = vector.load %arg15[%c0_386, %c0_387, %c2_388, %c0_389] : memref<2x18x18x32xf32, #tpu.memory_space<vmem>>, vector<2x16x16x32xf32>
    %537 = vector.shape_cast %536 : vector<2x16x16x32xf32> to vector<512x32xf32>
    %c0_390 = arith.constant 0 : index
    %c1_391 = arith.constant 1 : index
    %c0_392 = arith.constant 0 : index
    %c0_393 = arith.constant 0 : index
    %538 = vector.load %arg15[%c0_390, %c1_391, %c0_392, %c0_393] : memref<2x18x18x32xf32, #tpu.memory_space<vmem>>, vector<2x16x16x32xf32>
    %539 = vector.shape_cast %538 : vector<2x16x16x32xf32> to vector<512x32xf32>
    %c0_394 = arith.constant 0 : index
    %c1_395 = arith.constant 1 : index
    %c1_396 = arith.constant 1 : index
    %c0_397 = arith.constant 0 : index
    %540 = vector.load %arg15[%c0_394, %c1_395, %c1_396, %c0_397] : memref<2x18x18x32xf32, #tpu.memory_space<vmem>>, vector<2x16x16x32xf32>
    %541 = vector.shape_cast %540 : vector<2x16x16x32xf32> to vector<512x32xf32>
    %c0_398 = arith.constant 0 : index
    %c1_399 = arith.constant 1 : index
    %c2_400 = arith.constant 2 : index
    %c0_401 = arith.constant 0 : index
    %542 = vector.load %arg15[%c0_398, %c1_399, %c2_400, %c0_401] : memref<2x18x18x32xf32, #tpu.memory_space<vmem>>, vector<2x16x16x32xf32>
    %543 = vector.shape_cast %542 : vector<2x16x16x32xf32> to vector<512x32xf32>
    %c0_402 = arith.constant 0 : index
    %c2_403 = arith.constant 2 : index
    %c0_404 = arith.constant 0 : index
    %c0_405 = arith.constant 0 : index
    %544 = vector.load %arg15[%c0_402, %c2_403, %c0_404, %c0_405] : memref<2x18x18x32xf32, #tpu.memory_space<vmem>>, vector<2x16x16x32xf32>
    %545 = vector.shape_cast %544 : vector<2x16x16x32xf32> to vector<512x32xf32>
    %c0_406 = arith.constant 0 : index
    %c2_407 = arith.constant 2 : index
    %c1_408 = arith.constant 1 : index
    %c0_409 = arith.constant 0 : index
    %546 = vector.load %arg15[%c0_406, %c2_407, %c1_408, %c0_409] : memref<2x18x18x32xf32, #tpu.memory_space<vmem>>, vector<2x16x16x32xf32>
    %547 = vector.shape_cast %546 : vector<2x16x16x32xf32> to vector<512x32xf32>
    %c0_410 = arith.constant 0 : index
    %c2_411 = arith.constant 2 : index
    %c2_412 = arith.constant 2 : index
    %c0_413 = arith.constant 0 : index
    %548 = vector.load %arg15[%c0_410, %c2_411, %c2_412, %c0_413] : memref<2x18x18x32xf32, #tpu.memory_space<vmem>>, vector<2x16x16x32xf32>
    %549 = vector.shape_cast %548 : vector<2x16x16x32xf32> to vector<512x32xf32>
    %550 = tpu.concatenate %533, %535, %537, %539, %541, %543, %545, %547, %549 in 1 : vector<512x32xf32>, vector<512x32xf32>, vector<512x32xf32>, vector<512x32xf32>, vector<512x32xf32>, vector<512x32xf32>, vector<512x32xf32>, vector<512x32xf32>, vector<512x32xf32> -> vector<512x288xf32>
    %551 = arith.truncf %550 : vector<512x288xf32> to vector<512x288xbf16>
    %c0_414 = arith.constant 0 : index
    %c0_415 = arith.constant 0 : index
    %552 = vector.load %arg7[%c0_414, %c0_415] : memref<288x16xf32, #tpu.memory_space<vmem>>, vector<288x16xf32>
    %553 = arith.truncf %552 : vector<288x16xf32> to vector<288x16xbf16>
    %cst_416 = arith.constant dense<0.000000e+00> : vector<512x16xf32>
    %554 = tpu.matmul %551, %553, %cst_416 {dimension_numbers = #tpu.dot_dimension_numbers<[1], [0], [0], [1], [0, 0, 1, 1], [], []>} : vector<512x288xbf16>, vector<288x16xbf16>, vector<512x16xf32> -> vector<512x16xf32>
    %c0_417 = arith.constant 0 : index
    %c0_418 = arith.constant 0 : index
    %555 = vector.load %arg8[%c0_417, %c0_418] : memref<1x16xf32, #tpu.memory_space<vmem>>, vector<1x16xf32>
    %556 = vector.broadcast %555 : vector<1x16xf32> to vector<512x16xf32>
    %557 = arith.addf %554, %556 : vector<512x16xf32>
    %c0_419 = arith.constant 0 : index
    %c0_420 = arith.constant 0 : index
    %558 = vector.load %arg9[%c0_419, %c0_420] : memref<1x16xf32, #tpu.memory_space<vmem>>, vector<1x16xf32>
    %c0_421 = arith.constant 0 : index
    %c0_422 = arith.constant 0 : index
    %559 = vector.load %arg10[%c0_421, %c0_422] : memref<1x16xf32, #tpu.memory_space<vmem>>, vector<1x16xf32>
    %cst_423 = arith.constant dense<0.000000e+00> : vector<16xf32>
    %560 = vector.multi_reduction <add>, %557, %cst_423 [0] : vector<512x16xf32> to vector<16xf32>
    %561 = vector.shape_cast %560 : vector<16xf32> to vector<1x16xf32>
    %562 = arith.mulf %557, %557 : vector<512x16xf32>
    %cst_424 = arith.constant dense<0.000000e+00> : vector<16xf32>
    %563 = vector.multi_reduction <add>, %562, %cst_424 [0] : vector<512x16xf32> to vector<16xf32>
    %564 = vector.shape_cast %563 : vector<16xf32> to vector<1x16xf32>
    %cst_425 = arith.constant 0.001953125 : f32
    %565 = vector.broadcast %cst_425 : f32 to vector<1x16xf32>
    %566 = arith.mulf %561, %565 : vector<1x16xf32>
    %cst_426 = arith.constant 0.001953125 : f32
    %567 = vector.broadcast %cst_426 : f32 to vector<1x16xf32>
    %568 = arith.mulf %564, %567 : vector<1x16xf32>
    %569 = arith.mulf %566, %566 : vector<1x16xf32>
    %570 = arith.subf %568, %569 : vector<1x16xf32>
    %571 = vector.broadcast %566 : vector<1x16xf32> to vector<512x16xf32>
    %572 = arith.subf %557, %571 : vector<512x16xf32>
    %cst_427 = arith.constant 8.000000e-01 : f32
    %573 = vector.broadcast %cst_427 : f32 to vector<1x16xf32>
    %574 = arith.addf %570, %573 : vector<1x16xf32>
    %575 = math.rsqrt %574 : vector<1x16xf32>
    %576 = vector.broadcast %575 : vector<1x16xf32> to vector<512x16xf32>
    %577 = arith.mulf %572, %576 : vector<512x16xf32>
    %578 = vector.broadcast %558 : vector<1x16xf32> to vector<512x16xf32>
    %579 = arith.mulf %577, %578 : vector<512x16xf32>
    %580 = vector.broadcast %559 : vector<1x16xf32> to vector<512x16xf32>
    %581 = arith.addf %579, %580 : vector<512x16xf32>
    %cst_428 = arith.constant 0.000000e+00 : f32
    %582 = vector.broadcast %cst_428 : f32 to vector<512x16xf32>
    %583 = arith.cmpf ogt, %581, %582 : vector<512x16xf32>
    %cst_429 = arith.constant 2.000000e-01 : f32
    %584 = vector.broadcast %cst_429 : f32 to vector<512x16xf32>
    %585 = arith.mulf %584, %581 : vector<512x16xf32>
    %586 = arith.select %583, %581, %585 : vector<512x16xi1>, vector<512x16xf32>
    %cst_430 = arith.constant 0.000000e+00 : f32
    %587 = vector.broadcast %cst_430 : f32 to vector<2x18x18x16xf32>
    %c0_431 = arith.constant 0 : index
    %c0_432 = arith.constant 0 : index
    %c0_433 = arith.constant 0 : index
    %c0_434 = arith.constant 0 : index
    %588 = vector.load %arg16[%c0_431, %c0_432, %c0_433, %c0_434] : memref<2x18x18x16xf32, #tpu.memory_space<vmem>>, vector<2x18x18x16xf32>
    tpu.vector_store %arg16[%c0_431, %c0_432, %c0_433, %c0_434], %587 {strides = array<i32>} : memref<2x18x18x16xf32, #tpu.memory_space<vmem>>, vector<2x18x18x16xf32>,
    %589 = vector.shape_cast %586 : vector<512x16xf32> to vector<2x16x16x16xf32>
    %c0_435 = arith.constant 0 : index
    %c1_436 = arith.constant 1 : index
    %c1_437 = arith.constant 1 : index
    %c0_438 = arith.constant 0 : index
    %590 = vector.load %arg16[%c0_435, %c1_436, %c1_437, %c0_438] : memref<2x18x18x16xf32, #tpu.memory_space<vmem>>, vector<2x16x16x16xf32>
    tpu.vector_store %arg16[%c0_435, %c1_436, %c1_437, %c0_438], %589 {strides = array<i32>} : memref<2x18x18x16xf32, #tpu.memory_space<vmem>>, vector<2x16x16x16xf32>,
    %c0_439 = arith.constant 0 : index
    %c0_440 = arith.constant 0 : index
    %c0_441 = arith.constant 0 : index
    %c0_442 = arith.constant 0 : index
    %591 = vector.load %arg16[%c0_439, %c0_440, %c0_441, %c0_442] : memref<2x18x18x16xf32, #tpu.memory_space<vmem>>, vector<2x16x16x16xf32>
    %592 = vector.shape_cast %591 : vector<2x16x16x16xf32> to vector<512x16xf32>
    %c0_443 = arith.constant 0 : index
    %c0_444 = arith.constant 0 : index
    %c1_445 = arith.constant 1 : index
    %c0_446 = arith.constant 0 : index
    %593 = vector.load %arg16[%c0_443, %c0_444, %c1_445, %c0_446] : memref<2x18x18x16xf32, #tpu.memory_space<vmem>>, vector<2x16x16x16xf32>
    %594 = vector.shape_cast %593 : vector<2x16x16x16xf32> to vector<512x16xf32>
    %c0_447 = arith.constant 0 : index
    %c0_448 = arith.constant 0 : index
    %c2_449 = arith.constant 2 : index
    %c0_450 = arith.constant 0 : index
    %595 = vector.load %arg16[%c0_447, %c0_448, %c2_449, %c0_450] : memref<2x18x18x16xf32, #tpu.memory_space<vmem>>, vector<2x16x16x16xf32>
    %596 = vector.shape_cast %595 : vector<2x16x16x16xf32> to vector<512x16xf32>
    %c0_451 = arith.constant 0 : index
    %c1_452 = arith.constant 1 : index
    %c0_453 = arith.constant 0 : index
    %c0_454 = arith.constant 0 : index
    %597 = vector.load %arg16[%c0_451, %c1_452, %c0_453, %c0_454] : memref<2x18x18x16xf32, #tpu.memory_space<vmem>>, vector<2x16x16x16xf32>
    %598 = vector.shape_cast %597 : vector<2x16x16x16xf32> to vector<512x16xf32>
    %c0_455 = arith.constant 0 : index
    %c1_456 = arith.constant 1 : index
    %c1_457 = arith.constant 1 : index
    %c0_458 = arith.constant 0 : index
    %599 = vector.load %arg16[%c0_455, %c1_456, %c1_457, %c0_458] : memref<2x18x18x16xf32, #tpu.memory_space<vmem>>, vector<2x16x16x16xf32>
    %600 = vector.shape_cast %599 : vector<2x16x16x16xf32> to vector<512x16xf32>
    %c0_459 = arith.constant 0 : index
    %c1_460 = arith.constant 1 : index
    %c2_461 = arith.constant 2 : index
    %c0_462 = arith.constant 0 : index
    %601 = vector.load %arg16[%c0_459, %c1_460, %c2_461, %c0_462] : memref<2x18x18x16xf32, #tpu.memory_space<vmem>>, vector<2x16x16x16xf32>
    %602 = vector.shape_cast %601 : vector<2x16x16x16xf32> to vector<512x16xf32>
    %c0_463 = arith.constant 0 : index
    %c2_464 = arith.constant 2 : index
    %c0_465 = arith.constant 0 : index
    %c0_466 = arith.constant 0 : index
    %603 = vector.load %arg16[%c0_463, %c2_464, %c0_465, %c0_466] : memref<2x18x18x16xf32, #tpu.memory_space<vmem>>, vector<2x16x16x16xf32>
    %604 = vector.shape_cast %603 : vector<2x16x16x16xf32> to vector<512x16xf32>
    %c0_467 = arith.constant 0 : index
    %c2_468 = arith.constant 2 : index
    %c1_469 = arith.constant 1 : index
    %c0_470 = arith.constant 0 : index
    %605 = vector.load %arg16[%c0_467, %c2_468, %c1_469, %c0_470] : memref<2x18x18x16xf32, #tpu.memory_space<vmem>>, vector<2x16x16x16xf32>
    %606 = vector.shape_cast %605 : vector<2x16x16x16xf32> to vector<512x16xf32>
    %c0_471 = arith.constant 0 : index
    %c2_472 = arith.constant 2 : index
    %c2_473 = arith.constant 2 : index
    %c0_474 = arith.constant 0 : index
    %607 = vector.load %arg16[%c0_471, %c2_472, %c2_473, %c0_474] : memref<2x18x18x16xf32, #tpu.memory_space<vmem>>, vector<2x16x16x16xf32>
    %608 = vector.shape_cast %607 : vector<2x16x16x16xf32> to vector<512x16xf32>
    %609 = tpu.concatenate %592, %594, %596, %598, %600, %602, %604, %606, %608 in 1 : vector<512x16xf32>, vector<512x16xf32>, vector<512x16xf32>, vector<512x16xf32>, vector<512x16xf32>, vector<512x16xf32>, vector<512x16xf32>, vector<512x16xf32>, vector<512x16xf32> -> vector<512x144xf32>
    %c0_475 = arith.constant 0 : index
    %c0_476 = arith.constant 0 : index
    %610 = vector.load %arg11[%c0_475, %c0_476] : memref<3x144xf32, #tpu.memory_space<vmem>>, vector<3x144xf32>
    %611 = arith.truncf %610 : vector<3x144xf32> to vector<3x144xbf16>
    %612 = arith.truncf %609 : vector<512x144xf32> to vector<512x144xbf16>
    %cst_477 = arith.constant dense<0.000000e+00> : vector<3x512xf32>
    %613 = tpu.matmul %611, %612, %cst_477 {dimension_numbers = #tpu.dot_dimension_numbers<[1], [1], [0], [0], [0, 0, 1, 0], [], []>} : vector<3x144xbf16>, vector<512x144xbf16>, vector<3x512xf32> -> vector<3x512xf32>
    %c0_478 = arith.constant 0 : index
    %c0_479 = arith.constant 0 : index
    %614 = vector.load %arg12[%c0_478, %c0_479] : memref<3x1xf32, #tpu.memory_space<vmem>>, vector<3x1xf32>
    %615 = vector.broadcast %614 : vector<3x1xf32> to vector<3x512xf32>
    %616 = arith.addf %613, %615 : vector<3x512xf32>
    %617 = math.tanh %616 : vector<3x512xf32>
    %618 = vector.extract_strided_slice %617 {offsets = [0, 0], sizes = [3, 256], strides = [1, 1]} : vector<3x512xf32> to vector<3x256xf32>
    %c0_480 = arith.constant 0 : index
    %c0_481 = arith.constant 0 : index
    %c0_482 = arith.constant 0 : index
    %619 = vector.load %arg13[%c0_480, %c0_481, %c0_482] : memref<2x3x256xf32, #tpu.memory_space<vmem>>, vector<1x3x256xf32>
    %620 = vector.shape_cast %619 : vector<1x3x256xf32> to vector<3x256xf32>
    %621 = vector.shape_cast %618 : vector<3x256xf32> to vector<1x3x256xf32>
    tpu.vector_store %arg13[%c0_480, %c0_481, %c0_482], %621 {strides = array<i32>} : memref<2x3x256xf32, #tpu.memory_space<vmem>>, vector<1x3x256xf32>,
    %622 = vector.extract_strided_slice %617 {offsets = [0, 256], sizes = [3, 256], strides = [1, 1]} : vector<3x512xf32> to vector<3x256xf32>
    %c1_483 = arith.constant 1 : index
    %c0_484 = arith.constant 0 : index
    %c0_485 = arith.constant 0 : index
    %623 = vector.load %arg13[%c1_483, %c0_484, %c0_485] : memref<2x3x256xf32, #tpu.memory_space<vmem>>, vector<1x3x256xf32>
    %624 = vector.shape_cast %623 : vector<1x3x256xf32> to vector<3x256xf32>
    %625 = vector.shape_cast %622 : vector<3x256xf32> to vector<1x3x256xf32>
    tpu.vector_store %arg13[%c1_483, %c0_484, %c0_485], %625 {strides = array<i32>} : memref<2x3x256xf32, #tpu.memory_space<vmem>>, vector<1x3x256xf32>,
    return
  }
}

</mosaic_0001>

<llo_original>
// kernel: generator_forward.1
$region0: #{generator_forward.1}
  #allocation0 [shape = 'u32[]', space=smem, size = 0x4, offset = 0x4, fixed_abs, tag = 'smem constant byte address 0x4 - core index']
  #allocation1 [shape = 'u32[144,128]{1,0:T(1,128)}', space=vmem, size = 0x12000, scoped, tag = 'internal scratch']
  #allocation2 [shape = 'f32[2,10,10,32]{3,2,1,0:T(8,128)}', space=vmem, size = 0x28000, scoped, tag = 'scratch operand']
  #allocation3 [shape = 'f32[2,18,18,32]{3,2,1,0:T(8,128)}', space=vmem, size = 0x6c000, scoped, tag = 'scratch operand']
  #allocation4 [shape = 'f32[2,18,18,16]{3,2,1,0:T(8,128)}', space=vmem, size = 0x6c000, scoped, tag = 'scratch operand']
  %s0 = inlined_call_operand.vmem [shape: f32[2,32], index: 0, kind: input, shape index: {}]
  %s1 = inlined_call_operand.vmem [shape: f32[32,512], index: 1, kind: input, shape index: {}]
  %s2 = inlined_call_operand.vmem [shape: f32[1,512], index: 2, kind: input, shape index: {}]
  %s3 = inlined_call_operand.vmem [shape: f32[288,32], index: 3, kind: input, shape index: {}]
  %s4 = inlined_call_operand.vmem [shape: f32[1,32], index: 4, kind: input, shape index: {}]
  %s5 = inlined_call_operand.vmem [shape: f32[1,32], index: 5, kind: input, shape index: {}]
  %s6 = inlined_call_operand.vmem [shape: f32[1,32], index: 6, kind: input, shape index: {}]
  %s7 = inlined_call_operand.vmem [shape: f32[288,16], index: 7, kind: input, shape index: {}]
  %s8 = inlined_call_operand.vmem [shape: f32[1,16], index: 8, kind: input, shape index: {}]
  %s9 = inlined_call_operand.vmem [shape: f32[1,16], index: 9, kind: input, shape index: {}]
  %s10 = inlined_call_operand.vmem [shape: f32[1,16], index: 10, kind: input, shape index: {}]
  %s11 = inlined_call_operand.vmem [shape: f32[3,144], index: 11, kind: input, shape index: {}]
  %s12 = inlined_call_operand.vmem [shape: f32[3,1], index: 12, kind: input, shape index: {}]
  %s13 = inlined_call_operand.vmem [shape: f32[2,3,256], index: 13, kind: output, shape index: {}]
  %s14 = sld [smem:[#allocation0]]
  $region62: #{generator_forward.1} parent=0
    _
  %s16 = ssub.s32 1, %s14
  %s17 = scalar_select 0, %s16, %s14
  // Predicated region
  $region2: #{generator_forward.1} parent=0 // pred_check
    _
  $region3: #{generator_forward.1} parent=0 // pred_check_branch
    %19 = sbr.rel (0) target = $region5
  $region4: #{generator_forward.1} parent=0 // pred_region
    _
  $region5: #{generator_forward.1} parent=0 // pred_fallthru
    _
  // Predicated region
  $region6: #{generator_forward.1} parent=0 // pred_check
    _
  $region7: #{generator_forward.1} parent=0 // pred_check_branch
    %21 = sbr.rel (0) target = $region9
  $region8: #{generator_forward.1} parent=0 // pred_region
    _
  $region9: #{generator_forward.1} parent=0 // pred_fallthru
    _
  // Predicated region
  $region10: #{generator_forward.1} parent=0 // pred_check
    _
  $region11: #{generator_forward.1} parent=0 // pred_check_branch
    %23 = sbr.rel (0) target = $region13
  $region12: #{generator_forward.1} parent=0 // pred_region
    _
  $region13: #{generator_forward.1} parent=0 // pred_fallthru
    _
  // Predicated region
  $region14: #{generator_forward.1} parent=0 // pred_check
    _
  $region15: #{generator_forward.1} parent=0 // pred_check_branch
    %25 = sbr.rel (0) target = $region17
  $region16: #{generator_forward.1} parent=0 // pred_region
    _
  $region17: #{generator_forward.1} parent=0 // pred_fallthru
    _
  // Predicated region
  $region18: #{generator_forward.1} parent=0 // pred_check
    _
  $region19: #{generator_forward.1} parent=0 // pred_check_branch
    %27 = sbr.rel (0) target = $region21
  $region20: #{generator_forward.1} parent=0 // pred_region
    _
  $region21: #{generator_forward.1} parent=0 // pred_fallthru
    _
  // Predicated region
  $region22: #{generator_forward.1} parent=0 // pred_check
    _
  $region23: #{generator_forward.1} parent=0 // pred_check_branch
    %29 = sbr.rel (0) target = $region25
  $region24: #{generator_forward.1} parent=0 // pred_region
    _
  $region25: #{generator_forward.1} parent=0 // pred_fallthru
    _
  // Predicated region
  $region26: #{generator_forward.1} parent=0 // pred_check
    _
  $region27: #{generator_forward.1} parent=0 // pred_check_branch
    %31 = sbr.rel (0) target = $region29
  $region28: #{generator_forward.1} parent=0 // pred_region
    _
  $region29: #{generator_forward.1} parent=0 // pred_fallthru
    _
  // Predicated region
  $region30: #{generator_forward.1} parent=0 // pred_check
    _
  $region31: #{generator_forward.1} parent=0 // pred_check_branch
    %33 = sbr.rel (0) target = $region33
  $region32: #{generator_forward.1} parent=0 // pred_region
    _
  $region33: #{generator_forward.1} parent=0 // pred_fallthru
    _
  // Predicated region
  $region34: #{generator_forward.1} parent=0 // pred_check
    _
  $region35: #{generator_forward.1} parent=0 // pred_check_branch
    %35 = sbr.rel (0) target = $region37
  $region36: #{generator_forward.1} parent=0 // pred_region
    _
  $region37: #{generator_forward.1} parent=0 // pred_fallthru
    _
  // Predicated region
  $region38: #{generator_forward.1} parent=0 // pred_check
    _
  $region39: #{generator_forward.1} parent=0 // pred_check_branch
    %37 = sbr.rel (0) target = $region41
  $region40: #{generator_forward.1} parent=0 // pred_region
    _
  $region41: #{generator_forward.1} parent=0 // pred_fallthru
    _
  // Predicated region
  $region42: #{generator_forward.1} parent=0 // pred_check
    _
  $region43: #{generator_forward.1} parent=0 // pred_check_branch
    %39 = sbr.rel (0) target = $region45
  $region44: #{generator_forward.1} parent=0 // pred_region
    _
  $region45: #{generator_forward.1} parent=0 // pred_fallthru
    _
  // Predicated region
  $region46: #{generator_forward.1} parent=0 // pred_check
    _
  $region47: #{generator_forward.1} parent=0 // pred_check_branch
    %41 = sbr.rel (0) target = $region49
  $region48: #{generator_forward.1} parent=0 // pred_region
    _
  $region49: #{generator_forward.1} parent=0 // pred_fallthru
    _
  // Predicated region
  $region50: #{generator_forward.1} parent=0 // pred_check
    _
  $region51: #{generator_forward.1} parent=0 // pred_check_branch
    %43 = sbr.rel (0) target = $region53
  $region52: #{generator_forward.1} parent=0 // pred_region
    _
  $region53: #{generator_forward.1} parent=0 // pred_fallthru
    _
  %v45 = vld [vmem:[%s0] sm:$0x3]
  %v46 = vpack.c.bf16 %v45, %v45
  %v47 = vld [vmem:[%s1] sm:$0xff]
  %v48 = vld [vmem:[%s1 + $0x8] sm:$0xff]
  %v49 = vld [vmem:[%s1 + $0x10] sm:$0xff]
  %v50 = vld [vmem:[%s1 + $0x18] sm:$0xff]
  %v51 = vld [vmem:[%s1 + $0x20] sm:$0xff]
  %v52 = vld [vmem:[%s1 + $0x28] sm:$0xff]
  %v53 = vld [vmem:[%s1 + $0x30] sm:$0xff]
  %v54 = vld [vmem:[%s1 + $0x38] sm:$0xff]
  %v55 = vld [vmem:[%s1 + $0x40] sm:$0xff]
  %v56 = vld [vmem:[%s1 + $0x48] sm:$0xff]
  %v57 = vld [vmem:[%s1 + $0x50] sm:$0xff]
  %v58 = vld [vmem:[%s1 + $0x58] sm:$0xff]
  %v59 = vld [vmem:[%s1 + $0x60] sm:$0xff]
  %v60 = vld [vmem:[%s1 + $0x68] sm:$0xff]
  %v61 = vld [vmem:[%s1 + $0x70] sm:$0xff]
  %v62 = vld [vmem:[%s1 + $0x78] sm:$0xff]
  %v63 = vpack.c.bf16 %v51, %v47
  %v64 = vpack.c.bf16 %v52, %v48
  %v65 = vpack.c.bf16 %v53, %v49
  %v66 = vpack.c.bf16 %v54, %v50
  %v67 = vpack.c.bf16 %v59, %v55
  %v68 = vpack.c.bf16 %v60, %v56
  %v69 = vpack.c.bf16 %v61, %v57
  %v70 = vpack.c.bf16 %v62, %v58
  %v71 = vld [vmem:[%s2] sm:$0xf]
  %v73 = vlaneseq
  %v74 = vshrl.u32 %v73, 7
  %v75 = vsub.s32 0, %v74
  %v76 = vrot.slane %v71, %v75
  %v77 = vlaneseq
  %v78 = vshrl.u32 %v77, 7
  %v79 = vsub.s32 1, %v78
  %v80 = vrot.slane %v71, %v79
  %v81 = vlaneseq
  %v82 = vshrl.u32 %v81, 7
  %v83 = vsub.s32 2, %v82
  %v84 = vrot.slane %v71, %v83
  %v85 = vlaneseq
  %v86 = vshrl.u32 %v85, 7
  %v87 = vsub.s32 3, %v86
  %v88 = vrot.slane %v71, %v87
  %vm93 = vcmask 261120
  %v95 = vsel %vm93, %v46, 0
  %97 = vmatprep.subr.bf16.mxu0 %v64
  %98 = vmatpush1.bf16.msra.mxu0 %v63
  %99 = vmatprep.subr.bf16.mxu0 %v68
  %100 = vmatpush1.bf16.msra.mxu0 %v67
  %101 = vmatprep.subr.bf16.mxu0 0
  %102 = vmatpush1.bf16.msra.mxu0 0
  %103 = vmatprep.subr.bf16.mxu0 0
  %104 = vmatpush1.bf16.msra.mxu0 0
  %105 = vmatprep.subr.bf16.mxu0 0
  %106 = vmatpush1.bf16.msra.mxu0 0
  %107 = vmatprep.subr.bf16.mxu0 0
  %108 = vmatpush1.bf16.msra.mxu0 0
  %109 = vmatprep.subr.bf16.mxu0 0
  %110 = vmatpush1.bf16.msra.mxu0 0
  %111 = vmatprep.subr.bf16.mxu0 0
  %112 = vmatpush1.bf16.msra.mxu0 0
  %113 = vmatprep.subr.bf16.mxu0 0
  %114 = vmatpush1.bf16.msra.mxu0 0
  %115 = vmatprep.subr.bf16.mxu0 0
  %116 = vmatpush1.bf16.msra.mxu0 0
  %117 = vmatprep.subr.bf16.mxu0 0
  %118 = vmatpush1.bf16.msra.mxu0 0
  %119 = vmatprep.subr.bf16.mxu0 0
  %120 = vmatpush1.bf16.msra.mxu0 0
  %121 = vmatprep.subr.bf16.mxu0 0
  %122 = vmatpush1.bf16.msra.mxu0 0
  %123 = vmatprep.subr.bf16.mxu0 0
  %124 = vmatpush1.bf16.msra.mxu0 0
  %125 = vmatprep.subr.bf16.mxu0 0
  %126 = vmatpush1.bf16.msra.mxu0 0
  %127 = vmatprep.subr.bf16.mxu0 0
  %128 = vmatpush1.bf16.msra.mxu0 0
  %129 = vmatprep.mubr.bf16.mxu0 0
  %130 = vmatmul.mubr.bf16.gmra.mrb[0].mxu0 %v95
  %v131 = vpop.f32.mrb[0].mxu0
  %v132 = vadd.f32 %v76, %v131
  %v133 = vpop.f32.mrb[0].mxu0
  %v134 = vadd.f32 %v80, %v133
  %v135 = vpop.f32.mrb[0].mxu0
  %v136 = vpop.f32.mrb[0].mxu0
  %137 = vdwg.mxu0
  %138 = vmatprep.subr.bf16.mxu0 %v66
  %139 = vmatpush1.bf16.msra.mxu0 %v65
  %140 = vmatprep.subr.bf16.mxu0 %v70
  %141 = vmatpush1.bf16.msra.mxu0 %v69
  %142 = vmatprep.subr.bf16.mxu0 0
  %143 = vmatpush1.bf16.msra.mxu0 0
  %144 = vmatprep.subr.bf16.mxu0 0
  %145 = vmatpush1.bf16.msra.mxu0 0
  %146 = vmatprep.subr.bf16.mxu0 0
  %147 = vmatpush1.bf16.msra.mxu0 0
  %148 = vmatprep.subr.bf16.mxu0 0
  %149 = vmatpush1.bf16.msra.mxu0 0
  %150 = vmatprep.subr.bf16.mxu0 0
  %151 = vmatpush1.bf16.msra.mxu0 0
  %152 = vmatprep.subr.bf16.mxu0 0
  %153 = vmatpush1.bf16.msra.mxu0 0
  %154 = vmatprep.subr.bf16.mxu0 0
  %155 = vmatpush1.bf16.msra.mxu0 0
  %156 = vmatprep.subr.bf16.mxu0 0
  %157 = vmatpush1.bf16.msra.mxu0 0
  %158 = vmatprep.subr.bf16.mxu0 0
  %159 = vmatpush1.bf16.msra.mxu0 0
  %160 = vmatprep.subr.bf16.mxu0 0
  %161 = vmatpush1.bf16.msra.mxu0 0
  %162 = vmatprep.subr.bf16.mxu0 0
  %163 = vmatpush1.bf16.msra.mxu0 0
  %164 = vmatprep.subr.bf16.mxu0 0
  %165 = vmatpush1.bf16.msra.mxu0 0
  %166 = vmatprep.subr.bf16.mxu0 0
  %167 = vmatpush1.bf16.msra.mxu0 0
  %168 = vmatprep.subr.bf16.mxu0 0
  %169 = vmatpush1.bf16.msra.mxu0 0
  %170 = vmatprep.mubr.bf16.mxu0 0
  %171 = vmatmul.mubr.bf16.gmra.mrb[0].mxu0 %v95
  %v172 = vpop.f32.mrb[0].mxu0
  %v173 = vadd.f32 %v84, %v172
  %v174 = vpop.f32.mrb[0].mxu0
  %v175 = vadd.f32 %v88, %v174
  %v176 = vpop.f32.mrb[0].mxu0
  %v177 = vpop.f32.mrb[0].mxu0
  %178 = vdwg.mxu0
  %179 = vst.msk [vmem:[#allocation2] sm:$0xff] %vm93, 0.0
  %vm180 = vcmask 254976
  %181 = vst.msk [vmem:[#allocation2 + $0x8] sm:$0x3] %vm180, 0.0
  %182 = vst.msk [vmem:[#allocation2 + $0x10] sm:$0xff] %vm93, 0.0
  %183 = vst.msk [vmem:[#allocation2 + $0x18] sm:$0x3] %vm180, 0.0
  %184 = vst.msk [vmem:[#allocation2 + $0x20] sm:$0xff] %vm93, 0.0
  %185 = vst.msk [vmem:[#allocation2 + $0x28] sm:$0x3] %vm180, 0.0
  %186 = vst.msk [vmem:[#allocation2 + $0x30] sm:$0xff] %vm93, 0.0
  %187 = vst.msk [vmem:[#allocation2 + $0x38] sm:$0x3] %vm180, 0.0
  %188 = vst.msk [vmem:[#allocation2 + $0x40] sm:$0xff] %vm93, 0.0
  %189 = vst.msk [vmem:[#allocation2 + $0x48] sm:$0x3] %vm180, 0.0
  %190 = vst.msk [vmem:[#allocation2 + $0x50] sm:$0xff] %vm93, 0.0
  %191 = vst.msk [vmem:[#allocation2 + $0x58] sm:$0x3] %vm180, 0.0
  %192 = vst.msk [vmem:[#allocation2 + $0x60] sm:$0xff] %vm93, 0.0
  %193 = vst.msk [vmem:[#allocation2 + $0x68] sm:$0x3] %vm180, 0.0
  %194 = vst.msk [vmem:[#allocation2 + $0x70] sm:$0xff] %vm93, 0.0
  %195 = vst.msk [vmem:[#allocation2 + $0x78] sm:$0x3] %vm180, 0.0
  %196 = vst.msk [vmem:[#allocation2 + $0x80] sm:$0xff] %vm93, 0.0
  %197 = vst.msk [vmem:[#allocation2 + $0x88] sm:$0x3] %vm180, 0.0
  %198 = vst.msk [vmem:[#allocation2 + $0x90] sm:$0xff] %vm93, 0.0
  %199 = vst.msk [vmem:[#allocation2 + $0x98] sm:$0x3] %vm180, 0.0
  %200 = vst.msk [vmem:[#allocation2 + $0xa0] sm:$0xff] %vm93, 0.0
  %201 = vst.msk [vmem:[#allocation2 + $0xa8] sm:$0x3] %vm180, 0.0
  %202 = vst.msk [vmem:[#allocation2 + $0xb0] sm:$0xff] %vm93, 0.0
  %203 = vst.msk [vmem:[#allocation2 + $0xb8] sm:$0x3] %vm180, 0.0
  %204 = vst.msk [vmem:[#allocation2 + $0xc0] sm:$0xff] %vm93, 0.0
  %205 = vst.msk [vmem:[#allocation2 + $0xc8] sm:$0x3] %vm180, 0.0
  %206 = vst.msk [vmem:[#allocation2 + $0xd0] sm:$0xff] %vm93, 0.0
  %207 = vst.msk [vmem:[#allocation2 + $0xd8] sm:$0x3] %vm180, 0.0
  %208 = vst.msk [vmem:[#allocation2 + $0xe0] sm:$0xff] %vm93, 0.0
  %209 = vst.msk [vmem:[#allocation2 + $0xe8] sm:$0x3] %vm180, 0.0
  %210 = vst.msk [vmem:[#allocation2 + $0xf0] sm:$0xff] %vm93, 0.0
  %211 = vst.msk [vmem:[#allocation2 + $0xf8] sm:$0x3] %vm180, 0.0
  %212 = vst.msk [vmem:[#allocation2 + $0x100] sm:$0xff] %vm93, 0.0
  %213 = vst.msk [vmem:[#allocation2 + $0x108] sm:$0x3] %vm180, 0.0
  %214 = vst.msk [vmem:[#allocation2 + $0x110] sm:$0xff] %vm93, 0.0
  %215 = vst.msk [vmem:[#allocation2 + $0x118] sm:$0x3] %vm180, 0.0
  %216 = vst.msk [vmem:[#allocation2 + $0x120] sm:$0xff] %vm93, 0.0
  %217 = vst.msk [vmem:[#allocation2 + $0x128] sm:$0x3] %vm180, 0.0
  %218 = vst.msk [vmem:[#allocation2 + $0x130] sm:$0xff] %vm93, 0.0
  %219 = vst.msk [vmem:[#allocation2 + $0x138] sm:$0x3] %vm180, 0.0
  %v222 = vunpack.c.l.s4 1966171168
  %v223 = vunpack.c.0.s8 %v222
  %v224 = vlaneseq
  %v225 = vshrl.u32 %v224, 7
  %v226 = vsub.s32 %v223, %v225
  %v227 = vrot.slane %v132, %v226
  %v228 = vcombine.high %v227, %v227
  %v230 = vunpack.c.l.s4 1966171168
  %v231 = vunpack.c.0.s8 %v230
  %v232 = vlaneseq
  %v233 = vshrl.u32 %v232, 7
  %v234 = vsub.s32 %v231, %v233
  %v235 = vrot.slane %v227, %v234
  %v237 = vunpack.c.l.s4 1966171168
  %v238 = vunpack.c.0.s8 %v237
  %v239 = vlaneseq
  %v240 = vshrl.u32 %v239, 7
  %v241 = vsub.s32 %v238, %v240
  %v242 = vrot.slane %v228, %v241
  %v243 = vlaneseq
  %v244 = vshrl.u32 %v243, 7
  %v245 = vsub.s32 0, %v244
  %v246 = vrot.slane %v235, %v245
  %v247 = vlaneseq
  %v248 = vshrl.u32 %v247, 7
  %v249 = vsub.s32 0, %v248
  %v250 = vrot.slane %v242, %v249
  %s253 = scalar_lea.vmem [#allocation2], 16
  %254 = vst.msk [vmem:[%s253 + $0x1] sm:$0x3] %vm180, %v246
  %255 = vst.msk [vmem:[%s253 + $0x11] sm:$0x3] %vm180, %v246
  %256 = vst.msk [vmem:[%s253 + $0xa1] sm:$0x3] %vm180, %v250
  %257 = vst.msk [vmem:[%s253 + $0xb1] sm:$0x3] %vm180, %v250
  %258 = vrot.lane.b32.xlu0 %v246, 96
  %v259 = vpop.permute.xlu0 %258
  %260 = vrot.lane.b32.xlu0 %v250, 96
  %v261 = vpop.permute.xlu0 %260
  %264 = vst.msk [vmem:[%s253 + $0x3] sm:$0x3] %vm180, %v259
  %265 = vst.msk [vmem:[%s253 + $0x13] sm:$0x3] %vm180, %v259
  %266 = vst.msk [vmem:[%s253 + $0xa3] sm:$0x3] %vm180, %v261
  %267 = vst.msk [vmem:[%s253 + $0xb3] sm:$0x3] %vm180, %v261
  %268 = vrot.lane.b32.xlu0 %v246, 64
  %v269 = vpop.permute.xlu0 %268
  %270 = vrot.lane.b32.xlu0 %v250, 64
  %v271 = vpop.permute.xlu0 %270
  %274 = vst.msk [vmem:[%s253 + $0x5] sm:$0x3] %vm180, %v269
  %275 = vst.msk [vmem:[%s253 + $0x15] sm:$0x3] %vm180, %v269
  %276 = vst.msk [vmem:[%s253 + $0xa5] sm:$0x3] %vm180, %v271
  %277 = vst.msk [vmem:[%s253 + $0xb5] sm:$0x3] %vm180, %v271
  %278 = vrot.lane.b32.xlu0 %v246, 32
  %v279 = vpop.permute.xlu0 %278
  %280 = vrot.lane.b32.xlu0 %v250, 32
  %v281 = vpop.permute.xlu0 %280
  %284 = vst.msk [vmem:[%s253 + $0x7] sm:$0x3] %vm180, %v279
  %285 = vst.msk [vmem:[%s253 + $0x17] sm:$0x3] %vm180, %v279
  %286 = vst.msk [vmem:[%s253 + $0xa7] sm:$0x3] %vm180, %v281
  %287 = vst.msk [vmem:[%s253 + $0xb7] sm:$0x3] %vm180, %v281
  %v290 = vunpack.c.l.s4 1966171168
  %v291 = vunpack.c.0.s8 %v290
  %v292 = vlaneseq
  %v293 = vshrl.u32 %v292, 7
  %v294 = vsub.s32 %v291, %v293
  %v295 = vrot.slane %v134, %v294
  %v296 = vcombine.high %v295, %v295
  %v298 = vunpack.c.l.s4 1966171168
  %v299 = vunpack.c.0.s8 %v298
  %v300 = vlaneseq
  %v301 = vshrl.u32 %v300, 7
  %v302 = vsub.s32 %v299, %v301
  %v303 = vrot.slane %v295, %v302
  %v305 = vunpack.c.l.s4 1966171168
  %v306 = vunpack.c.0.s8 %v305
  %v307 = vlaneseq
  %v308 = vshrl.u32 %v307, 7
  %v309 = vsub.s32 %v306, %v308
  %v310 = vrot.slane %v296, %v309
  %v311 = vlaneseq
  %v312 = vshrl.u32 %v311, 7
  %v313 = vsub.s32 0, %v312
  %v314 = vrot.slane %v303, %v313
  %v315 = vlaneseq
  %v316 = vshrl.u32 %v315, 7
  %v317 = vsub.s32 0, %v316
  %v318 = vrot.slane %v310, %v317
  %s321 = scalar_lea.vmem [#allocation2], 48
  %322 = vst.msk [vmem:[%s321 + $0x1] sm:$0x3] %vm180, %v314
  %323 = vst.msk [vmem:[%s321 + $0x11] sm:$0x3] %vm180, %v314
  %324 = vst.msk [vmem:[%s321 + $0xa1] sm:$0x3] %vm180, %v318
  %325 = vst.msk [vmem:[%s321 + $0xb1] sm:$0x3] %vm180, %v318
  %326 = vrot.lane.b32.xlu0 %v314, 96
  %v327 = vpop.permute.xlu0 %326
  %328 = vrot.lane.b32.xlu0 %v318, 96
  %v329 = vpop.permute.xlu0 %328
  %332 = vst.msk [vmem:[%s321 + $0x3] sm:$0x3] %vm180, %v327
  %333 = vst.msk [vmem:[%s321 + $0x13] sm:$0x3] %vm180, %v327
  %334 = vst.msk [vmem:[%s321 + $0xa3] sm:$0x3] %vm180, %v329
  %335 = vst.msk [vmem:[%s321 + $0xb3] sm:$0x3] %vm180, %v329
  %336 = vrot.lane.b32.xlu0 %v314, 64
  %v337 = vpop.permute.xlu0 %336
  %338 = vrot.lane.b32.xlu0 %v318, 64
  %v339 = vpop.permute.xlu0 %338
  %342 = vst.msk [vmem:[%s321 + $0x5] sm:$0x3] %vm180, %v337
  %343 = vst.msk [vmem:[%s321 + $0x15] sm:$0x3] %vm180, %v337
  %344 = vst.msk [vmem:[%s321 + $0xa5] sm:$0x3] %vm180, %v339
  %345 = vst.msk [vmem:[%s321 + $0xb5] sm:$0x3] %vm180, %v339
  %346 = vrot.lane.b32.xlu0 %v314, 32
  %v347 = vpop.permute.xlu0 %346
  %348 = vrot.lane.b32.xlu0 %v318, 32
  %v349 = vpop.permute.xlu0 %348
  %352 = vst.msk [vmem:[%s321 + $0x7] sm:$0x3] %vm180, %v347
  %353 = vst.msk [vmem:[%s321 + $0x17] sm:$0x3] %vm180, %v347
  %354 = vst.msk [vmem:[%s321 + $0xa7] sm:$0x3] %vm180, %v349
  %355 = vst.msk [vmem:[%s321 + $0xb7] sm:$0x3] %vm180, %v349
  %v358 = vunpack.c.l.s4 1966171168
  %v359 = vunpack.c.0.s8 %v358
  %v360 = vlaneseq
  %v361 = vshrl.u32 %v360, 7
  %v362 = vsub.s32 %v359, %v361
  %v363 = vrot.slane %v173, %v362
  %v364 = vcombine.high %v363, %v363
  %v366 = vunpack.c.l.s4 1966171168
  %v367 = vunpack.c.0.s8 %v366
  %v368 = vlaneseq
  %v369 = vshrl.u32 %v368, 7
  %v370 = vsub.s32 %v367, %v369
  %v371 = vrot.slane %v363, %v370
  %v373 = vunpack.c.l.s4 1966171168
  %v374 = vunpack.c.0.s8 %v373
  %v375 = vlaneseq
  %v376 = vshrl.u32 %v375, 7
  %v377 = vsub.s32 %v374, %v376
  %v378 = vrot.slane %v364, %v377
  %v379 = vlaneseq
  %v380 = vshrl.u32 %v379, 7
  %v381 = vsub.s32 0, %v380
  %v382 = vrot.slane %v371, %v381
  %v383 = vlaneseq
  %v384 = vshrl.u32 %v383, 7
  %v385 = vsub.s32 0, %v384
  %v386 = vrot.slane %v378, %v385
  %s389 = scalar_lea.vmem [#allocation2], 80
  %390 = vst.msk [vmem:[%s389 + $0x1] sm:$0x3] %vm180, %v382
  %391 = vst.msk [vmem:[%s389 + $0x11] sm:$0x3] %vm180, %v382
  %392 = vst.msk [vmem:[%s389 + $0xa1] sm:$0x3] %vm180, %v386
  %393 = vst.msk [vmem:[%s389 + $0xb1] sm:$0x3] %vm180, %v386
  %394 = vrot.lane.b32.xlu0 %v382, 96
  %v395 = vpop.permute.xlu0 %394
  %396 = vrot.lane.b32.xlu0 %v386, 96
  %v397 = vpop.permute.xlu0 %396
  %400 = vst.msk [vmem:[%s389 + $0x3] sm:$0x3] %vm180, %v395
  %401 = vst.msk [vmem:[%s389 + $0x13] sm:$0x3] %vm180, %v395
  %402 = vst.msk [vmem:[%s389 + $0xa3] sm:$0x3] %vm180, %v397
  %403 = vst.msk [vmem:[%s389 + $0xb3] sm:$0x3] %vm180, %v397
  %404 = vrot.lane.b32.xlu0 %v382, 64
  %v405 = vpop.permute.xlu0 %404
  %406 = vrot.lane.b32.xlu0 %v386, 64
  %v407 = vpop.permute.xlu0 %406
  %410 = vst.msk [vmem:[%s389 + $0x5] sm:$0x3] %vm180, %v405
  %411 = vst.msk [vmem:[%s389 + $0x15] sm:$0x3] %vm180, %v405
  %412 = vst.msk [vmem:[%s389 + $0xa5] sm:$0x3] %vm180, %v407
  %413 = vst.msk [vmem:[%s389 + $0xb5] sm:$0x3] %vm180, %v407
  %414 = vrot.lane.b32.xlu0 %v382, 32
  %v415 = vpop.permute.xlu0 %414
  %416 = vrot.lane.b32.xlu0 %v386, 32
  %v417 = vpop.permute.xlu0 %416
  %420 = vst.msk [vmem:[%s389 + $0x7] sm:$0x3] %vm180, %v415
  %421 = vst.msk [vmem:[%s389 + $0x17] sm:$0x3] %vm180, %v415
  %422 = vst.msk [vmem:[%s389 + $0xa7] sm:$0x3] %vm180, %v417
  %423 = vst.msk [vmem:[%s389 + $0xb7] sm:$0x3] %vm180, %v417
  %v426 = vunpack.c.l.s4 1966171168
  %v427 = vunpack.c.0.s8 %v426
  %v428 = vlaneseq
  %v429 = vshrl.u32 %v428, 7
  %v430 = vsub.s32 %v427, %v429
  %v431 = vrot.slane %v175, %v430
  %v432 = vcombine.high %v431, %v431
  %v434 = vunpack.c.l.s4 1966171168
  %v435 = vunpack.c.0.s8 %v434
  %v436 = vlaneseq
  %v437 = vshrl.u32 %v436, 7
  %v438 = vsub.s32 %v435, %v437
  %v439 = vrot.slane %v431, %v438
  %v441 = vunpack.c.l.s4 1966171168
  %v442 = vunpack.c.0.s8 %v441
  %v443 = vlaneseq
  %v444 = vshrl.u32 %v443, 7
  %v445 = vsub.s32 %v442, %v444
  %v446 = vrot.slane %v432, %v445
  %v447 = vlaneseq
  %v448 = vshrl.u32 %v447, 7
  %v449 = vsub.s32 0, %v448
  %v450 = vrot.slane %v439, %v449
  %v451 = vlaneseq
  %v452 = vshrl.u32 %v451, 7
  %v453 = vsub.s32 0, %v452
  %v454 = vrot.slane %v446, %v453
  %s457 = scalar_lea.vmem [#allocation2], 112
  %458 = vst.msk [vmem:[%s457 + $0x1] sm:$0x3] %vm180, %v450
  %459 = vst.msk [vmem:[%s457 + $0x11] sm:$0x3] %vm180, %v450
  %460 = vst.msk [vmem:[%s457 + $0xa1] sm:$0x3] %vm180, %v454
  %461 = vst.msk [vmem:[%s457 + $0xb1] sm:$0x3] %vm180, %v454
  %462 = vrot.lane.b32.xlu0 %v450, 96
  %v463 = vpop.permute.xlu0 %462
  %464 = vrot.lane.b32.xlu0 %v454, 96
  %v465 = vpop.permute.xlu0 %464
  %468 = vst.msk [vmem:[%s457 + $0x3] sm:$0x3] %vm180, %v463
  %469 = vst.msk [vmem:[%s457 + $0x13] sm:$0x3] %vm180, %v463
  %470 = vst.msk [vmem:[%s457 + $0xa3] sm:$0x3] %vm180, %v465
  %471 = vst.msk [vmem:[%s457 + $0xb3] sm:$0x3] %vm180, %v465
  %472 = vrot.lane.b32.xlu0 %v450, 64
  %v473 = vpop.permute.xlu0 %472
  %474 = vrot.lane.b32.xlu0 %v454, 64
  %v475 = vpop.permute.xlu0 %474
  %478 = vst.msk [vmem:[%s457 + $0x5] sm:$0x3] %vm180, %v473
  %479 = vst.msk [vmem:[%s457 + $0x15] sm:$0x3] %vm180, %v473
  %480 = vst.msk [vmem:[%s457 + $0xa5] sm:$0x3] %vm180, %v475
  %481 = vst.msk [vmem:[%s457 + $0xb5] sm:$0x3] %vm180, %v475
  %482 = vrot.lane.b32.xlu0 %v450, 32
  %v483 = vpop.permute.xlu0 %482
  %484 = vrot.lane.b32.xlu0 %v454, 32
  %v485 = vpop.permute.xlu0 %484
  %488 = vst.msk [vmem:[%s457 + $0x7] sm:$0x3] %vm180, %v483
  %489 = vst.msk [vmem:[%s457 + $0x17] sm:$0x3] %vm180, %v483
  %490 = vst.msk [vmem:[%s457 + $0xa7] sm:$0x3] %vm180, %v485
  %491 = vst.msk [vmem:[%s457 + $0xb7] sm:$0x3] %vm180, %v485
  %v492 = vld [vmem:[#allocation2] sm:$0xff]
  %v493 = vld [vmem:[#allocation2 + $0x10] sm:$0xff]
  %v494 = vld [vmem:[#allocation2 + $0x20] sm:$0xff]
  %v495 = vld [vmem:[#allocation2 + $0x30] sm:$0xff]
  %v496 = vld [vmem:[#allocation2 + $0x40] sm:$0xff]
  %v497 = vld [vmem:[#allocation2 + $0x50] sm:$0xff]
  %v498 = vld [vmem:[#allocation2 + $0x60] sm:$0xff]
  %v499 = vld [vmem:[#allocation2 + $0x70] sm:$0xff]
  %v500 = vld [vmem:[#allocation2 + $0xa0] sm:$0xff]
  %v501 = vld [vmem:[#allocation2 + $0xb0] sm:$0xff]
  %v502 = vld [vmem:[#allocation2 + $0xc0] sm:$0xff]
  %v503 = vld [vmem:[#allocation2 + $0xd0] sm:$0xff]
  %v504 = vld [vmem:[#allocation2 + $0xe0] sm:$0xff]
  %v505 = vld [vmem:[#allocation2 + $0xf0] sm:$0xff]
  %v506 = vld [vmem:[#allocation2 + $0x100] sm:$0xff]
  %v507 = vld [vmem:[#allocation2 + $0x110] sm:$0xff]
  %v508 = vld [vmem:[#allocation2 + $0x1] sm:$0xff]
  %v509 = vld [vmem:[#allocation2 + $0x11] sm:$0xff]
  %v510 = vld [vmem:[#allocation2 + $0x21] sm:$0xff]
  %v511 = vld [vmem:[#allocation2 + $0x31] sm:$0xff]
  %v512 = vld [vmem:[#allocation2 + $0x41] sm:$0xff]
  %v513 = vld [vmem:[#allocation2 + $0x51] sm:$0xff]
  %v514 = vld [vmem:[#allocation2 + $0x61] sm:$0xff]
  %v515 = vld [vmem:[#allocation2 + $0x71] sm:$0xff]
  %v516 = vld [vmem:[#allocation2 + $0xa1] sm:$0xff]
  %v517 = vld [vmem:[#allocation2 + $0xb1] sm:$0xff]
  %v518 = vld [vmem:[#allocation2 + $0xc1] sm:$0xff]
  %v519 = vld [vmem:[#allocation2 + $0xd1] sm:$0xff]
  %v520 = vld [vmem:[#allocation2 + $0xe1] sm:$0xff]
  %v521 = vld [vmem:[#allocation2 + $0xf1] sm:$0xff]
  %v522 = vld [vmem:[#allocation2 + $0x101] sm:$0xff]
  %v523 = vld [vmem:[#allocation2 + $0x111] sm:$0xff]
  %v524 = vld [vmem:[#allocation2 + $0x2] sm:$0xff]
  %v525 = vld [vmem:[#allocation2 + $0x12] sm:$0xff]
  %v526 = vld [vmem:[#allocation2 + $0x22] sm:$0xff]
  %v527 = vld [vmem:[#allocation2 + $0x32] sm:$0xff]
  %v528 = vld [vmem:[#allocation2 + $0x42] sm:$0xff]
  %v529 = vld [vmem:[#allocation2 + $0x52] sm:$0xff]
  %v530 = vld [vmem:[#allocation2 + $0x62] sm:$0xff]
  %v531 = vld [vmem:[#allocation2 + $0x72] sm:$0xff]
  %v532 = vld [vmem:[#allocation2 + $0xa2] sm:$0xff]
  %v533 = vld [vmem:[#allocation2 + $0xb2] sm:$0xff]
  %v534 = vld [vmem:[#allocation2 + $0xc2] sm:$0xff]
  %v535 = vld [vmem:[#allocation2 + $0xd2] sm:$0xff]
  %v536 = vld [vmem:[#allocation2 + $0xe2] sm:$0xff]
  %v537 = vld [vmem:[#allocation2 + $0xf2] sm:$0xff]
  %v538 = vld [vmem:[#allocation2 + $0x102] sm:$0xff]
  %v539 = vld [vmem:[#allocation2 + $0x112] sm:$0xff]
  %v540 = vld [vmem:[%s253] sm:$0xff]
  %v541 = vld [vmem:[%s253 + $0x10] sm:$0xff]
  %v542 = vld [vmem:[%s253 + $0x20] sm:$0xff]
  %v543 = vld [vmem:[%s253 + $0x30] sm:$0xff]
  %v544 = vld [vmem:[%s253 + $0x40] sm:$0xff]
  %v545 = vld [vmem:[%s253 + $0x50] sm:$0xff]
  %v546 = vld [vmem:[%s253 + $0x60] sm:$0xff]
  %v547 = vld [vmem:[%s253 + $0x70] sm:$0xff]
  %v548 = vld [vmem:[%s253 + $0xa0] sm:$0xff]
  %v549 = vld [vmem:[%s253 + $0xb0] sm:$0xff]
  %v550 = vld [vmem:[%s253 + $0xc0] sm:$0xff]
  %v551 = vld [vmem:[%s253 + $0xd0] sm:$0xff]
  %v552 = vld [vmem:[%s253 + $0xe0] sm:$0xff]
  %v553 = vld [vmem:[%s253 + $0xf0] sm:$0xff]
  %v554 = vld [vmem:[%s253 + $0x100] sm:$0xff]
  %v555 = vld [vmem:[%s253 + $0x110] sm:$0xff]
  %v556 = vld [vmem:[%s253 + $0x1] sm:$0xff]
  %v557 = vld [vmem:[%s253 + $0x11] sm:$0xff]
  %v558 = vld [vmem:[%s253 + $0x21] sm:$0xff]
  %v559 = vld [vmem:[%s253 + $0x31] sm:$0xff]
  %v560 = vld [vmem:[%s253 + $0x41] sm:$0xff]
  %v561 = vld [vmem:[%s253 + $0x51] sm:$0xff]
  %v562 = vld [vmem:[%s253 + $0x61] sm:$0xff]
  %v563 = vld [vmem:[%s253 + $0x71] sm:$0xff]
  %v564 = vld [vmem:[%s253 + $0xa1] sm:$0xff]
  %v565 = vld [vmem:[%s253 + $0xb1] sm:$0xff]
  %v566 = vld [vmem:[%s253 + $0xc1] sm:$0xff]
  %v567 = vld [vmem:[%s253 + $0xd1] sm:$0xff]
  %v568 = vld [vmem:[%s253 + $0xe1] sm:$0xff]
  %v569 = vld [vmem:[%s253 + $0xf1] sm:$0xff]
  %v570 = vld [vmem:[%s253 + $0x101] sm:$0xff]
  %v571 = vld [vmem:[%s253 + $0x111] sm:$0xff]
  %v572 = vld [vmem:[%s253 + $0x2] sm:$0xff]
  %v573 = vld [vmem:[%s253 + $0x12] sm:$0xff]
  %v574 = vld [vmem:[%s253 + $0x22] sm:$0xff]
  %v575 = vld [vmem:[%s253 + $0x32] sm:$0xff]
  %v576 = vld [vmem:[%s253 + $0x42] sm:$0xff]
  %v577 = vld [vmem:[%s253 + $0x52] sm:$0xff]
  %v578 = vld [vmem:[%s253 + $0x62] sm:$0xff]
  %v579 = vld [vmem:[%s253 + $0x72] sm:$0xff]
  %v580 = vld [vmem:[%s253 + $0xa2] sm:$0xff]
  %v581 = vld [vmem:[%s253 + $0xb2] sm:$0xff]
  %v582 = vld [vmem:[%s253 + $0xc2] sm:$0xff]
  %v583 = vld [vmem:[%s253 + $0xd2] sm:$0xff]
  %v584 = vld [vmem:[%s253 + $0xe2] sm:$0xff]
  %v585 = vld [vmem:[%s253 + $0xf2] sm:$0xff]
  %v586 = vld [vmem:[%s253 + $0x102] sm:$0xff]
  %v587 = vld [vmem:[%s253 + $0x112] sm:$0xff]
  %s588 = scalar_lea.vmem [#allocation2], 32
  %v589 = vld [vmem:[%s588] sm:$0xff]
  %v590 = vld [vmem:[%s588 + $0x10] sm:$0xff]
  %v591 = vld [vmem:[%s588 + $0x20] sm:$0xff]
  %v592 = vld [vmem:[%s588 + $0x30] sm:$0xff]
  %v593 = vld [vmem:[%s588 + $0x40] sm:$0xff]
  %v594 = vld [vmem:[%s588 + $0x50] sm:$0xff]
  %v595 = vld [vmem:[%s588 + $0x60] sm:$0xff]
  %v596 = vld [vmem:[%s588 + $0x70] sm:$0xff]
  %v597 = vld [vmem:[%s588 + $0xa0] sm:$0xff]
  %v598 = vld [vmem:[%s588 + $0xb0] sm:$0xff]
  %v599 = vld [vmem:[%s588 + $0xc0] sm:$0xff]
  %v600 = vld [vmem:[%s588 + $0xd0] sm:$0xff]
  %v601 = vld [vmem:[%s588 + $0xe0] sm:$0xff]
  %v602 = vld [vmem:[%s588 + $0xf0] sm:$0xff]
  %v603 = vld [vmem:[%s588 + $0x100] sm:$0xff]
  %v604 = vld [vmem:[%s588 + $0x110] sm:$0xff]
  %v605 = vld [vmem:[%s588 + $0x1] sm:$0xff]
  %v606 = vld [vmem:[%s588 + $0x11] sm:$0xff]
  %v607 = vld [vmem:[%s588 + $0x21] sm:$0xff]
  %v608 = vld [vmem:[%s588 + $0x31] sm:$0xff]
  %v609 = vld [vmem:[%s588 + $0x41] sm:$0xff]
  %v610 = vld [vmem:[%s588 + $0x51] sm:$0xff]
  %v611 = vld [vmem:[%s588 + $0x61] sm:$0xff]
  %v612 = vld [vmem:[%s588 + $0x71] sm:$0xff]
  %v613 = vld [vmem:[%s588 + $0xa1] sm:$0xff]
  %v614 = vld [vmem:[%s588 + $0xb1] sm:$0xff]
  %v615 = vld [vmem:[%s588 + $0xc1] sm:$0xff]
  %v616 = vld [vmem:[%s588 + $0xd1] sm:$0xff]
  %v617 = vld [vmem:[%s588 + $0xe1] sm:$0xff]
  %v618 = vld [vmem:[%s588 + $0xf1] sm:$0xff]
  %v619 = vld [vmem:[%s588 + $0x101] sm:$0xff]
  %v620 = vld [vmem:[%s588 + $0x111] sm:$0xff]
  %v621 = vld [vmem:[%s588 + $0x2] sm:$0xff]
  %v622 = vld [vmem:[%s588 + $0x12] sm:$0xff]
  %v623 = vld [vmem:[%s588 + $0x22] sm:$0xff]
  %v624 = vld [vmem:[%s588 + $0x32] sm:$0xff]
  %v625 = vld [vmem:[%s588 + $0x42] sm:$0xff]
  %v626 = vld [vmem:[%s588 + $0x52] sm:$0xff]
  %v627 = vld [vmem:[%s588 + $0x62] sm:$0xff]
  %v628 = vld [vmem:[%s588 + $0x72] sm:$0xff]
  %v629 = vld [vmem:[%s588 + $0xa2] sm:$0xff]
  %v630 = vld [vmem:[%s588 + $0xb2] sm:$0xff]
  %v631 = vld [vmem:[%s588 + $0xc2] sm:$0xff]
  %v632 = vld [vmem:[%s588 + $0xd2] sm:$0xff]
  %v633 = vld [vmem:[%s588 + $0xe2] sm:$0xff]
  %v634 = vld [vmem:[%s588 + $0xf2] sm:$0xff]
  %v635 = vld [vmem:[%s588 + $0x102] sm:$0xff]
  %v636 = vld [vmem:[%s588 + $0x112] sm:$0xff]
  %653 = vrot.lane.b32.xlu0 %v508, 32
  %v654 = vpop.permute.xlu0 %653
  %655 = vrot.lane.b32.xlu0 %v509, 32
  %v656 = vpop.permute.xlu0 %655
  %657 = vrot.lane.b32.xlu0 %v510, 32
  %v658 = vpop.permute.xlu0 %657
  %659 = vrot.lane.b32.xlu0 %v511, 32
  %v660 = vpop.permute.xlu0 %659
  %661 = vrot.lane.b32.xlu0 %v512, 32
  %v662 = vpop.permute.xlu0 %661
  %663 = vrot.lane.b32.xlu0 %v513, 32
  %v664 = vpop.permute.xlu0 %663
  %665 = vrot.lane.b32.xlu0 %v514, 32
  %v666 = vpop.permute.xlu0 %665
  %667 = vrot.lane.b32.xlu0 %v515, 32
  %v668 = vpop.permute.xlu0 %667
  %669 = vrot.lane.b32.xlu0 %v516, 32
  %v670 = vpop.permute.xlu0 %669
  %671 = vrot.lane.b32.xlu0 %v517, 32
  %v672 = vpop.permute.xlu0 %671
  %673 = vrot.lane.b32.xlu0 %v518, 32
  %v674 = vpop.permute.xlu0 %673
  %675 = vrot.lane.b32.xlu0 %v519, 32
  %v676 = vpop.permute.xlu0 %675
  %677 = vrot.lane.b32.xlu0 %v520, 32
  %v678 = vpop.permute.xlu0 %677
  %679 = vrot.lane.b32.xlu0 %v521, 32
  %v680 = vpop.permute.xlu0 %679
  %681 = vrot.lane.b32.xlu0 %v522, 32
  %v682 = vpop.permute.xlu0 %681
  %683 = vrot.lane.b32.xlu0 %v523, 32
  %v684 = vpop.permute.xlu0 %683
  %717 = vrot.lane.b32.xlu0 %v524, 64
  %v718 = vpop.permute.xlu0 %717
  %719 = vrot.lane.b32.xlu0 %v525, 64
  %v720 = vpop.permute.xlu0 %719
  %721 = vrot.lane.b32.xlu0 %v526, 64
  %v722 = vpop.permute.xlu0 %721
  %723 = vrot.lane.b32.xlu0 %v527, 64
  %v724 = vpop.permute.xlu0 %723
  %725 = vrot.lane.b32.xlu0 %v528, 64
  %v726 = vpop.permute.xlu0 %725
  %727 = vrot.lane.b32.xlu0 %v529, 64
  %v728 = vpop.permute.xlu0 %727
  %729 = vrot.lane.b32.xlu0 %v530, 64
  %v730 = vpop.permute.xlu0 %729
  %731 = vrot.lane.b32.xlu0 %v531, 64
  %v732 = vpop.permute.xlu0 %731
  %733 = vrot.lane.b32.xlu0 %v532, 64
  %v734 = vpop.permute.xlu0 %733
  %735 = vrot.lane.b32.xlu0 %v533, 64
  %v736 = vpop.permute.xlu0 %735
  %737 = vrot.lane.b32.xlu0 %v534, 64
  %v738 = vpop.permute.xlu0 %737
  %739 = vrot.lane.b32.xlu0 %v535, 64
  %v740 = vpop.permute.xlu0 %739
  %741 = vrot.lane.b32.xlu0 %v536, 64
  %v742 = vpop.permute.xlu0 %741
  %743 = vrot.lane.b32.xlu0 %v537, 64
  %v744 = vpop.permute.xlu0 %743
  %745 = vrot.lane.b32.xlu0 %v538, 64
  %v746 = vpop.permute.xlu0 %745
  %747 = vrot.lane.b32.xlu0 %v539, 64
  %v748 = vpop.permute.xlu0 %747
  %781 = vrot.lane.b32.xlu0 %v540, 96
  %v782 = vpop.permute.xlu0 %781
  %783 = vrot.lane.b32.xlu0 %v541, 96
  %v784 = vpop.permute.xlu0 %783
  %785 = vrot.lane.b32.xlu0 %v542, 96
  %v786 = vpop.permute.xlu0 %785
  %787 = vrot.lane.b32.xlu0 %v543, 96
  %v788 = vpop.permute.xlu0 %787
  %789 = vrot.lane.b32.xlu0 %v544, 96
  %v790 = vpop.permute.xlu0 %789
  %791 = vrot.lane.b32.xlu0 %v545, 96
  %v792 = vpop.permute.xlu0 %791
  %793 = vrot.lane.b32.xlu0 %v546, 96
  %v794 = vpop.permute.xlu0 %793
  %795 = vrot.lane.b32.xlu0 %v547, 96
  %v796 = vpop.permute.xlu0 %795
  %797 = vrot.lane.b32.xlu0 %v548, 96
  %v798 = vpop.permute.xlu0 %797
  %799 = vrot.lane.b32.xlu0 %v549, 96
  %v800 = vpop.permute.xlu0 %799
  %801 = vrot.lane.b32.xlu0 %v550, 96
  %v802 = vpop.permute.xlu0 %801
  %803 = vrot.lane.b32.xlu0 %v551, 96
  %v804 = vpop.permute.xlu0 %803
  %805 = vrot.lane.b32.xlu0 %v552, 96
  %v806 = vpop.permute.xlu0 %805
  %807 = vrot.lane.b32.xlu0 %v553, 96
  %v808 = vpop.permute.xlu0 %807
  %809 = vrot.lane.b32.xlu0 %v554, 96
  %v810 = vpop.permute.xlu0 %809
  %811 = vrot.lane.b32.xlu0 %v555, 96
  %v812 = vpop.permute.xlu0 %811
  %845 = vrot.lane.b32.xlu0 %v572, 32
  %v846 = vpop.permute.xlu0 %845
  %847 = vrot.lane.b32.xlu0 %v573, 32
  %v848 = vpop.permute.xlu0 %847
  %849 = vrot.lane.b32.xlu0 %v574, 32
  %v850 = vpop.permute.xlu0 %849
  %851 = vrot.lane.b32.xlu0 %v575, 32
  %v852 = vpop.permute.xlu0 %851
  %853 = vrot.lane.b32.xlu0 %v576, 32
  %v854 = vpop.permute.xlu0 %853
  %855 = vrot.lane.b32.xlu0 %v577, 32
  %v856 = vpop.permute.xlu0 %855
  %857 = vrot.lane.b32.xlu0 %v578, 32
  %v858 = vpop.permute.xlu0 %857
  %859 = vrot.lane.b32.xlu0 %v579, 32
  %v860 = vpop.permute.xlu0 %859
  %861 = vrot.lane.b32.xlu0 %v580, 32
  %v862 = vpop.permute.xlu0 %861
  %863 = vrot.lane.b32.xlu0 %v581, 32
  %v864 = vpop.permute.xlu0 %863
  %865 = vrot.lane.b32.xlu0 %v582, 32
  %v866 = vpop.permute.xlu0 %865
  %867 = vrot.lane.b32.xlu0 %v583, 32
  %v868 = vpop.permute.xlu0 %867
  %869 = vrot.lane.b32.xlu0 %v584, 32
  %v870 = vpop.permute.xlu0 %869
  %871 = vrot.lane.b32.xlu0 %v585, 32
  %v872 = vpop.permute.xlu0 %871
  %873 = vrot.lane.b32.xlu0 %v586, 32
  %v874 = vpop.permute.xlu0 %873
  %875 = vrot.lane.b32.xlu0 %v587, 32
  %v876 = vpop.permute.xlu0 %875
  %909 = vrot.lane.b32.xlu0 %v589, 64
  %v910 = vpop.permute.xlu0 %909
  %911 = vrot.lane.b32.xlu0 %v590, 64
  %v912 = vpop.permute.xlu0 %911
  %913 = vrot.lane.b32.xlu0 %v591, 64
  %v914 = vpop.permute.xlu0 %913
  %915 = vrot.lane.b32.xlu0 %v592, 64
  %v916 = vpop.permute.xlu0 %915
  %917 = vrot.lane.b32.xlu0 %v593, 64
  %v918 = vpop.permute.xlu0 %917
  %919 = vrot.lane.b32.xlu0 %v594, 64
  %v920 = vpop.permute.xlu0 %919
  %921 = vrot.lane.b32.xlu0 %v595, 64
  %v922 = vpop.permute.xlu0 %921
  %923 = vrot.lane.b32.xlu0 %v596, 64
  %v924 = vpop.permute.xlu0 %923
  %925 = vrot.lane.b32.xlu0 %v597, 64
  %v926 = vpop.permute.xlu0 %925
  %927 = vrot.lane.b32.xlu0 %v598, 64
  %v928 = vpop.permute.xlu0 %927
  %929 = vrot.lane.b32.xlu0 %v599, 64
  %v930 = vpop.permute.xlu0 %929
  %931 = vrot.lane.b32.xlu0 %v600, 64
  %v932 = vpop.permute.xlu0 %931
  %933 = vrot.lane.b32.xlu0 %v601, 64
  %v934 = vpop.permute.xlu0 %933
  %935 = vrot.lane.b32.xlu0 %v602, 64
  %v936 = vpop.permute.xlu0 %935
  %937 = vrot.lane.b32.xlu0 %v603, 64
  %v938 = vpop.permute.xlu0 %937
  %939 = vrot.lane.b32.xlu0 %v604, 64
  %v940 = vpop.permute.xlu0 %939
  %973 = vrot.lane.b32.xlu0 %v605, 96
  %v974 = vpop.permute.xlu0 %973
  %975 = vrot.lane.b32.xlu0 %v606, 96
  %v976 = vpop.permute.xlu0 %975
  %977 = vrot.lane.b32.xlu0 %v607, 96
  %v978 = vpop.permute.xlu0 %977
  %979 = vrot.lane.b32.xlu0 %v608, 96
  %v980 = vpop.permute.xlu0 %979
  %981 = vrot.lane.b32.xlu0 %v609, 96
  %v982 = vpop.permute.xlu0 %981
  %983 = vrot.lane.b32.xlu0 %v610, 96
  %v984 = vpop.permute.xlu0 %983
  %985 = vrot.lane.b32.xlu0 %v611, 96
  %v986 = vpop.permute.xlu0 %985
  %987 = vrot.lane.b32.xlu0 %v612, 96
  %v988 = vpop.permute.xlu0 %987
  %989 = vrot.lane.b32.xlu0 %v613, 96
  %v990 = vpop.permute.xlu0 %989
  %991 = vrot.lane.b32.xlu0 %v614, 96
  %v992 = vpop.permute.xlu0 %991
  %993 = vrot.lane.b32.xlu0 %v615, 96
  %v994 = vpop.permute.xlu0 %993
  %995 = vrot.lane.b32.xlu0 %v616, 96
  %v996 = vpop.permute.xlu0 %995
  %997 = vrot.lane.b32.xlu0 %v617, 96
  %v998 = vpop.permute.xlu0 %997
  %999 = vrot.lane.b32.xlu0 %v618, 96
  %v1000 = vpop.permute.xlu0 %999
  %1001 = vrot.lane.b32.xlu0 %v619, 96
  %v1002 = vpop.permute.xlu0 %1001
  %1003 = vrot.lane.b32.xlu0 %v620, 96
  %v1004 = vpop.permute.xlu0 %1003
  %v1021 = vsel %vm93, %v492, %v654
  %v1022 = vsel %vm93, %v493, %v656
  %v1023 = vsel %vm93, %v494, %v658
  %v1024 = vsel %vm93, %v495, %v660
  %v1025 = vsel %vm93, %v496, %v662
  %v1026 = vsel %vm93, %v497, %v664
  %v1027 = vsel %vm93, %v498, %v666
  %v1028 = vsel %vm93, %v499, %v668
  %v1029 = vsel %vm93, %v500, %v670
  %v1030 = vsel %vm93, %v501, %v672
  %v1031 = vsel %vm93, %v502, %v674
  %v1032 = vsel %vm93, %v503, %v676
  %v1033 = vsel %vm93, %v504, %v678
  %v1034 = vsel %vm93, %v505, %v680
  %v1035 = vsel %vm93, %v506, %v682
  %v1036 = vsel %vm93, %v507, %v684
  %vm1037 = vcmask 523264
  %v1038 = vsel %vm1037, %v1021, %v718
  %v1039 = vsel %vm1037, %v1022, %v720
  %v1040 = vsel %vm1037, %v1023, %v722
  %v1041 = vsel %vm1037, %v1024, %v724
  %v1042 = vsel %vm1037, %v1025, %v726
  %v1043 = vsel %vm1037, %v1026, %v728
  %v1044 = vsel %vm1037, %v1027, %v730
  %v1045 = vsel %vm1037, %v1028, %v732
  %v1046 = vsel %vm1037, %v1029, %v734
  %v1047 = vsel %vm1037, %v1030, %v736
  %v1048 = vsel %vm1037, %v1031, %v738
  %v1049 = vsel %vm1037, %v1032, %v740
  %v1050 = vsel %vm1037, %v1033, %v742
  %v1051 = vsel %vm1037, %v1034, %v744
  %v1052 = vsel %vm1037, %v1035, %v746
  %v1053 = vsel %vm1037, %v1036, %v748
  %vm1054 = vcmask 785408
  %v1055 = vsel %vm1054, %v1038, %v782
  %v1056 = vsel %vm1054, %v1039, %v784
  %v1057 = vsel %vm1054, %v1040, %v786
  %v1058 = vsel %vm1054, %v1041, %v788
  %v1059 = vsel %vm1054, %v1042, %v790
  %v1060 = vsel %vm1054, %v1043, %v792
  %v1061 = vsel %vm1054, %v1044, %v794
  %v1062 = vsel %vm1054, %v1045, %v796
  %v1063 = vsel %vm1054, %v1046, %v798
  %v1064 = vsel %vm1054, %v1047, %v800
  %v1065 = vsel %vm1054, %v1048, %v802
  %v1066 = vsel %vm1054, %v1049, %v804
  %v1067 = vsel %vm1054, %v1050, %v806
  %v1068 = vsel %vm1054, %v1051, %v808
  %v1069 = vsel %vm1054, %v1052, %v810
  %v1070 = vsel %vm1054, %v1053, %v812
  %v1071 = vsel %vm93, %v556, %v846
  %v1072 = vsel %vm93, %v557, %v848
  %v1073 = vsel %vm93, %v558, %v850
  %v1074 = vsel %vm93, %v559, %v852
  %v1075 = vsel %vm93, %v560, %v854
  %v1076 = vsel %vm93, %v561, %v856
  %v1077 = vsel %vm93, %v562, %v858
  %v1078 = vsel %vm93, %v563, %v860
  %v1079 = vsel %vm93, %v564, %v862
  %v1080 = vsel %vm93, %v565, %v864
  %v1081 = vsel %vm93, %v566, %v866
  %v1082 = vsel %vm93, %v567, %v868
  %v1083 = vsel %vm93, %v568, %v870
  %v1084 = vsel %vm93, %v569, %v872
  %v1085 = vsel %vm93, %v570, %v874
  %v1086 = vsel %vm93, %v571, %v876
  %v1087 = vsel %vm1037, %v1071, %v910
  %v1088 = vsel %vm1037, %v1072, %v912
  %v1089 = vsel %vm1037, %v1073, %v914
  %v1090 = vsel %vm1037, %v1074, %v916
  %v1091 = vsel %vm1037, %v1075, %v918
  %v1092 = vsel %vm1037, %v1076, %v920
  %v1093 = vsel %vm1037, %v1077, %v922
  %v1094 = vsel %vm1037, %v1078, %v924
  %v1095 = vsel %vm1037, %v1079, %v926
  %v1096 = vsel %vm1037, %v1080, %v928
  %v1097 = vsel %vm1037, %v1081, %v930
  %v1098 = vsel %vm1037, %v1082, %v932
  %v1099 = vsel %vm1037, %v1083, %v934
  %v1100 = vsel %vm1037, %v1084, %v936
  %v1101 = vsel %vm1037, %v1085, %v938
  %v1102 = vsel %vm1037, %v1086, %v940
  %v1103 = vsel %vm1054, %v1087, %v974
  %v1104 = vsel %vm1054, %v1088, %v976
  %v1105 = vsel %vm1054, %v1089, %v978
  %v1106 = vsel %vm1054, %v1090, %v980
  %v1107 = vsel %vm1054, %v1091, %v982
  %v1108 = vsel %vm1054, %v1092, %v984
  %v1109 = vsel %vm1054, %v1093, %v986
  %v1110 = vsel %vm1054, %v1094, %v988
  %v1111 = vsel %vm1054, %v1095, %v990
  %v1112 = vsel %vm1054, %v1096, %v992
  %v1113 = vsel %vm1054, %v1097, %v994
  %v1114 = vsel %vm1054, %v1098, %v996
  %v1115 = vsel %vm1054, %v1099, %v998
  %v1116 = vsel %vm1054, %v1100, %v1000
  %v1117 = vsel %vm1054, %v1101, %v1002
  %v1118 = vsel %vm1054, %v1102, %v1004
  %v1119 = vpack.c.bf16 %v1056, %v1055
  %v1120 = vpack.c.bf16 %v1104, %v1103
  %v1121 = vpack.c.bf16 %v622, %v621
  %v1122 = vpack.c.bf16 %v1058, %v1057
  %v1123 = vpack.c.bf16 %v1106, %v1105
  %v1124 = vpack.c.bf16 %v624, %v623
  %v1125 = vpack.c.bf16 %v1060, %v1059
  %v1126 = vpack.c.bf16 %v1108, %v1107
  %v1127 = vpack.c.bf16 %v626, %v625
  %v1128 = vpack.c.bf16 %v1062, %v1061
  %v1129 = vpack.c.bf16 %v1110, %v1109
  %v1130 = vpack.c.bf16 %v628, %v627
  %v1131 = vpack.c.bf16 %v1064, %v1063
  %v1132 = vpack.c.bf16 %v1112, %v1111
  %v1133 = vpack.c.bf16 %v630, %v629
  %v1134 = vpack.c.bf16 %v1066, %v1065
  %v1135 = vpack.c.bf16 %v1114, %v1113
  %v1136 = vpack.c.bf16 %v632, %v631
  %v1137 = vpack.c.bf16 %v1068, %v1067
  %v1138 = vpack.c.bf16 %v1116, %v1115
  %v1139 = vpack.c.bf16 %v634, %v633
  %v1140 = vpack.c.bf16 %v1070, %v1069
  %v1141 = vpack.c.bf16 %v1118, %v1117
  %v1142 = vpack.c.bf16 %v636, %v635
  %v1143 = vld [vmem:[%s3] sm:$0xff]
  %v1144 = vld [vmem:[%s3 + $0x8] sm:$0xff]
  %v1145 = vld [vmem:[%s3 + $0x10] sm:$0xff]
  %v1146 = vld [vmem:[%s3 + $0x18] sm:$0xff]
  %v1147 = vld [vmem:[%s3 + $0x20] sm:$0xff]
  %v1148 = vld [vmem:[%s3 + $0x28] sm:$0xff]
  %v1149 = vld [vmem:[%s3 + $0x30] sm:$0xff]
  %v1150 = vld [vmem:[%s3 + $0x38] sm:$0xff]
  %v1151 = vld [vmem:[%s3 + $0x40] sm:$0xff]
  %v1152 = vld [vmem:[%s3 + $0x48] sm:$0xff]
  %v1153 = vld [vmem:[%s3 + $0x50] sm:$0xff]
  %v1154 = vld [vmem:[%s3 + $0x58] sm:$0xff]
  %v1155 = vld [vmem:[%s3 + $0x60] sm:$0xff]
  %v1156 = vld [vmem:[%s3 + $0x68] sm:$0xff]
  %v1157 = vld [vmem:[%s3 + $0x70] sm:$0xff]
  %v1158 = vld [vmem:[%s3 + $0x78] sm:$0xff]
  %v1159 = vld [vmem:[%s3 + $0x80] sm:$0xff]
  %v1160 = vld [vmem:[%s3 + $0x88] sm:$0xff]
  %v1161 = vld [vmem:[%s3 + $0x90] sm:$0xff]
  %v1162 = vld [vmem:[%s3 + $0x98] sm:$0xff]
  %v1163 = vld [vmem:[%s3 + $0xa0] sm:$0xff]
  %v1164 = vld [vmem:[%s3 + $0xa8] sm:$0xff]
  %v1165 = vld [vmem:[%s3 + $0xb0] sm:$0xff]
  %v1166 = vld [vmem:[%s3 + $0xb8] sm:$0xff]
  %v1167 = vld [vmem:[%s3 + $0xc0] sm:$0xff]
  %v1168 = vld [vmem:[%s3 + $0xc8] sm:$0xff]
  %v1169 = vld [vmem:[%s3 + $0xd0] sm:$0xff]
  %v1170 = vld [vmem:[%s3 + $0xd8] sm:$0xff]
  %v1171 = vld [vmem:[%s3 + $0xe0] sm:$0xff]
  %v1172 = vld [vmem:[%s3 + $0xe8] sm:$0xff]
  %v1173 = vld [vmem:[%s3 + $0xf0] sm:$0xff]
  %v1174 = vld [vmem:[%s3 + $0xf8] sm:$0xff]
  %v1175 = vld [vmem:[%s3 + $0x100] sm:$0xff]
  %v1176 = vld [vmem:[%s3 + $0x108] sm:$0xff]
  %v1177 = vld [vmem:[%s3 + $0x110] sm:$0xff]
  %v1178 = vld [vmem:[%s3 + $0x118] sm:$0xff]
  %v1179 = vpack.c.bf16 %v1144, %v1143
  %v1180 = vpack.c.bf16 %v1146, %v1145
  %v1181 = vpack.c.bf16 %v1148, %v1147
  %v1182 = vpack.c.bf16 %v1150, %v1149
  %v1183 = vpack.c.bf16 %v1152, %v1151
  %v1184 = vpack.c.bf16 %v1154, %v1153
  %v1185 = vpack.c.bf16 %v1156, %v1155
  %v1186 = vpack.c.bf16 %v1158, %v1157
  %v1187 = vpack.c.bf16 %v1160, %v1159
  %v1188 = vpack.c.bf16 %v1162, %v1161
  %v1189 = vpack.c.bf16 %v1164, %v1163
  %v1190 = vpack.c.bf16 %v1166, %v1165
  %v1191 = vpack.c.bf16 %v1168, %v1167
  %v1192 = vpack.c.bf16 %v1170, %v1169
  %v1193 = vpack.c.bf16 %v1172, %v1171
  %v1194 = vpack.c.bf16 %v1174, %v1173
  %v1195 = vpack.c.bf16 %v1176, %v1175
  %v1196 = vpack.c.bf16 %v1178, %v1177
  %v1197 = vld [vmem:[%s4] sm:$0x1]
  %v1199 = vlaneseq
  %v1200 = vshrl.u32 %v1199, 7
  %v1201 = vsub.s32 0, %v1200
  %v1202 = vrot.slane %v1197, %v1201
  %v1205 = vsel %vm93, %v1121, 0
  %v1208 = vsel %vm93, %v1124, 0
  %v1211 = vsel %vm93, %v1127, 0
  %v1214 = vsel %vm93, %v1130, 0
  %v1217 = vsel %vm93, %v1133, 0
  %v1220 = vsel %vm93, %v1136, 0
  %v1223 = vsel %vm93, %v1139, 0
  %v1226 = vsel %vm93, %v1142, 0
  %1228 = vmatprep.subr.bf16.mxu0 0
  %1229 = vmatpush1.bf16.msra.mxu0 %v1179
  %1230 = vmatprep.subr.bf16.mxu0 0
  %1231 = vmatpush1.bf16.msra.mxu0 %v1180
  %1232 = vmatprep.subr.bf16.mxu0 0
  %1233 = vmatpush1.bf16.msra.mxu0 %v1181
  %1234 = vmatprep.subr.bf16.mxu0 0
  %1235 = vmatpush1.bf16.msra.mxu0 %v1182
  %1236 = vmatprep.subr.bf16.mxu0 0
  %1237 = vmatpush1.bf16.msra.mxu0 %v1183
  %1238 = vmatprep.subr.bf16.mxu0 0
  %1239 = vmatpush1.bf16.msra.mxu0 %v1184
  %1240 = vmatprep.subr.bf16.mxu0 0
  %1241 = vmatpush1.bf16.msra.mxu0 %v1185
  %1242 = vmatprep.subr.bf16.mxu0 0
  %1243 = vmatpush1.bf16.msra.mxu0 %v1186
  %1244 = vmatprep.subr.bf16.mxu0 0
  %1245 = vmatpush1.bf16.msra.mxu0 %v1187
  %1246 = vmatprep.subr.bf16.mxu0 0
  %1247 = vmatpush1.bf16.msra.mxu0 %v1188
  %1248 = vmatprep.subr.bf16.mxu0 0
  %1249 = vmatpush1.bf16.msra.mxu0 %v1189
  %1250 = vmatprep.subr.bf16.mxu0 0
  %1251 = vmatpush1.bf16.msra.mxu0 %v1190
  %1252 = vmatprep.subr.bf16.mxu0 0
  %1253 = vmatpush1.bf16.msra.mxu0 %v1191
  %1254 = vmatprep.subr.bf16.mxu0 0
  %1255 = vmatpush1.bf16.msra.mxu0 %v1192
  %1256 = vmatprep.subr.bf16.mxu0 0
  %1257 = vmatpush1.bf16.msra.mxu0 %v1193
  %1258 = vmatprep.subr.bf16.mxu0 0
  %1259 = vmatpush1.bf16.msra.mxu0 %v1194
  %1260 = vmatprep.mubr.bf16.mxu0 %v1120
  %1261 = vmatmul.mubr.bf16.gmra.mrb[0].mxu0 %v1119
  %v1262 = vpop.f32.mrb[0].mxu0
  %v1263 = vadd.f32 %v1202, %v1262
  %v1264 = vpop.f32.mrb[0].mxu0
  %v1265 = vpop.f32.mrb[0].mxu0
  %v1266 = vadd.f32 %v1202, %v1265
  %v1267 = vpop.f32.mrb[0].mxu0
  %1268 = vmatprep.mubr.bf16.mxu0 %v1123
  %1269 = vmatmul.mubr.bf16.gmra.mrb[0].mxu0 %v1122
  %v1270 = vpop.f32.mrb[0].mxu0
  %v1271 = vadd.f32 %v1202, %v1270
  %v1272 = vpop.f32.mrb[0].mxu0
  %v1273 = vpop.f32.mrb[0].mxu0
  %v1274 = vadd.f32 %v1202, %v1273
  %v1275 = vpop.f32.mrb[0].mxu0
  %1276 = vmatprep.mubr.bf16.mxu0 %v1126
  %1277 = vmatmul.mubr.bf16.gmra.mrb[0].mxu0 %v1125
  %v1278 = vpop.f32.mrb[0].mxu0
  %v1279 = vadd.f32 %v1202, %v1278
  %v1280 = vpop.f32.mrb[0].mxu0
  %v1281 = vpop.f32.mrb[0].mxu0
  %v1282 = vadd.f32 %v1202, %v1281
  %v1283 = vpop.f32.mrb[0].mxu0
  %1284 = vmatprep.mubr.bf16.mxu0 %v1129
  %1285 = vmatmul.mubr.bf16.gmra.mrb[0].mxu0 %v1128
  %v1286 = vpop.f32.mrb[0].mxu0
  %v1287 = vadd.f32 %v1202, %v1286
  %v1288 = vpop.f32.mrb[0].mxu0
  %v1289 = vpop.f32.mrb[0].mxu0
  %v1290 = vadd.f32 %v1202, %v1289
  %v1291 = vpop.f32.mrb[0].mxu0
  %1292 = vmatprep.mubr.bf16.mxu0 %v1132
  %1293 = vmatmul.mubr.bf16.gmra.mrb[0].mxu0 %v1131
  %v1294 = vpop.f32.mrb[0].mxu0
  %v1295 = vadd.f32 %v1202, %v1294
  %v1296 = vpop.f32.mrb[0].mxu0
  %v1297 = vpop.f32.mrb[0].mxu0
  %v1298 = vadd.f32 %v1202, %v1297
  %v1299 = vpop.f32.mrb[0].mxu0
  %1300 = vmatprep.mubr.bf16.mxu0 %v1135
  %1301 = vmatmul.mubr.bf16.gmra.mrb[0].mxu0 %v1134
  %v1302 = vpop.f32.mrb[0].mxu0
  %v1303 = vadd.f32 %v1202, %v1302
  %v1304 = vpop.f32.mrb[0].mxu0
  %v1305 = vpop.f32.mrb[0].mxu0
  %v1306 = vadd.f32 %v1202, %v1305
  %v1307 = vpop.f32.mrb[0].mxu0
  %1308 = vmatprep.mubr.bf16.mxu0 %v1138
  %1309 = vmatmul.mubr.bf16.gmra.mrb[0].mxu0 %v1137
  %v1310 = vpop.f32.mrb[0].mxu0
  %v1311 = vadd.f32 %v1202, %v1310
  %v1312 = vpop.f32.mrb[0].mxu0
  %v1313 = vpop.f32.mrb[0].mxu0
  %v1314 = vadd.f32 %v1202, %v1313
  %v1315 = vpop.f32.mrb[0].mxu0
  %1316 = vmatprep.mubr.bf16.mxu0 %v1141
  %1317 = vmatmul.mubr.bf16.gmra.mrb[0].mxu0 %v1140
  %v1318 = vpop.f32.mrb[0].mxu0
  %v1319 = vadd.f32 %v1202, %v1318
  %v1320 = vpop.f32.mrb[0].mxu0
  %v1321 = vpop.f32.mrb[0].mxu0
  %v1322 = vadd.f32 %v1202, %v1321
  %v1323 = vpop.f32.mrb[0].mxu0
  %1324 = vdwg.mxu0
  %1325 = vmatprep.subr.bf16.mxu0 0
  %1326 = vmatpush1.bf16.msra.mxu0 %v1195
  %1327 = vmatprep.subr.bf16.mxu0 0
  %1328 = vmatpush1.bf16.msra.mxu0 %v1196
  %1329 = vmatprep.subr.bf16.mxu0 0
  %1330 = vmatpush1.bf16.msra.mxu0 0
  %1331 = vmatprep.subr.bf16.mxu0 0
  %1332 = vmatpush1.bf16.msra.mxu0 0
  %1333 = vmatprep.subr.bf16.mxu0 0
  %1334 = vmatpush1.bf16.msra.mxu0 0
  %1335 = vmatprep.subr.bf16.mxu0 0
  %1336 = vmatpush1.bf16.msra.mxu0 0
  %1337 = vmatprep.subr.bf16.mxu0 0
  %1338 = vmatpush1.bf16.msra.mxu0 0
  %1339 = vmatprep.subr.bf16.mxu0 0
  %1340 = vmatpush1.bf16.msra.mxu0 0
  %1341 = vmatprep.subr.bf16.mxu0 0
  %1342 = vmatpush1.bf16.msra.mxu0 0
  %1343 = vmatprep.subr.bf16.mxu0 0
  %1344 = vmatpush1.bf16.msra.mxu0 0
  %1345 = vmatprep.subr.bf16.mxu0 0
  %1346 = vmatpush1.bf16.msra.mxu0 0
  %1347 = vmatprep.subr.bf16.mxu0 0
  %1348 = vmatpush1.bf16.msra.mxu0 0
  %1349 = vmatprep.subr.bf16.mxu0 0
  %1350 = vmatpush1.bf16.msra.mxu0 0
  %1351 = vmatprep.subr.bf16.mxu0 0
  %1352 = vmatpush1.bf16.msra.mxu0 0
  %1353 = vmatprep.subr.bf16.mxu0 0
  %1354 = vmatpush1.bf16.msra.mxu0 0
  %1355 = vmatprep.subr.bf16.mxu0 0
  %1356 = vmatpush1.bf16.msra.mxu0 0
  %1357 = vmatprep.mubr.bf16.mxu0 0
  %1358 = vmatmul.mubr.bf16.gmra.mrb[0].mxu0 %v1205
  %v1359 = vpop.f32.mrb[0].mxu0
  %v1360 = vadd.f32 %v1263, %v1359
  %v1361 = vpop.f32.mrb[0].mxu0
  %v1362 = vpop.f32.mrb[0].mxu0
  %v1363 = vadd.f32 %v1266, %v1362
  %v1364 = vpop.f32.mrb[0].mxu0
  %1365 = vmatprep.mubr.bf16.mxu0 0
  %1366 = vmatmul.mubr.bf16.gmra.mrb[0].mxu0 %v1208
  %v1367 = vpop.f32.mrb[0].mxu0
  %v1368 = vadd.f32 %v1271, %v1367
  %v1369 = vpop.f32.mrb[0].mxu0
  %v1370 = vpop.f32.mrb[0].mxu0
  %v1371 = vadd.f32 %v1274, %v1370
  %v1372 = vpop.f32.mrb[0].mxu0
  %1373 = vmatprep.mubr.bf16.mxu0 0
  %1374 = vmatmul.mubr.bf16.gmra.mrb[0].mxu0 %v1211
  %v1375 = vpop.f32.mrb[0].mxu0
  %v1376 = vadd.f32 %v1279, %v1375
  %v1377 = vpop.f32.mrb[0].mxu0
  %v1378 = vpop.f32.mrb[0].mxu0
  %v1379 = vadd.f32 %v1282, %v1378
  %v1380 = vpop.f32.mrb[0].mxu0
  %1381 = vmatprep.mubr.bf16.mxu0 0
  %1382 = vmatmul.mubr.bf16.gmra.mrb[0].mxu0 %v1214
  %v1383 = vpop.f32.mrb[0].mxu0
  %v1384 = vadd.f32 %v1287, %v1383
  %v1385 = vpop.f32.mrb[0].mxu0
  %v1386 = vpop.f32.mrb[0].mxu0
  %v1387 = vadd.f32 %v1290, %v1386
  %v1388 = vpop.f32.mrb[0].mxu0
  %1389 = vmatprep.mubr.bf16.mxu0 0
  %1390 = vmatmul.mubr.bf16.gmra.mrb[0].mxu0 %v1217
  %v1391 = vpop.f32.mrb[0].mxu0
  %v1392 = vadd.f32 %v1295, %v1391
  %v1393 = vpop.f32.mrb[0].mxu0
  %v1394 = vpop.f32.mrb[0].mxu0
  %v1395 = vadd.f32 %v1298, %v1394
  %v1396 = vpop.f32.mrb[0].mxu0
  %1397 = vmatprep.mubr.bf16.mxu0 0
  %1398 = vmatmul.mubr.bf16.gmra.mrb[0].mxu0 %v1220
  %v1399 = vpop.f32.mrb[0].mxu0
  %v1400 = vadd.f32 %v1303, %v1399
  %v1401 = vpop.f32.mrb[0].mxu0
  %v1402 = vpop.f32.mrb[0].mxu0
  %v1403 = vadd.f32 %v1306, %v1402
  %v1404 = vpop.f32.mrb[0].mxu0
  %1405 = vmatprep.mubr.bf16.mxu0 0
  %1406 = vmatmul.mubr.bf16.gmra.mrb[0].mxu0 %v1223
  %v1407 = vpop.f32.mrb[0].mxu0
  %v1408 = vadd.f32 %v1311, %v1407
  %v1409 = vpop.f32.mrb[0].mxu0
  %v1410 = vpop.f32.mrb[0].mxu0
  %v1411 = vadd.f32 %v1314, %v1410
  %v1412 = vpop.f32.mrb[0].mxu0
  %1413 = vmatprep.mubr.bf16.mxu0 0
  %1414 = vmatmul.mubr.bf16.gmra.mrb[0].mxu0 %v1226
  %v1415 = vpop.f32.mrb[0].mxu0
  %v1416 = vadd.f32 %v1319, %v1415
  %v1417 = vpop.f32.mrb[0].mxu0
  %v1418 = vpop.f32.mrb[0].mxu0
  %v1419 = vadd.f32 %v1322, %v1418
  %v1420 = vpop.f32.mrb[0].mxu0
  %1421 = vdwg.mxu0
  %v1422 = vld [vmem:[%s5] sm:$0x1]
  %v1423 = vld [vmem:[%s6] sm:$0x1]
  %v1424 = vsel %vm93, %v1360, 0.0
  %v1425 = vsel %vm93, %v1363, 0.0
  %v1426 = vadd.f32 %v1424, %v1425
  %v1427 = vsel %vm93, %v1368, 0.0
  %v1428 = vadd.f32 %v1426, %v1427
  %v1429 = vsel %vm93, %v1371, 0.0
  %v1430 = vadd.f32 %v1428, %v1429
  %v1431 = vsel %vm93, %v1376, 0.0
  %v1432 = vadd.f32 %v1430, %v1431
  %v1433 = vsel %vm93, %v1379, 0.0
  %v1434 = vadd.f32 %v1432, %v1433
  %v1435 = vsel %vm93, %v1384, 0.0
  %v1436 = vadd.f32 %v1434, %v1435
  %v1437 = vsel %vm93, %v1387, 0.0
  %v1438 = vadd.f32 %v1436, %v1437
  %v1439 = vsel %vm93, %v1392, 0.0
  %v1440 = vadd.f32 %v1438, %v1439
  %v1441 = vsel %vm93, %v1395, 0.0
  %v1442 = vadd.f32 %v1440, %v1441
  %v1443 = vsel %vm93, %v1400, 0.0
  %v1444 = vadd.f32 %v1442, %v1443
  %v1445 = vsel %vm93, %v1403, 0.0
  %v1446 = vadd.f32 %v1444, %v1445
  %v1447 = vsel %vm93, %v1408, 0.0
  %v1448 = vadd.f32 %v1446, %v1447
  %v1449 = vsel %vm93, %v1411, 0.0
  %v1450 = vadd.f32 %v1448, %v1449
  %v1451 = vsel %vm93, %v1416, 0.0
  %v1452 = vadd.f32 %v1450, %v1451
  %v1453 = vsel %vm93, %v1419, 0.0
  %v1454 = vadd.f32 %v1452, %v1453
  %v1455 = vrot.slane %v1454, 4
  %v1456 = vadd.f32 %v1454, %v1455
  %v1457 = vrot.slane %v1456, 2
  %v1458 = vadd.f32 %v1456, %v1457
  %v1459 = vrot.slane %v1458, 1
  %v1460 = vadd.f32 %v1458, %v1459
  %v1461 = vmul.f32 %v1360, %v1360
  %v1462 = vmul.f32 %v1363, %v1363
  %v1463 = vmul.f32 %v1368, %v1368
  %v1464 = vmul.f32 %v1371, %v1371
  %v1465 = vmul.f32 %v1376, %v1376
  %v1466 = vmul.f32 %v1379, %v1379
  %v1467 = vmul.f32 %v1384, %v1384
  %v1468 = vmul.f32 %v1387, %v1387
  %v1469 = vmul.f32 %v1392, %v1392
  %v1470 = vmul.f32 %v1395, %v1395
  %v1471 = vmul.f32 %v1400, %v1400
  %v1472 = vmul.f32 %v1403, %v1403
  %v1473 = vmul.f32 %v1408, %v1408
  %v1474 = vmul.f32 %v1411, %v1411
  %v1475 = vmul.f32 %v1416, %v1416
  %v1476 = vmul.f32 %v1419, %v1419
  %v1477 = vsel %vm93, %v1461, 0.0
  %v1478 = vsel %vm93, %v1462, 0.0
  %v1479 = vadd.f32 %v1477, %v1478
  %v1480 = vsel %vm93, %v1463, 0.0
  %v1481 = vadd.f32 %v1479, %v1480
  %v1482 = vsel %vm93, %v1464, 0.0
  %v1483 = vadd.f32 %v1481, %v1482
  %v1484 = vsel %vm93, %v1465, 0.0
  %v1485 = vadd.f32 %v1483, %v1484
  %v1486 = vsel %vm93, %v1466, 0.0
  %v1487 = vadd.f32 %v1485, %v1486
  %v1488 = vsel %vm93, %v1467, 0.0
  %v1489 = vadd.f32 %v1487, %v1488
  %v1490 = vsel %vm93, %v1468, 0.0
  %v1491 = vadd.f32 %v1489, %v1490
  %v1492 = vsel %vm93, %v1469, 0.0
  %v1493 = vadd.f32 %v1491, %v1492
  %v1494 = vsel %vm93, %v1470, 0.0
  %v1495 = vadd.f32 %v1493, %v1494
  %v1496 = vsel %vm93, %v1471, 0.0
  %v1497 = vadd.f32 %v1495, %v1496
  %v1498 = vsel %vm93, %v1472, 0.0
  %v1499 = vadd.f32 %v1497, %v1498
  %v1500 = vsel %vm93, %v1473, 0.0
  %v1501 = vadd.f32 %v1499, %v1500
  %v1502 = vsel %vm93, %v1474, 0.0
  %v1503 = vadd.f32 %v1501, %v1502
  %v1504 = vsel %vm93, %v1475, 0.0
  %v1505 = vadd.f32 %v1503, %v1504
  %v1506 = vsel %vm93, %v1476, 0.0
  %v1507 = vadd.f32 %v1505, %v1506
  %v1508 = vrot.slane %v1507, 4
  %v1509 = vadd.f32 %v1507, %v1508
  %v1510 = vrot.slane %v1509, 2
  %v1511 = vadd.f32 %v1509, %v1510
  %v1512 = vrot.slane %v1511, 1
  %v1513 = vadd.f32 %v1511, %v1512
  %v1514 = vmul.f32 %v1460, 0.0078125
  %v1515 = vmul.f32 %v1513, 0.0078125
  %v1516 = vmul.f32 %v1514, %v1514
  %v1517 = vsub.f32 %v1515, %v1516
  %v1518 = vsub.f32 %v1360, %v1514
  %v1519 = vsub.f32 %v1363, %v1514
  %v1520 = vsub.f32 %v1368, %v1514
  %v1521 = vsub.f32 %v1371, %v1514
  %v1522 = vsub.f32 %v1376, %v1514
  %v1523 = vsub.f32 %v1379, %v1514
  %v1524 = vsub.f32 %v1384, %v1514
  %v1525 = vsub.f32 %v1387, %v1514
  %v1526 = vsub.f32 %v1392, %v1514
  %v1527 = vsub.f32 %v1395, %v1514
  %v1528 = vsub.f32 %v1400, %v1514
  %v1529 = vsub.f32 %v1403, %v1514
  %v1530 = vsub.f32 %v1408, %v1514
  %v1531 = vsub.f32 %v1411, %v1514
  %v1532 = vsub.f32 %v1416, %v1514
  %v1533 = vsub.f32 %v1419, %v1514
  %v1534 = vadd.f32 %v1517, 0.8
  %v1535 = vrsqrt.pop %v1534
  %v1536 = vmul.f32 %v1518, %v1535
  %v1537 = vmul.f32 %v1519, %v1535
  %v1538 = vmul.f32 %v1520, %v1535
  %v1539 = vmul.f32 %v1521, %v1535
  %v1540 = vmul.f32 %v1522, %v1535
  %v1541 = vmul.f32 %v1523, %v1535
  %v1542 = vmul.f32 %v1524, %v1535
  %v1543 = vmul.f32 %v1525, %v1535
  %v1544 = vmul.f32 %v1526, %v1535
  %v1545 = vmul.f32 %v1527, %v1535
  %v1546 = vmul.f32 %v1528, %v1535
  %v1547 = vmul.f32 %v1529, %v1535
  %v1548 = vmul.f32 %v1530, %v1535
  %v1549 = vmul.f32 %v1531, %v1535
  %v1550 = vmul.f32 %v1532, %v1535
  %v1551 = vmul.f32 %v1533, %v1535
  %v1553 = vlaneseq
  %v1554 = vshrl.u32 %v1553, 7
  %v1555 = vsub.s32 0, %v1554
  %v1556 = vrot.slane %v1422, %v1555
  %v1558 = vmul.f32 %v1536, %v1556
  %v1559 = vmul.f32 %v1537, %v1556
  %v1560 = vmul.f32 %v1538, %v1556
  %v1561 = vmul.f32 %v1539, %v1556
  %v1562 = vmul.f32 %v1540, %v1556
  %v1563 = vmul.f32 %v1541, %v1556
  %v1564 = vmul.f32 %v1542, %v1556
  %v1565 = vmul.f32 %v1543, %v1556
  %v1566 = vmul.f32 %v1544, %v1556
  %v1567 = vmul.f32 %v1545, %v1556
  %v1568 = vmul.f32 %v1546, %v1556
  %v1569 = vmul.f32 %v1547, %v1556
  %v1570 = vmul.f32 %v1548, %v1556
  %v1571 = vmul.f32 %v1549, %v1556
  %v1572 = vmul.f32 %v1550, %v1556
  %v1573 = vmul.f32 %v1551, %v1556
  %v1575 = vlaneseq
  %v1576 = vshrl.u32 %v1575, 7
  %v1577 = vsub.s32 0, %v1576
  %v1578 = vrot.slane %v1423, %v1577
  %v1580 = vadd.f32 %v1558, %v1578
  %v1581 = vadd.f32 %v1559, %v1578
  %v1582 = vadd.f32 %v1560, %v1578
  %v1583 = vadd.f32 %v1561, %v1578
  %v1584 = vadd.f32 %v1562, %v1578
  %v1585 = vadd.f32 %v1563, %v1578
  %v1586 = vadd.f32 %v1564, %v1578
  %v1587 = vadd.f32 %v1565, %v1578
  %v1588 = vadd.f32 %v1566, %v1578
  %v1589 = vadd.f32 %v1567, %v1578
  %v1590 = vadd.f32 %v1568, %v1578
  %v1591 = vadd.f32 %v1569, %v1578
  %v1592 = vadd.f32 %v1570, %v1578
  %v1593 = vadd.f32 %v1571, %v1578
  %v1594 = vadd.f32 %v1572, %v1578
  %v1595 = vadd.f32 %v1573, %v1578
  %vm1596 = vcmp.gt.f32.partialorder %v1580, 0.0
  %vm1597 = vcmp.gt.f32.partialorder %v1581, 0.0
  %vm1598 = vcmp.gt.f32.partialorder %v1582, 0.0
  %vm1599 = vcmp.gt.f32.partialorder %v1583, 0.0
  %vm1600 = vcmp.gt.f32.partialorder %v1584, 0.0
  %vm1601 = vcmp.gt.f32.partialorder %v1585, 0.0
  %vm1602 = vcmp.gt.f32.partialorder %v1586, 0.0
  %vm1603 = vcmp.gt.f32.partialorder %v1587, 0.0
  %vm1604 = vcmp.gt.f32.partialorder %v1588, 0.0
  %vm1605 = vcmp.gt.f32.partialorder %v1589, 0.0
  %vm1606 = vcmp.gt.f32.partialorder %v1590, 0.0
  %vm1607 = vcmp.gt.f32.partialorder %v1591, 0.0
  %vm1608 = vcmp.gt.f32.partialorder %v1592, 0.0
  %vm1609 = vcmp.gt.f32.partialorder %v1593, 0.0
  %vm1610 = vcmp.gt.f32.partialorder %v1594, 0.0
  %vm1611 = vcmp.gt.f32.partialorder %v1595, 0.0
  %v1612 = vmul.f32 %v1580, 0.2
  %v1613 = vmul.f32 %v1581, 0.2
  %v1614 = vmul.f32 %v1582, 0.2
  %v1615 = vmul.f32 %v1583, 0.2
  %v1616 = vmul.f32 %v1584, 0.2
  %v1617 = vmul.f32 %v1585, 0.2
  %v1618 = vmul.f32 %v1586, 0.2
  %v1619 = vmul.f32 %v1587, 0.2
  %v1620 = vmul.f32 %v1588, 0.2
  %v1621 = vmul.f32 %v1589, 0.2
  %v1622 = vmul.f32 %v1590, 0.2
  %v1623 = vmul.f32 %v1591, 0.2
  %v1624 = vmul.f32 %v1592, 0.2
  %v1625 = vmul.f32 %v1593, 0.2
  %v1626 = vmul.f32 %v1594, 0.2
  %v1627 = vmul.f32 %v1595, 0.2
  %v1628 = vsel %vm1596, %v1580, %v1612
  %v1629 = vsel %vm1597, %v1581, %v1613
  %v1630 = vsel %vm1598, %v1582, %v1614
  %v1631 = vsel %vm1599, %v1583, %v1615
  %v1632 = vsel %vm1600, %v1584, %v1616
  %v1633 = vsel %vm1601, %v1585, %v1617
  %v1634 = vsel %vm1602, %v1586, %v1618
  %v1635 = vsel %vm1603, %v1587, %v1619
  %v1636 = vsel %vm1604, %v1588, %v1620
  %v1637 = vsel %vm1605, %v1589, %v1621
  %v1638 = vsel %vm1606, %v1590, %v1622
  %v1639 = vsel %vm1607, %v1591, %v1623
  %v1640 = vsel %vm1608, %v1592, %v1624
  %v1641 = vsel %vm1609, %v1593, %v1625
  %v1642 = vsel %vm1610, %v1594, %v1626
  %v1643 = vsel %vm1611, %v1595, %v1627
  %1644 = vst.msk [vmem:[#allocation3] sm:$0xff] %vm93, 0.0
  %1645 = vst.msk [vmem:[#allocation3 + $0x8] sm:$0xff] %vm93, 0.0
  %1646 = vst.msk [vmem:[#allocation3 + $0x10] sm:$0x3] %vm180, 0.0
  %1647 = vst.msk [vmem:[#allocation3 + $0x18] sm:$0xff] %vm93, 0.0
  %1648 = vst.msk [vmem:[#allocation3 + $0x20] sm:$0xff] %vm93, 0.0
  %1649 = vst.msk [vmem:[#allocation3 + $0x28] sm:$0x3] %vm180, 0.0
  %1650 = vst.msk [vmem:[#allocation3 + $0x30] sm:$0xff] %vm93, 0.0
  %1651 = vst.msk [vmem:[#allocation3 + $0x38] sm:$0xff] %vm93, 0.0
  %1652 = vst.msk [vmem:[#allocation3 + $0x40] sm:$0x3] %vm180, 0.0
  %1653 = vst.msk [vmem:[#allocation3 + $0x48] sm:$0xff] %vm93, 0.0
  %1654 = vst.msk [vmem:[#allocation3 + $0x50] sm:$0xff] %vm93, 0.0
  %1655 = vst.msk [vmem:[#allocation3 + $0x58] sm:$0x3] %vm180, 0.0
  %1656 = vst.msk [vmem:[#allocation3 + $0x60] sm:$0xff] %vm93, 0.0
  %1657 = vst.msk [vmem:[#allocation3 + $0x68] sm:$0xff] %vm93, 0.0
  %1658 = vst.msk [vmem:[#allocation3 + $0x70] sm:$0x3] %vm180, 0.0
  %1659 = vst.msk [vmem:[#allocation3 + $0x78] sm:$0xff] %vm93, 0.0
  %1660 = vst.msk [vmem:[#allocation3 + $0x80] sm:$0xff] %vm93, 0.0
  %1661 = vst.msk [vmem:[#allocation3 + $0x88] sm:$0x3] %vm180, 0.0
  %1662 = vst.msk [vmem:[#allocation3 + $0x90] sm:$0xff] %vm93, 0.0
  %1663 = vst.msk [vmem:[#allocation3 + $0x98] sm:$0xff] %vm93, 0.0
  %1664 = vst.msk [vmem:[#allocation3 + $0xa0] sm:$0x3] %vm180, 0.0
  %1665 = vst.msk [vmem:[#allocation3 + $0xa8] sm:$0xff] %vm93, 0.0
  %1666 = vst.msk [vmem:[#allocation3 + $0xb0] sm:$0xff] %vm93, 0.0
  %1667 = vst.msk [vmem:[#allocation3 + $0xb8] sm:$0x3] %vm180, 0.0
  %1668 = vst.msk [vmem:[#allocation3 + $0xc0] sm:$0xff] %vm93, 0.0
  %1669 = vst.msk [vmem:[#allocation3 + $0xc8] sm:$0xff] %vm93, 0.0
  %1670 = vst.msk [vmem:[#allocation3 + $0xd0] sm:$0x3] %vm180, 0.0
  %1671 = vst.msk [vmem:[#allocation3 + $0xd8] sm:$0xff] %vm93, 0.0
  %1672 = vst.msk [vmem:[#allocation3 + $0xe0] sm:$0xff] %vm93, 0.0
  %1673 = vst.msk [vmem:[#allocation3 + $0xe8] sm:$0x3] %vm180, 0.0
  %1674 = vst.msk [vmem:[#allocation3 + $0xf0] sm:$0xff] %vm93, 0.0
  %1675 = vst.msk [vmem:[#allocation3 + $0xf8] sm:$0xff] %vm93, 0.0
  %1676 = vst.msk [vmem:[#allocation3 + $0x100] sm:$0x3] %vm180, 0.0
  %1677 = vst.msk [vmem:[#allocation3 + $0x108] sm:$0xff] %vm93, 0.0
  %1678 = vst.msk [vmem:[#allocation3 + $0x110] sm:$0xff] %vm93, 0.0
  %1679 = vst.msk [vmem:[#allocation3 + $0x118] sm:$0x3] %vm180, 0.0
  %1680 = vst.msk [vmem:[#allocation3 + $0x120] sm:$0xff] %vm93, 0.0
  %1681 = vst.msk [vmem:[#allocation3 + $0x128] sm:$0xff] %vm93, 0.0
  %1682 = vst.msk [vmem:[#allocation3 + $0x130] sm:$0x3] %vm180, 0.0
  %1683 = vst.msk [vmem:[#allocation3 + $0x138] sm:$0xff] %vm93, 0.0
  %1684 = vst.msk [vmem:[#allocation3 + $0x140] sm:$0xff] %vm93, 0.0
  %1685 = vst.msk [vmem:[#allocation3 + $0x148] sm:$0x3] %vm180, 0.0
  %1686 = vst.msk [vmem:[#allocation3 + $0x150] sm:$0xff] %vm93, 0.0
  %1687 = vst.msk [vmem:[#allocation3 + $0x158] sm:$0xff] %vm93, 0.0
  %1688 = vst.msk [vmem:[#allocation3 + $0x160] sm:$0x3] %vm180, 0.0
  %1689 = vst.msk [vmem:[#allocation3 + $0x168] sm:$0xff] %vm93, 0.0
  %1690 = vst.msk [vmem:[#allocation3 + $0x170] sm:$0xff] %vm93, 0.0
  %1691 = vst.msk [vmem:[#allocation3 + $0x178] sm:$0x3] %vm180, 0.0
  %1692 = vst.msk [vmem:[#allocation3 + $0x180] sm:$0xff] %vm93, 0.0
  %1693 = vst.msk [vmem:[#allocation3 + $0x188] sm:$0xff] %vm93, 0.0
  %1694 = vst.msk [vmem:[#allocation3 + $0x190] sm:$0x3] %vm180, 0.0
  %1695 = vst.msk [vmem:[#allocation3 + $0x198] sm:$0xff] %vm93, 0.0
  %1696 = vst.msk [vmem:[#allocation3 + $0x1a0] sm:$0xff] %vm93, 0.0
  %1697 = vst.msk [vmem:[#allocation3 + $0x1a8] sm:$0x3] %vm180, 0.0
  %1698 = vst.msk [vmem:[#allocation3 + $0x1b0] sm:$0xff] %vm93, 0.0
  %1699 = vst.msk [vmem:[#allocation3 + $0x1b8] sm:$0xff] %vm93, 0.0
  %1700 = vst.msk [vmem:[#allocation3 + $0x1c0] sm:$0x3] %vm180, 0.0
  %1701 = vst.msk [vmem:[#allocation3 + $0x1c8] sm:$0xff] %vm93, 0.0
  %1702 = vst.msk [vmem:[#allocation3 + $0x1d0] sm:$0xff] %vm93, 0.0
  %1703 = vst.msk [vmem:[#allocation3 + $0x1d8] sm:$0x3] %vm180, 0.0
  %1704 = vst.msk [vmem:[#allocation3 + $0x1e0] sm:$0xff] %vm93, 0.0
  %1705 = vst.msk [vmem:[#allocation3 + $0x1e8] sm:$0xff] %vm93, 0.0
  %1706 = vst.msk [vmem:[#allocation3 + $0x1f0] sm:$0x3] %vm180, 0.0
  %1707 = vst.msk [vmem:[#allocation3 + $0x1f8] sm:$0xff] %vm93, 0.0
  %1708 = vst.msk [vmem:[#allocation3 + $0x200] sm:$0xff] %vm93, 0.0
  %1709 = vst.msk [vmem:[#allocation3 + $0x208] sm:$0x3] %vm180, 0.0
  %1710 = vst.msk [vmem:[#allocation3 + $0x210] sm:$0xff] %vm93, 0.0
  %1711 = vst.msk [vmem:[#allocation3 + $0x218] sm:$0xff] %vm93, 0.0
  %1712 = vst.msk [vmem:[#allocation3 + $0x220] sm:$0x3] %vm180, 0.0
  %1713 = vst.msk [vmem:[#allocation3 + $0x228] sm:$0xff] %vm93, 0.0
  %1714 = vst.msk [vmem:[#allocation3 + $0x230] sm:$0xff] %vm93, 0.0
  %1715 = vst.msk [vmem:[#allocation3 + $0x238] sm:$0x3] %vm180, 0.0
  %1716 = vst.msk [vmem:[#allocation3 + $0x240] sm:$0xff] %vm93, 0.0
  %1717 = vst.msk [vmem:[#allocation3 + $0x248] sm:$0xff] %vm93, 0.0
  %1718 = vst.msk [vmem:[#allocation3 + $0x250] sm:$0x3] %vm180, 0.0
  %1719 = vst.msk [vmem:[#allocation3 + $0x258] sm:$0xff] %vm93, 0.0
  %1720 = vst.msk [vmem:[#allocation3 + $0x260] sm:$0xff] %vm93, 0.0
  %1721 = vst.msk [vmem:[#allocation3 + $0x268] sm:$0x3] %vm180, 0.0
  %1722 = vst.msk [vmem:[#allocation3 + $0x270] sm:$0xff] %vm93, 0.0
  %1723 = vst.msk [vmem:[#allocation3 + $0x278] sm:$0xff] %vm93, 0.0
  %1724 = vst.msk [vmem:[#allocation3 + $0x280] sm:$0x3] %vm180, 0.0
  %1725 = vst.msk [vmem:[#allocation3 + $0x288] sm:$0xff] %vm93, 0.0
  %1726 = vst.msk [vmem:[#allocation3 + $0x290] sm:$0xff] %vm93, 0.0
  %1727 = vst.msk [vmem:[#allocation3 + $0x298] sm:$0x3] %vm180, 0.0
  %1728 = vst.msk [vmem:[#allocation3 + $0x2a0] sm:$0xff] %vm93, 0.0
  %1729 = vst.msk [vmem:[#allocation3 + $0x2a8] sm:$0xff] %vm93, 0.0
  %1730 = vst.msk [vmem:[#allocation3 + $0x2b0] sm:$0x3] %vm180, 0.0
  %1731 = vst.msk [vmem:[#allocation3 + $0x2b8] sm:$0xff] %vm93, 0.0
  %1732 = vst.msk [vmem:[#allocation3 + $0x2c0] sm:$0xff] %vm93, 0.0
  %1733 = vst.msk [vmem:[#allocation3 + $0x2c8] sm:$0x3] %vm180, 0.0
  %1734 = vst.msk [vmem:[#allocation3 + $0x2d0] sm:$0xff] %vm93, 0.0
  %1735 = vst.msk [vmem:[#allocation3 + $0x2d8] sm:$0xff] %vm93, 0.0
  %1736 = vst.msk [vmem:[#allocation3 + $0x2e0] sm:$0x3] %vm180, 0.0
  %1737 = vst.msk [vmem:[#allocation3 + $0x2e8] sm:$0xff] %vm93, 0.0
  %1738 = vst.msk [vmem:[#allocation3 + $0x2f0] sm:$0xff] %vm93, 0.0
  %1739 = vst.msk [vmem:[#allocation3 + $0x2f8] sm:$0x3] %vm180, 0.0
  %1740 = vst.msk [vmem:[#allocation3 + $0x300] sm:$0xff] %vm93, 0.0
  %1741 = vst.msk [vmem:[#allocation3 + $0x308] sm:$0xff] %vm93, 0.0
  %1742 = vst.msk [vmem:[#allocation3 + $0x310] sm:$0x3] %vm180, 0.0
  %1743 = vst.msk [vmem:[#allocation3 + $0x318] sm:$0xff] %vm93, 0.0
  %1744 = vst.msk [vmem:[#allocation3 + $0x320] sm:$0xff] %vm93, 0.0
  %1745 = vst.msk [vmem:[#allocation3 + $0x328] sm:$0x3] %vm180, 0.0
  %1746 = vst.msk [vmem:[#allocation3 + $0x330] sm:$0xff] %vm93, 0.0
  %1747 = vst.msk [vmem:[#allocation3 + $0x338] sm:$0xff] %vm93, 0.0
  %1748 = vst.msk [vmem:[#allocation3 + $0x340] sm:$0x3] %vm180, 0.0
  %1749 = vst.msk [vmem:[#allocation3 + $0x348] sm:$0xff] %vm93, 0.0
  %1750 = vst.msk [vmem:[#allocation3 + $0x350] sm:$0xff] %vm93, 0.0
  %1751 = vst.msk [vmem:[#allocation3 + $0x358] sm:$0x3] %vm180, 0.0
  %v1752 = vlaneseq
  %v1753 = vshrl.u32 %v1752, 7
  %v1754 = vsub.s32 0, %v1753
  %v1755 = vrot.slane %v1628, %v1754
  %v1756 = vlaneseq
  %v1757 = vshrl.u32 %v1756, 7
  %v1758 = vsub.s32 0, %v1757
  %v1759 = vrot.slane %v1636, %v1758
  %s1760 = scalar_lea.vmem [#allocation3], 24
  %1761 = vst.msk [vmem:[%s1760 + $0x1] sm:$0x3] %vm180, %v1755
  %1762 = vst.msk [vmem:[%s1760 + $0x19] sm:$0x3] %vm180, %v1755
  %1763 = vst.msk [vmem:[%s1760 + $0x1b1] sm:$0x3] %vm180, %v1759
  %1764 = vst.msk [vmem:[%s1760 + $0x1c9] sm:$0x3] %vm180, %v1759
  %v1765 = vlaneseq
  %v1766 = vshrl.u32 %v1765, 7
  %v1767 = vsub.s32 1, %v1766
  %v1768 = vrot.slane %v1628, %v1767
  %v1769 = vlaneseq
  %v1770 = vshrl.u32 %v1769, 7
  %v1771 = vsub.s32 1, %v1770
  %v1772 = vrot.slane %v1636, %v1771
  %1773 = vst.msk [vmem:[%s1760 + $0x3] sm:$0x3] %vm180, %v1768
  %1774 = vst.msk [vmem:[%s1760 + $0x1b] sm:$0x3] %vm180, %v1768
  %1775 = vst.msk [vmem:[%s1760 + $0x1b3] sm:$0x3] %vm180, %v1772
  %1776 = vst.msk [vmem:[%s1760 + $0x1cb] sm:$0x3] %vm180, %v1772
  %v1777 = vlaneseq
  %v1778 = vshrl.u32 %v1777, 7
  %v1779 = vsub.s32 2, %v1778
  %v1780 = vrot.slane %v1628, %v1779
  %v1781 = vlaneseq
  %v1782 = vshrl.u32 %v1781, 7
  %v1783 = vsub.s32 2, %v1782
  %v1784 = vrot.slane %v1636, %v1783
  %1785 = vst.msk [vmem:[%s1760 + $0x5] sm:$0x3] %vm180, %v1780
  %1786 = vst.msk [vmem:[%s1760 + $0x1d] sm:$0x3] %vm180, %v1780
  %1787 = vst.msk [vmem:[%s1760 + $0x1b5] sm:$0x3] %vm180, %v1784
  %1788 = vst.msk [vmem:[%s1760 + $0x1cd] sm:$0x3] %vm180, %v1784
  %v1789 = vlaneseq
  %v1790 = vshrl.u32 %v1789, 7
  %v1791 = vsub.s32 3, %v1790
  %v1792 = vrot.slane %v1628, %v1791
  %v1793 = vlaneseq
  %v1794 = vshrl.u32 %v1793, 7
  %v1795 = vsub.s32 3, %v1794
  %v1796 = vrot.slane %v1636, %v1795
  %1797 = vst.msk [vmem:[%s1760 + $0x7] sm:$0x3] %vm180, %v1792
  %1798 = vst.msk [vmem:[%s1760 + $0x1f] sm:$0x3] %vm180, %v1792
  %1799 = vst.msk [vmem:[%s1760 + $0x1b7] sm:$0x3] %vm180, %v1796
  %1800 = vst.msk [vmem:[%s1760 + $0x1cf] sm:$0x3] %vm180, %v1796
  %v1801 = vlaneseq
  %v1802 = vshrl.u32 %v1801, 7
  %v1803 = vsub.s32 4, %v1802
  %v1804 = vrot.slane %v1628, %v1803
  %v1805 = vlaneseq
  %v1806 = vshrl.u32 %v1805, 7
  %v1807 = vsub.s32 4, %v1806
  %v1808 = vrot.slane %v1636, %v1807
  %1809 = vst.msk [vmem:[%s1760 + $0x9] sm:$0x3] %vm180, %v1804
  %1810 = vst.msk [vmem:[%s1760 + $0x21] sm:$0x3] %vm180, %v1804
  %1811 = vst.msk [vmem:[%s1760 + $0x1b9] sm:$0x3] %vm180, %v1808
  %1812 = vst.msk [vmem:[%s1760 + $0x1d1] sm:$0x3] %vm180, %v1808
  %v1813 = vlaneseq
  %v1814 = vshrl.u32 %v1813, 7
  %v1815 = vsub.s32 5, %v1814
  %v1816 = vrot.slane %v1628, %v1815
  %v1817 = vlaneseq
  %v1818 = vshrl.u32 %v1817, 7
  %v1819 = vsub.s32 5, %v1818
  %v1820 = vrot.slane %v1636, %v1819
  %1821 = vst.msk [vmem:[%s1760 + $0xb] sm:$0x3] %vm180, %v1816
  %1822 = vst.msk [vmem:[%s1760 + $0x23] sm:$0x3] %vm180, %v1816
  %1823 = vst.msk [vmem:[%s1760 + $0x1bb] sm:$0x3] %vm180, %v1820
  %1824 = vst.msk [vmem:[%s1760 + $0x1d3] sm:$0x3] %vm180, %v1820
  %v1825 = vlaneseq
  %v1826 = vshrl.u32 %v1825, 7
  %v1827 = vsub.s32 6, %v1826
  %v1828 = vrot.slane %v1628, %v1827
  %v1829 = vlaneseq
  %v1830 = vshrl.u32 %v1829, 7
  %v1831 = vsub.s32 6, %v1830
  %v1832 = vrot.slane %v1636, %v1831
  %1833 = vst.msk [vmem:[%s1760 + $0xd] sm:$0x3] %vm180, %v1828
  %1834 = vst.msk [vmem:[%s1760 + $0x25] sm:$0x3] %vm180, %v1828
  %1835 = vst.msk [vmem:[%s1760 + $0x1bd] sm:$0x3] %vm180, %v1832
  %1836 = vst.msk [vmem:[%s1760 + $0x1d5] sm:$0x3] %vm180, %v1832
  %v1837 = vlaneseq
  %v1838 = vshrl.u32 %v1837, 7
  %v1839 = vsub.s32 7, %v1838
  %v1840 = vrot.slane %v1628, %v1839
  %v1841 = vlaneseq
  %v1842 = vshrl.u32 %v1841, 7
  %v1843 = vsub.s32 7, %v1842
  %v1844 = vrot.slane %v1636, %v1843
  %1845 = vst.msk [vmem:[%s1760 + $0xf] sm:$0x3] %vm180, %v1840
  %1846 = vst.msk [vmem:[%s1760 + $0x27] sm:$0x3] %vm180, %v1840
  %1847 = vst.msk [vmem:[%s1760 + $0x1bf] sm:$0x3] %vm180, %v1844
  %1848 = vst.msk [vmem:[%s1760 + $0x1d7] sm:$0x3] %vm180, %v1844
  %v1849 = vlaneseq
  %v1850 = vshrl.u32 %v1849, 7
  %v1851 = vsub.s32 0, %v1850
  %v1852 = vrot.slane %v1629, %v1851
  %v1853 = vlaneseq
  %v1854 = vshrl.u32 %v1853, 7
  %v1855 = vsub.s32 0, %v1854
  %v1856 = vrot.slane %v1637, %v1855
  %s1857 = scalar_lea.vmem [#allocation3], 72
  %1858 = vst.msk [vmem:[%s1857 + $0x1] sm:$0x3] %vm180, %v1852
  %1859 = vst.msk [vmem:[%s1857 + $0x19] sm:$0x3] %vm180, %v1852
  %1860 = vst.msk [vmem:[%s1857 + $0x1b1] sm:$0x3] %vm180, %v1856
  %1861 = vst.msk [vmem:[%s1857 + $0x1c9] sm:$0x3] %vm180, %v1856
  %v1862 = vlaneseq
  %v1863 = vshrl.u32 %v1862, 7
  %v1864 = vsub.s32 1, %v1863
  %v1865 = vrot.slane %v1629, %v1864
  %v1866 = vlaneseq
  %v1867 = vshrl.u32 %v1866, 7
  %v1868 = vsub.s32 1, %v1867
  %v1869 = vrot.slane %v1637, %v1868
  %1870 = vst.msk [vmem:[%s1857 + $0x3] sm:$0x3] %vm180, %v1865
  %1871 = vst.msk [vmem:[%s1857 + $0x1b] sm:$0x3] %vm180, %v1865
  %1872 = vst.msk [vmem:[%s1857 + $0x1b3] sm:$0x3] %vm180, %v1869
  %1873 = vst.msk [vmem:[%s1857 + $0x1cb] sm:$0x3] %vm180, %v1869
  %v1874 = vlaneseq
  %v1875 = vshrl.u32 %v1874, 7
  %v1876 = vsub.s32 2, %v1875
  %v1877 = vrot.slane %v1629, %v1876
  %v1878 = vlaneseq
  %v1879 = vshrl.u32 %v1878, 7
  %v1880 = vsub.s32 2, %v1879
  %v1881 = vrot.slane %v1637, %v1880
  %1882 = vst.msk [vmem:[%s1857 + $0x5] sm:$0x3] %vm180, %v1877
  %1883 = vst.msk [vmem:[%s1857 + $0x1d] sm:$0x3] %vm180, %v1877
  %1884 = vst.msk [vmem:[%s1857 + $0x1b5] sm:$0x3] %vm180, %v1881
  %1885 = vst.msk [vmem:[%s1857 + $0x1cd] sm:$0x3] %vm180, %v1881
  %v1886 = vlaneseq
  %v1887 = vshrl.u32 %v1886, 7
  %v1888 = vsub.s32 3, %v1887
  %v1889 = vrot.slane %v1629, %v1888
  %v1890 = vlaneseq
  %v1891 = vshrl.u32 %v1890, 7
  %v1892 = vsub.s32 3, %v1891
  %v1893 = vrot.slane %v1637, %v1892
  %1894 = vst.msk [vmem:[%s1857 + $0x7] sm:$0x3] %vm180, %v1889
  %1895 = vst.msk [vmem:[%s1857 + $0x1f] sm:$0x3] %vm180, %v1889
  %1896 = vst.msk [vmem:[%s1857 + $0x1b7] sm:$0x3] %vm180, %v1893
  %1897 = vst.msk [vmem:[%s1857 + $0x1cf] sm:$0x3] %vm180, %v1893
  %v1898 = vlaneseq
  %v1899 = vshrl.u32 %v1898, 7
  %v1900 = vsub.s32 4, %v1899
  %v1901 = vrot.slane %v1629, %v1900
  %v1902 = vlaneseq
  %v1903 = vshrl.u32 %v1902, 7
  %v1904 = vsub.s32 4, %v1903
  %v1905 = vrot.slane %v1637, %v1904
  %1906 = vst.msk [vmem:[%s1857 + $0x9] sm:$0x3] %vm180, %v1901
  %1907 = vst.msk [vmem:[%s1857 + $0x21] sm:$0x3] %vm180, %v1901
  %1908 = vst.msk [vmem:[%s1857 + $0x1b9] sm:$0x3] %vm180, %v1905
  %1909 = vst.msk [vmem:[%s1857 + $0x1d1] sm:$0x3] %vm180, %v1905
  %v1910 = vlaneseq
  %v1911 = vshrl.u32 %v1910, 7
  %v1912 = vsub.s32 5, %v1911
  %v1913 = vrot.slane %v1629, %v1912
  %v1914 = vlaneseq
  %v1915 = vshrl.u32 %v1914, 7
  %v1916 = vsub.s32 5, %v1915
  %v1917 = vrot.slane %v1637, %v1916
  %1918 = vst.msk [vmem:[%s1857 + $0xb] sm:$0x3] %vm180, %v1913
  %1919 = vst.msk [vmem:[%s1857 + $0x23] sm:$0x3] %vm180, %v1913
  %1920 = vst.msk [vmem:[%s1857 + $0x1bb] sm:$0x3] %vm180, %v1917
  %1921 = vst.msk [vmem:[%s1857 + $0x1d3] sm:$0x3] %vm180, %v1917
  %v1922 = vlaneseq
  %v1923 = vshrl.u32 %v1922, 7
  %v1924 = vsub.s32 6, %v1923
  %v1925 = vrot.slane %v1629, %v1924
  %v1926 = vlaneseq
  %v1927 = vshrl.u32 %v1926, 7
  %v1928 = vsub.s32 6, %v1927
  %v1929 = vrot.slane %v1637, %v1928
  %1930 = vst.msk [vmem:[%s1857 + $0xd] sm:$0x3] %vm180, %v1925
  %1931 = vst.msk [vmem:[%s1857 + $0x25] sm:$0x3] %vm180, %v1925
  %1932 = vst.msk [vmem:[%s1857 + $0x1bd] sm:$0x3] %vm180, %v1929
  %1933 = vst.msk [vmem:[%s1857 + $0x1d5] sm:$0x3] %vm180, %v1929
  %v1934 = vlaneseq
  %v1935 = vshrl.u32 %v1934, 7
  %v1936 = vsub.s32 7, %v1935
  %v1937 = vrot.slane %v1629, %v1936
  %v1938 = vlaneseq
  %v1939 = vshrl.u32 %v1938, 7
  %v1940 = vsub.s32 7, %v1939
  %v1941 = vrot.slane %v1637, %v1940
  %1942 = vst.msk [vmem:[%s1857 + $0xf] sm:$0x3] %vm180, %v1937
  %1943 = vst.msk [vmem:[%s1857 + $0x27] sm:$0x3] %vm180, %v1937
  %1944 = vst.msk [vmem:[%s1857 + $0x1bf] sm:$0x3] %vm180, %v1941
  %1945 = vst.msk [vmem:[%s1857 + $0x1d7] sm:$0x3] %vm180, %v1941
  %v1946 = vlaneseq
  %v1947 = vshrl.u32 %v1946, 7
  %v1948 = vsub.s32 0, %v1947
  %v1949 = vrot.slane %v1630, %v1948
  %v1950 = vlaneseq
  %v1951 = vshrl.u32 %v1950, 7
  %v1952 = vsub.s32 0, %v1951
  %v1953 = vrot.slane %v1638, %v1952
  %s1954 = scalar_lea.vmem [#allocation3], 120
  %1955 = vst.msk [vmem:[%s1954 + $0x1] sm:$0x3] %vm180, %v1949
  %1956 = vst.msk [vmem:[%s1954 + $0x19] sm:$0x3] %vm180, %v1949
  %1957 = vst.msk [vmem:[%s1954 + $0x1b1] sm:$0x3] %vm180, %v1953
  %1958 = vst.msk [vmem:[%s1954 + $0x1c9] sm:$0x3] %vm180, %v1953
  %v1959 = vlaneseq
  %v1960 = vshrl.u32 %v1959, 7
  %v1961 = vsub.s32 1, %v1960
  %v1962 = vrot.slane %v1630, %v1961
  %v1963 = vlaneseq
  %v1964 = vshrl.u32 %v1963, 7
  %v1965 = vsub.s32 1, %v1964
  %v1966 = vrot.slane %v1638, %v1965
  %1967 = vst.msk [vmem:[%s1954 + $0x3] sm:$0x3] %vm180, %v1962
  %1968 = vst.msk [vmem:[%s1954 + $0x1b] sm:$0x3] %vm180, %v1962
  %1969 = vst.msk [vmem:[%s1954 + $0x1b3] sm:$0x3] %vm180, %v1966
  %1970 = vst.msk [vmem:[%s1954 + $0x1cb] sm:$0x3] %vm180, %v1966
  %v1971 = vlaneseq
  %v1972 = vshrl.u32 %v1971, 7
  %v1973 = vsub.s32 2, %v1972
  %v1974 = vrot.slane %v1630, %v1973
  %v1975 = vlaneseq
  %v1976 = vshrl.u32 %v1975, 7
  %v1977 = vsub.s32 2, %v1976
  %v1978 = vrot.slane %v1638, %v1977
  %1979 = vst.msk [vmem:[%s1954 + $0x5] sm:$0x3] %vm180, %v1974
  %1980 = vst.msk [vmem:[%s1954 + $0x1d] sm:$0x3] %vm180, %v1974
  %1981 = vst.msk [vmem:[%s1954 + $0x1b5] sm:$0x3] %vm180, %v1978
  %1982 = vst.msk [vmem:[%s1954 + $0x1cd] sm:$0x3] %vm180, %v1978
  %v1983 = vlaneseq
  %v1984 = vshrl.u32 %v1983, 7
  %v1985 = vsub.s32 3, %v1984
  %v1986 = vrot.slane %v1630, %v1985
  %v1987 = vlaneseq
  %v1988 = vshrl.u32 %v1987, 7
  %v1989 = vsub.s32 3, %v1988
  %v1990 = vrot.slane %v1638, %v1989
  %1991 = vst.msk [vmem:[%s1954 + $0x7] sm:$0x3] %vm180, %v1986
  %1992 = vst.msk [vmem:[%s1954 + $0x1f] sm:$0x3] %vm180, %v1986
  %1993 = vst.msk [vmem:[%s1954 + $0x1b7] sm:$0x3] %vm180, %v1990
  %1994 = vst.msk [vmem:[%s1954 + $0x1cf] sm:$0x3] %vm180, %v1990
  %v1995 = vlaneseq
  %v1996 = vshrl.u32 %v1995, 7
  %v1997 = vsub.s32 4, %v1996
  %v1998 = vrot.slane %v1630, %v1997
  %v1999 = vlaneseq
  %v2000 = vshrl.u32 %v1999, 7
  %v2001 = vsub.s32 4, %v2000
  %v2002 = vrot.slane %v1638, %v2001
  %2003 = vst.msk [vmem:[%s1954 + $0x9] sm:$0x3] %vm180, %v1998
  %2004 = vst.msk [vmem:[%s1954 + $0x21] sm:$0x3] %vm180, %v1998
  %2005 = vst.msk [vmem:[%s1954 + $0x1b9] sm:$0x3] %vm180, %v2002
  %2006 = vst.msk [vmem:[%s1954 + $0x1d1] sm:$0x3] %vm180, %v2002
  %v2007 = vlaneseq
  %v2008 = vshrl.u32 %v2007, 7
  %v2009 = vsub.s32 5, %v2008
  %v2010 = vrot.slane %v1630, %v2009
  %v2011 = vlaneseq
  %v2012 = vshrl.u32 %v2011, 7
  %v2013 = vsub.s32 5, %v2012
  %v2014 = vrot.slane %v1638, %v2013
  %2015 = vst.msk [vmem:[%s1954 + $0xb] sm:$0x3] %vm180, %v2010
  %2016 = vst.msk [vmem:[%s1954 + $0x23] sm:$0x3] %vm180, %v2010
  %2017 = vst.msk [vmem:[%s1954 + $0x1bb] sm:$0x3] %vm180, %v2014
  %2018 = vst.msk [vmem:[%s1954 + $0x1d3] sm:$0x3] %vm180, %v2014
  %v2019 = vlaneseq
  %v2020 = vshrl.u32 %v2019, 7
  %v2021 = vsub.s32 6, %v2020
  %v2022 = vrot.slane %v1630, %v2021
  %v2023 = vlaneseq
  %v2024 = vshrl.u32 %v2023, 7
  %v2025 = vsub.s32 6, %v2024
  %v2026 = vrot.slane %v1638, %v2025
  %2027 = vst.msk [vmem:[%s1954 + $0xd] sm:$0x3] %vm180, %v2022
  %2028 = vst.msk [vmem:[%s1954 + $0x25] sm:$0x3] %vm180, %v2022
  %2029 = vst.msk [vmem:[%s1954 + $0x1bd] sm:$0x3] %vm180, %v2026
  %2030 = vst.msk [vmem:[%s1954 + $0x1d5] sm:$0x3] %vm180, %v2026
  %v2031 = vlaneseq
  %v2032 = vshrl.u32 %v2031, 7
  %v2033 = vsub.s32 7, %v2032
  %v2034 = vrot.slane %v1630, %v2033
  %v2035 = vlaneseq
  %v2036 = vshrl.u32 %v2035, 7
  %v2037 = vsub.s32 7, %v2036
  %v2038 = vrot.slane %v1638, %v2037
  %2039 = vst.msk [vmem:[%s1954 + $0xf] sm:$0x3] %vm180, %v2034
  %2040 = vst.msk [vmem:[%s1954 + $0x27] sm:$0x3] %vm180, %v2034
  %2041 = vst.msk [vmem:[%s1954 + $0x1bf] sm:$0x3] %vm180, %v2038
  %2042 = vst.msk [vmem:[%s1954 + $0x1d7] sm:$0x3] %vm180, %v2038
  %v2043 = vlaneseq
  %v2044 = vshrl.u32 %v2043, 7
  %v2045 = vsub.s32 0, %v2044
  %v2046 = vrot.slane %v1631, %v2045
  %v2047 = vlaneseq
  %v2048 = vshrl.u32 %v2047, 7
  %v2049 = vsub.s32 0, %v2048
  %v2050 = vrot.slane %v1639, %v2049
  %s2051 = scalar_lea.vmem [#allocation3], 168
  %2052 = vst.msk [vmem:[%s2051 + $0x1] sm:$0x3] %vm180, %v2046
  %2053 = vst.msk [vmem:[%s2051 + $0x19] sm:$0x3] %vm180, %v2046
  %2054 = vst.msk [vmem:[%s2051 + $0x1b1] sm:$0x3] %vm180, %v2050
  %2055 = vst.msk [vmem:[%s2051 + $0x1c9] sm:$0x3] %vm180, %v2050
  %v2056 = vlaneseq
  %v2057 = vshrl.u32 %v2056, 7
  %v2058 = vsub.s32 1, %v2057
  %v2059 = vrot.slane %v1631, %v2058
  %v2060 = vlaneseq
  %v2061 = vshrl.u32 %v2060, 7
  %v2062 = vsub.s32 1, %v2061
  %v2063 = vrot.slane %v1639, %v2062
  %2064 = vst.msk [vmem:[%s2051 + $0x3] sm:$0x3] %vm180, %v2059
  %2065 = vst.msk [vmem:[%s2051 + $0x1b] sm:$0x3] %vm180, %v2059
  %2066 = vst.msk [vmem:[%s2051 + $0x1b3] sm:$0x3] %vm180, %v2063
  %2067 = vst.msk [vmem:[%s2051 + $0x1cb] sm:$0x3] %vm180, %v2063
  %v2068 = vlaneseq
  %v2069 = vshrl.u32 %v2068, 7
  %v2070 = vsub.s32 2, %v2069
  %v2071 = vrot.slane %v1631, %v2070
  %v2072 = vlaneseq
  %v2073 = vshrl.u32 %v2072, 7
  %v2074 = vsub.s32 2, %v2073
  %v2075 = vrot.slane %v1639, %v2074
  %2076 = vst.msk [vmem:[%s2051 + $0x5] sm:$0x3] %vm180, %v2071
  %2077 = vst.msk [vmem:[%s2051 + $0x1d] sm:$0x3] %vm180, %v2071
  %2078 = vst.msk [vmem:[%s2051 + $0x1b5] sm:$0x3] %vm180, %v2075
  %2079 = vst.msk [vmem:[%s2051 + $0x1cd] sm:$0x3] %vm180, %v2075
  %v2080 = vlaneseq
  %v2081 = vshrl.u32 %v2080, 7
  %v2082 = vsub.s32 3, %v2081
  %v2083 = vrot.slane %v1631, %v2082
  %v2084 = vlaneseq
  %v2085 = vshrl.u32 %v2084, 7
  %v2086 = vsub.s32 3, %v2085
  %v2087 = vrot.slane %v1639, %v2086
  %2088 = vst.msk [vmem:[%s2051 + $0x7] sm:$0x3] %vm180, %v2083
  %2089 = vst.msk [vmem:[%s2051 + $0x1f] sm:$0x3] %vm180, %v2083
  %2090 = vst.msk [vmem:[%s2051 + $0x1b7] sm:$0x3] %vm180, %v2087
  %2091 = vst.msk [vmem:[%s2051 + $0x1cf] sm:$0x3] %vm180, %v2087
  %v2092 = vlaneseq
  %v2093 = vshrl.u32 %v2092, 7
  %v2094 = vsub.s32 4, %v2093
  %v2095 = vrot.slane %v1631, %v2094
  %v2096 = vlaneseq
  %v2097 = vshrl.u32 %v2096, 7
  %v2098 = vsub.s32 4, %v2097
  %v2099 = vrot.slane %v1639, %v2098
  %2100 = vst.msk [vmem:[%s2051 + $0x9] sm:$0x3] %vm180, %v2095
  %2101 = vst.msk [vmem:[%s2051 + $0x21] sm:$0x3] %vm180, %v2095
  %2102 = vst.msk [vmem:[%s2051 + $0x1b9] sm:$0x3] %vm180, %v2099
  %2103 = vst.msk [vmem:[%s2051 + $0x1d1] sm:$0x3] %vm180, %v2099
  %v2104 = vlaneseq
  %v2105 = vshrl.u32 %v2104, 7
  %v2106 = vsub.s32 5, %v2105
  %v2107 = vrot.slane %v1631, %v2106
  %v2108 = vlaneseq
  %v2109 = vshrl.u32 %v2108, 7
  %v2110 = vsub.s32 5, %v2109
  %v2111 = vrot.slane %v1639, %v2110
  %2112 = vst.msk [vmem:[%s2051 + $0xb] sm:$0x3] %vm180, %v2107
  %2113 = vst.msk [vmem:[%s2051 + $0x23] sm:$0x3] %vm180, %v2107
  %2114 = vst.msk [vmem:[%s2051 + $0x1bb] sm:$0x3] %vm180, %v2111
  %2115 = vst.msk [vmem:[%s2051 + $0x1d3] sm:$0x3] %vm180, %v2111
  %v2116 = vlaneseq
  %v2117 = vshrl.u32 %v2116, 7
  %v2118 = vsub.s32 6, %v2117
  %v2119 = vrot.slane %v1631, %v2118
  %v2120 = vlaneseq
  %v2121 = vshrl.u32 %v2120, 7
  %v2122 = vsub.s32 6, %v2121
  %v2123 = vrot.slane %v1639, %v2122
  %2124 = vst.msk [vmem:[%s2051 + $0xd] sm:$0x3] %vm180, %v2119
  %2125 = vst.msk [vmem:[%s2051 + $0x25] sm:$0x3] %vm180, %v2119
  %2126 = vst.msk [vmem:[%s2051 + $0x1bd] sm:$0x3] %vm180, %v2123
  %2127 = vst.msk [vmem:[%s2051 + $0x1d5] sm:$0x3] %vm180, %v2123
  %v2128 = vlaneseq
  %v2129 = vshrl.u32 %v2128, 7
  %v2130 = vsub.s32 7, %v2129
  %v2131 = vrot.slane %v1631, %v2130
  %v2132 = vlaneseq
  %v2133 = vshrl.u32 %v2132, 7
  %v2134 = vsub.s32 7, %v2133
  %v2135 = vrot.slane %v1639, %v2134
  %2136 = vst.msk [vmem:[%s2051 + $0xf] sm:$0x3] %vm180, %v2131
  %2137 = vst.msk [vmem:[%s2051 + $0x27] sm:$0x3] %vm180, %v2131
  %2138 = vst.msk [vmem:[%s2051 + $0x1bf] sm:$0x3] %vm180, %v2135
  %2139 = vst.msk [vmem:[%s2051 + $0x1d7] sm:$0x3] %vm180, %v2135
  %v2140 = vlaneseq
  %v2141 = vshrl.u32 %v2140, 7
  %v2142 = vsub.s32 0, %v2141
  %v2143 = vrot.slane %v1632, %v2142
  %v2144 = vlaneseq
  %v2145 = vshrl.u32 %v2144, 7
  %v2146 = vsub.s32 0, %v2145
  %v2147 = vrot.slane %v1640, %v2146
  %s2148 = scalar_lea.vmem [#allocation3], 216
  %2149 = vst.msk [vmem:[%s2148 + $0x1] sm:$0x3] %vm180, %v2143
  %2150 = vst.msk [vmem:[%s2148 + $0x19] sm:$0x3] %vm180, %v2143
  %2151 = vst.msk [vmem:[%s2148 + $0x1b1] sm:$0x3] %vm180, %v2147
  %2152 = vst.msk [vmem:[%s2148 + $0x1c9] sm:$0x3] %vm180, %v2147
  %v2153 = vlaneseq
  %v2154 = vshrl.u32 %v2153, 7
  %v2155 = vsub.s32 1, %v2154
  %v2156 = vrot.slane %v1632, %v2155
  %v2157 = vlaneseq
  %v2158 = vshrl.u32 %v2157, 7
  %v2159 = vsub.s32 1, %v2158
  %v2160 = vrot.slane %v1640, %v2159
  %2161 = vst.msk [vmem:[%s2148 + $0x3] sm:$0x3] %vm180, %v2156
  %2162 = vst.msk [vmem:[%s2148 + $0x1b] sm:$0x3] %vm180, %v2156
  %2163 = vst.msk [vmem:[%s2148 + $0x1b3] sm:$0x3] %vm180, %v2160
  %2164 = vst.msk [vmem:[%s2148 + $0x1cb] sm:$0x3] %vm180, %v2160
  %v2165 = vlaneseq
  %v2166 = vshrl.u32 %v2165, 7
  %v2167 = vsub.s32 2, %v2166
  %v2168 = vrot.slane %v1632, %v2167
  %v2169 = vlaneseq
  %v2170 = vshrl.u32 %v2169, 7
  %v2171 = vsub.s32 2, %v2170
  %v2172 = vrot.slane %v1640, %v2171
  %2173 = vst.msk [vmem:[%s2148 + $0x5] sm:$0x3] %vm180, %v2168
  %2174 = vst.msk [vmem:[%s2148 + $0x1d] sm:$0x3] %vm180, %v2168
  %2175 = vst.msk [vmem:[%s2148 + $0x1b5] sm:$0x3] %vm180, %v2172
  %2176 = vst.msk [vmem:[%s2148 + $0x1cd] sm:$0x3] %vm180, %v2172
  %v2177 = vlaneseq
  %v2178 = vshrl.u32 %v2177, 7
  %v2179 = vsub.s32 3, %v2178
  %v2180 = vrot.slane %v1632, %v2179
  %v2181 = vlaneseq
  %v2182 = vshrl.u32 %v2181, 7
  %v2183 = vsub.s32 3, %v2182
  %v2184 = vrot.slane %v1640, %v2183
  %2185 = vst.msk [vmem:[%s2148 + $0x7] sm:$0x3] %vm180, %v2180
  %2186 = vst.msk [vmem:[%s2148 + $0x1f] sm:$0x3] %vm180, %v2180
  %2187 = vst.msk [vmem:[%s2148 + $0x1b7] sm:$0x3] %vm180, %v2184
  %2188 = vst.msk [vmem:[%s2148 + $0x1cf] sm:$0x3] %vm180, %v2184
  %v2189 = vlaneseq
  %v2190 = vshrl.u32 %v2189, 7
  %v2191 = vsub.s32 4, %v2190
  %v2192 = vrot.slane %v1632, %v2191
  %v2193 = vlaneseq
  %v2194 = vshrl.u32 %v2193, 7
  %v2195 = vsub.s32 4, %v2194
  %v2196 = vrot.slane %v1640, %v2195
  %2197 = vst.msk [vmem:[%s2148 + $0x9] sm:$0x3] %vm180, %v2192
  %2198 = vst.msk [vmem:[%s2148 + $0x21] sm:$0x3] %vm180, %v2192
  %2199 = vst.msk [vmem:[%s2148 + $0x1b9] sm:$0x3] %vm180, %v2196
  %2200 = vst.msk [vmem:[%s2148 + $0x1d1] sm:$0x3] %vm180, %v2196
  %v2201 = vlaneseq
  %v2202 = vshrl.u32 %v2201, 7
  %v2203 = vsub.s32 5, %v2202
  %v2204 = vrot.slane %v1632, %v2203
  %v2205 = vlaneseq
  %v2206 = vshrl.u32 %v2205, 7
  %v2207 = vsub.s32 5, %v2206
  %v2208 = vrot.slane %v1640, %v2207
  %2209 = vst.msk [vmem:[%s2148 + $0xb] sm:$0x3] %vm180, %v2204
  %2210 = vst.msk [vmem:[%s2148 + $0x23] sm:$0x3] %vm180, %v2204
  %2211 = vst.msk [vmem:[%s2148 + $0x1bb] sm:$0x3] %vm180, %v2208
  %2212 = vst.msk [vmem:[%s2148 + $0x1d3] sm:$0x3] %vm180, %v2208
  %v2213 = vlaneseq
  %v2214 = vshrl.u32 %v2213, 7
  %v2215 = vsub.s32 6, %v2214
  %v2216 = vrot.slane %v1632, %v2215
  %v2217 = vlaneseq
  %v2218 = vshrl.u32 %v2217, 7
  %v2219 = vsub.s32 6, %v2218
  %v2220 = vrot.slane %v1640, %v2219
  %2221 = vst.msk [vmem:[%s2148 + $0xd] sm:$0x3] %vm180, %v2216
  %2222 = vst.msk [vmem:[%s2148 + $0x25] sm:$0x3] %vm180, %v2216
  %2223 = vst.msk [vmem:[%s2148 + $0x1bd] sm:$0x3] %vm180, %v2220
  %2224 = vst.msk [vmem:[%s2148 + $0x1d5] sm:$0x3] %vm180, %v2220
  %v2225 = vlaneseq
  %v2226 = vshrl.u32 %v2225, 7
  %v2227 = vsub.s32 7, %v2226
  %v2228 = vrot.slane %v1632, %v2227
  %v2229 = vlaneseq
  %v2230 = vshrl.u32 %v2229, 7
  %v2231 = vsub.s32 7, %v2230
  %v2232 = vrot.slane %v1640, %v2231
  %2233 = vst.msk [vmem:[%s2148 + $0xf] sm:$0x3] %vm180, %v2228
  %2234 = vst.msk [vmem:[%s2148 + $0x27] sm:$0x3] %vm180, %v2228
  %2235 = vst.msk [vmem:[%s2148 + $0x1bf] sm:$0x3] %vm180, %v2232
  %2236 = vst.msk [vmem:[%s2148 + $0x1d7] sm:$0x3] %vm180, %v2232
  %v2237 = vlaneseq
  %v2238 = vshrl.u32 %v2237, 7
  %v2239 = vsub.s32 0, %v2238
  %v2240 = vrot.slane %v1633, %v2239
  %v2241 = vlaneseq
  %v2242 = vshrl.u32 %v2241, 7
  %v2243 = vsub.s32 0, %v2242
  %v2244 = vrot.slane %v1641, %v2243
  %s2245 = scalar_lea.vmem [#allocation3], 264
  %2246 = vst.msk [vmem:[%s2245 + $0x1] sm:$0x3] %vm180, %v2240
  %2247 = vst.msk [vmem:[%s2245 + $0x19] sm:$0x3] %vm180, %v2240
  %2248 = vst.msk [vmem:[%s2245 + $0x1b1] sm:$0x3] %vm180, %v2244
  %2249 = vst.msk [vmem:[%s2245 + $0x1c9] sm:$0x3] %vm180, %v2244
  %v2250 = vlaneseq
  %v2251 = vshrl.u32 %v2250, 7
  %v2252 = vsub.s32 1, %v2251
  %v2253 = vrot.slane %v1633, %v2252
  %v2254 = vlaneseq
  %v2255 = vshrl.u32 %v2254, 7
  %v2256 = vsub.s32 1, %v2255
  %v2257 = vrot.slane %v1641, %v2256
  %2258 = vst.msk [vmem:[%s2245 + $0x3] sm:$0x3] %vm180, %v2253
  %2259 = vst.msk [vmem:[%s2245 + $0x1b] sm:$0x3] %vm180, %v2253
  %2260 = vst.msk [vmem:[%s2245 + $0x1b3] sm:$0x3] %vm180, %v2257
  %2261 = vst.msk [vmem:[%s2245 + $0x1cb] sm:$0x3] %vm180, %v2257
  %v2262 = vlaneseq
  %v2263 = vshrl.u32 %v2262, 7
  %v2264 = vsub.s32 2, %v2263
  %v2265 = vrot.slane %v1633, %v2264
  %v2266 = vlaneseq
  %v2267 = vshrl.u32 %v2266, 7
  %v2268 = vsub.s32 2, %v2267
  %v2269 = vrot.slane %v1641, %v2268
  %2270 = vst.msk [vmem:[%s2245 + $0x5] sm:$0x3] %vm180, %v2265
  %2271 = vst.msk [vmem:[%s2245 + $0x1d] sm:$0x3] %vm180, %v2265
  %2272 = vst.msk [vmem:[%s2245 + $0x1b5] sm:$0x3] %vm180, %v2269
  %2273 = vst.msk [vmem:[%s2245 + $0x1cd] sm:$0x3] %vm180, %v2269
  %v2274 = vlaneseq
  %v2275 = vshrl.u32 %v2274, 7
  %v2276 = vsub.s32 3, %v2275
  %v2277 = vrot.slane %v1633, %v2276
  %v2278 = vlaneseq
  %v2279 = vshrl.u32 %v2278, 7
  %v2280 = vsub.s32 3, %v2279
  %v2281 = vrot.slane %v1641, %v2280
  %2282 = vst.msk [vmem:[%s2245 + $0x7] sm:$0x3] %vm180, %v2277
  %2283 = vst.msk [vmem:[%s2245 + $0x1f] sm:$0x3] %vm180, %v2277
  %2284 = vst.msk [vmem:[%s2245 + $0x1b7] sm:$0x3] %vm180, %v2281
  %2285 = vst.msk [vmem:[%s2245 + $0x1cf] sm:$0x3] %vm180, %v2281
  %v2286 = vlaneseq
  %v2287 = vshrl.u32 %v2286, 7
  %v2288 = vsub.s32 4, %v2287
  %v2289 = vrot.slane %v1633, %v2288
  %v2290 = vlaneseq
  %v2291 = vshrl.u32 %v2290, 7
  %v2292 = vsub.s32 4, %v2291
  %v2293 = vrot.slane %v1641, %v2292
  %2294 = vst.msk [vmem:[%s2245 + $0x9] sm:$0x3] %vm180, %v2289
  %2295 = vst.msk [vmem:[%s2245 + $0x21] sm:$0x3] %vm180, %v2289
  %2296 = vst.msk [vmem:[%s2245 + $0x1b9] sm:$0x3] %vm180, %v2293
  %2297 = vst.msk [vmem:[%s2245 + $0x1d1] sm:$0x3] %vm180, %v2293
  %v2298 = vlaneseq
  %v2299 = vshrl.u32 %v2298, 7
  %v2300 = vsub.s32 5, %v2299
  %v2301 = vrot.slane %v1633, %v2300
  %v2302 = vlaneseq
  %v2303 = vshrl.u32 %v2302, 7
  %v2304 = vsub.s32 5, %v2303
  %v2305 = vrot.slane %v1641, %v2304
  %2306 = vst.msk [vmem:[%s2245 + $0xb] sm:$0x3] %vm180, %v2301
  %2307 = vst.msk [vmem:[%s2245 + $0x23] sm:$0x3] %vm180, %v2301
  %2308 = vst.msk [vmem:[%s2245 + $0x1bb] sm:$0x3] %vm180, %v2305
  %2309 = vst.msk [vmem:[%s2245 + $0x1d3] sm:$0x3] %vm180, %v2305
  %v2310 = vlaneseq
  %v2311 = vshrl.u32 %v2310, 7
  %v2312 = vsub.s32 6, %v2311
  %v2313 = vrot.slane %v1633, %v2312
  %v2314 = vlaneseq
  %v2315 = vshrl.u32 %v2314, 7
  %v2316 = vsub.s32 6, %v2315
  %v2317 = vrot.slane %v1641, %v2316
  %2318 = vst.msk [vmem:[%s2245 + $0xd] sm:$0x3] %vm180, %v2313
  %2319 = vst.msk [vmem:[%s2245 + $0x25] sm:$0x3] %vm180, %v2313
  %2320 = vst.msk [vmem:[%s2245 + $0x1bd] sm:$0x3] %vm180, %v2317
  %2321 = vst.msk [vmem:[%s2245 + $0x1d5] sm:$0x3] %vm180, %v2317
  %v2322 = vlaneseq
  %v2323 = vshrl.u32 %v2322, 7
  %v2324 = vsub.s32 7, %v2323
  %v2325 = vrot.slane %v1633, %v2324
  %v2326 = vlaneseq
  %v2327 = vshrl.u32 %v2326, 7
  %v2328 = vsub.s32 7, %v2327
  %v2329 = vrot.slane %v1641, %v2328
  %2330 = vst.msk [vmem:[%s2245 + $0xf] sm:$0x3] %vm180, %v2325
  %2331 = vst.msk [vmem:[%s2245 + $0x27] sm:$0x3] %vm180, %v2325
  %2332 = vst.msk [vmem:[%s2245 + $0x1bf] sm:$0x3] %vm180, %v2329
  %2333 = vst.msk [vmem:[%s2245 + $0x1d7] sm:$0x3] %vm180, %v2329
  %v2334 = vlaneseq
  %v2335 = vshrl.u32 %v2334, 7
  %v2336 = vsub.s32 0, %v2335
  %v2337 = vrot.slane %v1634, %v2336
  %v2338 = vlaneseq
  %v2339 = vshrl.u32 %v2338, 7
  %v2340 = vsub.s32 0, %v2339
  %v2341 = vrot.slane %v1642, %v2340
  %s2342 = scalar_lea.vmem [#allocation3], 312
  %2343 = vst.msk [vmem:[%s2342 + $0x1] sm:$0x3] %vm180, %v2337
  %2344 = vst.msk [vmem:[%s2342 + $0x19] sm:$0x3] %vm180, %v2337
  %2345 = vst.msk [vmem:[%s2342 + $0x1b1] sm:$0x3] %vm180, %v2341
  %2346 = vst.msk [vmem:[%s2342 + $0x1c9] sm:$0x3] %vm180, %v2341
  %v2347 = vlaneseq
  %v2348 = vshrl.u32 %v2347, 7
  %v2349 = vsub.s32 1, %v2348
  %v2350 = vrot.slane %v1634, %v2349
  %v2351 = vlaneseq
  %v2352 = vshrl.u32 %v2351, 7
  %v2353 = vsub.s32 1, %v2352
  %v2354 = vrot.slane %v1642, %v2353
  %2355 = vst.msk [vmem:[%s2342 + $0x3] sm:$0x3] %vm180, %v2350
  %2356 = vst.msk [vmem:[%s2342 + $0x1b] sm:$0x3] %vm180, %v2350
  %2357 = vst.msk [vmem:[%s2342 + $0x1b3] sm:$0x3] %vm180, %v2354
  %2358 = vst.msk [vmem:[%s2342 + $0x1cb] sm:$0x3] %vm180, %v2354
  %v2359 = vlaneseq
  %v2360 = vshrl.u32 %v2359, 7
  %v2361 = vsub.s32 2, %v2360
  %v2362 = vrot.slane %v1634, %v2361
  %v2363 = vlaneseq
  %v2364 = vshrl.u32 %v2363, 7
  %v2365 = vsub.s32 2, %v2364
  %v2366 = vrot.slane %v1642, %v2365
  %2367 = vst.msk [vmem:[%s2342 + $0x5] sm:$0x3] %vm180, %v2362
  %2368 = vst.msk [vmem:[%s2342 + $0x1d] sm:$0x3] %vm180, %v2362
  %2369 = vst.msk [vmem:[%s2342 + $0x1b5] sm:$0x3] %vm180, %v2366
  %2370 = vst.msk [vmem:[%s2342 + $0x1cd] sm:$0x3] %vm180, %v2366
  %v2371 = vlaneseq
  %v2372 = vshrl.u32 %v2371, 7
  %v2373 = vsub.s32 3, %v2372
  %v2374 = vrot.slane %v1634, %v2373
  %v2375 = vlaneseq
  %v2376 = vshrl.u32 %v2375, 7
  %v2377 = vsub.s32 3, %v2376
  %v2378 = vrot.slane %v1642, %v2377
  %2379 = vst.msk [vmem:[%s2342 + $0x7] sm:$0x3] %vm180, %v2374
  %2380 = vst.msk [vmem:[%s2342 + $0x1f] sm:$0x3] %vm180, %v2374
  %2381 = vst.msk [vmem:[%s2342 + $0x1b7] sm:$0x3] %vm180, %v2378
  %2382 = vst.msk [vmem:[%s2342 + $0x1cf] sm:$0x3] %vm180, %v2378
  %v2383 = vlaneseq
  %v2384 = vshrl.u32 %v2383, 7
  %v2385 = vsub.s32 4, %v2384
  %v2386 = vrot.slane %v1634, %v2385
  %v2387 = vlaneseq
  %v2388 = vshrl.u32 %v2387, 7
  %v2389 = vsub.s32 4, %v2388
  %v2390 = vrot.slane %v1642, %v2389
  %2391 = vst.msk [vmem:[%s2342 + $0x9] sm:$0x3] %vm180, %v2386
  %2392 = vst.msk [vmem:[%s2342 + $0x21] sm:$0x3] %vm180, %v2386
  %2393 = vst.msk [vmem:[%s2342 + $0x1b9] sm:$0x3] %vm180, %v2390
  %2394 = vst.msk [vmem:[%s2342 + $0x1d1] sm:$0x3] %vm180, %v2390
  %v2395 = vlaneseq
  %v2396 = vshrl.u32 %v2395, 7
  %v2397 = vsub.s32 5, %v2396
  %v2398 = vrot.slane %v1634, %v2397
  %v2399 = vlaneseq
  %v2400 = vshrl.u32 %v2399, 7
  %v2401 = vsub.s32 5, %v2400
  %v2402 = vrot.slane %v1642, %v2401
  %2403 = vst.msk [vmem:[%s2342 + $0xb] sm:$0x3] %vm180, %v2398
  %2404 = vst.msk [vmem:[%s2342 + $0x23] sm:$0x3] %vm180, %v2398
  %2405 = vst.msk [vmem:[%s2342 + $0x1bb] sm:$0x3] %vm180, %v2402
  %2406 = vst.msk [vmem:[%s2342 + $0x1d3] sm:$0x3] %vm180, %v2402
  %v2407 = vlaneseq
  %v2408 = vshrl.u32 %v2407, 7
  %v2409 = vsub.s32 6, %v2408
  %v2410 = vrot.slane %v1634, %v2409
  %v2411 = vlaneseq
  %v2412 = vshrl.u32 %v2411, 7
  %v2413 = vsub.s32 6, %v2412
  %v2414 = vrot.slane %v1642, %v2413
  %2415 = vst.msk [vmem:[%s2342 + $0xd] sm:$0x3] %vm180, %v2410
  %2416 = vst.msk [vmem:[%s2342 + $0x25] sm:$0x3] %vm180, %v2410
  %2417 = vst.msk [vmem:[%s2342 + $0x1bd] sm:$0x3] %vm180, %v2414
  %2418 = vst.msk [vmem:[%s2342 + $0x1d5] sm:$0x3] %vm180, %v2414
  %v2419 = vlaneseq
  %v2420 = vshrl.u32 %v2419, 7
  %v2421 = vsub.s32 7, %v2420
  %v2422 = vrot.slane %v1634, %v2421
  %v2423 = vlaneseq
  %v2424 = vshrl.u32 %v2423, 7
  %v2425 = vsub.s32 7, %v2424
  %v2426 = vrot.slane %v1642, %v2425
  %2427 = vst.msk [vmem:[%s2342 + $0xf] sm:$0x3] %vm180, %v2422
  %2428 = vst.msk [vmem:[%s2342 + $0x27] sm:$0x3] %vm180, %v2422
  %2429 = vst.msk [vmem:[%s2342 + $0x1bf] sm:$0x3] %vm180, %v2426
  %2430 = vst.msk [vmem:[%s2342 + $0x1d7] sm:$0x3] %vm180, %v2426
  %v2431 = vlaneseq
  %v2432 = vshrl.u32 %v2431, 7
  %v2433 = vsub.s32 0, %v2432
  %v2434 = vrot.slane %v1635, %v2433
  %v2435 = vlaneseq
  %v2436 = vshrl.u32 %v2435, 7
  %v2437 = vsub.s32 0, %v2436
  %v2438 = vrot.slane %v1643, %v2437
  %s2439 = scalar_lea.vmem [#allocation3], 360
  %2440 = vst.msk [vmem:[%s2439 + $0x1] sm:$0x3] %vm180, %v2434
  %2441 = vst.msk [vmem:[%s2439 + $0x19] sm:$0x3] %vm180, %v2434
  %2442 = vst.msk [vmem:[%s2439 + $0x1b1] sm:$0x3] %vm180, %v2438
  %2443 = vst.msk [vmem:[%s2439 + $0x1c9] sm:$0x3] %vm180, %v2438
  %v2444 = vlaneseq
  %v2445 = vshrl.u32 %v2444, 7
  %v2446 = vsub.s32 1, %v2445
  %v2447 = vrot.slane %v1635, %v2446
  %v2448 = vlaneseq
  %v2449 = vshrl.u32 %v2448, 7
  %v2450 = vsub.s32 1, %v2449
  %v2451 = vrot.slane %v1643, %v2450
  %2452 = vst.msk [vmem:[%s2439 + $0x3] sm:$0x3] %vm180, %v2447
  %2453 = vst.msk [vmem:[%s2439 + $0x1b] sm:$0x3] %vm180, %v2447
  %2454 = vst.msk [vmem:[%s2439 + $0x1b3] sm:$0x3] %vm180, %v2451
  %2455 = vst.msk [vmem:[%s2439 + $0x1cb] sm:$0x3] %vm180, %v2451
  %v2456 = vlaneseq
  %v2457 = vshrl.u32 %v2456, 7
  %v2458 = vsub.s32 2, %v2457
  %v2459 = vrot.slane %v1635, %v2458
  %v2460 = vlaneseq
  %v2461 = vshrl.u32 %v2460, 7
  %v2462 = vsub.s32 2, %v2461
  %v2463 = vrot.slane %v1643, %v2462
  %2464 = vst.msk [vmem:[%s2439 + $0x5] sm:$0x3] %vm180, %v2459
  %2465 = vst.msk [vmem:[%s2439 + $0x1d] sm:$0x3] %vm180, %v2459
  %2466 = vst.msk [vmem:[%s2439 + $0x1b5] sm:$0x3] %vm180, %v2463
  %2467 = vst.msk [vmem:[%s2439 + $0x1cd] sm:$0x3] %vm180, %v2463
  %v2468 = vlaneseq
  %v2469 = vshrl.u32 %v2468, 7
  %v2470 = vsub.s32 3, %v2469
  %v2471 = vrot.slane %v1635, %v2470
  %v2472 = vlaneseq
  %v2473 = vshrl.u32 %v2472, 7
  %v2474 = vsub.s32 3, %v2473
  %v2475 = vrot.slane %v1643, %v2474
  %2476 = vst.msk [vmem:[%s2439 + $0x7] sm:$0x3] %vm180, %v2471
  %2477 = vst.msk [vmem:[%s2439 + $0x1f] sm:$0x3] %vm180, %v2471
  %2478 = vst.msk [vmem:[%s2439 + $0x1b7] sm:$0x3] %vm180, %v2475
  %2479 = vst.msk [vmem:[%s2439 + $0x1cf] sm:$0x3] %vm180, %v2475
  %v2480 = vlaneseq
  %v2481 = vshrl.u32 %v2480, 7
  %v2482 = vsub.s32 4, %v2481
  %v2483 = vrot.slane %v1635, %v2482
  %v2484 = vlaneseq
  %v2485 = vshrl.u32 %v2484, 7
  %v2486 = vsub.s32 4, %v2485
  %v2487 = vrot.slane %v1643, %v2486
  %2488 = vst.msk [vmem:[%s2439 + $0x9] sm:$0x3] %vm180, %v2483
  %2489 = vst.msk [vmem:[%s2439 + $0x21] sm:$0x3] %vm180, %v2483
  %2490 = vst.msk [vmem:[%s2439 + $0x1b9] sm:$0x3] %vm180, %v2487
  %2491 = vst.msk [vmem:[%s2439 + $0x1d1] sm:$0x3] %vm180, %v2487
  %v2492 = vlaneseq
  %v2493 = vshrl.u32 %v2492, 7
  %v2494 = vsub.s32 5, %v2493
  %v2495 = vrot.slane %v1635, %v2494
  %v2496 = vlaneseq
  %v2497 = vshrl.u32 %v2496, 7
  %v2498 = vsub.s32 5, %v2497
  %v2499 = vrot.slane %v1643, %v2498
  %2500 = vst.msk [vmem:[%s2439 + $0xb] sm:$0x3] %vm180, %v2495
  %2501 = vst.msk [vmem:[%s2439 + $0x23] sm:$0x3] %vm180, %v2495
  %2502 = vst.msk [vmem:[%s2439 + $0x1bb] sm:$0x3] %vm180, %v2499
  %2503 = vst.msk [vmem:[%s2439 + $0x1d3] sm:$0x3] %vm180, %v2499
  %v2504 = vlaneseq
  %v2505 = vshrl.u32 %v2504, 7
  %v2506 = vsub.s32 6, %v2505
  %v2507 = vrot.slane %v1635, %v2506
  %v2508 = vlaneseq
  %v2509 = vshrl.u32 %v2508, 7
  %v2510 = vsub.s32 6, %v2509
  %v2511 = vrot.slane %v1643, %v2510
  %2512 = vst.msk [vmem:[%s2439 + $0xd] sm:$0x3] %vm180, %v2507
  %2513 = vst.msk [vmem:[%s2439 + $0x25] sm:$0x3] %vm180, %v2507
  %2514 = vst.msk [vmem:[%s2439 + $0x1bd] sm:$0x3] %vm180, %v2511
  %2515 = vst.msk [vmem:[%s2439 + $0x1d5] sm:$0x3] %vm180, %v2511
  %v2516 = vlaneseq
  %v2517 = vshrl.u32 %v2516, 7
  %v2518 = vsub.s32 7, %v2517
  %v2519 = vrot.slane %v1635, %v2518
  %v2520 = vlaneseq
  %v2521 = vshrl.u32 %v2520, 7
  %v2522 = vsub.s32 7, %v2521
  %v2523 = vrot.slane %v1643, %v2522
  %2524 = vst.msk [vmem:[%s2439 + $0xf] sm:$0x3] %vm180, %v2519
  %2525 = vst.msk [vmem:[%s2439 + $0x27] sm:$0x3] %vm180, %v2519
  %2526 = vst.msk [vmem:[%s2439 + $0x1bf] sm:$0x3] %vm180, %v2523
  %2527 = vst.msk [vmem:[%s2439 + $0x1d7] sm:$0x3] %vm180, %v2523
  %v2528 = vld [vmem:[#allocation3] sm:$0xff]
  %v2529 = vld [vmem:[#allocation3 + $0x8] sm:$0xff]
  %v2530 = vld [vmem:[#allocation3 + $0x18] sm:$0xff]
  %v2531 = vld [vmem:[#allocation3 + $0x20] sm:$0xff]
  %v2532 = vld [vmem:[#allocation3 + $0x30] sm:$0xff]
  %v2533 = vld [vmem:[#allocation3 + $0x38] sm:$0xff]
  %v2534 = vld [vmem:[#allocation3 + $0x48] sm:$0xff]
  %v2535 = vld [vmem:[#allocation3 + $0x50] sm:$0xff]
  %v2536 = vld [vmem:[#allocation3 + $0x60] sm:$0xff]
  %v2537 = vld [vmem:[#allocation3 + $0x68] sm:$0xff]
  %v2538 = vld [vmem:[#allocation3 + $0x78] sm:$0xff]
  %v2539 = vld [vmem:[#allocation3 + $0x80] sm:$0xff]
  %v2540 = vld [vmem:[#allocation3 + $0x90] sm:$0xff]
  %v2541 = vld [vmem:[#allocation3 + $0x98] sm:$0xff]
  %v2542 = vld [vmem:[#allocation3 + $0xa8] sm:$0xff]
  %v2543 = vld [vmem:[#allocation3 + $0xb0] sm:$0xff]
  %v2544 = vld [vmem:[#allocation3 + $0xc0] sm:$0xff]
  %v2545 = vld [vmem:[#allocation3 + $0xc8] sm:$0xff]
  %v2546 = vld [vmem:[#allocation3 + $0xd8] sm:$0xff]
  %v2547 = vld [vmem:[#allocation3 + $0xe0] sm:$0xff]
  %v2548 = vld [vmem:[#allocation3 + $0xf0] sm:$0xff]
  %v2549 = vld [vmem:[#allocation3 + $0xf8] sm:$0xff]
  %v2550 = vld [vmem:[#allocation3 + $0x108] sm:$0xff]
  %v2551 = vld [vmem:[#allocation3 + $0x110] sm:$0xff]
  %v2552 = vld [vmem:[#allocation3 + $0x120] sm:$0xff]
  %v2553 = vld [vmem:[#allocation3 + $0x128] sm:$0xff]
  %v2554 = vld [vmem:[#allocation3 + $0x138] sm:$0xff]
  %v2555 = vld [vmem:[#allocation3 + $0x140] sm:$0xff]
  %v2556 = vld [vmem:[#allocation3 + $0x150] sm:$0xff]
  %v2557 = vld [vmem:[#allocation3 + $0x158] sm:$0xff]
  %v2558 = vld [vmem:[#allocation3 + $0x168] sm:$0xff]
  %v2559 = vld [vmem:[#allocation3 + $0x170] sm:$0xff]
  %v2560 = vld [vmem:[#allocation3 + $0x1b0] sm:$0xff]
  %v2561 = vld [vmem:[#allocation3 + $0x1b8] sm:$0xff]
  %v2562 = vld [vmem:[#allocation3 + $0x1c8] sm:$0xff]
  %v2563 = vld [vmem:[#allocation3 + $0x1d0] sm:$0xff]
  %v2564 = vld [vmem:[#allocation3 + $0x1e0] sm:$0xff]
  %v2565 = vld [vmem:[#allocation3 + $0x1e8] sm:$0xff]
  %v2566 = vld [vmem:[#allocation3 + $0x1f8] sm:$0xff]
  %v2567 = vld [vmem:[#allocation3 + $0x200] sm:$0xff]
  %v2568 = vld [vmem:[#allocation3 + $0x210] sm:$0xff]
  %v2569 = vld [vmem:[#allocation3 + $0x218] sm:$0xff]
  %v2570 = vld [vmem:[#allocation3 + $0x228] sm:$0xff]
  %v2571 = vld [vmem:[#allocation3 + $0x230] sm:$0xff]
  %v2572 = vld [vmem:[#allocation3 + $0x240] sm:$0xff]
  %v2573 = vld [vmem:[#allocation3 + $0x248] sm:$0xff]
  %v2574 = vld [vmem:[#allocation3 + $0x258] sm:$0xff]
  %v2575 = vld [vmem:[#allocation3 + $0x260] sm:$0xff]
  %v2576 = vld [vmem:[#allocation3 + $0x270] sm:$0xff]
  %v2577 = vld [vmem:[#allocation3 + $0x278] sm:$0xff]
  %v2578 = vld [vmem:[#allocation3 + $0x288] sm:$0xff]
  %v2579 = vld [vmem:[#allocation3 + $0x290] sm:$0xff]
  %v2580 = vld [vmem:[#allocation3 + $0x2a0] sm:$0xff]
  %v2581 = vld [vmem:[#allocation3 + $0x2a8] sm:$0xff]
  %v2582 = vld [vmem:[#allocation3 + $0x2b8] sm:$0xff]
  %v2583 = vld [vmem:[#allocation3 + $0x2c0] sm:$0xff]
  %v2584 = vld [vmem:[#allocation3 + $0x2d0] sm:$0xff]
  %v2585 = vld [vmem:[#allocation3 + $0x2d8] sm:$0xff]
  %v2586 = vld [vmem:[#allocation3 + $0x2e8] sm:$0xff]
  %v2587 = vld [vmem:[#allocation3 + $0x2f0] sm:$0xff]
  %v2588 = vld [vmem:[#allocation3 + $0x300] sm:$0xff]
  %v2589 = vld [vmem:[#allocation3 + $0x308] sm:$0xff]
  %v2590 = vld [vmem:[#allocation3 + $0x318] sm:$0xff]
  %v2591 = vld [vmem:[#allocation3 + $0x320] sm:$0xff]
  %v2592 = vld [vmem:[#allocation3 + $0x1] sm:$0xff]
  %v2593 = vld [vmem:[#allocation3 + $0x9] sm:$0xff]
  %v2594 = vld [vmem:[#allocation3 + $0x19] sm:$0xff]
  %v2595 = vld [vmem:[#allocation3 + $0x21] sm:$0xff]
  %v2596 = vld [vmem:[#allocation3 + $0x31] sm:$0xff]
  %v2597 = vld [vmem:[#allocation3 + $0x39] sm:$0xff]
  %v2598 = vld [vmem:[#allocation3 + $0x49] sm:$0xff]
  %v2599 = vld [vmem:[#allocation3 + $0x51] sm:$0xff]
  %v2600 = vld [vmem:[#allocation3 + $0x61] sm:$0xff]
  %v2601 = vld [vmem:[#allocation3 + $0x69] sm:$0xff]
  %v2602 = vld [vmem:[#allocation3 + $0x79] sm:$0xff]
  %v2603 = vld [vmem:[#allocation3 + $0x81] sm:$0xff]
  %v2604 = vld [vmem:[#allocation3 + $0x91] sm:$0xff]
  %v2605 = vld [vmem:[#allocation3 + $0x99] sm:$0xff]
  %v2606 = vld [vmem:[#allocation3 + $0xa9] sm:$0xff]
  %v2607 = vld [vmem:[#allocation3 + $0xb1] sm:$0xff]
  %v2608 = vld [vmem:[#allocation3 + $0xc1] sm:$0xff]
  %v2609 = vld [vmem:[#allocation3 + $0xc9] sm:$0xff]
  %v2610 = vld [vmem:[#allocation3 + $0xd9] sm:$0xff]
  %v2611 = vld [vmem:[#allocation3 + $0xe1] sm:$0xff]
  %v2612 = vld [vmem:[#allocation3 + $0xf1] sm:$0xff]
  %v2613 = vld [vmem:[#allocation3 + $0xf9] sm:$0xff]
  %v2614 = vld [vmem:[#allocation3 + $0x109] sm:$0xff]
  %v2615 = vld [vmem:[#allocation3 + $0x111] sm:$0xff]
  %v2616 = vld [vmem:[#allocation3 + $0x121] sm:$0xff]
  %v2617 = vld [vmem:[#allocation3 + $0x129] sm:$0xff]
  %v2618 = vld [vmem:[#allocation3 + $0x139] sm:$0xff]
  %v2619 = vld [vmem:[#allocation3 + $0x141] sm:$0xff]
  %v2620 = vld [vmem:[#allocation3 + $0x151] sm:$0xff]
  %v2621 = vld [vmem:[#allocation3 + $0x159] sm:$0xff]
  %v2622 = vld [vmem:[#allocation3 + $0x169] sm:$0xff]
  %v2623 = vld [vmem:[#allocation3 + $0x171] sm:$0xff]
  %v2624 = vld [vmem:[#allocation3 + $0x1b1] sm:$0xff]
  %v2625 = vld [vmem:[#allocation3 + $0x1b9] sm:$0xff]
  %v2626 = vld [vmem:[#allocation3 + $0x1c9] sm:$0xff]
  %v2627 = vld [vmem:[#allocation3 + $0x1d1] sm:$0xff]
  %v2628 = vld [vmem:[#allocation3 + $0x1e1] sm:$0xff]
  %v2629 = vld [vmem:[#allocation3 + $0x1e9] sm:$0xff]
  %v2630 = vld [vmem:[#allocation3 + $0x1f9] sm:$0xff]
  %v2631 = vld [vmem:[#allocation3 + $0x201] sm:$0xff]
  %v2632 = vld [vmem:[#allocation3 + $0x211] sm:$0xff]
  %v2633 = vld [vmem:[#allocation3 + $0x219] sm:$0xff]
  %v2634 = vld [vmem:[#allocation3 + $0x229] sm:$0xff]
  %v2635 = vld [vmem:[#allocation3 + $0x231] sm:$0xff]
  %v2636 = vld [vmem:[#allocation3 + $0x241] sm:$0xff]
  %v2637 = vld [vmem:[#allocation3 + $0x249] sm:$0xff]
  %v2638 = vld [vmem:[#allocation3 + $0x259] sm:$0xff]
  %v2639 = vld [vmem:[#allocation3 + $0x261] sm:$0xff]
  %v2640 = vld [vmem:[#allocation3 + $0x271] sm:$0xff]
  %v2641 = vld [vmem:[#allocation3 + $0x279] sm:$0xff]
  %v2642 = vld [vmem:[#allocation3 + $0x289] sm:$0xff]
  %v2643 = vld [vmem:[#allocation3 + $0x291] sm:$0xff]
  %v2644 = vld [vmem:[#allocation3 + $0x2a1] sm:$0xff]
  %v2645 = vld [vmem:[#allocation3 + $0x2a9] sm:$0xff]
  %v2646 = vld [vmem:[#allocation3 + $0x2b9] sm:$0xff]
  %v2647 = vld [vmem:[#allocation3 + $0x2c1] sm:$0xff]
  %v2648 = vld [vmem:[#allocation3 + $0x2d1] sm:$0xff]
  %v2649 = vld [vmem:[#allocation3 + $0x2d9] sm:$0xff]
  %v2650 = vld [vmem:[#allocation3 + $0x2e9] sm:$0xff]
  %v2651 = vld [vmem:[#allocation3 + $0x2f1] sm:$0xff]
  %v2652 = vld [vmem:[#allocation3 + $0x301] sm:$0xff]
  %v2653 = vld [vmem:[#allocation3 + $0x309] sm:$0xff]
  %v2654 = vld [vmem:[#allocation3 + $0x319] sm:$0xff]
  %v2655 = vld [vmem:[#allocation3 + $0x321] sm:$0xff]
  %v2656 = vld [vmem:[#allocation3 + $0x2] sm:$0xff]
  %v2657 = vld [vmem:[#allocation3 + $0xa] sm:$0xff]
  %v2658 = vld [vmem:[#allocation3 + $0x1a] sm:$0xff]
  %v2659 = vld [vmem:[#allocation3 + $0x22] sm:$0xff]
  %v2660 = vld [vmem:[#allocation3 + $0x32] sm:$0xff]
  %v2661 = vld [vmem:[#allocation3 + $0x3a] sm:$0xff]
  %v2662 = vld [vmem:[#allocation3 + $0x4a] sm:$0xff]
  %v2663 = vld [vmem:[#allocation3 + $0x52] sm:$0xff]
  %v2664 = vld [vmem:[#allocation3 + $0x62] sm:$0xff]
  %v2665 = vld [vmem:[#allocation3 + $0x6a] sm:$0xff]
  %v2666 = vld [vmem:[#allocation3 + $0x7a] sm:$0xff]
  %v2667 = vld [vmem:[#allocation3 + $0x82] sm:$0xff]
  %v2668 = vld [vmem:[#allocation3 + $0x92] sm:$0xff]
  %v2669 = vld [vmem:[#allocation3 + $0x9a] sm:$0xff]
  %v2670 = vld [vmem:[#allocation3 + $0xaa] sm:$0xff]
  %v2671 = vld [vmem:[#allocation3 + $0xb2] sm:$0xff]
  %v2672 = vld [vmem:[#allocation3 + $0xc2] sm:$0xff]
  %v2673 = vld [vmem:[#allocation3 + $0xca] sm:$0xff]
  %v2674 = vld [vmem:[#allocation3 + $0xda] sm:$0xff]
  %v2675 = vld [vmem:[#allocation3 + $0xe2] sm:$0xff]
  %v2676 = vld [vmem:[#allocation3 + $0xf2] sm:$0xff]
  %v2677 = vld [vmem:[#allocation3 + $0xfa] sm:$0xff]
  %v2678 = vld [vmem:[#allocation3 + $0x10a] sm:$0xff]
  %v2679 = vld [vmem:[#allocation3 + $0x112] sm:$0xff]
  %v2680 = vld [vmem:[#allocation3 + $0x122] sm:$0xff]
  %v2681 = vld [vmem:[#allocation3 + $0x12a] sm:$0xff]
  %v2682 = vld [vmem:[#allocation3 + $0x13a] sm:$0xff]
  %v2683 = vld [vmem:[#allocation3 + $0x142] sm:$0xff]
  %v2684 = vld [vmem:[#allocation3 + $0x152] sm:$0xff]
  %v2685 = vld [vmem:[#allocation3 + $0x15a] sm:$0xff]
  %v2686 = vld [vmem:[#allocation3 + $0x16a] sm:$0xff]
  %v2687 = vld [vmem:[#allocation3 + $0x172] sm:$0xff]
  %v2688 = vld [vmem:[#allocation3 + $0x1b2] sm:$0xff]
  %v2689 = vld [vmem:[#allocation3 + $0x1ba] sm:$0xff]
  %v2690 = vld [vmem:[#allocation3 + $0x1ca] sm:$0xff]
  %v2691 = vld [vmem:[#allocation3 + $0x1d2] sm:$0xff]
  %v2692 = vld [vmem:[#allocation3 + $0x1e2] sm:$0xff]
  %v2693 = vld [vmem:[#allocation3 + $0x1ea] sm:$0xff]
  %v2694 = vld [vmem:[#allocation3 + $0x1fa] sm:$0xff]
  %v2695 = vld [vmem:[#allocation3 + $0x202] sm:$0xff]
  %v2696 = vld [vmem:[#allocation3 + $0x212] sm:$0xff]
  %v2697 = vld [vmem:[#allocation3 + $0x21a] sm:$0xff]
  %v2698 = vld [vmem:[#allocation3 + $0x22a] sm:$0xff]
  %v2699 = vld [vmem:[#allocation3 + $0x232] sm:$0xff]
  %v2700 = vld [vmem:[#allocation3 + $0x242] sm:$0xff]
  %v2701 = vld [vmem:[#allocation3 + $0x24a] sm:$0xff]
  %v2702 = vld [vmem:[#allocation3 + $0x25a] sm:$0xff]
  %v2703 = vld [vmem:[#allocation3 + $0x262] sm:$0xff]
  %v2704 = vld [vmem:[#allocation3 + $0x272] sm:$0xff]
  %v2705 = vld [vmem:[#allocation3 + $0x27a] sm:$0xff]
  %v2706 = vld [vmem:[#allocation3 + $0x28a] sm:$0xff]
  %v2707 = vld [vmem:[#allocation3 + $0x292] sm:$0xff]
  %v2708 = vld [vmem:[#allocation3 + $0x2a2] sm:$0xff]
  %v2709 = vld [vmem:[#allocation3 + $0x2aa] sm:$0xff]
  %v2710 = vld [vmem:[#allocation3 + $0x2ba] sm:$0xff]
  %v2711 = vld [vmem:[#allocation3 + $0x2c2] sm:$0xff]
  %v2712 = vld [vmem:[#allocation3 + $0x2d2] sm:$0xff]
  %v2713 = vld [vmem:[#allocation3 + $0x2da] sm:$0xff]
  %v2714 = vld [vmem:[#allocation3 + $0x2ea] sm:$0xff]
  %v2715 = vld [vmem:[#allocation3 + $0x2f2] sm:$0xff]
  %v2716 = vld [vmem:[#allocation3 + $0x302] sm:$0xff]
  %v2717 = vld [vmem:[#allocation3 + $0x30a] sm:$0xff]
  %v2718 = vld [vmem:[#allocation3 + $0x31a] sm:$0xff]
  %v2719 = vld [vmem:[#allocation3 + $0x322] sm:$0xff]
  %v2720 = vld [vmem:[%s1760] sm:$0xff]
  %v2721 = vld [vmem:[%s1760 + $0x8] sm:$0xff]
  %v2722 = vld [vmem:[%s1760 + $0x18] sm:$0xff]
  %v2723 = vld [vmem:[%s1760 + $0x20] sm:$0xff]
  %v2724 = vld [vmem:[%s1760 + $0x30] sm:$0xff]
  %v2725 = vld [vmem:[%s1760 + $0x38] sm:$0xff]
  %v2726 = vld [vmem:[%s1760 + $0x48] sm:$0xff]
  %v2727 = vld [vmem:[%s1760 + $0x50] sm:$0xff]
  %v2728 = vld [vmem:[%s1760 + $0x60] sm:$0xff]
  %v2729 = vld [vmem:[%s1760 + $0x68] sm:$0xff]
  %v2730 = vld [vmem:[%s1760 + $0x78] sm:$0xff]
  %v2731 = vld [vmem:[%s1760 + $0x80] sm:$0xff]
  %v2732 = vld [vmem:[%s1760 + $0x90] sm:$0xff]
  %v2733 = vld [vmem:[%s1760 + $0x98] sm:$0xff]
  %v2734 = vld [vmem:[%s1760 + $0xa8] sm:$0xff]
  %v2735 = vld [vmem:[%s1760 + $0xb0] sm:$0xff]
  %v2736 = vld [vmem:[%s1760 + $0xc0] sm:$0xff]
  %v2737 = vld [vmem:[%s1760 + $0xc8] sm:$0xff]
  %v2738 = vld [vmem:[%s1760 + $0xd8] sm:$0xff]
  %v2739 = vld [vmem:[%s1760 + $0xe0] sm:$0xff]
  %v2740 = vld [vmem:[%s1760 + $0xf0] sm:$0xff]
  %v2741 = vld [vmem:[%s1760 + $0xf8] sm:$0xff]
  %v2742 = vld [vmem:[%s1760 + $0x108] sm:$0xff]
  %v2743 = vld [vmem:[%s1760 + $0x110] sm:$0xff]
  %v2744 = vld [vmem:[%s1760 + $0x120] sm:$0xff]
  %v2745 = vld [vmem:[%s1760 + $0x128] sm:$0xff]
  %v2746 = vld [vmem:[%s1760 + $0x138] sm:$0xff]
  %v2747 = vld [vmem:[%s1760 + $0x140] sm:$0xff]
  %v2748 = vld [vmem:[%s1760 + $0x150] sm:$0xff]
  %v2749 = vld [vmem:[%s1760 + $0x158] sm:$0xff]
  %v2750 = vld [vmem:[%s1760 + $0x168] sm:$0xff]
  %v2751 = vld [vmem:[%s1760 + $0x170] sm:$0xff]
  %v2752 = vld [vmem:[%s1760 + $0x1b0] sm:$0xff]
  %v2753 = vld [vmem:[%s1760 + $0x1b8] sm:$0xff]
  %v2754 = vld [vmem:[%s1760 + $0x1c8] sm:$0xff]
  %v2755 = vld [vmem:[%s1760 + $0x1d0] sm:$0xff]
  %v2756 = vld [vmem:[%s1760 + $0x1e0] sm:$0xff]
  %v2757 = vld [vmem:[%s1760 + $0x1e8] sm:$0xff]
  %v2758 = vld [vmem:[%s1760 + $0x1f8] sm:$0xff]
  %v2759 = vld [vmem:[%s1760 + $0x200] sm:$0xff]
  %v2760 = vld [vmem:[%s1760 + $0x210] sm:$0xff]
  %v2761 = vld [vmem:[%s1760 + $0x218] sm:$0xff]
  %v2762 = vld [vmem:[%s1760 + $0x228] sm:$0xff]
  %v2763 = vld [vmem:[%s1760 + $0x230] sm:$0xff]
  %v2764 = vld [vmem:[%s1760 + $0x240] sm:$0xff]
  %v2765 = vld [vmem:[%s1760 + $0x248] sm:$0xff]
  %v2766 = vld [vmem:[%s1760 + $0x258] sm:$0xff]
  %v2767 = vld [vmem:[%s1760 + $0x260] sm:$0xff]
  %v2768 = vld [vmem:[%s1760 + $0x270] sm:$0xff]
  %v2769 = vld [vmem:[%s1760 + $0x278] sm:$0xff]
  %v2770 = vld [vmem:[%s1760 + $0x288] sm:$0xff]
  %v2771 = vld [vmem:[%s1760 + $0x290] sm:$0xff]
  %v2772 = vld [vmem:[%s1760 + $0x2a0] sm:$0xff]
  %v2773 = vld [vmem:[%s1760 + $0x2a8] sm:$0xff]
  %v2774 = vld [vmem:[%s1760 + $0x2b8] sm:$0xff]
  %v2775 = vld [vmem:[%s1760 + $0x2c0] sm:$0xff]
  %v2776 = vld [vmem:[%s1760 + $0x2d0] sm:$0xff]
  %v2777 = vld [vmem:[%s1760 + $0x2d8] sm:$0xff]
  %v2778 = vld [vmem:[%s1760 + $0x2e8] sm:$0xff]
  %v2779 = vld [vmem:[%s1760 + $0x2f0] sm:$0xff]
  %v2780 = vld [vmem:[%s1760 + $0x300] sm:$0xff]
  %v2781 = vld [vmem:[%s1760 + $0x308] sm:$0xff]
  %v2782 = vld [vmem:[%s1760 + $0x318] sm:$0xff]
  %v2783 = vld [vmem:[%s1760 + $0x320] sm:$0xff]
  %v2784 = vld [vmem:[%s1760 + $0x1] sm:$0xff]
  %v2785 = vld [vmem:[%s1760 + $0x9] sm:$0xff]
  %v2786 = vld [vmem:[%s1760 + $0x19] sm:$0xff]
  %v2787 = vld [vmem:[%s1760 + $0x21] sm:$0xff]
  %v2788 = vld [vmem:[%s1760 + $0x31] sm:$0xff]
  %v2789 = vld [vmem:[%s1760 + $0x39] sm:$0xff]
  %v2790 = vld [vmem:[%s1760 + $0x49] sm:$0xff]
  %v2791 = vld [vmem:[%s1760 + $0x51] sm:$0xff]
  %v2792 = vld [vmem:[%s1760 + $0x61] sm:$0xff]
  %v2793 = vld [vmem:[%s1760 + $0x69] sm:$0xff]
  %v2794 = vld [vmem:[%s1760 + $0x79] sm:$0xff]
  %v2795 = vld [vmem:[%s1760 + $0x81] sm:$0xff]
  %v2796 = vld [vmem:[%s1760 + $0x91] sm:$0xff]
  %v2797 = vld [vmem:[%s1760 + $0x99] sm:$0xff]
  %v2798 = vld [vmem:[%s1760 + $0xa9] sm:$0xff]
  %v2799 = vld [vmem:[%s1760 + $0xb1] sm:$0xff]
  %v2800 = vld [vmem:[%s1760 + $0xc1] sm:$0xff]
  %v2801 = vld [vmem:[%s1760 + $0xc9] sm:$0xff]
  %v2802 = vld [vmem:[%s1760 + $0xd9] sm:$0xff]
  %v2803 = vld [vmem:[%s1760 + $0xe1] sm:$0xff]
  %v2804 = vld [vmem:[%s1760 + $0xf1] sm:$0xff]
  %v2805 = vld [vmem:[%s1760 + $0xf9] sm:$0xff]
  %v2806 = vld [vmem:[%s1760 + $0x109] sm:$0xff]
  %v2807 = vld [vmem:[%s1760 + $0x111] sm:$0xff]
  %v2808 = vld [vmem:[%s1760 + $0x121] sm:$0xff]
  %v2809 = vld [vmem:[%s1760 + $0x129] sm:$0xff]
  %v2810 = vld [vmem:[%s1760 + $0x139] sm:$0xff]
  %v2811 = vld [vmem:[%s1760 + $0x141] sm:$0xff]
  %v2812 = vld [vmem:[%s1760 + $0x151] sm:$0xff]
  %v2813 = vld [vmem:[%s1760 + $0x159] sm:$0xff]
  %v2814 = vld [vmem:[%s1760 + $0x169] sm:$0xff]
  %v2815 = vld [vmem:[%s1760 + $0x171] sm:$0xff]
  %v2816 = vld [vmem:[%s1760 + $0x1b1] sm:$0xff]
  %v2817 = vld [vmem:[%s1760 + $0x1b9] sm:$0xff]
  %v2818 = vld [vmem:[%s1760 + $0x1c9] sm:$0xff]
  %v2819 = vld [vmem:[%s1760 + $0x1d1] sm:$0xff]
  %v2820 = vld [vmem:[%s1760 + $0x1e1] sm:$0xff]
  %v2821 = vld [vmem:[%s1760 + $0x1e9] sm:$0xff]
  %v2822 = vld [vmem:[%s1760 + $0x1f9] sm:$0xff]
  %v2823 = vld [vmem:[%s1760 + $0x201] sm:$0xff]
  %v2824 = vld [vmem:[%s1760 + $0x211] sm:$0xff]
  %v2825 = vld [vmem:[%s1760 + $0x219] sm:$0xff]
  %v2826 = vld [vmem:[%s1760 + $0x229] sm:$0xff]
  %v2827 = vld [vmem:[%s1760 + $0x231] sm:$0xff]
  %v2828 = vld [vmem:[%s1760 + $0x241] sm:$0xff]
  %v2829 = vld [vmem:[%s1760 + $0x249] sm:$0xff]
  %v2830 = vld [vmem:[%s1760 + $0x259] sm:$0xff]
  %v2831 = vld [vmem:[%s1760 + $0x261] sm:$0xff]
  %v2832 = vld [vmem:[%s1760 + $0x271] sm:$0xff]
  %v2833 = vld [vmem:[%s1760 + $0x279] sm:$0xff]
  %v2834 = vld [vmem:[%s1760 + $0x289] sm:$0xff]
  %v2835 = vld [vmem:[%s1760 + $0x291] sm:$0xff]
  %v2836 = vld [vmem:[%s1760 + $0x2a1] sm:$0xff]
  %v2837 = vld [vmem:[%s1760 + $0x2a9] sm:$0xff]
  %v2838 = vld [vmem:[%s1760 + $0x2b9] sm:$0xff]
  %v2839 = vld [vmem:[%s1760 + $0x2c1] sm:$0xff]
  %v2840 = vld [vmem:[%s1760 + $0x2d1] sm:$0xff]
  %v2841 = vld [vmem:[%s1760 + $0x2d9] sm:$0xff]
  %v2842 = vld [vmem:[%s1760 + $0x2e9] sm:$0xff]
  %v2843 = vld [vmem:[%s1760 + $0x2f1] sm:$0xff]
  %v2844 = vld [vmem:[%s1760 + $0x301] sm:$0xff]
  %v2845 = vld [vmem:[%s1760 + $0x309] sm:$0xff]
  %v2846 = vld [vmem:[%s1760 + $0x319] sm:$0xff]
  %v2847 = vld [vmem:[%s1760 + $0x321] sm:$0xff]
  %v2848 = vld [vmem:[%s1760 + $0x2] sm:$0xff]
  %v2849 = vld [vmem:[%s1760 + $0xa] sm:$0xff]
  %v2850 = vld [vmem:[%s1760 + $0x1a] sm:$0xff]
  %v2851 = vld [vmem:[%s1760 + $0x22] sm:$0xff]
  %v2852 = vld [vmem:[%s1760 + $0x32] sm:$0xff]
  %v2853 = vld [vmem:[%s1760 + $0x3a] sm:$0xff]
  %v2854 = vld [vmem:[%s1760 + $0x4a] sm:$0xff]
  %v2855 = vld [vmem:[%s1760 + $0x52] sm:$0xff]
  %v2856 = vld [vmem:[%s1760 + $0x62] sm:$0xff]
  %v2857 = vld [vmem:[%s1760 + $0x6a] sm:$0xff]
  %v2858 = vld [vmem:[%s1760 + $0x7a] sm:$0xff]
  %v2859 = vld [vmem:[%s1760 + $0x82] sm:$0xff]
  %v2860 = vld [vmem:[%s1760 + $0x92] sm:$0xff]
  %v2861 = vld [vmem:[%s1760 + $0x9a] sm:$0xff]
  %v2862 = vld [vmem:[%s1760 + $0xaa] sm:$0xff]
  %v2863 = vld [vmem:[%s1760 + $0xb2] sm:$0xff]
  %v2864 = vld [vmem:[%s1760 + $0xc2] sm:$0xff]
  %v2865 = vld [vmem:[%s1760 + $0xca] sm:$0xff]
  %v2866 = vld [vmem:[%s1760 + $0xda] sm:$0xff]
  %v2867 = vld [vmem:[%s1760 + $0xe2] sm:$0xff]
  %v2868 = vld [vmem:[%s1760 + $0xf2] sm:$0xff]
  %v2869 = vld [vmem:[%s1760 + $0xfa] sm:$0xff]
  %v2870 = vld [vmem:[%s1760 + $0x10a] sm:$0xff]
  %v2871 = vld [vmem:[%s1760 + $0x112] sm:$0xff]
  %v2872 = vld [vmem:[%s1760 + $0x122] sm:$0xff]
  %v2873 = vld [vmem:[%s1760 + $0x12a] sm:$0xff]
  %v2874 = vld [vmem:[%s1760 + $0x13a] sm:$0xff]
  %v2875 = vld [vmem:[%s1760 + $0x142] sm:$0xff]
  %v2876 = vld [vmem:[%s1760 + $0x152] sm:$0xff]
  %v2877 = vld [vmem:[%s1760 + $0x15a] sm:$0xff]
  %v2878 = vld [vmem:[%s1760 + $0x16a] sm:$0xff]
  %v2879 = vld [vmem:[%s1760 + $0x172] sm:$0xff]
  %v2880 = vld [vmem:[%s1760 + $0x1b2] sm:$0xff]
  %v2881 = vld [vmem:[%s1760 + $0x1ba] sm:$0xff]
  %v2882 = vld [vmem:[%s1760 + $0x1ca] sm:$0xff]
  %v2883 = vld [vmem:[%s1760 + $0x1d2] sm:$0xff]
  %v2884 = vld [vmem:[%s1760 + $0x1e2] sm:$0xff]
  %v2885 = vld [vmem:[%s1760 + $0x1ea] sm:$0xff]
  %v2886 = vld [vmem:[%s1760 + $0x1fa] sm:$0xff]
  %v2887 = vld [vmem:[%s1760 + $0x202] sm:$0xff]
  %v2888 = vld [vmem:[%s1760 + $0x212] sm:$0xff]
  %v2889 = vld [vmem:[%s1760 + $0x21a] sm:$0xff]
  %v2890 = vld [vmem:[%s1760 + $0x22a] sm:$0xff]
  %v2891 = vld [vmem:[%s1760 + $0x232] sm:$0xff]
  %v2892 = vld [vmem:[%s1760 + $0x242] sm:$0xff]
  %v2893 = vld [vmem:[%s1760 + $0x24a] sm:$0xff]
  %v2894 = vld [vmem:[%s1760 + $0x25a] sm:$0xff]
  %v2895 = vld [vmem:[%s1760 + $0x262] sm:$0xff]
  %v2896 = vld [vmem:[%s1760 + $0x272] sm:$0xff]
  %v2897 = vld [vmem:[%s1760 + $0x27a] sm:$0xff]
  %v2898 = vld [vmem:[%s1760 + $0x28a] sm:$0xff]
  %v2899 = vld [vmem:[%s1760 + $0x292] sm:$0xff]
  %v2900 = vld [vmem:[%s1760 + $0x2a2] sm:$0xff]
  %v2901 = vld [vmem:[%s1760 + $0x2aa] sm:$0xff]
  %v2902 = vld [vmem:[%s1760 + $0x2ba] sm:$0xff]
  %v2903 = vld [vmem:[%s1760 + $0x2c2] sm:$0xff]
  %v2904 = vld [vmem:[%s1760 + $0x2d2] sm:$0xff]
  %v2905 = vld [vmem:[%s1760 + $0x2da] sm:$0xff]
  %v2906 = vld [vmem:[%s1760 + $0x2ea] sm:$0xff]
  %v2907 = vld [vmem:[%s1760 + $0x2f2] sm:$0xff]
  %v2908 = vld [vmem:[%s1760 + $0x302] sm:$0xff]
  %v2909 = vld [vmem:[%s1760 + $0x30a] sm:$0xff]
  %v2910 = vld [vmem:[%s1760 + $0x31a] sm:$0xff]
  %v2911 = vld [vmem:[%s1760 + $0x322] sm:$0xff]
  %s2912 = scalar_lea.vmem [#allocation3], 48
  %v2913 = vld [vmem:[%s2912] sm:$0xff]
  %v2914 = vld [vmem:[%s2912 + $0x8] sm:$0xff]
  %v2915 = vld [vmem:[%s2912 + $0x18] sm:$0xff]
  %v2916 = vld [vmem:[%s2912 + $0x20] sm:$0xff]
  %v2917 = vld [vmem:[%s2912 + $0x30] sm:$0xff]
  %v2918 = vld [vmem:[%s2912 + $0x38] sm:$0xff]
  %v2919 = vld [vmem:[%s2912 + $0x48] sm:$0xff]
  %v2920 = vld [vmem:[%s2912 + $0x50] sm:$0xff]
  %v2921 = vld [vmem:[%s2912 + $0x60] sm:$0xff]
  %v2922 = vld [vmem:[%s2912 + $0x68] sm:$0xff]
  %v2923 = vld [vmem:[%s2912 + $0x78] sm:$0xff]
  %v2924 = vld [vmem:[%s2912 + $0x80] sm:$0xff]
  %v2925 = vld [vmem:[%s2912 + $0x90] sm:$0xff]
  %v2926 = vld [vmem:[%s2912 + $0x98] sm:$0xff]
  %v2927 = vld [vmem:[%s2912 + $0xa8] sm:$0xff]
  %v2928 = vld [vmem:[%s2912 + $0xb0] sm:$0xff]
  %v2929 = vld [vmem:[%s2912 + $0xc0] sm:$0xff]
  %v2930 = vld [vmem:[%s2912 + $0xc8] sm:$0xff]
  %v2931 = vld [vmem:[%s2912 + $0xd8] sm:$0xff]
  %v2932 = vld [vmem:[%s2912 + $0xe0] sm:$0xff]
  %v2933 = vld [vmem:[%s2912 + $0xf0] sm:$0xff]
  %v2934 = vld [vmem:[%s2912 + $0xf8] sm:$0xff]
  %v2935 = vld [vmem:[%s2912 + $0x108] sm:$0xff]
  %v2936 = vld [vmem:[%s2912 + $0x110] sm:$0xff]
  %v2937 = vld [vmem:[%s2912 + $0x120] sm:$0xff]
  %v2938 = vld [vmem:[%s2912 + $0x128] sm:$0xff]
  %v2939 = vld [vmem:[%s2912 + $0x138] sm:$0xff]
  %v2940 = vld [vmem:[%s2912 + $0x140] sm:$0xff]
  %v2941 = vld [vmem:[%s2912 + $0x150] sm:$0xff]
  %v2942 = vld [vmem:[%s2912 + $0x158] sm:$0xff]
  %v2943 = vld [vmem:[%s2912 + $0x168] sm:$0xff]
  %v2944 = vld [vmem:[%s2912 + $0x170] sm:$0xff]
  %v2945 = vld [vmem:[%s2912 + $0x1b0] sm:$0xff]
  %v2946 = vld [vmem:[%s2912 + $0x1b8] sm:$0xff]
  %v2947 = vld [vmem:[%s2912 + $0x1c8] sm:$0xff]
  %v2948 = vld [vmem:[%s2912 + $0x1d0] sm:$0xff]
  %v2949 = vld [vmem:[%s2912 + $0x1e0] sm:$0xff]
  %v2950 = vld [vmem:[%s2912 + $0x1e8] sm:$0xff]
  %v2951 = vld [vmem:[%s2912 + $0x1f8] sm:$0xff]
  %v2952 = vld [vmem:[%s2912 + $0x200] sm:$0xff]
  %v2953 = vld [vmem:[%s2912 + $0x210] sm:$0xff]
  %v2954 = vld [vmem:[%s2912 + $0x218] sm:$0xff]
  %v2955 = vld [vmem:[%s2912 + $0x228] sm:$0xff]
  %v2956 = vld [vmem:[%s2912 + $0x230] sm:$0xff]
  %v2957 = vld [vmem:[%s2912 + $0x240] sm:$0xff]
  %v2958 = vld [vmem:[%s2912 + $0x248] sm:$0xff]
  %v2959 = vld [vmem:[%s2912 + $0x258] sm:$0xff]
  %v2960 = vld [vmem:[%s2912 + $0x260] sm:$0xff]
  %v2961 = vld [vmem:[%s2912 + $0x270] sm:$0xff]
  %v2962 = vld [vmem:[%s2912 + $0x278] sm:$0xff]
  %v2963 = vld [vmem:[%s2912 + $0x288] sm:$0xff]
  %v2964 = vld [vmem:[%s2912 + $0x290] sm:$0xff]
  %v2965 = vld [vmem:[%s2912 + $0x2a0] sm:$0xff]
  %v2966 = vld [vmem:[%s2912 + $0x2a8] sm:$0xff]
  %v2967 = vld [vmem:[%s2912 + $0x2b8] sm:$0xff]
  %v2968 = vld [vmem:[%s2912 + $0x2c0] sm:$0xff]
  %v2969 = vld [vmem:[%s2912 + $0x2d0] sm:$0xff]
  %v2970 = vld [vmem:[%s2912 + $0x2d8] sm:$0xff]
  %v2971 = vld [vmem:[%s2912 + $0x2e8] sm:$0xff]
  %v2972 = vld [vmem:[%s2912 + $0x2f0] sm:$0xff]
  %v2973 = vld [vmem:[%s2912 + $0x300] sm:$0xff]
  %v2974 = vld [vmem:[%s2912 + $0x308] sm:$0xff]
  %v2975 = vld [vmem:[%s2912 + $0x318] sm:$0xff]
  %v2976 = vld [vmem:[%s2912 + $0x320] sm:$0xff]
  %v2977 = vld [vmem:[%s2912 + $0x1] sm:$0xff]
  %v2978 = vld [vmem:[%s2912 + $0x9] sm:$0xff]
  %v2979 = vld [vmem:[%s2912 + $0x19] sm:$0xff]
  %v2980 = vld [vmem:[%s2912 + $0x21] sm:$0xff]
  %v2981 = vld [vmem:[%s2912 + $0x31] sm:$0xff]
  %v2982 = vld [vmem:[%s2912 + $0x39] sm:$0xff]
  %v2983 = vld [vmem:[%s2912 + $0x49] sm:$0xff]
  %v2984 = vld [vmem:[%s2912 + $0x51] sm:$0xff]
  %v2985 = vld [vmem:[%s2912 + $0x61] sm:$0xff]
  %v2986 = vld [vmem:[%s2912 + $0x69] sm:$0xff]
  %v2987 = vld [vmem:[%s2912 + $0x79] sm:$0xff]
  %v2988 = vld [vmem:[%s2912 + $0x81] sm:$0xff]
  %v2989 = vld [vmem:[%s2912 + $0x91] sm:$0xff]
  %v2990 = vld [vmem:[%s2912 + $0x99] sm:$0xff]
  %v2991 = vld [vmem:[%s2912 + $0xa9] sm:$0xff]
  %v2992 = vld [vmem:[%s2912 + $0xb1] sm:$0xff]
  %v2993 = vld [vmem:[%s2912 + $0xc1] sm:$0xff]
  %v2994 = vld [vmem:[%s2912 + $0xc9] sm:$0xff]
  %v2995 = vld [vmem:[%s2912 + $0xd9] sm:$0xff]
  %v2996 = vld [vmem:[%s2912 + $0xe1] sm:$0xff]
  %v2997 = vld [vmem:[%s2912 + $0xf1] sm:$0xff]
  %v2998 = vld [vmem:[%s2912 + $0xf9] sm:$0xff]
  %v2999 = vld [vmem:[%s2912 + $0x109] sm:$0xff]
  %v3000 = vld [vmem:[%s2912 + $0x111] sm:$0xff]
  %v3001 = vld [vmem:[%s2912 + $0x121] sm:$0xff]
  %v3002 = vld [vmem:[%s2912 + $0x129] sm:$0xff]
  %v3003 = vld [vmem:[%s2912 + $0x139] sm:$0xff]
  %v3004 = vld [vmem:[%s2912 + $0x141] sm:$0xff]
  %v3005 = vld [vmem:[%s2912 + $0x151] sm:$0xff]
  %v3006 = vld [vmem:[%s2912 + $0x159] sm:$0xff]
  %v3007 = vld [vmem:[%s2912 + $0x169] sm:$0xff]
  %v3008 = vld [vmem:[%s2912 + $0x171] sm:$0xff]
  %v3009 = vld [vmem:[%s2912 + $0x1b1] sm:$0xff]
  %v3010 = vld [vmem:[%s2912 + $0x1b9] sm:$0xff]
  %v3011 = vld [vmem:[%s2912 + $0x1c9] sm:$0xff]
  %v3012 = vld [vmem:[%s2912 + $0x1d1] sm:$0xff]
  %v3013 = vld [vmem:[%s2912 + $0x1e1] sm:$0xff]
  %v3014 = vld [vmem:[%s2912 + $0x1e9] sm:$0xff]
  %v3015 = vld [vmem:[%s2912 + $0x1f9] sm:$0xff]
  %v3016 = vld [vmem:[%s2912 + $0x201] sm:$0xff]
  %v3017 = vld [vmem:[%s2912 + $0x211] sm:$0xff]
  %v3018 = vld [vmem:[%s2912 + $0x219] sm:$0xff]
  %v3019 = vld [vmem:[%s2912 + $0x229] sm:$0xff]
  %v3020 = vld [vmem:[%s2912 + $0x231] sm:$0xff]
  %v3021 = vld [vmem:[%s2912 + $0x241] sm:$0xff]
  %v3022 = vld [vmem:[%s2912 + $0x249] sm:$0xff]
  %v3023 = vld [vmem:[%s2912 + $0x259] sm:$0xff]
  %v3024 = vld [vmem:[%s2912 + $0x261] sm:$0xff]
  %v3025 = vld [vmem:[%s2912 + $0x271] sm:$0xff]
  %v3026 = vld [vmem:[%s2912 + $0x279] sm:$0xff]
  %v3027 = vld [vmem:[%s2912 + $0x289] sm:$0xff]
  %v3028 = vld [vmem:[%s2912 + $0x291] sm:$0xff]
  %v3029 = vld [vmem:[%s2912 + $0x2a1] sm:$0xff]
  %v3030 = vld [vmem:[%s2912 + $0x2a9] sm:$0xff]
  %v3031 = vld [vmem:[%s2912 + $0x2b9] sm:$0xff]
  %v3032 = vld [vmem:[%s2912 + $0x2c1] sm:$0xff]
  %v3033 = vld [vmem:[%s2912 + $0x2d1] sm:$0xff]
  %v3034 = vld [vmem:[%s2912 + $0x2d9] sm:$0xff]
  %v3035 = vld [vmem:[%s2912 + $0x2e9] sm:$0xff]
  %v3036 = vld [vmem:[%s2912 + $0x2f1] sm:$0xff]
  %v3037 = vld [vmem:[%s2912 + $0x301] sm:$0xff]
  %v3038 = vld [vmem:[%s2912 + $0x309] sm:$0xff]
  %v3039 = vld [vmem:[%s2912 + $0x319] sm:$0xff]
  %v3040 = vld [vmem:[%s2912 + $0x321] sm:$0xff]
  %v3041 = vld [vmem:[%s2912 + $0x2] sm:$0xff]
  %v3042 = vld [vmem:[%s2912 + $0xa] sm:$0xff]
  %v3043 = vld [vmem:[%s2912 + $0x1a] sm:$0xff]
  %v3044 = vld [vmem:[%s2912 + $0x22] sm:$0xff]
  %v3045 = vld [vmem:[%s2912 + $0x32] sm:$0xff]
  %v3046 = vld [vmem:[%s2912 + $0x3a] sm:$0xff]
  %v3047 = vld [vmem:[%s2912 + $0x4a] sm:$0xff]
  %v3048 = vld [vmem:[%s2912 + $0x52] sm:$0xff]
  %v3049 = vld [vmem:[%s2912 + $0x62] sm:$0xff]
  %v3050 = vld [vmem:[%s2912 + $0x6a] sm:$0xff]
  %v3051 = vld [vmem:[%s2912 + $0x7a] sm:$0xff]
  %v3052 = vld [vmem:[%s2912 + $0x82] sm:$0xff]
  %v3053 = vld [vmem:[%s2912 + $0x92] sm:$0xff]
  %v3054 = vld [vmem:[%s2912 + $0x9a] sm:$0xff]
  %v3055 = vld [vmem:[%s2912 + $0xaa] sm:$0xff]
  %v3056 = vld [vmem:[%s2912 + $0xb2] sm:$0xff]
  %v3057 = vld [vmem:[%s2912 + $0xc2] sm:$0xff]
  %v3058 = vld [vmem:[%s2912 + $0xca] sm:$0xff]
  %v3059 = vld [vmem:[%s2912 + $0xda] sm:$0xff]
  %v3060 = vld [vmem:[%s2912 + $0xe2] sm:$0xff]
  %v3061 = vld [vmem:[%s2912 + $0xf2] sm:$0xff]
  %v3062 = vld [vmem:[%s2912 + $0xfa] sm:$0xff]
  %v3063 = vld [vmem:[%s2912 + $0x10a] sm:$0xff]
  %v3064 = vld [vmem:[%s2912 + $0x112] sm:$0xff]
  %v3065 = vld [vmem:[%s2912 + $0x122] sm:$0xff]
  %v3066 = vld [vmem:[%s2912 + $0x12a] sm:$0xff]
  %v3067 = vld [vmem:[%s2912 + $0x13a] sm:$0xff]
  %v3068 = vld [vmem:[%s2912 + $0x142] sm:$0xff]
  %v3069 = vld [vmem:[%s2912 + $0x152] sm:$0xff]
  %v3070 = vld [vmem:[%s2912 + $0x15a] sm:$0xff]
  %v3071 = vld [vmem:[%s2912 + $0x16a] sm:$0xff]
  %v3072 = vld [vmem:[%s2912 + $0x172] sm:$0xff]
  %v3073 = vld [vmem:[%s2912 + $0x1b2] sm:$0xff]
  %v3074 = vld [vmem:[%s2912 + $0x1ba] sm:$0xff]
  %v3075 = vld [vmem:[%s2912 + $0x1ca] sm:$0xff]
  %v3076 = vld [vmem:[%s2912 + $0x1d2] sm:$0xff]
  %v3077 = vld [vmem:[%s2912 + $0x1e2] sm:$0xff]
  %v3078 = vld [vmem:[%s2912 + $0x1ea] sm:$0xff]
  %v3079 = vld [vmem:[%s2912 + $0x1fa] sm:$0xff]
  %v3080 = vld [vmem:[%s2912 + $0x202] sm:$0xff]
  %v3081 = vld [vmem:[%s2912 + $0x212] sm:$0xff]
  %v3082 = vld [vmem:[%s2912 + $0x21a] sm:$0xff]
  %v3083 = vld [vmem:[%s2912 + $0x22a] sm:$0xff]
  %v3084 = vld [vmem:[%s2912 + $0x232] sm:$0xff]
  %v3085 = vld [vmem:[%s2912 + $0x242] sm:$0xff]
  %v3086 = vld [vmem:[%s2912 + $0x24a] sm:$0xff]
  %v3087 = vld [vmem:[%s2912 + $0x25a] sm:$0xff]
  %v3088 = vld [vmem:[%s2912 + $0x262] sm:$0xff]
  %v3089 = vld [vmem:[%s2912 + $0x272] sm:$0xff]
  %v3090 = vld [vmem:[%s2912 + $0x27a] sm:$0xff]
  %v3091 = vld [vmem:[%s2912 + $0x28a] sm:$0xff]
  %v3092 = vld [vmem:[%s2912 + $0x292] sm:$0xff]
  %v3093 = vld [vmem:[%s2912 + $0x2a2] sm:$0xff]
  %v3094 = vld [vmem:[%s2912 + $0x2aa] sm:$0xff]
  %v3095 = vld [vmem:[%s2912 + $0x2ba] sm:$0xff]
  %v3096 = vld [vmem:[%s2912 + $0x2c2] sm:$0xff]
  %v3097 = vld [vmem:[%s2912 + $0x2d2] sm:$0xff]
  %v3098 = vld [vmem:[%s2912 + $0x2da] sm:$0xff]
  %v3099 = vld [vmem:[%s2912 + $0x2ea] sm:$0xff]
  %v3100 = vld [vmem:[%s2912 + $0x2f2] sm:$0xff]
  %v3101 = vld [vmem:[%s2912 + $0x302] sm:$0xff]
  %v3102 = vld [vmem:[%s2912 + $0x30a] sm:$0xff]
  %v3103 = vld [vmem:[%s2912 + $0x31a] sm:$0xff]
  %v3104 = vld [vmem:[%s2912 + $0x322] sm:$0xff]
  %3169 = vrot.lane.b32.xlu0 %v2592, 32
  %v3170 = vpop.permute.xlu0 %3169
  %3171 = vrot.lane.b32.xlu0 %v2593, 32
  %v3172 = vpop.permute.xlu0 %3171
  %3173 = vrot.lane.b32.xlu0 %v2594, 32
  %v3174 = vpop.permute.xlu0 %3173
  %3175 = vrot.lane.b32.xlu0 %v2595, 32
  %v3176 = vpop.permute.xlu0 %3175
  %3177 = vrot.lane.b32.xlu0 %v2596, 32
  %v3178 = vpop.permute.xlu0 %3177
  %3179 = vrot.lane.b32.xlu0 %v2597, 32
  %v3180 = vpop.permute.xlu0 %3179
  %3181 = vrot.lane.b32.xlu0 %v2598, 32
  %v3182 = vpop.permute.xlu0 %3181
  %3183 = vrot.lane.b32.xlu0 %v2599, 32
  %v3184 = vpop.permute.xlu0 %3183
  %3185 = vrot.lane.b32.xlu0 %v2600, 32
  %v3186 = vpop.permute.xlu0 %3185
  %3187 = vrot.lane.b32.xlu0 %v2601, 32
  %v3188 = vpop.permute.xlu0 %3187
  %3189 = vrot.lane.b32.xlu0 %v2602, 32
  %v3190 = vpop.permute.xlu0 %3189
  %3191 = vrot.lane.b32.xlu0 %v2603, 32
  %v3192 = vpop.permute.xlu0 %3191
  %3193 = vrot.lane.b32.xlu0 %v2604, 32
  %v3194 = vpop.permute.xlu0 %3193
  %3195 = vrot.lane.b32.xlu0 %v2605, 32
  %v3196 = vpop.permute.xlu0 %3195
  %3197 = vrot.lane.b32.xlu0 %v2606, 32
  %v3198 = vpop.permute.xlu0 %3197
  %3199 = vrot.lane.b32.xlu0 %v2607, 32
  %v3200 = vpop.permute.xlu0 %3199
  %3201 = vrot.lane.b32.xlu0 %v2608, 32
  %v3202 = vpop.permute.xlu0 %3201
  %3203 = vrot.lane.b32.xlu0 %v2609, 32
  %v3204 = vpop.permute.xlu0 %3203
  %3205 = vrot.lane.b32.xlu0 %v2610, 32
  %v3206 = vpop.permute.xlu0 %3205
  %3207 = vrot.lane.b32.xlu0 %v2611, 32
  %v3208 = vpop.permute.xlu0 %3207
  %3209 = vrot.lane.b32.xlu0 %v2612, 32
  %v3210 = vpop.permute.xlu0 %3209
  %3211 = vrot.lane.b32.xlu0 %v2613, 32
  %v3212 = vpop.permute.xlu0 %3211
  %3213 = vrot.lane.b32.xlu0 %v2614, 32
  %v3214 = vpop.permute.xlu0 %3213
  %3215 = vrot.lane.b32.xlu0 %v2615, 32
  %v3216 = vpop.permute.xlu0 %3215
  %3217 = vrot.lane.b32.xlu0 %v2616, 32
  %v3218 = vpop.permute.xlu0 %3217
  %3219 = vrot.lane.b32.xlu0 %v2617, 32
  %v3220 = vpop.permute.xlu0 %3219
  %3221 = vrot.lane.b32.xlu0 %v2618, 32
  %v3222 = vpop.permute.xlu0 %3221
  %3223 = vrot.lane.b32.xlu0 %v2619, 32
  %v3224 = vpop.permute.xlu0 %3223
  %3225 = vrot.lane.b32.xlu0 %v2620, 32
  %v3226 = vpop.permute.xlu0 %3225
  %3227 = vrot.lane.b32.xlu0 %v2621, 32
  %v3228 = vpop.permute.xlu0 %3227
  %3229 = vrot.lane.b32.xlu0 %v2622, 32
  %v3230 = vpop.permute.xlu0 %3229
  %3231 = vrot.lane.b32.xlu0 %v2623, 32
  %v3232 = vpop.permute.xlu0 %3231
  %3233 = vrot.lane.b32.xlu0 %v2624, 32
  %v3234 = vpop.permute.xlu0 %3233
  %3235 = vrot.lane.b32.xlu0 %v2625, 32
  %v3236 = vpop.permute.xlu0 %3235
  %3237 = vrot.lane.b32.xlu0 %v2626, 32
  %v3238 = vpop.permute.xlu0 %3237
  %3239 = vrot.lane.b32.xlu0 %v2627, 32
  %v3240 = vpop.permute.xlu0 %3239
  %3241 = vrot.lane.b32.xlu0 %v2628, 32
  %v3242 = vpop.permute.xlu0 %3241
  %3243 = vrot.lane.b32.xlu0 %v2629, 32
  %v3244 = vpop.permute.xlu0 %3243
  %3245 = vrot.lane.b32.xlu0 %v2630, 32
  %v3246 = vpop.permute.xlu0 %3245
  %3247 = vrot.lane.b32.xlu0 %v2631, 32
  %v3248 = vpop.permute.xlu0 %3247
  %3249 = vrot.lane.b32.xlu0 %v2632, 32
  %v3250 = vpop.permute.xlu0 %3249
  %3251 = vrot.lane.b32.xlu0 %v2633, 32
  %v3252 = vpop.permute.xlu0 %3251
  %3253 = vrot.lane.b32.xlu0 %v2634, 32
  %v3254 = vpop.permute.xlu0 %3253
  %3255 = vrot.lane.b32.xlu0 %v2635, 32
  %v3256 = vpop.permute.xlu0 %3255
  %3257 = vrot.lane.b32.xlu0 %v2636, 32
  %v3258 = vpop.permute.xlu0 %3257
  %3259 = vrot.lane.b32.xlu0 %v2637, 32
  %v3260 = vpop.permute.xlu0 %3259
  %3261 = vrot.lane.b32.xlu0 %v2638, 32
  %v3262 = vpop.permute.xlu0 %3261
  %3263 = vrot.lane.b32.xlu0 %v2639, 32
  %v3264 = vpop.permute.xlu0 %3263
  %3265 = vrot.lane.b32.xlu0 %v2640, 32
  %v3266 = vpop.permute.xlu0 %3265
  %3267 = vrot.lane.b32.xlu0 %v2641, 32
  %v3268 = vpop.permute.xlu0 %3267
  %3269 = vrot.lane.b32.xlu0 %v2642, 32
  %v3270 = vpop.permute.xlu0 %3269
  %3271 = vrot.lane.b32.xlu0 %v2643, 32
  %v3272 = vpop.permute.xlu0 %3271
  %3273 = vrot.lane.b32.xlu0 %v2644, 32
  %v3274 = vpop.permute.xlu0 %3273
  %3275 = vrot.lane.b32.xlu0 %v2645, 32
  %v3276 = vpop.permute.xlu0 %3275
  %3277 = vrot.lane.b32.xlu0 %v2646, 32
  %v3278 = vpop.permute.xlu0 %3277
  %3279 = vrot.lane.b32.xlu0 %v2647, 32
  %v3280 = vpop.permute.xlu0 %3279
  %3281 = vrot.lane.b32.xlu0 %v2648, 32
  %v3282 = vpop.permute.xlu0 %3281
  %3283 = vrot.lane.b32.xlu0 %v2649, 32
  %v3284 = vpop.permute.xlu0 %3283
  %3285 = vrot.lane.b32.xlu0 %v2650, 32
  %v3286 = vpop.permute.xlu0 %3285
  %3287 = vrot.lane.b32.xlu0 %v2651, 32
  %v3288 = vpop.permute.xlu0 %3287
  %3289 = vrot.lane.b32.xlu0 %v2652, 32
  %v3290 = vpop.permute.xlu0 %3289
  %3291 = vrot.lane.b32.xlu0 %v2653, 32
  %v3292 = vpop.permute.xlu0 %3291
  %3293 = vrot.lane.b32.xlu0 %v2654, 32
  %v3294 = vpop.permute.xlu0 %3293
  %3295 = vrot.lane.b32.xlu0 %v2655, 32
  %v3296 = vpop.permute.xlu0 %3295
  %3425 = vrot.lane.b32.xlu0 %v2656, 64
  %v3426 = vpop.permute.xlu0 %3425
  %3427 = vrot.lane.b32.xlu0 %v2657, 64
  %v3428 = vpop.permute.xlu0 %3427
  %3429 = vrot.lane.b32.xlu0 %v2658, 64
  %v3430 = vpop.permute.xlu0 %3429
  %3431 = vrot.lane.b32.xlu0 %v2659, 64
  %v3432 = vpop.permute.xlu0 %3431
  %3433 = vrot.lane.b32.xlu0 %v2660, 64
  %v3434 = vpop.permute.xlu0 %3433
  %3435 = vrot.lane.b32.xlu0 %v2661, 64
  %v3436 = vpop.permute.xlu0 %3435
  %3437 = vrot.lane.b32.xlu0 %v2662, 64
  %v3438 = vpop.permute.xlu0 %3437
  %3439 = vrot.lane.b32.xlu0 %v2663, 64
  %v3440 = vpop.permute.xlu0 %3439
  %3441 = vrot.lane.b32.xlu0 %v2664, 64
  %v3442 = vpop.permute.xlu0 %3441
  %3443 = vrot.lane.b32.xlu0 %v2665, 64
  %v3444 = vpop.permute.xlu0 %3443
  %3445 = vrot.lane.b32.xlu0 %v2666, 64
  %v3446 = vpop.permute.xlu0 %3445
  %3447 = vrot.lane.b32.xlu0 %v2667, 64
  %v3448 = vpop.permute.xlu0 %3447
  %3449 = vrot.lane.b32.xlu0 %v2668, 64
  %v3450 = vpop.permute.xlu0 %3449
  %3451 = vrot.lane.b32.xlu0 %v2669, 64
  %v3452 = vpop.permute.xlu0 %3451
  %3453 = vrot.lane.b32.xlu0 %v2670, 64
  %v3454 = vpop.permute.xlu0 %3453
  %3455 = vrot.lane.b32.xlu0 %v2671, 64
  %v3456 = vpop.permute.xlu0 %3455
  %3457 = vrot.lane.b32.xlu0 %v2672, 64
  %v3458 = vpop.permute.xlu0 %3457
  %3459 = vrot.lane.b32.xlu0 %v2673, 64
  %v3460 = vpop.permute.xlu0 %3459
  %3461 = vrot.lane.b32.xlu0 %v2674, 64
  %v3462 = vpop.permute.xlu0 %3461
  %3463 = vrot.lane.b32.xlu0 %v2675, 64
  %v3464 = vpop.permute.xlu0 %3463
  %3465 = vrot.lane.b32.xlu0 %v2676, 64
  %v3466 = vpop.permute.xlu0 %3465
  %3467 = vrot.lane.b32.xlu0 %v2677, 64
  %v3468 = vpop.permute.xlu0 %3467
  %3469 = vrot.lane.b32.xlu0 %v2678, 64
  %v3470 = vpop.permute.xlu0 %3469
  %3471 = vrot.lane.b32.xlu0 %v2679, 64
  %v3472 = vpop.permute.xlu0 %3471
  %3473 = vrot.lane.b32.xlu0 %v2680, 64
  %v3474 = vpop.permute.xlu0 %3473
  %3475 = vrot.lane.b32.xlu0 %v2681, 64
  %v3476 = vpop.permute.xlu0 %3475
  %3477 = vrot.lane.b32.xlu0 %v2682, 64
  %v3478 = vpop.permute.xlu0 %3477
  %3479 = vrot.lane.b32.xlu0 %v2683, 64
  %v3480 = vpop.permute.xlu0 %3479
  %3481 = vrot.lane.b32.xlu0 %v2684, 64
  %v3482 = vpop.permute.xlu0 %3481
  %3483 = vrot.lane.b32.xlu0 %v2685, 64
  %v3484 = vpop.permute.xlu0 %3483
  %3485 = vrot.lane.b32.xlu0 %v2686, 64
  %v3486 = vpop.permute.xlu0 %3485
  %3487 = vrot.lane.b32.xlu0 %v2687, 64
  %v3488 = vpop.permute.xlu0 %3487
  %3489 = vrot.lane.b32.xlu0 %v2688, 64
  %v3490 = vpop.permute.xlu0 %3489
  %3491 = vrot.lane.b32.xlu0 %v2689, 64
  %v3492 = vpop.permute.xlu0 %3491
  %3493 = vrot.lane.b32.xlu0 %v2690, 64
  %v3494 = vpop.permute.xlu0 %3493
  %3495 = vrot.lane.b32.xlu0 %v2691, 64
  %v3496 = vpop.permute.xlu0 %3495
  %3497 = vrot.lane.b32.xlu0 %v2692, 64
  %v3498 = vpop.permute.xlu0 %3497
  %3499 = vrot.lane.b32.xlu0 %v2693, 64
  %v3500 = vpop.permute.xlu0 %3499
  %3501 = vrot.lane.b32.xlu0 %v2694, 64
  %v3502 = vpop.permute.xlu0 %3501
  %3503 = vrot.lane.b32.xlu0 %v2695, 64
  %v3504 = vpop.permute.xlu0 %3503
  %3505 = vrot.lane.b32.xlu0 %v2696, 64
  %v3506 = vpop.permute.xlu0 %3505
  %3507 = vrot.lane.b32.xlu0 %v2697, 64
  %v3508 = vpop.permute.xlu0 %3507
  %3509 = vrot.lane.b32.xlu0 %v2698, 64
  %v3510 = vpop.permute.xlu0 %3509
  %3511 = vrot.lane.b32.xlu0 %v2699, 64
  %v3512 = vpop.permute.xlu0 %3511
  %3513 = vrot.lane.b32.xlu0 %v2700, 64
  %v3514 = vpop.permute.xlu0 %3513
  %3515 = vrot.lane.b32.xlu0 %v2701, 64
  %v3516 = vpop.permute.xlu0 %3515
  %3517 = vrot.lane.b32.xlu0 %v2702, 64
  %v3518 = vpop.permute.xlu0 %3517
  %3519 = vrot.lane.b32.xlu0 %v2703, 64
  %v3520 = vpop.permute.xlu0 %3519
  %3521 = vrot.lane.b32.xlu0 %v2704, 64
  %v3522 = vpop.permute.xlu0 %3521
  %3523 = vrot.lane.b32.xlu0 %v2705, 64
  %v3524 = vpop.permute.xlu0 %3523
  %3525 = vrot.lane.b32.xlu0 %v2706, 64
  %v3526 = vpop.permute.xlu0 %3525
  %3527 = vrot.lane.b32.xlu0 %v2707, 64
  %v3528 = vpop.permute.xlu0 %3527
  %3529 = vrot.lane.b32.xlu0 %v2708, 64
  %v3530 = vpop.permute.xlu0 %3529
  %3531 = vrot.lane.b32.xlu0 %v2709, 64
  %v3532 = vpop.permute.xlu0 %3531
  %3533 = vrot.lane.b32.xlu0 %v2710, 64
  %v3534 = vpop.permute.xlu0 %3533
  %3535 = vrot.lane.b32.xlu0 %v2711, 64
  %v3536 = vpop.permute.xlu0 %3535
  %3537 = vrot.lane.b32.xlu0 %v2712, 64
  %v3538 = vpop.permute.xlu0 %3537
  %3539 = vrot.lane.b32.xlu0 %v2713, 64
  %v3540 = vpop.permute.xlu0 %3539
  %3541 = vrot.lane.b32.xlu0 %v2714, 64
  %v3542 = vpop.permute.xlu0 %3541
  %3543 = vrot.lane.b32.xlu0 %v2715, 64
  %v3544 = vpop.permute.xlu0 %3543
  %3545 = vrot.lane.b32.xlu0 %v2716, 64
  %v3546 = vpop.permute.xlu0 %3545
  %3547 = vrot.lane.b32.xlu0 %v2717, 64
  %v3548 = vpop.permute.xlu0 %3547
  %3549 = vrot.lane.b32.xlu0 %v2718, 64
  %v3550 = vpop.permute.xlu0 %3549
  %3551 = vrot.lane.b32.xlu0 %v2719, 64
  %v3552 = vpop.permute.xlu0 %3551
  %3681 = vrot.lane.b32.xlu0 %v2720, 96
  %v3682 = vpop.permute.xlu0 %3681
  %3683 = vrot.lane.b32.xlu0 %v2721, 96
  %v3684 = vpop.permute.xlu0 %3683
  %3685 = vrot.lane.b32.xlu0 %v2722, 96
  %v3686 = vpop.permute.xlu0 %3685
  %3687 = vrot.lane.b32.xlu0 %v2723, 96
  %v3688 = vpop.permute.xlu0 %3687
  %3689 = vrot.lane.b32.xlu0 %v2724, 96
  %v3690 = vpop.permute.xlu0 %3689
  %3691 = vrot.lane.b32.xlu0 %v2725, 96
  %v3692 = vpop.permute.xlu0 %3691
  %3693 = vrot.lane.b32.xlu0 %v2726, 96
  %v3694 = vpop.permute.xlu0 %3693
  %3695 = vrot.lane.b32.xlu0 %v2727, 96
  %v3696 = vpop.permute.xlu0 %3695
  %3697 = vrot.lane.b32.xlu0 %v2728, 96
  %v3698 = vpop.permute.xlu0 %3697
  %3699 = vrot.lane.b32.xlu0 %v2729, 96
  %v3700 = vpop.permute.xlu0 %3699
  %3701 = vrot.lane.b32.xlu0 %v2730, 96
  %v3702 = vpop.permute.xlu0 %3701
  %3703 = vrot.lane.b32.xlu0 %v2731, 96
  %v3704 = vpop.permute.xlu0 %3703
  %3705 = vrot.lane.b32.xlu0 %v2732, 96
  %v3706 = vpop.permute.xlu0 %3705
  %3707 = vrot.lane.b32.xlu0 %v2733, 96
  %v3708 = vpop.permute.xlu0 %3707
  %3709 = vrot.lane.b32.xlu0 %v2734, 96
  %v3710 = vpop.permute.xlu0 %3709
  %3711 = vrot.lane.b32.xlu0 %v2735, 96
  %v3712 = vpop.permute.xlu0 %3711
  %3713 = vrot.lane.b32.xlu0 %v2736, 96
  %v3714 = vpop.permute.xlu0 %3713
  %3715 = vrot.lane.b32.xlu0 %v2737, 96
  %v3716 = vpop.permute.xlu0 %3715
  %3717 = vrot.lane.b32.xlu0 %v2738, 96
  %v3718 = vpop.permute.xlu0 %3717
  %3719 = vrot.lane.b32.xlu0 %v2739, 96
  %v3720 = vpop.permute.xlu0 %3719
  %3721 = vrot.lane.b32.xlu0 %v2740, 96
  %v3722 = vpop.permute.xlu0 %3721
  %3723 = vrot.lane.b32.xlu0 %v2741, 96
  %v3724 = vpop.permute.xlu0 %3723
  %3725 = vrot.lane.b32.xlu0 %v2742, 96
  %v3726 = vpop.permute.xlu0 %3725
  %3727 = vrot.lane.b32.xlu0 %v2743, 96
  %v3728 = vpop.permute.xlu0 %3727
  %3729 = vrot.lane.b32.xlu0 %v2744, 96
  %v3730 = vpop.permute.xlu0 %3729
  %3731 = vrot.lane.b32.xlu0 %v2745, 96
  %v3732 = vpop.permute.xlu0 %3731
  %3733 = vrot.lane.b32.xlu0 %v2746, 96
  %v3734 = vpop.permute.xlu0 %3733
  %3735 = vrot.lane.b32.xlu0 %v2747, 96
  %v3736 = vpop.permute.xlu0 %3735
  %3737 = vrot.lane.b32.xlu0 %v2748, 96
  %v3738 = vpop.permute.xlu0 %3737
  %3739 = vrot.lane.b32.xlu0 %v2749, 96
  %v3740 = vpop.permute.xlu0 %3739
  %3741 = vrot.lane.b32.xlu0 %v2750, 96
  %v3742 = vpop.permute.xlu0 %3741
  %3743 = vrot.lane.b32.xlu0 %v2751, 96
  %v3744 = vpop.permute.xlu0 %3743
  %3745 = vrot.lane.b32.xlu0 %v2752, 96
  %v3746 = vpop.permute.xlu0 %3745
  %3747 = vrot.lane.b32.xlu0 %v2753, 96
  %v3748 = vpop.permute.xlu0 %3747
  %3749 = vrot.lane.b32.xlu0 %v2754, 96
  %v3750 = vpop.permute.xlu0 %3749
  %3751 = vrot.lane.b32.xlu0 %v2755, 96
  %v3752 = vpop.permute.xlu0 %3751
  %3753 = vrot.lane.b32.xlu0 %v2756, 96
  %v3754 = vpop.permute.xlu0 %3753
  %3755 = vrot.lane.b32.xlu0 %v2757, 96
  %v3756 = vpop.permute.xlu0 %3755
  %3757 = vrot.lane.b32.xlu0 %v2758, 96
  %v3758 = vpop.permute.xlu0 %3757
  %3759 = vrot.lane.b32.xlu0 %v2759, 96
  %v3760 = vpop.permute.xlu0 %3759
  %3761 = vrot.lane.b32.xlu0 %v2760, 96
  %v3762 = vpop.permute.xlu0 %3761
  %3763 = vrot.lane.b32.xlu0 %v2761, 96
  %v3764 = vpop.permute.xlu0 %3763
  %3765 = vrot.lane.b32.xlu0 %v2762, 96
  %v3766 = vpop.permute.xlu0 %3765
  %3767 = vrot.lane.b32.xlu0 %v2763, 96
  %v3768 = vpop.permute.xlu0 %3767
  %3769 = vrot.lane.b32.xlu0 %v2764, 96
  %v3770 = vpop.permute.xlu0 %3769
  %3771 = vrot.lane.b32.xlu0 %v2765, 96
  %v3772 = vpop.permute.xlu0 %3771
  %3773 = vrot.lane.b32.xlu0 %v2766, 96
  %v3774 = vpop.permute.xlu0 %3773
  %3775 = vrot.lane.b32.xlu0 %v2767, 96
  %v3776 = vpop.permute.xlu0 %3775
  %3777 = vrot.lane.b32.xlu0 %v2768, 96
  %v3778 = vpop.permute.xlu0 %3777
  %3779 = vrot.lane.b32.xlu0 %v2769, 96
  %v3780 = vpop.permute.xlu0 %3779
  %3781 = vrot.lane.b32.xlu0 %v2770, 96
  %v3782 = vpop.permute.xlu0 %3781
  %3783 = vrot.lane.b32.xlu0 %v2771, 96
  %v3784 = vpop.permute.xlu0 %3783
  %3785 = vrot.lane.b32.xlu0 %v2772, 96
  %v3786 = vpop.permute.xlu0 %3785
  %3787 = vrot.lane.b32.xlu0 %v2773, 96
  %v3788 = vpop.permute.xlu0 %3787
  %3789 = vrot.lane.b32.xlu0 %v2774, 96
  %v3790 = vpop.permute.xlu0 %3789
  %3791 = vrot.lane.b32.xlu0 %v2775, 96
  %v3792 = vpop.permute.xlu0 %3791
  %3793 = vrot.lane.b32.xlu0 %v2776, 96
  %v3794 = vpop.permute.xlu0 %3793
  %3795 = vrot.lane.b32.xlu0 %v2777, 96
  %v3796 = vpop.permute.xlu0 %3795
  %3797 = vrot.lane.b32.xlu0 %v2778, 96
  %v3798 = vpop.permute.xlu0 %3797
  %3799 = vrot.lane.b32.xlu0 %v2779, 96
  %v3800 = vpop.permute.xlu0 %3799
  %3801 = vrot.lane.b32.xlu0 %v2780, 96
  %v3802 = vpop.permute.xlu0 %3801
  %3803 = vrot.lane.b32.xlu0 %v2781, 96
  %v3804 = vpop.permute.xlu0 %3803
  %3805 = vrot.lane.b32.xlu0 %v2782, 96
  %v3806 = vpop.permute.xlu0 %3805
  %3807 = vrot.lane.b32.xlu0 %v2783, 96
  %v3808 = vpop.permute.xlu0 %3807
  %3937 = vrot.lane.b32.xlu0 %v2848, 32
  %v3938 = vpop.permute.xlu0 %3937
  %3939 = vrot.lane.b32.xlu0 %v2849, 32
  %v3940 = vpop.permute.xlu0 %3939
  %3941 = vrot.lane.b32.xlu0 %v2850, 32
  %v3942 = vpop.permute.xlu0 %3941
  %3943 = vrot.lane.b32.xlu0 %v2851, 32
  %v3944 = vpop.permute.xlu0 %3943
  %3945 = vrot.lane.b32.xlu0 %v2852, 32
  %v3946 = vpop.permute.xlu0 %3945
  %3947 = vrot.lane.b32.xlu0 %v2853, 32
  %v3948 = vpop.permute.xlu0 %3947
  %3949 = vrot.lane.b32.xlu0 %v2854, 32
  %v3950 = vpop.permute.xlu0 %3949
  %3951 = vrot.lane.b32.xlu0 %v2855, 32
  %v3952 = vpop.permute.xlu0 %3951
  %3953 = vrot.lane.b32.xlu0 %v2856, 32
  %v3954 = vpop.permute.xlu0 %3953
  %3955 = vrot.lane.b32.xlu0 %v2857, 32
  %v3956 = vpop.permute.xlu0 %3955
  %3957 = vrot.lane.b32.xlu0 %v2858, 32
  %v3958 = vpop.permute.xlu0 %3957
  %3959 = vrot.lane.b32.xlu0 %v2859, 32
  %v3960 = vpop.permute.xlu0 %3959
  %3961 = vrot.lane.b32.xlu0 %v2860, 32
  %v3962 = vpop.permute.xlu0 %3961
  %3963 = vrot.lane.b32.xlu0 %v2861, 32
  %v3964 = vpop.permute.xlu0 %3963
  %3965 = vrot.lane.b32.xlu0 %v2862, 32
  %v3966 = vpop.permute.xlu0 %3965
  %3967 = vrot.lane.b32.xlu0 %v2863, 32
  %v3968 = vpop.permute.xlu0 %3967
  %3969 = vrot.lane.b32.xlu0 %v2864, 32
  %v3970 = vpop.permute.xlu0 %3969
  %3971 = vrot.lane.b32.xlu0 %v2865, 32
  %v3972 = vpop.permute.xlu0 %3971
  %3973 = vrot.lane.b32.xlu0 %v2866, 32
  %v3974 = vpop.permute.xlu0 %3973
  %3975 = vrot.lane.b32.xlu0 %v2867, 32
  %v3976 = vpop.permute.xlu0 %3975
  %3977 = vrot.lane.b32.xlu0 %v2868, 32
  %v3978 = vpop.permute.xlu0 %3977
  %3979 = vrot.lane.b32.xlu0 %v2869, 32
  %v3980 = vpop.permute.xlu0 %3979
  %3981 = vrot.lane.b32.xlu0 %v2870, 32
  %v3982 = vpop.permute.xlu0 %3981
  %3983 = vrot.lane.b32.xlu0 %v2871, 32
  %v3984 = vpop.permute.xlu0 %3983
  %3985 = vrot.lane.b32.xlu0 %v2872, 32
  %v3986 = vpop.permute.xlu0 %3985
  %3987 = vrot.lane.b32.xlu0 %v2873, 32
  %v3988 = vpop.permute.xlu0 %3987
  %3989 = vrot.lane.b32.xlu0 %v2874, 32
  %v3990 = vpop.permute.xlu0 %3989
  %3991 = vrot.lane.b32.xlu0 %v2875, 32
  %v3992 = vpop.permute.xlu0 %3991
  %3993 = vrot.lane.b32.xlu0 %v2876, 32
  %v3994 = vpop.permute.xlu0 %3993
  %3995 = vrot.lane.b32.xlu0 %v2877, 32
  %v3996 = vpop.permute.xlu0 %3995
  %3997 = vrot.lane.b32.xlu0 %v2878, 32
  %v3998 = vpop.permute.xlu0 %3997
  %3999 = vrot.lane.b32.xlu0 %v2879, 32
  %v4000 = vpop.permute.xlu0 %3999
  %4001 = vrot.lane.b32.xlu0 %v2880, 32
  %v4002 = vpop.permute.xlu0 %4001
  %4003 = vrot.lane.b32.xlu0 %v2881, 32
  %v4004 = vpop.permute.xlu0 %4003
  %4005 = vrot.lane.b32.xlu0 %v2882, 32
  %v4006 = vpop.permute.xlu0 %4005
  %4007 = vrot.lane.b32.xlu0 %v2883, 32
  %v4008 = vpop.permute.xlu0 %4007
  %4009 = vrot.lane.b32.xlu0 %v2884, 32
  %v4010 = vpop.permute.xlu0 %4009
  %4011 = vrot.lane.b32.xlu0 %v2885, 32
  %v4012 = vpop.permute.xlu0 %4011
  %4013 = vrot.lane.b32.xlu0 %v2886, 32
  %v4014 = vpop.permute.xlu0 %4013
  %4015 = vrot.lane.b32.xlu0 %v2887, 32
  %v4016 = vpop.permute.xlu0 %4015
  %4017 = vrot.lane.b32.xlu0 %v2888, 32
  %v4018 = vpop.permute.xlu0 %4017
  %4019 = vrot.lane.b32.xlu0 %v2889, 32
  %v4020 = vpop.permute.xlu0 %4019
  %4021 = vrot.lane.b32.xlu0 %v2890, 32
  %v4022 = vpop.permute.xlu0 %4021
  %4023 = vrot.lane.b32.xlu0 %v2891, 32
  %v4024 = vpop.permute.xlu0 %4023
  %4025 = vrot.lane.b32.xlu0 %v2892, 32
  %v4026 = vpop.permute.xlu0 %4025
  %4027 = vrot.lane.b32.xlu0 %v2893, 32
  %v4028 = vpop.permute.xlu0 %4027
  %4029 = vrot.lane.b32.xlu0 %v2894, 32
  %v4030 = vpop.permute.xlu0 %4029
  %4031 = vrot.lane.b32.xlu0 %v2895, 32
  %v4032 = vpop.permute.xlu0 %4031
  %4033 = vrot.lane.b32.xlu0 %v2896, 32
  %v4034 = vpop.permute.xlu0 %4033
  %4035 = vrot.lane.b32.xlu0 %v2897, 32
  %v4036 = vpop.permute.xlu0 %4035
  %4037 = vrot.lane.b32.xlu0 %v2898, 32
  %v4038 = vpop.permute.xlu0 %4037
  %4039 = vrot.lane.b32.xlu0 %v2899, 32
  %v4040 = vpop.permute.xlu0 %4039
  %4041 = vrot.lane.b32.xlu0 %v2900, 32
  %v4042 = vpop.permute.xlu0 %4041
  %4043 = vrot.lane.b32.xlu0 %v2901, 32
  %v4044 = vpop.permute.xlu0 %4043
  %4045 = vrot.lane.b32.xlu0 %v2902, 32
  %v4046 = vpop.permute.xlu0 %4045
  %4047 = vrot.lane.b32.xlu0 %v2903, 32
  %v4048 = vpop.permute.xlu0 %4047
  %4049 = vrot.lane.b32.xlu0 %v2904, 32
  %v4050 = vpop.permute.xlu0 %4049
  %4051 = vrot.lane.b32.xlu0 %v2905, 32
  %v4052 = vpop.permute.xlu0 %4051
  %4053 = vrot.lane.b32.xlu0 %v2906, 32
  %v4054 = vpop.permute.xlu0 %4053
  %4055 = vrot.lane.b32.xlu0 %v2907, 32
  %v4056 = vpop.permute.xlu0 %4055
  %4057 = vrot.lane.b32.xlu0 %v2908, 32
  %v4058 = vpop.permute.xlu0 %4057
  %4059 = vrot.lane.b32.xlu0 %v2909, 32
  %v4060 = vpop.permute.xlu0 %4059
  %4061 = vrot.lane.b32.xlu0 %v2910, 32
  %v4062 = vpop.permute.xlu0 %4061
  %4063 = vrot.lane.b32.xlu0 %v2911, 32
  %v4064 = vpop.permute.xlu0 %4063
  %4193 = vrot.lane.b32.xlu0 %v2913, 64
  %v4194 = vpop.permute.xlu0 %4193
  %4195 = vrot.lane.b32.xlu0 %v2914, 64
  %v4196 = vpop.permute.xlu0 %4195
  %4197 = vrot.lane.b32.xlu0 %v2915, 64
  %v4198 = vpop.permute.xlu0 %4197
  %4199 = vrot.lane.b32.xlu0 %v2916, 64
  %v4200 = vpop.permute.xlu0 %4199
  %4201 = vrot.lane.b32.xlu0 %v2917, 64
  %v4202 = vpop.permute.xlu0 %4201
  %4203 = vrot.lane.b32.xlu0 %v2918, 64
  %v4204 = vpop.permute.xlu0 %4203
  %4205 = vrot.lane.b32.xlu0 %v2919, 64
  %v4206 = vpop.permute.xlu0 %4205
  %4207 = vrot.lane.b32.xlu0 %v2920, 64
  %v4208 = vpop.permute.xlu0 %4207
  %4209 = vrot.lane.b32.xlu0 %v2921, 64
  %v4210 = vpop.permute.xlu0 %4209
  %4211 = vrot.lane.b32.xlu0 %v2922, 64
  %v4212 = vpop.permute.xlu0 %4211
  %4213 = vrot.lane.b32.xlu0 %v2923, 64
  %v4214 = vpop.permute.xlu0 %4213
  %4215 = vrot.lane.b32.xlu0 %v2924, 64
  %v4216 = vpop.permute.xlu0 %4215
  %4217 = vrot.lane.b32.xlu0 %v2925, 64
  %v4218 = vpop.permute.xlu0 %4217
  %4219 = vrot.lane.b32.xlu0 %v2926, 64
  %v4220 = vpop.permute.xlu0 %4219
  %4221 = vrot.lane.b32.xlu0 %v2927, 64
  %v4222 = vpop.permute.xlu0 %4221
  %4223 = vrot.lane.b32.xlu0 %v2928, 64
  %v4224 = vpop.permute.xlu0 %4223
  %4225 = vrot.lane.b32.xlu0 %v2929, 64
  %v4226 = vpop.permute.xlu0 %4225
  %4227 = vrot.lane.b32.xlu0 %v2930, 64
  %v4228 = vpop.permute.xlu0 %4227
  %4229 = vrot.lane.b32.xlu0 %v2931, 64
  %v4230 = vpop.permute.xlu0 %4229
  %4231 = vrot.lane.b32.xlu0 %v2932, 64
  %v4232 = vpop.permute.xlu0 %4231
  %4233 = vrot.lane.b32.xlu0 %v2933, 64
  %v4234 = vpop.permute.xlu0 %4233
  %4235 = vrot.lane.b32.xlu0 %v2934, 64
  %v4236 = vpop.permute.xlu0 %4235
  %4237 = vrot.lane.b32.xlu0 %v2935, 64
  %v4238 = vpop.permute.xlu0 %4237
  %4239 = vrot.lane.b32.xlu0 %v2936, 64
  %v4240 = vpop.permute.xlu0 %4239
  %4241 = vrot.lane.b32.xlu0 %v2937, 64
  %v4242 = vpop.permute.xlu0 %4241
  %4243 = vrot.lane.b32.xlu0 %v2938, 64
  %v4244 = vpop.permute.xlu0 %4243
  %4245 = vrot.lane.b32.xlu0 %v2939, 64
  %v4246 = vpop.permute.xlu0 %4245
  %4247 = vrot.lane.b32.xlu0 %v2940, 64
  %v4248 = vpop.permute.xlu0 %4247
  %4249 = vrot.lane.b32.xlu0 %v2941, 64
  %v4250 = vpop.permute.xlu0 %4249
  %4251 = vrot.lane.b32.xlu0 %v2942, 64
  %v4252 = vpop.permute.xlu0 %4251
  %4253 = vrot.lane.b32.xlu0 %v2943, 64
  %v4254 = vpop.permute.xlu0 %4253
  %4255 = vrot.lane.b32.xlu0 %v2944, 64
  %v4256 = vpop.permute.xlu0 %4255
  %4257 = vrot.lane.b32.xlu0 %v2945, 64
  %v4258 = vpop.permute.xlu0 %4257
  %4259 = vrot.lane.b32.xlu0 %v2946, 64
  %v4260 = vpop.permute.xlu0 %4259
  %4261 = vrot.lane.b32.xlu0 %v2947, 64
  %v4262 = vpop.permute.xlu0 %4261
  %4263 = vrot.lane.b32.xlu0 %v2948, 64
  %v4264 = vpop.permute.xlu0 %4263
  %4265 = vrot.lane.b32.xlu0 %v2949, 64
  %v4266 = vpop.permute.xlu0 %4265
  %4267 = vrot.lane.b32.xlu0 %v2950, 64
  %v4268 = vpop.permute.xlu0 %4267
  %4269 = vrot.lane.b32.xlu0 %v2951, 64
  %v4270 = vpop.permute.xlu0 %4269
  %4271 = vrot.lane.b32.xlu0 %v2952, 64
  %v4272 = vpop.permute.xlu0 %4271
  %4273 = vrot.lane.b32.xlu0 %v2953, 64
  %v4274 = vpop.permute.xlu0 %4273
  %4275 = vrot.lane.b32.xlu0 %v2954, 64
  %v4276 = vpop.permute.xlu0 %4275
  %4277 = vrot.lane.b32.xlu0 %v2955, 64
  %v4278 = vpop.permute.xlu0 %4277
  %4279 = vrot.lane.b32.xlu0 %v2956, 64
  %v4280 = vpop.permute.xlu0 %4279
  %4281 = vrot.lane.b32.xlu0 %v2957, 64
  %v4282 = vpop.permute.xlu0 %4281
  %4283 = vrot.lane.b32.xlu0 %v2958, 64
  %v4284 = vpop.permute.xlu0 %4283
  %4285 = vrot.lane.b32.xlu0 %v2959, 64
  %v4286 = vpop.permute.xlu0 %4285
  %4287 = vrot.lane.b32.xlu0 %v2960, 64
  %v4288 = vpop.permute.xlu0 %4287
  %4289 = vrot.lane.b32.xlu0 %v2961, 64
  %v4290 = vpop.permute.xlu0 %4289
  %4291 = vrot.lane.b32.xlu0 %v2962, 64
  %v4292 = vpop.permute.xlu0 %4291
  %4293 = vrot.lane.b32.xlu0 %v2963, 64
  %v4294 = vpop.permute.xlu0 %4293
  %4295 = vrot.lane.b32.xlu0 %v2964, 64
  %v4296 = vpop.permute.xlu0 %4295
  %4297 = vrot.lane.b32.xlu0 %v2965, 64
  %v4298 = vpop.permute.xlu0 %4297
  %4299 = vrot.lane.b32.xlu0 %v2966, 64
  %v4300 = vpop.permute.xlu0 %4299
  %4301 = vrot.lane.b32.xlu0 %v2967, 64
  %v4302 = vpop.permute.xlu0 %4301
  %4303 = vrot.lane.b32.xlu0 %v2968, 64
  %v4304 = vpop.permute.xlu0 %4303
  %4305 = vrot.lane.b32.xlu0 %v2969, 64
  %v4306 = vpop.permute.xlu0 %4305
  %4307 = vrot.lane.b32.xlu0 %v2970, 64
  %v4308 = vpop.permute.xlu0 %4307
  %4309 = vrot.lane.b32.xlu0 %v2971, 64
  %v4310 = vpop.permute.xlu0 %4309
  %4311 = vrot.lane.b32.xlu0 %v2972, 64
  %v4312 = vpop.permute.xlu0 %4311
  %4313 = vrot.lane.b32.xlu0 %v2973, 64
  %v4314 = vpop.permute.xlu0 %4313
  %4315 = vrot.lane.b32.xlu0 %v2974, 64
  %v4316 = vpop.permute.xlu0 %4315
  %4317 = vrot.lane.b32.xlu0 %v2975, 64
  %v4318 = vpop.permute.xlu0 %4317
  %4319 = vrot.lane.b32.xlu0 %v2976, 64
  %v4320 = vpop.permute.xlu0 %4319
  %4449 = vrot.lane.b32.xlu0 %v2977, 96
  %v4450 = vpop.permute.xlu0 %4449
  %4451 = vrot.lane.b32.xlu0 %v2978, 96
  %v4452 = vpop.permute.xlu0 %4451
  %4453 = vrot.lane.b32.xlu0 %v2979, 96
  %v4454 = vpop.permute.xlu0 %4453
  %4455 = vrot.lane.b32.xlu0 %v2980, 96
  %v4456 = vpop.permute.xlu0 %4455
  %4457 = vrot.lane.b32.xlu0 %v2981, 96
  %v4458 = vpop.permute.xlu0 %4457
  %4459 = vrot.lane.b32.xlu0 %v2982, 96
  %v4460 = vpop.permute.xlu0 %4459
  %4461 = vrot.lane.b32.xlu0 %v2983, 96
  %v4462 = vpop.permute.xlu0 %4461
  %4463 = vrot.lane.b32.xlu0 %v2984, 96
  %v4464 = vpop.permute.xlu0 %4463
  %4465 = vrot.lane.b32.xlu0 %v2985, 96
  %v4466 = vpop.permute.xlu0 %4465
  %4467 = vrot.lane.b32.xlu0 %v2986, 96
  %v4468 = vpop.permute.xlu0 %4467
  %4469 = vrot.lane.b32.xlu0 %v2987, 96
  %v4470 = vpop.permute.xlu0 %4469
  %4471 = vrot.lane.b32.xlu0 %v2988, 96
  %v4472 = vpop.permute.xlu0 %4471
  %4473 = vrot.lane.b32.xlu0 %v2989, 96
  %v4474 = vpop.permute.xlu0 %4473
  %4475 = vrot.lane.b32.xlu0 %v2990, 96
  %v4476 = vpop.permute.xlu0 %4475
  %4477 = vrot.lane.b32.xlu0 %v2991, 96
  %v4478 = vpop.permute.xlu0 %4477
  %4479 = vrot.lane.b32.xlu0 %v2992, 96
  %v4480 = vpop.permute.xlu0 %4479
  %4481 = vrot.lane.b32.xlu0 %v2993, 96
  %v4482 = vpop.permute.xlu0 %4481
  %4483 = vrot.lane.b32.xlu0 %v2994, 96
  %v4484 = vpop.permute.xlu0 %4483
  %4485 = vrot.lane.b32.xlu0 %v2995, 96
  %v4486 = vpop.permute.xlu0 %4485
  %4487 = vrot.lane.b32.xlu0 %v2996, 96
  %v4488 = vpop.permute.xlu0 %4487
  %4489 = vrot.lane.b32.xlu0 %v2997, 96
  %v4490 = vpop.permute.xlu0 %4489
  %4491 = vrot.lane.b32.xlu0 %v2998, 96
  %v4492 = vpop.permute.xlu0 %4491
  %4493 = vrot.lane.b32.xlu0 %v2999, 96
  %v4494 = vpop.permute.xlu0 %4493
  %4495 = vrot.lane.b32.xlu0 %v3000, 96
  %v4496 = vpop.permute.xlu0 %4495
  %4497 = vrot.lane.b32.xlu0 %v3001, 96
  %v4498 = vpop.permute.xlu0 %4497
  %4499 = vrot.lane.b32.xlu0 %v3002, 96
  %v4500 = vpop.permute.xlu0 %4499
  %4501 = vrot.lane.b32.xlu0 %v3003, 96
  %v4502 = vpop.permute.xlu0 %4501
  %4503 = vrot.lane.b32.xlu0 %v3004, 96
  %v4504 = vpop.permute.xlu0 %4503
  %4505 = vrot.lane.b32.xlu0 %v3005, 96
  %v4506 = vpop.permute.xlu0 %4505
  %4507 = vrot.lane.b32.xlu0 %v3006, 96
  %v4508 = vpop.permute.xlu0 %4507
  %4509 = vrot.lane.b32.xlu0 %v3007, 96
  %v4510 = vpop.permute.xlu0 %4509
  %4511 = vrot.lane.b32.xlu0 %v3008, 96
  %v4512 = vpop.permute.xlu0 %4511
  %4513 = vrot.lane.b32.xlu0 %v3009, 96
  %v4514 = vpop.permute.xlu0 %4513
  %4515 = vrot.lane.b32.xlu0 %v3010, 96
  %v4516 = vpop.permute.xlu0 %4515
  %4517 = vrot.lane.b32.xlu0 %v3011, 96
  %v4518 = vpop.permute.xlu0 %4517
  %4519 = vrot.lane.b32.xlu0 %v3012, 96
  %v4520 = vpop.permute.xlu0 %4519
  %4521 = vrot.lane.b32.xlu0 %v3013, 96
  %v4522 = vpop.permute.xlu0 %4521
  %4523 = vrot.lane.b32.xlu0 %v3014, 96
  %v4524 = vpop.permute.xlu0 %4523
  %4525 = vrot.lane.b32.xlu0 %v3015, 96
  %v4526 = vpop.permute.xlu0 %4525
  %4527 = vrot.lane.b32.xlu0 %v3016, 96
  %v4528 = vpop.permute.xlu0 %4527
  %4529 = vrot.lane.b32.xlu0 %v3017, 96
  %v4530 = vpop.permute.xlu0 %4529
  %4531 = vrot.lane.b32.xlu0 %v3018, 96
  %v4532 = vpop.permute.xlu0 %4531
  %4533 = vrot.lane.b32.xlu0 %v3019, 96
  %v4534 = vpop.permute.xlu0 %4533
  %4535 = vrot.lane.b32.xlu0 %v3020, 96
  %v4536 = vpop.permute.xlu0 %4535
  %4537 = vrot.lane.b32.xlu0 %v3021, 96
  %v4538 = vpop.permute.xlu0 %4537
  %4539 = vrot.lane.b32.xlu0 %v3022, 96
  %v4540 = vpop.permute.xlu0 %4539
  %4541 = vrot.lane.b32.xlu0 %v3023, 96
  %v4542 = vpop.permute.xlu0 %4541
  %4543 = vrot.lane.b32.xlu0 %v3024, 96
  %v4544 = vpop.permute.xlu0 %4543
  %4545 = vrot.lane.b32.xlu0 %v3025, 96
  %v4546 = vpop.permute.xlu0 %4545
  %4547 = vrot.lane.b32.xlu0 %v3026, 96
  %v4548 = vpop.permute.xlu0 %4547
  %4549 = vrot.lane.b32.xlu0 %v3027, 96
  %v4550 = vpop.permute.xlu0 %4549
  %4551 = vrot.lane.b32.xlu0 %v3028, 96
  %v4552 = vpop.permute.xlu0 %4551
  %4553 = vrot.lane.b32.xlu0 %v3029, 96
  %v4554 = vpop.permute.xlu0 %4553
  %4555 = vrot.lane.b32.xlu0 %v3030, 96
  %v4556 = vpop.permute.xlu0 %4555
  %4557 = vrot.lane.b32.xlu0 %v3031, 96
  %v4558 = vpop.permute.xlu0 %4557
  %4559 = vrot.lane.b32.xlu0 %v3032, 96
  %v4560 = vpop.permute.xlu0 %4559
  %4561 = vrot.lane.b32.xlu0 %v3033, 96
  %v4562 = vpop.permute.xlu0 %4561
  %4563 = vrot.lane.b32.xlu0 %v3034, 96
  %v4564 = vpop.permute.xlu0 %4563
  %4565 = vrot.lane.b32.xlu0 %v3035, 96
  %v4566 = vpop.permute.xlu0 %4565
  %4567 = vrot.lane.b32.xlu0 %v3036, 96
  %v4568 = vpop.permute.xlu0 %4567
  %4569 = vrot.lane.b32.xlu0 %v3037, 96
  %v4570 = vpop.permute.xlu0 %4569
  %4571 = vrot.lane.b32.xlu0 %v3038, 96
  %v4572 = vpop.permute.xlu0 %4571
  %4573 = vrot.lane.b32.xlu0 %v3039, 96
  %v4574 = vpop.permute.xlu0 %4573
  %4575 = vrot.lane.b32.xlu0 %v3040, 96
  %v4576 = vpop.permute.xlu0 %4575
  %v4641 = vsel %vm93, %v2528, %v3170
  %v4642 = vsel %vm93, %v2529, %v3172
  %v4643 = vsel %vm93, %v2530, %v3174
  %v4644 = vsel %vm93, %v2531, %v3176
  %v4645 = vsel %vm93, %v2532, %v3178
  %v4646 = vsel %vm93, %v2533, %v3180
  %v4647 = vsel %vm93, %v2534, %v3182
  %v4648 = vsel %vm93, %v2535, %v3184
  %v4649 = vsel %vm93, %v2536, %v3186
  %v4650 = vsel %vm93, %v2537, %v3188
  %v4651 = vsel %vm93, %v2538, %v3190
  %v4652 = vsel %vm93, %v2539, %v3192
  %v4653 = vsel %vm93, %v2540, %v3194
  %v4654 = vsel %vm93, %v2541, %v3196
  %v4655 = vsel %vm93, %v2542, %v3198
  %v4656 = vsel %vm93, %v2543, %v3200
  %v4657 = vsel %vm93, %v2544, %v3202
  %v4658 = vsel %vm93, %v2545, %v3204
  %v4659 = vsel %vm93, %v2546, %v3206
  %v4660 = vsel %vm93, %v2547, %v3208
  %v4661 = vsel %vm93, %v2548, %v3210
  %v4662 = vsel %vm93, %v2549, %v3212
  %v4663 = vsel %vm93, %v2550, %v3214
  %v4664 = vsel %vm93, %v2551, %v3216
  %v4665 = vsel %vm93, %v2552, %v3218
  %v4666 = vsel %vm93, %v2553, %v3220
  %v4667 = vsel %vm93, %v2554, %v3222
  %v4668 = vsel %vm93, %v2555, %v3224
  %v4669 = vsel %vm93, %v2556, %v3226
  %v4670 = vsel %vm93, %v2557, %v3228
  %v4671 = vsel %vm93, %v2558, %v3230
  %v4672 = vsel %vm93, %v2559, %v3232
  %v4673 = vsel %vm93, %v2560, %v3234
  %v4674 = vsel %vm93, %v2561, %v3236
  %v4675 = vsel %vm93, %v2562, %v3238
  %v4676 = vsel %vm93, %v2563, %v3240
  %v4677 = vsel %vm93, %v2564, %v3242
  %v4678 = vsel %vm93, %v2565, %v3244
  %v4679 = vsel %vm93, %v2566, %v3246
  %v4680 = vsel %vm93, %v2567, %v3248
  %v4681 = vsel %vm93, %v2568, %v3250
  %v4682 = vsel %vm93, %v2569, %v3252
  %v4683 = vsel %vm93, %v2570, %v3254
  %v4684 = vsel %vm93, %v2571, %v3256
  %v4685 = vsel %vm93, %v2572, %v3258
  %v4686 = vsel %vm93, %v2573, %v3260
  %v4687 = vsel %vm93, %v2574, %v3262
  %v4688 = vsel %vm93, %v2575, %v3264
  %v4689 = vsel %vm93, %v2576, %v3266
  %v4690 = vsel %vm93, %v2577, %v3268
  %v4691 = vsel %vm93, %v2578, %v3270
  %v4692 = vsel %vm93, %v2579, %v3272
  %v4693 = vsel %vm93, %v2580, %v3274
  %v4694 = vsel %vm93, %v2581, %v3276
  %v4695 = vsel %vm93, %v2582, %v3278
  %v4696 = vsel %vm93, %v2583, %v3280
  %v4697 = vsel %vm93, %v2584, %v3282
  %v4698 = vsel %vm93, %v2585, %v3284
  %v4699 = vsel %vm93, %v2586, %v3286
  %v4700 = vsel %vm93, %v2587, %v3288
  %v4701 = vsel %vm93, %v2588, %v3290
  %v4702 = vsel %vm93, %v2589, %v3292
  %v4703 = vsel %vm93, %v2590, %v3294
  %v4704 = vsel %vm93, %v2591, %v3296
  %v4705 = vsel %vm1037, %v4641, %v3426
  %v4706 = vsel %vm1037, %v4642, %v3428
  %v4707 = vsel %vm1037, %v4643, %v3430
  %v4708 = vsel %vm1037, %v4644, %v3432
  %v4709 = vsel %vm1037, %v4645, %v3434
  %v4710 = vsel %vm1037, %v4646, %v3436
  %v4711 = vsel %vm1037, %v4647, %v3438
  %v4712 = vsel %vm1037, %v4648, %v3440
  %v4713 = vsel %vm1037, %v4649, %v3442
  %v4714 = vsel %vm1037, %v4650, %v3444
  %v4715 = vsel %vm1037, %v4651, %v3446
  %v4716 = vsel %vm1037, %v4652, %v3448
  %v4717 = vsel %vm1037, %v4653, %v3450
  %v4718 = vsel %vm1037, %v4654, %v3452
  %v4719 = vsel %vm1037, %v4655, %v3454
  %v4720 = vsel %vm1037, %v4656, %v3456
  %v4721 = vsel %vm1037, %v4657, %v3458
  %v4722 = vsel %vm1037, %v4658, %v3460
  %v4723 = vsel %vm1037, %v4659, %v3462
  %v4724 = vsel %vm1037, %v4660, %v3464
  %v4725 = vsel %vm1037, %v4661, %v3466
  %v4726 = vsel %vm1037, %v4662, %v3468
  %v4727 = vsel %vm1037, %v4663, %v3470
  %v4728 = vsel %vm1037, %v4664, %v3472
  %v4729 = vsel %vm1037, %v4665, %v3474
  %v4730 = vsel %vm1037, %v4666, %v3476
  %v4731 = vsel %vm1037, %v4667, %v3478
  %v4732 = vsel %vm1037, %v4668, %v3480
  %v4733 = vsel %vm1037, %v4669, %v3482
  %v4734 = vsel %vm1037, %v4670, %v3484
  %v4735 = vsel %vm1037, %v4671, %v3486
  %v4736 = vsel %vm1037, %v4672, %v3488
  %v4737 = vsel %vm1037, %v4673, %v3490
  %v4738 = vsel %vm1037, %v4674, %v3492
  %v4739 = vsel %vm1037, %v4675, %v3494
  %v4740 = vsel %vm1037, %v4676, %v3496
  %v4741 = vsel %vm1037, %v4677, %v3498
  %v4742 = vsel %vm1037, %v4678, %v3500
  %v4743 = vsel %vm1037, %v4679, %v3502
  %v4744 = vsel %vm1037, %v4680, %v3504
  %v4745 = vsel %vm1037, %v4681, %v3506
  %v4746 = vsel %vm1037, %v4682, %v3508
  %v4747 = vsel %vm1037, %v4683, %v3510
  %v4748 = vsel %vm1037, %v4684, %v3512
  %v4749 = vsel %vm1037, %v4685, %v3514
  %v4750 = vsel %vm1037, %v4686, %v3516
  %v4751 = vsel %vm1037, %v4687, %v3518
  %v4752 = vsel %vm1037, %v4688, %v3520
  %v4753 = vsel %vm1037, %v4689, %v3522
  %v4754 = vsel %vm1037, %v4690, %v3524
  %v4755 = vsel %vm1037, %v4691, %v3526
  %v4756 = vsel %vm1037, %v4692, %v3528
  %v4757 = vsel %vm1037, %v4693, %v3530
  %v4758 = vsel %vm1037, %v4694, %v3532
  %v4759 = vsel %vm1037, %v4695, %v3534
  %v4760 = vsel %vm1037, %v4696, %v3536
  %v4761 = vsel %vm1037, %v4697, %v3538
  %v4762 = vsel %vm1037, %v4698, %v3540
  %v4763 = vsel %vm1037, %v4699, %v3542
  %v4764 = vsel %vm1037, %v4700, %v3544
  %v4765 = vsel %vm1037, %v4701, %v3546
  %v4766 = vsel %vm1037, %v4702, %v3548
  %v4767 = vsel %vm1037, %v4703, %v3550
  %v4768 = vsel %vm1037, %v4704, %v3552
  %v4769 = vsel %vm1054, %v4705, %v3682
  %v4770 = vsel %vm1054, %v4706, %v3684
  %v4771 = vsel %vm1054, %v4707, %v3686
  %v4772 = vsel %vm1054, %v4708, %v3688
  %v4773 = vsel %vm1054, %v4709, %v3690
  %v4774 = vsel %vm1054, %v4710, %v3692
  %v4775 = vsel %vm1054, %v4711, %v3694
  %v4776 = vsel %vm1054, %v4712, %v3696
  %v4777 = vsel %vm1054, %v4713, %v3698
  %v4778 = vsel %vm1054, %v4714, %v3700
  %v4779 = vsel %vm1054, %v4715, %v3702
  %v4780 = vsel %vm1054, %v4716, %v3704
  %v4781 = vsel %vm1054, %v4717, %v3706
  %v4782 = vsel %vm1054, %v4718, %v3708
  %v4783 = vsel %vm1054, %v4719, %v3710
  %v4784 = vsel %vm1054, %v4720, %v3712
  %v4785 = vsel %vm1054, %v4721, %v3714
  %v4786 = vsel %vm1054, %v4722, %v3716
  %v4787 = vsel %vm1054, %v4723, %v3718
  %v4788 = vsel %vm1054, %v4724, %v3720
  %v4789 = vsel %vm1054, %v4725, %v3722
  %v4790 = vsel %vm1054, %v4726, %v3724
  %v4791 = vsel %vm1054, %v4727, %v3726
  %v4792 = vsel %vm1054, %v4728, %v3728
  %v4793 = vsel %vm1054, %v4729, %v3730
  %v4794 = vsel %vm1054, %v4730, %v3732
  %v4795 = vsel %vm1054, %v4731, %v3734
  %v4796 = vsel %vm1054, %v4732, %v3736
  %v4797 = vsel %vm1054, %v4733, %v3738
  %v4798 = vsel %vm1054, %v4734, %v3740
  %v4799 = vsel %vm1054, %v4735, %v3742
  %v4800 = vsel %vm1054, %v4736, %v3744
  %v4801 = vsel %vm1054, %v4737, %v3746
  %v4802 = vsel %vm1054, %v4738, %v3748
  %v4803 = vsel %vm1054, %v4739, %v3750
  %v4804 = vsel %vm1054, %v4740, %v3752
  %v4805 = vsel %vm1054, %v4741, %v3754
  %v4806 = vsel %vm1054, %v4742, %v3756
  %v4807 = vsel %vm1054, %v4743, %v3758
  %v4808 = vsel %vm1054, %v4744, %v3760
  %v4809 = vsel %vm1054, %v4745, %v3762
  %v4810 = vsel %vm1054, %v4746, %v3764
  %v4811 = vsel %vm1054, %v4747, %v3766
  %v4812 = vsel %vm1054, %v4748, %v3768
  %v4813 = vsel %vm1054, %v4749, %v3770
  %v4814 = vsel %vm1054, %v4750, %v3772
  %v4815 = vsel %vm1054, %v4751, %v3774
  %v4816 = vsel %vm1054, %v4752, %v3776
  %v4817 = vsel %vm1054, %v4753, %v3778
  %v4818 = vsel %vm1054, %v4754, %v3780
  %v4819 = vsel %vm1054, %v4755, %v3782
  %v4820 = vsel %vm1054, %v4756, %v3784
  %v4821 = vsel %vm1054, %v4757, %v3786
  %v4822 = vsel %vm1054, %v4758, %v3788
  %v4823 = vsel %vm1054, %v4759, %v3790
  %v4824 = vsel %vm1054, %v4760, %v3792
  %v4825 = vsel %vm1054, %v4761, %v3794
  %v4826 = vsel %vm1054, %v4762, %v3796
  %v4827 = vsel %vm1054, %v4763, %v3798
  %v4828 = vsel %vm1054, %v4764, %v3800
  %v4829 = vsel %vm1054, %v4765, %v3802
  %v4830 = vsel %vm1054, %v4766, %v3804
  %v4831 = vsel %vm1054, %v4767, %v3806
  %v4832 = vsel %vm1054, %v4768, %v3808
  %v4833 = vsel %vm93, %v2784, %v3938
  %v4834 = vsel %vm93, %v2785, %v3940
  %v4835 = vsel %vm93, %v2786, %v3942
  %v4836 = vsel %vm93, %v2787, %v3944
  %v4837 = vsel %vm93, %v2788, %v3946
  %v4838 = vsel %vm93, %v2789, %v3948
  %v4839 = vsel %vm93, %v2790, %v3950
  %v4840 = vsel %vm93, %v2791, %v3952
  %v4841 = vsel %vm93, %v2792, %v3954
  %v4842 = vsel %vm93, %v2793, %v3956
  %v4843 = vsel %vm93, %v2794, %v3958
  %v4844 = vsel %vm93, %v2795, %v3960
  %v4845 = vsel %vm93, %v2796, %v3962
  %v4846 = vsel %vm93, %v2797, %v3964
  %v4847 = vsel %vm93, %v2798, %v3966
  %v4848 = vsel %vm93, %v2799, %v3968
  %v4849 = vsel %vm93, %v2800, %v3970
  %v4850 = vsel %vm93, %v2801, %v3972
  %v4851 = vsel %vm93, %v2802, %v3974
  %v4852 = vsel %vm93, %v2803, %v3976
  %v4853 = vsel %vm93, %v2804, %v3978
  %v4854 = vsel %vm93, %v2805, %v3980
  %v4855 = vsel %vm93, %v2806, %v3982
  %v4856 = vsel %vm93, %v2807, %v3984
  %v4857 = vsel %vm93, %v2808, %v3986
  %v4858 = vsel %vm93, %v2809, %v3988
  %v4859 = vsel %vm93, %v2810, %v3990
  %v4860 = vsel %vm93, %v2811, %v3992
  %v4861 = vsel %vm93, %v2812, %v3994
  %v4862 = vsel %vm93, %v2813, %v3996
  %v4863 = vsel %vm93, %v2814, %v3998
  %v4864 = vsel %vm93, %v2815, %v4000
  %v4865 = vsel %vm93, %v2816, %v4002
  %v4866 = vsel %vm93, %v2817, %v4004
  %v4867 = vsel %vm93, %v2818, %v4006
  %v4868 = vsel %vm93, %v2819, %v4008
  %v4869 = vsel %vm93, %v2820, %v4010
  %v4870 = vsel %vm93, %v2821, %v4012
  %v4871 = vsel %vm93, %v2822, %v4014
  %v4872 = vsel %vm93, %v2823, %v4016
  %v4873 = vsel %vm93, %v2824, %v4018
  %v4874 = vsel %vm93, %v2825, %v4020
  %v4875 = vsel %vm93, %v2826, %v4022
  %v4876 = vsel %vm93, %v2827, %v4024
  %v4877 = vsel %vm93, %v2828, %v4026
  %v4878 = vsel %vm93, %v2829, %v4028
  %v4879 = vsel %vm93, %v2830, %v4030
  %v4880 = vsel %vm93, %v2831, %v4032
  %v4881 = vsel %vm93, %v2832, %v4034
  %v4882 = vsel %vm93, %v2833, %v4036
  %v4883 = vsel %vm93, %v2834, %v4038
  %v4884 = vsel %vm93, %v2835, %v4040
  %v4885 = vsel %vm93, %v2836, %v4042
  %v4886 = vsel %vm93, %v2837, %v4044
  %v4887 = vsel %vm93, %v2838, %v4046
  %v4888 = vsel %vm93, %v2839, %v4048
  %v4889 = vsel %vm93, %v2840, %v4050
  %v4890 = vsel %vm93, %v2841, %v4052
  %v4891 = vsel %vm93, %v2842, %v4054
  %v4892 = vsel %vm93, %v2843, %v4056
  %v4893 = vsel %vm93, %v2844, %v4058
  %v4894 = vsel %vm93, %v2845, %v4060
  %v4895 = vsel %vm93, %v2846, %v4062
  %v4896 = vsel %vm93, %v2847, %v4064
  %v4897 = vsel %vm1037, %v4833, %v4194
  %v4898 = vsel %vm1037, %v4834, %v4196
  %v4899 = vsel %vm1037, %v4835, %v4198
  %v4900 = vsel %vm1037, %v4836, %v4200
  %v4901 = vsel %vm1037, %v4837, %v4202
  %v4902 = vsel %vm1037, %v4838, %v4204
  %v4903 = vsel %vm1037, %v4839, %v4206
  %v4904 = vsel %vm1037, %v4840, %v4208
  %v4905 = vsel %vm1037, %v4841, %v4210
  %v4906 = vsel %vm1037, %v4842, %v4212
  %v4907 = vsel %vm1037, %v4843, %v4214
  %v4908 = vsel %vm1037, %v4844, %v4216
  %v4909 = vsel %vm1037, %v4845, %v4218
  %v4910 = vsel %vm1037, %v4846, %v4220
  %v4911 = vsel %vm1037, %v4847, %v4222
  %v4912 = vsel %vm1037, %v4848, %v4224
  %v4913 = vsel %vm1037, %v4849, %v4226
  %v4914 = vsel %vm1037, %v4850, %v4228
  %v4915 = vsel %vm1037, %v4851, %v4230
  %v4916 = vsel %vm1037, %v4852, %v4232
  %v4917 = vsel %vm1037, %v4853, %v4234
  %v4918 = vsel %vm1037, %v4854, %v4236
  %v4919 = vsel %vm1037, %v4855, %v4238
  %v4920 = vsel %vm1037, %v4856, %v4240
  %v4921 = vsel %vm1037, %v4857, %v4242
  %v4922 = vsel %vm1037, %v4858, %v4244
  %v4923 = vsel %vm1037, %v4859, %v4246
  %v4924 = vsel %vm1037, %v4860, %v4248
  %v4925 = vsel %vm1037, %v4861, %v4250
  %v4926 = vsel %vm1037, %v4862, %v4252
  %v4927 = vsel %vm1037, %v4863, %v4254
  %v4928 = vsel %vm1037, %v4864, %v4256
  %v4929 = vsel %vm1037, %v4865, %v4258
  %v4930 = vsel %vm1037, %v4866, %v4260
  %v4931 = vsel %vm1037, %v4867, %v4262
  %v4932 = vsel %vm1037, %v4868, %v4264
  %v4933 = vsel %vm1037, %v4869, %v4266
  %v4934 = vsel %vm1037, %v4870, %v4268
  %v4935 = vsel %vm1037, %v4871, %v4270
  %v4936 = vsel %vm1037, %v4872, %v4272
  %v4937 = vsel %vm1037, %v4873, %v4274
  %v4938 = vsel %vm1037, %v4874, %v4276
  %v4939 = vsel %vm1037, %v4875, %v4278
  %v4940 = vsel %vm1037, %v4876, %v4280
  %v4941 = vsel %vm1037, %v4877, %v4282
  %v4942 = vsel %vm1037, %v4878, %v4284
  %v4943 = vsel %vm1037, %v4879, %v4286
  %v4944 = vsel %vm1037, %v4880, %v4288
  %v4945 = vsel %vm1037, %v4881, %v4290
  %v4946 = vsel %vm1037, %v4882, %v4292
  %v4947 = vsel %vm1037, %v4883, %v4294
  %v4948 = vsel %vm1037, %v4884, %v4296
  %v4949 = vsel %vm1037, %v4885, %v4298
  %v4950 = vsel %vm1037, %v4886, %v4300
  %v4951 = vsel %vm1037, %v4887, %v4302
  %v4952 = vsel %vm1037, %v4888, %v4304
  %v4953 = vsel %vm1037, %v4889, %v4306
  %v4954 = vsel %vm1037, %v4890, %v4308
  %v4955 = vsel %vm1037, %v4891, %v4310
  %v4956 = vsel %vm1037, %v4892, %v4312
  %v4957 = vsel %vm1037, %v4893, %v4314
  %v4958 = vsel %vm1037, %v4894, %v4316
  %v4959 = vsel %vm1037, %v4895, %v4318
  %v4960 = vsel %vm1037, %v4896, %v4320
  %v4961 = vsel %vm1054, %v4897, %v4450
  %v4962 = vsel %vm1054, %v4898, %v4452
  %v4963 = vsel %vm1054, %v4899, %v4454
  %v4964 = vsel %vm1054, %v4900, %v4456
  %v4965 = vsel %vm1054, %v4901, %v4458
  %v4966 = vsel %vm1054, %v4902, %v4460
  %v4967 = vsel %vm1054, %v4903, %v4462
  %v4968 = vsel %vm1054, %v4904, %v4464
  %v4969 = vsel %vm1054, %v4905, %v4466
  %v4970 = vsel %vm1054, %v4906, %v4468
  %v4971 = vsel %vm1054, %v4907, %v4470
  %v4972 = vsel %vm1054, %v4908, %v4472
  %v4973 = vsel %vm1054, %v4909, %v4474
  %v4974 = vsel %vm1054, %v4910, %v4476
  %v4975 = vsel %vm1054, %v4911, %v4478
  %v4976 = vsel %vm1054, %v4912, %v4480
  %v4977 = vsel %vm1054, %v4913, %v4482
  %v4978 = vsel %vm1054, %v4914, %v4484
  %v4979 = vsel %vm1054, %v4915, %v4486
  %v4980 = vsel %vm1054, %v4916, %v4488
  %v4981 = vsel %vm1054, %v4917, %v4490
  %v4982 = vsel %vm1054, %v4918, %v4492
  %v4983 = vsel %vm1054, %v4919, %v4494
  %v4984 = vsel %vm1054, %v4920, %v4496
  %v4985 = vsel %vm1054, %v4921, %v4498
  %v4986 = vsel %vm1054, %v4922, %v4500
  %v4987 = vsel %vm1054, %v4923, %v4502
  %v4988 = vsel %vm1054, %v4924, %v4504
  %v4989 = vsel %vm1054, %v4925, %v4506
  %v4990 = vsel %vm1054, %v4926, %v4508
  %v4991 = vsel %vm1054, %v4927, %v4510
  %v4992 = vsel %vm1054, %v4928, %v4512
  %v4993 = vsel %vm1054, %v4929, %v4514
  %v4994 = vsel %vm1054, %v4930, %v4516
  %v4995 = vsel %vm1054, %v4931, %v4518
  %v4996 = vsel %vm1054, %v4932, %v4520
  %v4997 = vsel %vm1054, %v4933, %v4522
  %v4998 = vsel %vm1054, %v4934, %v4524
  %v4999 = vsel %vm1054, %v4935, %v4526
  %v5000 = vsel %vm1054, %v4936, %v4528
  %v5001 = vsel %vm1054, %v4937, %v4530
  %v5002 = vsel %vm1054, %v4938, %v4532
  %v5003 = vsel %vm1054, %v4939, %v4534
  %v5004 = vsel %vm1054, %v4940, %v4536
  %v5005 = vsel %vm1054, %v4941, %v4538
  %v5006 = vsel %vm1054, %v4942, %v4540
  %v5007 = vsel %vm1054, %v4943, %v4542
  %v5008 = vsel %vm1054, %v4944, %v4544
  %v5009 = vsel %vm1054, %v4945, %v4546
  %v5010 = vsel %vm1054, %v4946, %v4548
  %v5011 = vsel %vm1054, %v4947, %v4550
  %v5012 = vsel %vm1054, %v4948, %v4552
  %v5013 = vsel %vm1054, %v4949, %v4554
  %v5014 = vsel %vm1054, %v4950, %v4556
  %v5015 = vsel %vm1054, %v4951, %v4558
  %v5016 = vsel %vm1054, %v4952, %v4560
  %v5017 = vsel %vm1054, %v4953, %v4562
  %v5018 = vsel %vm1054, %v4954, %v4564
  %v5019 = vsel %vm1054, %v4955, %v4566
  %v5020 = vsel %vm1054, %v4956, %v4568
  %v5021 = vsel %vm1054, %v4957, %v4570
  %v5022 = vsel %vm1054, %v4958, %v4572
  %v5023 = vsel %vm1054, %v4959, %v4574
  %v5024 = vsel %vm1054, %v4960, %v4576
  %v5025 = vpack.c.bf16 %v4770, %v4769
  %v5026 = vpack.c.bf16 %v4962, %v4961
  %v5027 = vpack.c.bf16 %v3042, %v3041
  %v5028 = vpack.c.bf16 %v4772, %v4771
  %v5029 = vpack.c.bf16 %v4964, %v4963
  %v5030 = vpack.c.bf16 %v3044, %v3043
  %v5031 = vpack.c.bf16 %v4774, %v4773
  %v5032 = vpack.c.bf16 %v4966, %v4965
  %v5033 = vpack.c.bf16 %v3046, %v3045
  %v5034 = vpack.c.bf16 %v4776, %v4775
  %v5035 = vpack.c.bf16 %v4968, %v4967
  %v5036 = vpack.c.bf16 %v3048, %v3047
  %v5037 = vpack.c.bf16 %v4778, %v4777
  %v5038 = vpack.c.bf16 %v4970, %v4969
  %v5039 = vpack.c.bf16 %v3050, %v3049
  %v5040 = vpack.c.bf16 %v4780, %v4779
  %v5041 = vpack.c.bf16 %v4972, %v4971
  %v5042 = vpack.c.bf16 %v3052, %v3051
  %v5043 = vpack.c.bf16 %v4782, %v4781
  %v5044 = vpack.c.bf16 %v4974, %v4973
  %v5045 = vpack.c.bf16 %v3054, %v3053
  %v5046 = vpack.c.bf16 %v4784, %v4783
  %v5047 = vpack.c.bf16 %v4976, %v4975
  %v5048 = vpack.c.bf16 %v3056, %v3055
  %v5049 = vpack.c.bf16 %v4786, %v4785
  %v5050 = vpack.c.bf16 %v4978, %v4977
  %v5051 = vpack.c.bf16 %v3058, %v3057
  %v5052 = vpack.c.bf16 %v4788, %v4787
  %v5053 = vpack.c.bf16 %v4980, %v4979
  %v5054 = vpack.c.bf16 %v3060, %v3059
  %v5055 = vpack.c.bf16 %v4790, %v4789
  %v5056 = vpack.c.bf16 %v4982, %v4981
  %v5057 = vpack.c.bf16 %v3062, %v3061
  %v5058 = vpack.c.bf16 %v4792, %v4791
  %v5059 = vpack.c.bf16 %v4984, %v4983
  %v5060 = vpack.c.bf16 %v3064, %v3063
  %v5061 = vpack.c.bf16 %v4794, %v4793
  %v5062 = vpack.c.bf16 %v4986, %v4985
  %v5063 = vpack.c.bf16 %v3066, %v3065
  %v5064 = vpack.c.bf16 %v4796, %v4795
  %v5065 = vpack.c.bf16 %v4988, %v4987
  %v5066 = vpack.c.bf16 %v3068, %v3067
  %v5067 = vpack.c.bf16 %v4798, %v4797
  %v5068 = vpack.c.bf16 %v4990, %v4989
  %v5069 = vpack.c.bf16 %v3070, %v3069
  %v5070 = vpack.c.bf16 %v4800, %v4799
  %v5071 = vpack.c.bf16 %v4992, %v4991
  %v5072 = vpack.c.bf16 %v3072, %v3071
  %v5073 = vpack.c.bf16 %v4802, %v4801
  %v5074 = vpack.c.bf16 %v4994, %v4993
  %v5075 = vpack.c.bf16 %v3074, %v3073
  %v5076 = vpack.c.bf16 %v4804, %v4803
  %v5077 = vpack.c.bf16 %v4996, %v4995
  %v5078 = vpack.c.bf16 %v3076, %v3075
  %v5079 = vpack.c.bf16 %v4806, %v4805
  %v5080 = vpack.c.bf16 %v4998, %v4997
  %v5081 = vpack.c.bf16 %v3078, %v3077
  %v5082 = vpack.c.bf16 %v4808, %v4807
  %v5083 = vpack.c.bf16 %v5000, %v4999
  %v5084 = vpack.c.bf16 %v3080, %v3079
  %v5085 = vpack.c.bf16 %v4810, %v4809
  %v5086 = vpack.c.bf16 %v5002, %v5001
  %v5087 = vpack.c.bf16 %v3082, %v3081
  %v5088 = vpack.c.bf16 %v4812, %v4811
  %v5089 = vpack.c.bf16 %v5004, %v5003
  %v5090 = vpack.c.bf16 %v3084, %v3083
  %v5091 = vpack.c.bf16 %v4814, %v4813
  %v5092 = vpack.c.bf16 %v5006, %v5005
  %v5093 = vpack.c.bf16 %v3086, %v3085
  %v5094 = vpack.c.bf16 %v4816, %v4815
  %v5095 = vpack.c.bf16 %v5008, %v5007
  %v5096 = vpack.c.bf16 %v3088, %v3087
  %v5097 = vpack.c.bf16 %v4818, %v4817
  %v5098 = vpack.c.bf16 %v5010, %v5009
  %v5099 = vpack.c.bf16 %v3090, %v3089
  %v5100 = vpack.c.bf16 %v4820, %v4819
  %v5101 = vpack.c.bf16 %v5012, %v5011
  %v5102 = vpack.c.bf16 %v3092, %v3091
  %v5103 = vpack.c.bf16 %v4822, %v4821
  %v5104 = vpack.c.bf16 %v5014, %v5013
  %v5105 = vpack.c.bf16 %v3094, %v3093
  %v5106 = vpack.c.bf16 %v4824, %v4823
  %v5107 = vpack.c.bf16 %v5016, %v5015
  %v5108 = vpack.c.bf16 %v3096, %v3095
  %v5109 = vpack.c.bf16 %v4826, %v4825
  %v5110 = vpack.c.bf16 %v5018, %v5017
  %v5111 = vpack.c.bf16 %v3098, %v3097
  %v5112 = vpack.c.bf16 %v4828, %v4827
  %v5113 = vpack.c.bf16 %v5020, %v5019
  %v5114 = vpack.c.bf16 %v3100, %v3099
  %v5115 = vpack.c.bf16 %v4830, %v4829
  %v5116 = vpack.c.bf16 %v5022, %v5021
  %v5117 = vpack.c.bf16 %v3102, %v3101
  %v5118 = vpack.c.bf16 %v4832, %v4831
  %v5119 = vpack.c.bf16 %v5024, %v5023
  %v5120 = vpack.c.bf16 %v3104, %v3103
  %v5121 = vld [vmem:[%s7] sm:$0xff]
  %v5122 = vld [vmem:[%s7 + $0x8] sm:$0xff]
  %v5123 = vld [vmem:[%s7 + $0x10] sm:$0xff]
  %v5124 = vld [vmem:[%s7 + $0x18] sm:$0xff]
  %v5125 = vld [vmem:[%s7 + $0x20] sm:$0xff]
  %v5126 = vld [vmem:[%s7 + $0x28] sm:$0xff]
  %v5127 = vld [vmem:[%s7 + $0x30] sm:$0xff]
  %v5128 = vld [vmem:[%s7 + $0x38] sm:$0xff]
  %v5129 = vld [vmem:[%s7 + $0x40] sm:$0xff]
  %v5130 = vld [vmem:[%s7 + $0x48] sm:$0xff]
  %v5131 = vld [vmem:[%s7 + $0x50] sm:$0xff]
  %v5132 = vld [vmem:[%s7 + $0x58] sm:$0xff]
  %v5133 = vld [vmem:[%s7 + $0x60] sm:$0xff]
  %v5134 = vld [vmem:[%s7 + $0x68] sm:$0xff]
  %v5135 = vld [vmem:[%s7 + $0x70] sm:$0xff]
  %v5136 = vld [vmem:[%s7 + $0x78] sm:$0xff]
  %v5137 = vld [vmem:[%s7 + $0x80] sm:$0xff]
  %v5138 = vld [vmem:[%s7 + $0x88] sm:$0xff]
  %v5139 = vld [vmem:[%s7 + $0x90] sm:$0xff]
  %v5140 = vld [vmem:[%s7 + $0x98] sm:$0xff]
  %v5141 = vld [vmem:[%s7 + $0xa0] sm:$0xff]
  %v5142 = vld [vmem:[%s7 + $0xa8] sm:$0xff]
  %v5143 = vld [vmem:[%s7 + $0xb0] sm:$0xff]
  %v5144 = vld [vmem:[%s7 + $0xb8] sm:$0xff]
  %v5145 = vld [vmem:[%s7 + $0xc0] sm:$0xff]
  %v5146 = vld [vmem:[%s7 + $0xc8] sm:$0xff]
  %v5147 = vld [vmem:[%s7 + $0xd0] sm:$0xff]
  %v5148 = vld [vmem:[%s7 + $0xd8] sm:$0xff]
  %v5149 = vld [vmem:[%s7 + $0xe0] sm:$0xff]
  %v5150 = vld [vmem:[%s7 + $0xe8] sm:$0xff]
  %v5151 = vld [vmem:[%s7 + $0xf0] sm:$0xff]
  %v5152 = vld [vmem:[%s7 + $0xf8] sm:$0xff]
  %v5153 = vld [vmem:[%s7 + $0x100] sm:$0xff]
  %v5154 = vld [vmem:[%s7 + $0x108] sm:$0xff]
  %v5155 = vld [vmem:[%s7 + $0x110] sm:$0xff]
  %v5156 = vld [vmem:[%s7 + $0x118] sm:$0xff]
  %v5157 = vpack.c.bf16 %v5122, %v5121
  %v5158 = vpack.c.bf16 %v5124, %v5123
  %v5159 = vpack.c.bf16 %v5126, %v5125
  %v5160 = vpack.c.bf16 %v5128, %v5127
  %v5161 = vpack.c.bf16 %v5130, %v5129
  %v5162 = vpack.c.bf16 %v5132, %v5131
  %v5163 = vpack.c.bf16 %v5134, %v5133
  %v5164 = vpack.c.bf16 %v5136, %v5135
  %v5165 = vpack.c.bf16 %v5138, %v5137
  %v5166 = vpack.c.bf16 %v5140, %v5139
  %v5167 = vpack.c.bf16 %v5142, %v5141
  %v5168 = vpack.c.bf16 %v5144, %v5143
  %v5169 = vpack.c.bf16 %v5146, %v5145
  %v5170 = vpack.c.bf16 %v5148, %v5147
  %v5171 = vpack.c.bf16 %v5150, %v5149
  %v5172 = vpack.c.bf16 %v5152, %v5151
  %v5173 = vpack.c.bf16 %v5154, %v5153
  %v5174 = vpack.c.bf16 %v5156, %v5155
  %v5175 = vld [vmem:[%s8] sm:$0x1]
  %v5177 = vlaneseq
  %v5178 = vshrl.u32 %v5177, 7
  %v5179 = vsub.s32 0, %v5178
  %v5180 = vrot.slane %v5175, %v5179
  %v5183 = vsel %vm93, %v5027, 0
  %v5186 = vsel %vm93, %v5030, 0
  %v5189 = vsel %vm93, %v5033, 0
  %v5192 = vsel %vm93, %v5036, 0
  %v5195 = vsel %vm93, %v5039, 0
  %v5198 = vsel %vm93, %v5042, 0
  %v5201 = vsel %vm93, %v5045, 0
  %v5204 = vsel %vm93, %v5048, 0
  %v5207 = vsel %vm93, %v5051, 0
  %v5210 = vsel %vm93, %v5054, 0
  %v5213 = vsel %vm93, %v5057, 0
  %v5216 = vsel %vm93, %v5060, 0
  %v5219 = vsel %vm93, %v5063, 0
  %v5222 = vsel %vm93, %v5066, 0
  %v5225 = vsel %vm93, %v5069, 0
  %v5228 = vsel %vm93, %v5072, 0
  %v5231 = vsel %vm93, %v5075, 0
  %v5234 = vsel %vm93, %v5078, 0
  %v5237 = vsel %vm93, %v5081, 0
  %v5240 = vsel %vm93, %v5084, 0
  %v5243 = vsel %vm93, %v5087, 0
  %v5246 = vsel %vm93, %v5090, 0
  %v5249 = vsel %vm93, %v5093, 0
  %v5252 = vsel %vm93, %v5096, 0
  %v5255 = vsel %vm93, %v5099, 0
  %v5258 = vsel %vm93, %v5102, 0
  %v5261 = vsel %vm93, %v5105, 0
  %v5264 = vsel %vm93, %v5108, 0
  %v5267 = vsel %vm93, %v5111, 0
  %v5270 = vsel %vm93, %v5114, 0
  %v5273 = vsel %vm93, %v5117, 0
  %v5276 = vsel %vm93, %v5120, 0
  %5278 = vmatprep.subr.bf16.mxu0 0
  %5279 = vmatpush1.bf16.msra.mxu0 %v5157
  %5280 = vmatprep.subr.bf16.mxu0 0
  %5281 = vmatpush1.bf16.msra.mxu0 %v5158
  %5282 = vmatprep.subr.bf16.mxu0 0
  %5283 = vmatpush1.bf16.msra.mxu0 %v5159
  %5284 = vmatprep.subr.bf16.mxu0 0
  %5285 = vmatpush1.bf16.msra.mxu0 %v5160
  %5286 = vmatprep.subr.bf16.mxu0 0
  %5287 = vmatpush1.bf16.msra.mxu0 %v5161
  %5288 = vmatprep.subr.bf16.mxu0 0
  %5289 = vmatpush1.bf16.msra.mxu0 %v5162
  %5290 = vmatprep.subr.bf16.mxu0 0
  %5291 = vmatpush1.bf16.msra.mxu0 %v5163
  %5292 = vmatprep.subr.bf16.mxu0 0
  %5293 = vmatpush1.bf16.msra.mxu0 %v5164
  %5294 = vmatprep.subr.bf16.mxu0 0
  %5295 = vmatpush1.bf16.msra.mxu0 %v5165
  %5296 = vmatprep.subr.bf16.mxu0 0
  %5297 = vmatpush1.bf16.msra.mxu0 %v5166
  %5298 = vmatprep.subr.bf16.mxu0 0
  %5299 = vmatpush1.bf16.msra.mxu0 %v5167
  %5300 = vmatprep.subr.bf16.mxu0 0
  %5301 = vmatpush1.bf16.msra.mxu0 %v5168
  %5302 = vmatprep.subr.bf16.mxu0 0
  %5303 = vmatpush1.bf16.msra.mxu0 %v5169
  %5304 = vmatprep.subr.bf16.mxu0 0
  %5305 = vmatpush1.bf16.msra.mxu0 %v5170
  %5306 = vmatprep.subr.bf16.mxu0 0
  %5307 = vmatpush1.bf16.msra.mxu0 %v5171
  %5308 = vmatprep.subr.bf16.mxu0 0
  %5309 = vmatpush1.bf16.msra.mxu0 %v5172
  %5310 = vmatprep.mubr.bf16.mxu0 %v5026
  %5311 = vmatmul.mubr.bf16.gmra.mrb[0].mxu0 %v5025
  %v5312 = vpop.f32.mrb[0].mxu0
  %v5313 = vadd.f32 %v5180, %v5312
  %v5314 = vpop.f32.mrb[0].mxu0
  %v5315 = vpop.f32.mrb[0].mxu0
  %v5316 = vadd.f32 %v5180, %v5315
  %v5317 = vpop.f32.mrb[0].mxu0
  %5318 = vmatprep.mubr.bf16.mxu0 %v5029
  %5319 = vmatmul.mubr.bf16.gmra.mrb[0].mxu0 %v5028
  %v5320 = vpop.f32.mrb[0].mxu0
  %v5321 = vadd.f32 %v5180, %v5320
  %v5322 = vpop.f32.mrb[0].mxu0
  %v5323 = vpop.f32.mrb[0].mxu0
  %v5324 = vadd.f32 %v5180, %v5323
  %v5325 = vpop.f32.mrb[0].mxu0
  %5326 = vmatprep.mubr.bf16.mxu0 %v5032
  %5327 = vmatmul.mubr.bf16.gmra.mrb[0].mxu0 %v5031
  %v5328 = vpop.f32.mrb[0].mxu0
  %v5329 = vadd.f32 %v5180, %v5328
  %v5330 = vpop.f32.mrb[0].mxu0
  %v5331 = vpop.f32.mrb[0].mxu0
  %v5332 = vadd.f32 %v5180, %v5331
  %v5333 = vpop.f32.mrb[0].mxu0
  %5334 = vmatprep.mubr.bf16.mxu0 %v5035
  %5335 = vmatmul.mubr.bf16.gmra.mrb[0].mxu0 %v5034
  %v5336 = vpop.f32.mrb[0].mxu0
  %v5337 = vadd.f32 %v5180, %v5336
  %v5338 = vpop.f32.mrb[0].mxu0
  %v5339 = vpop.f32.mrb[0].mxu0
  %v5340 = vadd.f32 %v5180, %v5339
  %v5341 = vpop.f32.mrb[0].mxu0
  %5342 = vmatprep.mubr.bf16.mxu0 %v5038
  %5343 = vmatmul.mubr.bf16.gmra.mrb[0].mxu0 %v5037
  %v5344 = vpop.f32.mrb[0].mxu0
  %v5345 = vadd.f32 %v5180, %v5344
  %v5346 = vpop.f32.mrb[0].mxu0
  %v5347 = vpop.f32.mrb[0].mxu0
  %v5348 = vadd.f32 %v5180, %v5347
  %v5349 = vpop.f32.mrb[0].mxu0
  %5350 = vmatprep.mubr.bf16.mxu0 %v5041
  %5351 = vmatmul.mubr.bf16.gmra.mrb[0].mxu0 %v5040
  %v5352 = vpop.f32.mrb[0].mxu0
  %v5353 = vadd.f32 %v5180, %v5352
  %v5354 = vpop.f32.mrb[0].mxu0
  %v5355 = vpop.f32.mrb[0].mxu0
  %v5356 = vadd.f32 %v5180, %v5355
  %v5357 = vpop.f32.mrb[0].mxu0
  %5358 = vmatprep.mubr.bf16.mxu0 %v5044
  %5359 = vmatmul.mubr.bf16.gmra.mrb[0].mxu0 %v5043
  %v5360 = vpop.f32.mrb[0].mxu0
  %v5361 = vadd.f32 %v5180, %v5360
  %v5362 = vpop.f32.mrb[0].mxu0
  %v5363 = vpop.f32.mrb[0].mxu0
  %v5364 = vadd.f32 %v5180, %v5363
  %v5365 = vpop.f32.mrb[0].mxu0
  %5366 = vmatprep.mubr.bf16.mxu0 %v5047
  %5367 = vmatmul.mubr.bf16.gmra.mrb[0].mxu0 %v5046
  %v5368 = vpop.f32.mrb[0].mxu0
  %v5369 = vadd.f32 %v5180, %v5368
  %v5370 = vpop.f32.mrb[0].mxu0
  %v5371 = vpop.f32.mrb[0].mxu0
  %v5372 = vadd.f32 %v5180, %v5371
  %v5373 = vpop.f32.mrb[0].mxu0
  %5374 = vmatprep.mubr.bf16.mxu0 %v5050
  %5375 = vmatmul.mubr.bf16.gmra.mrb[0].mxu0 %v5049
  %v5376 = vpop.f32.mrb[0].mxu0
  %v5377 = vadd.f32 %v5180, %v5376
  %v5378 = vpop.f32.mrb[0].mxu0
  %v5379 = vpop.f32.mrb[0].mxu0
  %v5380 = vadd.f32 %v5180, %v5379
  %v5381 = vpop.f32.mrb[0].mxu0
  %5382 = vmatprep.mubr.bf16.mxu0 %v5053
  %5383 = vmatmul.mubr.bf16.gmra.mrb[0].mxu0 %v5052
  %v5384 = vpop.f32.mrb[0].mxu0
  %v5385 = vadd.f32 %v5180, %v5384
  %v5386 = vpop.f32.mrb[0].mxu0
  %v5387 = vpop.f32.mrb[0].mxu0
  %v5388 = vadd.f32 %v5180, %v5387
  %v5389 = vpop.f32.mrb[0].mxu0
  %5390 = vmatprep.mubr.bf16.mxu0 %v5056
  %5391 = vmatmul.mubr.bf16.gmra.mrb[0].mxu0 %v5055
  %v5392 = vpop.f32.mrb[0].mxu0
  %v5393 = vadd.f32 %v5180, %v5392
  %v5394 = vpop.f32.mrb[0].mxu0
  %v5395 = vpop.f32.mrb[0].mxu0
  %v5396 = vadd.f32 %v5180, %v5395
  %v5397 = vpop.f32.mrb[0].mxu0
  %5398 = vmatprep.mubr.bf16.mxu0 %v5059
  %5399 = vmatmul.mubr.bf16.gmra.mrb[0].mxu0 %v5058
  %v5400 = vpop.f32.mrb[0].mxu0
  %v5401 = vadd.f32 %v5180, %v5400
  %v5402 = vpop.f32.mrb[0].mxu0
  %v5403 = vpop.f32.mrb[0].mxu0
  %v5404 = vadd.f32 %v5180, %v5403
  %v5405 = vpop.f32.mrb[0].mxu0
  %5406 = vmatprep.mubr.bf16.mxu0 %v5062
  %5407 = vmatmul.mubr.bf16.gmra.mrb[0].mxu0 %v5061
  %v5408 = vpop.f32.mrb[0].mxu0
  %v5409 = vadd.f32 %v5180, %v5408
  %v5410 = vpop.f32.mrb[0].mxu0
  %v5411 = vpop.f32.mrb[0].mxu0
  %v5412 = vadd.f32 %v5180, %v5411
  %v5413 = vpop.f32.mrb[0].mxu0
  %5414 = vmatprep.mubr.bf16.mxu0 %v5065
  %5415 = vmatmul.mubr.bf16.gmra.mrb[0].mxu0 %v5064
  %v5416 = vpop.f32.mrb[0].mxu0
  %v5417 = vadd.f32 %v5180, %v5416
  %v5418 = vpop.f32.mrb[0].mxu0
  %v5419 = vpop.f32.mrb[0].mxu0
  %v5420 = vadd.f32 %v5180, %v5419
  %v5421 = vpop.f32.mrb[0].mxu0
  %5422 = vmatprep.mubr.bf16.mxu0 %v5068
  %5423 = vmatmul.mubr.bf16.gmra.mrb[0].mxu0 %v5067
  %v5424 = vpop.f32.mrb[0].mxu0
  %v5425 = vadd.f32 %v5180, %v5424
  %v5426 = vpop.f32.mrb[0].mxu0
  %v5427 = vpop.f32.mrb[0].mxu0
  %v5428 = vadd.f32 %v5180, %v5427
  %v5429 = vpop.f32.mrb[0].mxu0
  %5430 = vmatprep.mubr.bf16.mxu0 %v5071
  %5431 = vmatmul.mubr.bf16.gmra.mrb[0].mxu0 %v5070
  %v5432 = vpop.f32.mrb[0].mxu0
  %v5433 = vadd.f32 %v5180, %v5432
  %v5434 = vpop.f32.mrb[0].mxu0
  %v5435 = vpop.f32.mrb[0].mxu0
  %v5436 = vadd.f32 %v5180, %v5435
  %v5437 = vpop.f32.mrb[0].mxu0
  %5438 = vmatprep.mubr.bf16.mxu0 %v5074
  %5439 = vmatmul.mubr.bf16.gmra.mrb[0].mxu0 %v5073
  %v5440 = vpop.f32.mrb[0].mxu0
  %v5441 = vadd.f32 %v5180, %v5440
  %v5442 = vpop.f32.mrb[0].mxu0
  %v5443 = vpop.f32.mrb[0].mxu0
  %v5444 = vadd.f32 %v5180, %v5443
  %v5445 = vpop.f32.mrb[0].mxu0
  %5446 = vmatprep.mubr.bf16.mxu0 %v5077
  %5447 = vmatmul.mubr.bf16.gmra.mrb[0].mxu0 %v5076
  %v5448 = vpop.f32.mrb[0].mxu0
  %v5449 = vadd.f32 %v5180, %v5448
  %v5450 = vpop.f32.mrb[0].mxu0
  %v5451 = vpop.f32.mrb[0].mxu0
  %v5452 = vadd.f32 %v5180, %v5451
  %v5453 = vpop.f32.mrb[0].mxu0
  %5454 = vmatprep.mubr.bf16.mxu0 %v5080
  %5455 = vmatmul.mubr.bf16.gmra.mrb[0].mxu0 %v5079
  %v5456 = vpop.f32.mrb[0].mxu0
  %v5457 = vadd.f32 %v5180, %v5456
  %v5458 = vpop.f32.mrb[0].mxu0
  %v5459 = vpop.f32.mrb[0].mxu0
  %v5460 = vadd.f32 %v5180, %v5459
  %v5461 = vpop.f32.mrb[0].mxu0
  %5462 = vmatprep.mubr.bf16.mxu0 %v5083
  %5463 = vmatmul.mubr.bf16.gmra.mrb[0].mxu0 %v5082
  %v5464 = vpop.f32.mrb[0].mxu0
  %v5465 = vadd.f32 %v5180, %v5464
  %v5466 = vpop.f32.mrb[0].mxu0
  %v5467 = vpop.f32.mrb[0].mxu0
  %v5468 = vadd.f32 %v5180, %v5467
  %v5469 = vpop.f32.mrb[0].mxu0
  %5470 = vmatprep.mubr.bf16.mxu0 %v5086
  %5471 = vmatmul.mubr.bf16.gmra.mrb[0].mxu0 %v5085
  %v5472 = vpop.f32.mrb[0].mxu0
  %v5473 = vadd.f32 %v5180, %v5472
  %v5474 = vpop.f32.mrb[0].mxu0
  %v5475 = vpop.f32.mrb[0].mxu0
  %v5476 = vadd.f32 %v5180, %v5475
  %v5477 = vpop.f32.mrb[0].mxu0
  %5478 = vmatprep.mubr.bf16.mxu0 %v5089
  %5479 = vmatmul.mubr.bf16.gmra.mrb[0].mxu0 %v5088
  %v5480 = vpop.f32.mrb[0].mxu0
  %v5481 = vadd.f32 %v5180, %v5480
  %v5482 = vpop.f32.mrb[0].mxu0
  %v5483 = vpop.f32.mrb[0].mxu0
  %v5484 = vadd.f32 %v5180, %v5483
  %v5485 = vpop.f32.mrb[0].mxu0
  %5486 = vmatprep.mubr.bf16.mxu0 %v5092
  %5487 = vmatmul.mubr.bf16.gmra.mrb[0].mxu0 %v5091
  %v5488 = vpop.f32.mrb[0].mxu0
  %v5489 = vadd.f32 %v5180, %v5488
  %v5490 = vpop.f32.mrb[0].mxu0
  %v5491 = vpop.f32.mrb[0].mxu0
  %v5492 = vadd.f32 %v5180, %v5491
  %v5493 = vpop.f32.mrb[0].mxu0
  %5494 = vmatprep.mubr.bf16.mxu0 %v5095
  %5495 = vmatmul.mubr.bf16.gmra.mrb[0].mxu0 %v5094
  %v5496 = vpop.f32.mrb[0].mxu0
  %v5497 = vadd.f32 %v5180, %v5496
  %v5498 = vpop.f32.mrb[0].mxu0
  %v5499 = vpop.f32.mrb[0].mxu0
  %v5500 = vadd.f32 %v5180, %v5499
  %v5501 = vpop.f32.mrb[0].mxu0
  %5502 = vmatprep.mubr.bf16.mxu0 %v5098
  %5503 = vmatmul.mubr.bf16.gmra.mrb[0].mxu0 %v5097
  %v5504 = vpop.f32.mrb[0].mxu0
  %v5505 = vadd.f32 %v5180, %v5504
  %v5506 = vpop.f32.mrb[0].mxu0
  %v5507 = vpop.f32.mrb[0].mxu0
  %v5508 = vadd.f32 %v5180, %v5507
  %v5509 = vpop.f32.mrb[0].mxu0
  %5510 = vmatprep.mubr.bf16.mxu0 %v5101
  %5511 = vmatmul.mubr.bf16.gmra.mrb[0].mxu0 %v5100
  %v5512 = vpop.f32.mrb[0].mxu0
  %v5513 = vadd.f32 %v5180, %v5512
  %v5514 = vpop.f32.mrb[0].mxu0
  %v5515 = vpop.f32.mrb[0].mxu0
  %v5516 = vadd.f32 %v5180, %v5515
  %v5517 = vpop.f32.mrb[0].mxu0
  %5518 = vmatprep.mubr.bf16.mxu0 %v5104
  %5519 = vmatmul.mubr.bf16.gmra.mrb[0].mxu0 %v5103
  %v5520 = vpop.f32.mrb[0].mxu0
  %v5521 = vadd.f32 %v5180, %v5520
  %v5522 = vpop.f32.mrb[0].mxu0
  %v5523 = vpop.f32.mrb[0].mxu0
  %v5524 = vadd.f32 %v5180, %v5523
  %v5525 = vpop.f32.mrb[0].mxu0
  %5526 = vmatprep.mubr.bf16.mxu0 %v5107
  %5527 = vmatmul.mubr.bf16.gmra.mrb[0].mxu0 %v5106
  %v5528 = vpop.f32.mrb[0].mxu0
  %v5529 = vadd.f32 %v5180, %v5528
  %v5530 = vpop.f32.mrb[0].mxu0
  %v5531 = vpop.f32.mrb[0].mxu0
  %v5532 = vadd.f32 %v5180, %v5531
  %v5533 = vpop.f32.mrb[0].mxu0
  %5534 = vmatprep.mubr.bf16.mxu0 %v5110
  %5535 = vmatmul.mubr.bf16.gmra.mrb[0].mxu0 %v5109
  %v5536 = vpop.f32.mrb[0].mxu0
  %v5537 = vadd.f32 %v5180, %v5536
  %v5538 = vpop.f32.mrb[0].mxu0
  %v5539 = vpop.f32.mrb[0].mxu0
  %v5540 = vadd.f32 %v5180, %v5539
  %v5541 = vpop.f32.mrb[0].mxu0
  %5542 = vmatprep.mubr.bf16.mxu0 %v5113
  %5543 = vmatmul.mubr.bf16.gmra.mrb[0].mxu0 %v5112
  %v5544 = vpop.f32.mrb[0].mxu0
  %v5545 = vadd.f32 %v5180, %v5544
  %v5546 = vpop.f32.mrb[0].mxu0
  %v5547 = vpop.f32.mrb[0].mxu0
  %v5548 = vadd.f32 %v5180, %v5547
  %v5549 = vpop.f32.mrb[0].mxu0
  %5550 = vmatprep.mubr.bf16.mxu0 %v5116
  %5551 = vmatmul.mubr.bf16.gmra.mrb[0].mxu0 %v5115
  %v5552 = vpop.f32.mrb[0].mxu0
  %v5553 = vadd.f32 %v5180, %v5552
  %v5554 = vpop.f32.mrb[0].mxu0
  %v5555 = vpop.f32.mrb[0].mxu0
  %v5556 = vadd.f32 %v5180, %v5555
  %v5557 = vpop.f32.mrb[0].mxu0
  %5558 = vmatprep.mubr.bf16.mxu0 %v5119
  %5559 = vmatmul.mubr.bf16.gmra.mrb[0].mxu0 %v5118
  %v5560 = vpop.f32.mrb[0].mxu0
  %v5561 = vadd.f32 %v5180, %v5560
  %v5562 = vpop.f32.mrb[0].mxu0
  %v5563 = vpop.f32.mrb[0].mxu0
  %v5564 = vadd.f32 %v5180, %v5563
  %v5565 = vpop.f32.mrb[0].mxu0
  %5566 = vdwg.mxu0
  %5567 = vmatprep.subr.bf16.mxu0 0
  %5568 = vmatpush1.bf16.msra.mxu0 %v5173
  %5569 = vmatprep.subr.bf16.mxu0 0
  %5570 = vmatpush1.bf16.msra.mxu0 %v5174
  %5571 = vmatprep.subr.bf16.mxu0 0
  %5572 = vmatpush1.bf16.msra.mxu0 0
  %5573 = vmatprep.subr.bf16.mxu0 0
  %5574 = vmatpush1.bf16.msra.mxu0 0
  %5575 = vmatprep.subr.bf16.mxu0 0
  %5576 = vmatpush1.bf16.msra.mxu0 0
  %5577 = vmatprep.subr.bf16.mxu0 0
  %5578 = vmatpush1.bf16.msra.mxu0 0
  %5579 = vmatprep.subr.bf16.mxu0 0
  %5580 = vmatpush1.bf16.msra.mxu0 0
  %5581 = vmatprep.subr.bf16.mxu0 0
  %5582 = vmatpush1.bf16.msra.mxu0 0
  %5583 = vmatprep.subr.bf16.mxu0 0
  %5584 = vmatpush1.bf16.msra.mxu0 0
  %5585 = vmatprep.subr.bf16.mxu0 0
  %5586 = vmatpush1.bf16.msra.mxu0 0
  %5587 = vmatprep.subr.bf16.mxu0 0
  %5588 = vmatpush1.bf16.msra.mxu0 0
  %5589 = vmatprep.subr.bf16.mxu0 0
  %5590 = vmatpush1.bf16.msra.mxu0 0
  %5591 = vmatprep.subr.bf16.mxu0 0
  %5592 = vmatpush1.bf16.msra.mxu0 0
  %5593 = vmatprep.subr.bf16.mxu0 0
  %5594 = vmatpush1.bf16.msra.mxu0 0
  %5595 = vmatprep.subr.bf16.mxu0 0
  %5596 = vmatpush1.bf16.msra.mxu0 0
  %5597 = vmatprep.subr.bf16.mxu0 0
  %5598 = vmatpush1.bf16.msra.mxu0 0
  %5599 = vmatprep.mubr.bf16.mxu0 0
  %5600 = vmatmul.mubr.bf16.gmra.mrb[0].mxu0 %v5183
  %v5601 = vpop.f32.mrb[0].mxu0
  %v5602 = vadd.f32 %v5313, %v5601
  %v5603 = vpop.f32.mrb[0].mxu0
  %v5604 = vpop.f32.mrb[0].mxu0
  %v5605 = vadd.f32 %v5316, %v5604
  %v5606 = vpop.f32.mrb[0].mxu0
  %5607 = vmatprep.mubr.bf16.mxu0 0
  %5608 = vmatmul.mubr.bf16.gmra.mrb[0].mxu0 %v5186
  %v5609 = vpop.f32.mrb[0].mxu0
  %v5610 = vadd.f32 %v5321, %v5609
  %v5611 = vpop.f32.mrb[0].mxu0
  %v5612 = vpop.f32.mrb[0].mxu0
  %v5613 = vadd.f32 %v5324, %v5612
  %v5614 = vpop.f32.mrb[0].mxu0
  %5615 = vmatprep.mubr.bf16.mxu0 0
  %5616 = vmatmul.mubr.bf16.gmra.mrb[0].mxu0 %v5189
  %v5617 = vpop.f32.mrb[0].mxu0
  %v5618 = vadd.f32 %v5329, %v5617
  %v5619 = vpop.f32.mrb[0].mxu0
  %v5620 = vpop.f32.mrb[0].mxu0
  %v5621 = vadd.f32 %v5332, %v5620
  %v5622 = vpop.f32.mrb[0].mxu0
  %5623 = vmatprep.mubr.bf16.mxu0 0
  %5624 = vmatmul.mubr.bf16.gmra.mrb[0].mxu0 %v5192
  %v5625 = vpop.f32.mrb[0].mxu0
  %v5626 = vadd.f32 %v5337, %v5625
  %v5627 = vpop.f32.mrb[0].mxu0
  %v5628 = vpop.f32.mrb[0].mxu0
  %v5629 = vadd.f32 %v5340, %v5628
  %v5630 = vpop.f32.mrb[0].mxu0
  %5631 = vmatprep.mubr.bf16.mxu0 0
  %5632 = vmatmul.mubr.bf16.gmra.mrb[0].mxu0 %v5195
  %v5633 = vpop.f32.mrb[0].mxu0
  %v5634 = vadd.f32 %v5345, %v5633
  %v5635 = vpop.f32.mrb[0].mxu0
  %v5636 = vpop.f32.mrb[0].mxu0
  %v5637 = vadd.f32 %v5348, %v5636
  %v5638 = vpop.f32.mrb[0].mxu0
  %5639 = vmatprep.mubr.bf16.mxu0 0
  %5640 = vmatmul.mubr.bf16.gmra.mrb[0].mxu0 %v5198
  %v5641 = vpop.f32.mrb[0].mxu0
  %v5642 = vadd.f32 %v5353, %v5641
  %v5643 = vpop.f32.mrb[0].mxu0
  %v5644 = vpop.f32.mrb[0].mxu0
  %v5645 = vadd.f32 %v5356, %v5644
  %v5646 = vpop.f32.mrb[0].mxu0
  %5647 = vmatprep.mubr.bf16.mxu0 0
  %5648 = vmatmul.mubr.bf16.gmra.mrb[0].mxu0 %v5201
  %v5649 = vpop.f32.mrb[0].mxu0
  %v5650 = vadd.f32 %v5361, %v5649
  %v5651 = vpop.f32.mrb[0].mxu0
  %v5652 = vpop.f32.mrb[0].mxu0
  %v5653 = vadd.f32 %v5364, %v5652
  %v5654 = vpop.f32.mrb[0].mxu0
  %5655 = vmatprep.mubr.bf16.mxu0 0
  %5656 = vmatmul.mubr.bf16.gmra.mrb[0].mxu0 %v5204
  %v5657 = vpop.f32.mrb[0].mxu0
  %v5658 = vadd.f32 %v5369, %v5657
  %v5659 = vpop.f32.mrb[0].mxu0
  %v5660 = vpop.f32.mrb[0].mxu0
  %v5661 = vadd.f32 %v5372, %v5660
  %v5662 = vpop.f32.mrb[0].mxu0
  %5663 = vmatprep.mubr.bf16.mxu0 0
  %5664 = vmatmul.mubr.bf16.gmra.mrb[0].mxu0 %v5207
  %v5665 = vpop.f32.mrb[0].mxu0
  %v5666 = vadd.f32 %v5377, %v5665
  %v5667 = vpop.f32.mrb[0].mxu0
  %v5668 = vpop.f32.mrb[0].mxu0
  %v5669 = vadd.f32 %v5380, %v5668
  %v5670 = vpop.f32.mrb[0].mxu0
  %5671 = vmatprep.mubr.bf16.mxu0 0
  %5672 = vmatmul.mubr.bf16.gmra.mrb[0].mxu0 %v5210
  %v5673 = vpop.f32.mrb[0].mxu0
  %v5674 = vadd.f32 %v5385, %v5673
  %v5675 = vpop.f32.mrb[0].mxu0
  %v5676 = vpop.f32.mrb[0].mxu0
  %v5677 = vadd.f32 %v5388, %v5676
  %v5678 = vpop.f32.mrb[0].mxu0
  %5679 = vmatprep.mubr.bf16.mxu0 0
  %5680 = vmatmul.mubr.bf16.gmra.mrb[0].mxu0 %v5213
  %v5681 = vpop.f32.mrb[0].mxu0
  %v5682 = vadd.f32 %v5393, %v5681
  %v5683 = vpop.f32.mrb[0].mxu0
  %v5684 = vpop.f32.mrb[0].mxu0
  %v5685 = vadd.f32 %v5396, %v5684
  %v5686 = vpop.f32.mrb[0].mxu0
  %5687 = vmatprep.mubr.bf16.mxu0 0
  %5688 = vmatmul.mubr.bf16.gmra.mrb[0].mxu0 %v5216
  %v5689 = vpop.f32.mrb[0].mxu0
  %v5690 = vadd.f32 %v5401, %v5689
  %v5691 = vpop.f32.mrb[0].mxu0
  %v5692 = vpop.f32.mrb[0].mxu0
  %v5693 = vadd.f32 %v5404, %v5692
  %v5694 = vpop.f32.mrb[0].mxu0
  %5695 = vmatprep.mubr.bf16.mxu0 0
  %5696 = vmatmul.mubr.bf16.gmra.mrb[0].mxu0 %v5219
  %v5697 = vpop.f32.mrb[0].mxu0
  %v5698 = vadd.f32 %v5409, %v5697
  %v5699 = vpop.f32.mrb[0].mxu0
  %v5700 = vpop.f32.mrb[0].mxu0
  %v5701 = vadd.f32 %v5412, %v5700
  %v5702 = vpop.f32.mrb[0].mxu0
  %5703 = vmatprep.mubr.bf16.mxu0 0
  %5704 = vmatmul.mubr.bf16.gmra.mrb[0].mxu0 %v5222
  %v5705 = vpop.f32.mrb[0].mxu0
  %v5706 = vadd.f32 %v5417, %v5705
  %v5707 = vpop.f32.mrb[0].mxu0
  %v5708 = vpop.f32.mrb[0].mxu0
  %v5709 = vadd.f32 %v5420, %v5708
  %v5710 = vpop.f32.mrb[0].mxu0
  %5711 = vmatprep.mubr.bf16.mxu0 0
  %5712 = vmatmul.mubr.bf16.gmra.mrb[0].mxu0 %v5225
  %v5713 = vpop.f32.mrb[0].mxu0
  %v5714 = vadd.f32 %v5425, %v5713
  %v5715 = vpop.f32.mrb[0].mxu0
  %v5716 = vpop.f32.mrb[0].mxu0
  %v5717 = vadd.f32 %v5428, %v5716
  %v5718 = vpop.f32.mrb[0].mxu0
  %5719 = vmatprep.mubr.bf16.mxu0 0
  %5720 = vmatmul.mubr.bf16.gmra.mrb[0].mxu0 %v5228
  %v5721 = vpop.f32.mrb[0].mxu0
  %v5722 = vadd.f32 %v5433, %v5721
  %v5723 = vpop.f32.mrb[0].mxu0
  %v5724 = vpop.f32.mrb[0].mxu0
  %v5725 = vadd.f32 %v5436, %v5724
  %v5726 = vpop.f32.mrb[0].mxu0
  %5727 = vmatprep.mubr.bf16.mxu0 0
  %5728 = vmatmul.mubr.bf16.gmra.mrb[0].mxu0 %v5231
  %v5729 = vpop.f32.mrb[0].mxu0
  %v5730 = vadd.f32 %v5441, %v5729
  %v5731 = vpop.f32.mrb[0].mxu0
  %v5732 = vpop.f32.mrb[0].mxu0
  %v5733 = vadd.f32 %v5444, %v5732
  %v5734 = vpop.f32.mrb[0].mxu0
  %5735 = vmatprep.mubr.bf16.mxu0 0
  %5736 = vmatmul.mubr.bf16.gmra.mrb[0].mxu0 %v5234
  %v5737 = vpop.f32.mrb[0].mxu0
  %v5738 = vadd.f32 %v5449, %v5737
  %v5739 = vpop.f32.mrb[0].mxu0
  %v5740 = vpop.f32.mrb[0].mxu0
  %v5741 = vadd.f32 %v5452, %v5740
  %v5742 = vpop.f32.mrb[0].mxu0
  %5743 = vmatprep.mubr.bf16.mxu0 0
  %5744 = vmatmul.mubr.bf16.gmra.mrb[0].mxu0 %v5237
  %v5745 = vpop.f32.mrb[0].mxu0
  %v5746 = vadd.f32 %v5457, %v5745
  %v5747 = vpop.f32.mrb[0].mxu0
  %v5748 = vpop.f32.mrb[0].mxu0
  %v5749 = vadd.f32 %v5460, %v5748
  %v5750 = vpop.f32.mrb[0].mxu0
  %5751 = vmatprep.mubr.bf16.mxu0 0
  %5752 = vmatmul.mubr.bf16.gmra.mrb[0].mxu0 %v5240
  %v5753 = vpop.f32.mrb[0].mxu0
  %v5754 = vadd.f32 %v5465, %v5753
  %v5755 = vpop.f32.mrb[0].mxu0
  %v5756 = vpop.f32.mrb[0].mxu0
  %v5757 = vadd.f32 %v5468, %v5756
  %v5758 = vpop.f32.mrb[0].mxu0
  %5759 = vmatprep.mubr.bf16.mxu0 0
  %5760 = vmatmul.mubr.bf16.gmra.mrb[0].mxu0 %v5243
  %v5761 = vpop.f32.mrb[0].mxu0
  %v5762 = vadd.f32 %v5473, %v5761
  %v5763 = vpop.f32.mrb[0].mxu0
  %v5764 = vpop.f32.mrb[0].mxu0
  %v5765 = vadd.f32 %v5476, %v5764
  %v5766 = vpop.f32.mrb[0].mxu0
  %5767 = vmatprep.mubr.bf16.mxu0 0
  %5768 = vmatmul.mubr.bf16.gmra.mrb[0].mxu0 %v5246
  %v5769 = vpop.f32.mrb[0].mxu0
  %v5770 = vadd.f32 %v5481, %v5769
  %v5771 = vpop.f32.mrb[0].mxu0
  %v5772 = vpop.f32.mrb[0].mxu0
  %v5773 = vadd.f32 %v5484, %v5772
  %v5774 = vpop.f32.mrb[0].mxu0
  %5775 = vmatprep.mubr.bf16.mxu0 0
  %5776 = vmatmul.mubr.bf16.gmra.mrb[0].mxu0 %v5249
  %v5777 = vpop.f32.mrb[0].mxu0
  %v5778 = vadd.f32 %v5489, %v5777
  %v5779 = vpop.f32.mrb[0].mxu0
  %v5780 = vpop.f32.mrb[0].mxu0
  %v5781 = vadd.f32 %v5492, %v5780
  %v5782 = vpop.f32.mrb[0].mxu0
  %5783 = vmatprep.mubr.bf16.mxu0 0
  %5784 = vmatmul.mubr.bf16.gmra.mrb[0].mxu0 %v5252
  %v5785 = vpop.f32.mrb[0].mxu0
  %v5786 = vadd.f32 %v5497, %v5785
  %v5787 = vpop.f32.mrb[0].mxu0
  %v5788 = vpop.f32.mrb[0].mxu0
  %v5789 = vadd.f32 %v5500, %v5788
  %v5790 = vpop.f32.mrb[0].mxu0
  %5791 = vmatprep.mubr.bf16.mxu0 0
  %5792 = vmatmul.mubr.bf16.gmra.mrb[0].mxu0 %v5255
  %v5793 = vpop.f32.mrb[0].mxu0
  %v5794 = vadd.f32 %v5505, %v5793
  %v5795 = vpop.f32.mrb[0].mxu0
  %v5796 = vpop.f32.mrb[0].mxu0
  %v5797 = vadd.f32 %v5508, %v5796
  %v5798 = vpop.f32.mrb[0].mxu0
  %5799 = vmatprep.mubr.bf16.mxu0 0
  %5800 = vmatmul.mubr.bf16.gmra.mrb[0].mxu0 %v5258
  %v5801 = vpop.f32.mrb[0].mxu0
  %v5802 = vadd.f32 %v5513, %v5801
  %v5803 = vpop.f32.mrb[0].mxu0
  %v5804 = vpop.f32.mrb[0].mxu0
  %v5805 = vadd.f32 %v5516, %v5804
  %v5806 = vpop.f32.mrb[0].mxu0
  %5807 = vmatprep.mubr.bf16.mxu0 0
  %5808 = vmatmul.mubr.bf16.gmra.mrb[0].mxu0 %v5261
  %v5809 = vpop.f32.mrb[0].mxu0
  %v5810 = vadd.f32 %v5521, %v5809
  %v5811 = vpop.f32.mrb[0].mxu0
  %v5812 = vpop.f32.mrb[0].mxu0
  %v5813 = vadd.f32 %v5524, %v5812
  %v5814 = vpop.f32.mrb[0].mxu0
  %5815 = vmatprep.mubr.bf16.mxu0 0
  %5816 = vmatmul.mubr.bf16.gmra.mrb[0].mxu0 %v5264
  %v5817 = vpop.f32.mrb[0].mxu0
  %v5818 = vadd.f32 %v5529, %v5817
  %v5819 = vpop.f32.mrb[0].mxu0
  %v5820 = vpop.f32.mrb[0].mxu0
  %v5821 = vadd.f32 %v5532, %v5820
  %v5822 = vpop.f32.mrb[0].mxu0
  %5823 = vmatprep.mubr.bf16.mxu0 0
  %5824 = vmatmul.mubr.bf16.gmra.mrb[0].mxu0 %v5267
  %v5825 = vpop.f32.mrb[0].mxu0
  %v5826 = vadd.f32 %v5537, %v5825
  %v5827 = vpop.f32.mrb[0].mxu0
  %v5828 = vpop.f32.mrb[0].mxu0
  %v5829 = vadd.f32 %v5540, %v5828
  %v5830 = vpop.f32.mrb[0].mxu0
  %5831 = vmatprep.mubr.bf16.mxu0 0
  %5832 = vmatmul.mubr.bf16.gmra.mrb[0].mxu0 %v5270
  %v5833 = vpop.f32.mrb[0].mxu0
  %v5834 = vadd.f32 %v5545, %v5833
  %v5835 = vpop.f32.mrb[0].mxu0
  %v5836 = vpop.f32.mrb[0].mxu0
  %v5837 = vadd.f32 %v5548, %v5836
  %v5838 = vpop.f32.mrb[0].mxu0
  %5839 = vmatprep.mubr.bf16.mxu0 0
  %5840 = vmatmul.mubr.bf16.gmra.mrb[0].mxu0 %v5273
  %v5841 = vpop.f32.mrb[0].mxu0
  %v5842 = vadd.f32 %v5553, %v5841
  %v5843 = vpop.f32.mrb[0].mxu0
  %v5844 = vpop.f32.mrb[0].mxu0
  %v5845 = vadd.f32 %v5556, %v5844
  %v5846 = vpop.f32.mrb[0].mxu0
  %5847 = vmatprep.mubr.bf16.mxu0 0
  %5848 = vmatmul.mubr.bf16.gmra.mrb[0].mxu0 %v5276
  %v5849 = vpop.f32.mrb[0].mxu0
  %v5850 = vadd.f32 %v5561, %v5849
  %v5851 = vpop.f32.mrb[0].mxu0
  %v5852 = vpop.f32.mrb[0].mxu0
  %v5853 = vadd.f32 %v5564, %v5852
  %v5854 = vpop.f32.mrb[0].mxu0
  %5855 = vdwg.mxu0
  %v5856 = vld [vmem:[%s9] sm:$0x1]
  %v5857 = vld [vmem:[%s10] sm:$0x1]
  %vm5858 = vcmask 130048
  %v5859 = vsel %vm5858, %v5602, 0.0
  %v5860 = vsel %vm5858, %v5605, 0.0
  %v5861 = vadd.f32 %v5859, %v5860
  %v5862 = vsel %vm5858, %v5610, 0.0
  %v5863 = vadd.f32 %v5861, %v5862
  %v5864 = vsel %vm5858, %v5613, 0.0
  %v5865 = vadd.f32 %v5863, %v5864
  %v5866 = vsel %vm5858, %v5618, 0.0
  %v5867 = vadd.f32 %v5865, %v5866
  %v5868 = vsel %vm5858, %v5621, 0.0
  %v5869 = vadd.f32 %v5867, %v5868
  %v5870 = vsel %vm5858, %v5626, 0.0
  %v5871 = vadd.f32 %v5869, %v5870
  %v5872 = vsel %vm5858, %v5629, 0.0
  %v5873 = vadd.f32 %v5871, %v5872
  %v5874 = vsel %vm5858, %v5634, 0.0
  %v5875 = vadd.f32 %v5873, %v5874
  %v5876 = vsel %vm5858, %v5637, 0.0
  %v5877 = vadd.f32 %v5875, %v5876
  %v5878 = vsel %vm5858, %v5642, 0.0
  %v5879 = vadd.f32 %v5877, %v5878
  %v5880 = vsel %vm5858, %v5645, 0.0
  %v5881 = vadd.f32 %v5879, %v5880
  %v5882 = vsel %vm5858, %v5650, 0.0
  %v5883 = vadd.f32 %v5881, %v5882
  %v5884 = vsel %vm5858, %v5653, 0.0
  %v5885 = vadd.f32 %v5883, %v5884
  %v5886 = vsel %vm5858, %v5658, 0.0
  %v5887 = vadd.f32 %v5885, %v5886
  %v5888 = vsel %vm5858, %v5661, 0.0
  %v5889 = vadd.f32 %v5887, %v5888
  %v5890 = vsel %vm5858, %v5666, 0.0
  %v5891 = vadd.f32 %v5889, %v5890
  %v5892 = vsel %vm5858, %v5669, 0.0
  %v5893 = vadd.f32 %v5891, %v5892
  %v5894 = vsel %vm5858, %v5674, 0.0
  %v5895 = vadd.f32 %v5893, %v5894
  %v5896 = vsel %vm5858, %v5677, 0.0
  %v5897 = vadd.f32 %v5895, %v5896
  %v5898 = vsel %vm5858, %v5682, 0.0
  %v5899 = vadd.f32 %v5897, %v5898
  %v5900 = vsel %vm5858, %v5685, 0.0
  %v5901 = vadd.f32 %v5899, %v5900
  %v5902 = vsel %vm5858, %v5690, 0.0
  %v5903 = vadd.f32 %v5901, %v5902
  %v5904 = vsel %vm5858, %v5693, 0.0
  %v5905 = vadd.f32 %v5903, %v5904
  %v5906 = vsel %vm5858, %v5698, 0.0
  %v5907 = vadd.f32 %v5905, %v5906
  %v5908 = vsel %vm5858, %v5701, 0.0
  %v5909 = vadd.f32 %v5907, %v5908
  %v5910 = vsel %vm5858, %v5706, 0.0
  %v5911 = vadd.f32 %v5909, %v5910
  %v5912 = vsel %vm5858, %v5709, 0.0
  %v5913 = vadd.f32 %v5911, %v5912
  %v5914 = vsel %vm5858, %v5714, 0.0
  %v5915 = vadd.f32 %v5913, %v5914
  %v5916 = vsel %vm5858, %v5717, 0.0
  %v5917 = vadd.f32 %v5915, %v5916
  %v5918 = vsel %vm5858, %v5722, 0.0
  %v5919 = vadd.f32 %v5917, %v5918
  %v5920 = vsel %vm5858, %v5725, 0.0
  %v5921 = vadd.f32 %v5919, %v5920
  %v5922 = vsel %vm5858, %v5730, 0.0
  %v5923 = vadd.f32 %v5921, %v5922
  %v5924 = vsel %vm5858, %v5733, 0.0
  %v5925 = vadd.f32 %v5923, %v5924
  %v5926 = vsel %vm5858, %v5738, 0.0
  %v5927 = vadd.f32 %v5925, %v5926
  %v5928 = vsel %vm5858, %v5741, 0.0
  %v5929 = vadd.f32 %v5927, %v5928
  %v5930 = vsel %vm5858, %v5746, 0.0
  %v5931 = vadd.f32 %v5929, %v5930
  %v5932 = vsel %vm5858, %v5749, 0.0
  %v5933 = vadd.f32 %v5931, %v5932
  %v5934 = vsel %vm5858, %v5754, 0.0
  %v5935 = vadd.f32 %v5933, %v5934
  %v5936 = vsel %vm5858, %v5757, 0.0
  %v5937 = vadd.f32 %v5935, %v5936
  %v5938 = vsel %vm5858, %v5762, 0.0
  %v5939 = vadd.f32 %v5937, %v5938
  %v5940 = vsel %vm5858, %v5765, 0.0
  %v5941 = vadd.f32 %v5939, %v5940
  %v5942 = vsel %vm5858, %v5770, 0.0
  %v5943 = vadd.f32 %v5941, %v5942
  %v5944 = vsel %vm5858, %v5773, 0.0
  %v5945 = vadd.f32 %v5943, %v5944
  %v5946 = vsel %vm5858, %v5778, 0.0
  %v5947 = vadd.f32 %v5945, %v5946
  %v5948 = vsel %vm5858, %v5781, 0.0
  %v5949 = vadd.f32 %v5947, %v5948
  %v5950 = vsel %vm5858, %v5786, 0.0
  %v5951 = vadd.f32 %v5949, %v5950
  %v5952 = vsel %vm5858, %v5789, 0.0
  %v5953 = vadd.f32 %v5951, %v5952
  %v5954 = vsel %vm5858, %v5794, 0.0
  %v5955 = vadd.f32 %v5953, %v5954
  %v5956 = vsel %vm5858, %v5797, 0.0
  %v5957 = vadd.f32 %v5955, %v5956
  %v5958 = vsel %vm5858, %v5802, 0.0
  %v5959 = vadd.f32 %v5957, %v5958
  %v5960 = vsel %vm5858, %v5805, 0.0
  %v5961 = vadd.f32 %v5959, %v5960
  %v5962 = vsel %vm5858, %v5810, 0.0
  %v5963 = vadd.f32 %v5961, %v5962
  %v5964 = vsel %vm5858, %v5813, 0.0
  %v5965 = vadd.f32 %v5963, %v5964
  %v5966 = vsel %vm5858, %v5818, 0.0
  %v5967 = vadd.f32 %v5965, %v5966
  %v5968 = vsel %vm5858, %v5821, 0.0
  %v5969 = vadd.f32 %v5967, %v5968
  %v5970 = vsel %vm5858, %v5826, 0.0
  %v5971 = vadd.f32 %v5969, %v5970
  %v5972 = vsel %vm5858, %v5829, 0.0
  %v5973 = vadd.f32 %v5971, %v5972
  %v5974 = vsel %vm5858, %v5834, 0.0
  %v5975 = vadd.f32 %v5973, %v5974
  %v5976 = vsel %vm5858, %v5837, 0.0
  %v5977 = vadd.f32 %v5975, %v5976
  %v5978 = vsel %vm5858, %v5842, 0.0
  %v5979 = vadd.f32 %v5977, %v5978
  %v5980 = vsel %vm5858, %v5845, 0.0
  %v5981 = vadd.f32 %v5979, %v5980
  %v5982 = vsel %vm5858, %v5850, 0.0
  %v5983 = vadd.f32 %v5981, %v5982
  %v5984 = vsel %vm5858, %v5853, 0.0
  %v5985 = vadd.f32 %v5983, %v5984
  %v5986 = vrot.slane %v5985, 4
  %v5987 = vadd.f32 %v5985, %v5986
  %v5988 = vrot.slane %v5987, 2
  %v5989 = vadd.f32 %v5987, %v5988
  %v5990 = vrot.slane %v5989, 1
  %v5991 = vadd.f32 %v5989, %v5990
  %v5992 = vmul.f32 %v5602, %v5602
  %v5993 = vmul.f32 %v5605, %v5605
  %v5994 = vmul.f32 %v5610, %v5610
  %v5995 = vmul.f32 %v5613, %v5613
  %v5996 = vmul.f32 %v5618, %v5618
  %v5997 = vmul.f32 %v5621, %v5621
  %v5998 = vmul.f32 %v5626, %v5626
  %v5999 = vmul.f32 %v5629, %v5629
  %v6000 = vmul.f32 %v5634, %v5634
  %v6001 = vmul.f32 %v5637, %v5637
  %v6002 = vmul.f32 %v5642, %v5642
  %v6003 = vmul.f32 %v5645, %v5645
  %v6004 = vmul.f32 %v5650, %v5650
  %v6005 = vmul.f32 %v5653, %v5653
  %v6006 = vmul.f32 %v5658, %v5658
  %v6007 = vmul.f32 %v5661, %v5661
  %v6008 = vmul.f32 %v5666, %v5666
  %v6009 = vmul.f32 %v5669, %v5669
  %v6010 = vmul.f32 %v5674, %v5674
  %v6011 = vmul.f32 %v5677, %v5677
  %v6012 = vmul.f32 %v5682, %v5682
  %v6013 = vmul.f32 %v5685, %v5685
  %v6014 = vmul.f32 %v5690, %v5690
  %v6015 = vmul.f32 %v5693, %v5693
  %v6016 = vmul.f32 %v5698, %v5698
  %v6017 = vmul.f32 %v5701, %v5701
  %v6018 = vmul.f32 %v5706, %v5706
  %v6019 = vmul.f32 %v5709, %v5709
  %v6020 = vmul.f32 %v5714, %v5714
  %v6021 = vmul.f32 %v5717, %v5717
  %v6022 = vmul.f32 %v5722, %v5722
  %v6023 = vmul.f32 %v5725, %v5725
  %v6024 = vmul.f32 %v5730, %v5730
  %v6025 = vmul.f32 %v5733, %v5733
  %v6026 = vmul.f32 %v5738, %v5738
  %v6027 = vmul.f32 %v5741, %v5741
  %v6028 = vmul.f32 %v5746, %v5746
  %v6029 = vmul.f32 %v5749, %v5749
  %v6030 = vmul.f32 %v5754, %v5754
  %v6031 = vmul.f32 %v5757, %v5757
  %v6032 = vmul.f32 %v5762, %v5762
  %v6033 = vmul.f32 %v5765, %v5765
  %v6034 = vmul.f32 %v5770, %v5770
  %v6035 = vmul.f32 %v5773, %v5773
  %v6036 = vmul.f32 %v5778, %v5778
  %v6037 = vmul.f32 %v5781, %v5781
  %v6038 = vmul.f32 %v5786, %v5786
  %v6039 = vmul.f32 %v5789, %v5789
  %v6040 = vmul.f32 %v5794, %v5794
  %v6041 = vmul.f32 %v5797, %v5797
  %v6042 = vmul.f32 %v5802, %v5802
  %v6043 = vmul.f32 %v5805, %v5805
  %v6044 = vmul.f32 %v5810, %v5810
  %v6045 = vmul.f32 %v5813, %v5813
  %v6046 = vmul.f32 %v5818, %v5818
  %v6047 = vmul.f32 %v5821, %v5821
  %v6048 = vmul.f32 %v5826, %v5826
  %v6049 = vmul.f32 %v5829, %v5829
  %v6050 = vmul.f32 %v5834, %v5834
  %v6051 = vmul.f32 %v5837, %v5837
  %v6052 = vmul.f32 %v5842, %v5842
  %v6053 = vmul.f32 %v5845, %v5845
  %v6054 = vmul.f32 %v5850, %v5850
  %v6055 = vmul.f32 %v5853, %v5853
  %v6056 = vsel %vm5858, %v5992, 0.0
  %v6057 = vsel %vm5858, %v5993, 0.0
  %v6058 = vadd.f32 %v6056, %v6057
  %v6059 = vsel %vm5858, %v5994, 0.0
  %v6060 = vadd.f32 %v6058, %v6059
  %v6061 = vsel %vm5858, %v5995, 0.0
  %v6062 = vadd.f32 %v6060, %v6061
  %v6063 = vsel %vm5858, %v5996, 0.0
  %v6064 = vadd.f32 %v6062, %v6063
  %v6065 = vsel %vm5858, %v5997, 0.0
  %v6066 = vadd.f32 %v6064, %v6065
  %v6067 = vsel %vm5858, %v5998, 0.0
  %v6068 = vadd.f32 %v6066, %v6067
  %v6069 = vsel %vm5858, %v5999, 0.0
  %v6070 = vadd.f32 %v6068, %v6069
  %v6071 = vsel %vm5858, %v6000, 0.0
  %v6072 = vadd.f32 %v6070, %v6071
  %v6073 = vsel %vm5858, %v6001, 0.0
  %v6074 = vadd.f32 %v6072, %v6073
  %v6075 = vsel %vm5858, %v6002, 0.0
  %v6076 = vadd.f32 %v6074, %v6075
  %v6077 = vsel %vm5858, %v6003, 0.0
  %v6078 = vadd.f32 %v6076, %v6077
  %v6079 = vsel %vm5858, %v6004, 0.0
  %v6080 = vadd.f32 %v6078, %v6079
  %v6081 = vsel %vm5858, %v6005, 0.0
  %v6082 = vadd.f32 %v6080, %v6081
  %v6083 = vsel %vm5858, %v6006, 0.0
  %v6084 = vadd.f32 %v6082, %v6083
  %v6085 = vsel %vm5858, %v6007, 0.0
  %v6086 = vadd.f32 %v6084, %v6085
  %v6087 = vsel %vm5858, %v6008, 0.0
  %v6088 = vadd.f32 %v6086, %v6087
  %v6089 = vsel %vm5858, %v6009, 0.0
  %v6090 = vadd.f32 %v6088, %v6089
  %v6091 = vsel %vm5858, %v6010, 0.0
  %v6092 = vadd.f32 %v6090, %v6091
  %v6093 = vsel %vm5858, %v6011, 0.0
  %v6094 = vadd.f32 %v6092, %v6093
  %v6095 = vsel %vm5858, %v6012, 0.0
  %v6096 = vadd.f32 %v6094, %v6095
  %v6097 = vsel %vm5858, %v6013, 0.0
  %v6098 = vadd.f32 %v6096, %v6097
  %v6099 = vsel %vm5858, %v6014, 0.0
  %v6100 = vadd.f32 %v6098, %v6099
  %v6101 = vsel %vm5858, %v6015, 0.0
  %v6102 = vadd.f32 %v6100, %v6101
  %v6103 = vsel %vm5858, %v6016, 0.0
  %v6104 = vadd.f32 %v6102, %v6103
  %v6105 = vsel %vm5858, %v6017, 0.0
  %v6106 = vadd.f32 %v6104, %v6105
  %v6107 = vsel %vm5858, %v6018, 0.0
  %v6108 = vadd.f32 %v6106, %v6107
  %v6109 = vsel %vm5858, %v6019, 0.0
  %v6110 = vadd.f32 %v6108, %v6109
  %v6111 = vsel %vm5858, %v6020, 0.0
  %v6112 = vadd.f32 %v6110, %v6111
  %v6113 = vsel %vm5858, %v6021, 0.0
  %v6114 = vadd.f32 %v6112, %v6113
  %v6115 = vsel %vm5858, %v6022, 0.0
  %v6116 = vadd.f32 %v6114, %v6115
  %v6117 = vsel %vm5858, %v6023, 0.0
  %v6118 = vadd.f32 %v6116, %v6117
  %v6119 = vsel %vm5858, %v6024, 0.0
  %v6120 = vadd.f32 %v6118, %v6119
  %v6121 = vsel %vm5858, %v6025, 0.0
  %v6122 = vadd.f32 %v6120, %v6121
  %v6123 = vsel %vm5858, %v6026, 0.0
  %v6124 = vadd.f32 %v6122, %v6123
  %v6125 = vsel %vm5858, %v6027, 0.0
  %v6126 = vadd.f32 %v6124, %v6125
  %v6127 = vsel %vm5858, %v6028, 0.0
  %v6128 = vadd.f32 %v6126, %v6127
  %v6129 = vsel %vm5858, %v6029, 0.0
  %v6130 = vadd.f32 %v6128, %v6129
  %v6131 = vsel %vm5858, %v6030, 0.0
  %v6132 = vadd.f32 %v6130, %v6131
  %v6133 = vsel %vm5858, %v6031, 0.0
  %v6134 = vadd.f32 %v6132, %v6133
  %v6135 = vsel %vm5858, %v6032, 0.0
  %v6136 = vadd.f32 %v6134, %v6135
  %v6137 = vsel %vm5858, %v6033, 0.0
  %v6138 = vadd.f32 %v6136, %v6137
  %v6139 = vsel %vm5858, %v6034, 0.0
  %v6140 = vadd.f32 %v6138, %v6139
  %v6141 = vsel %vm5858, %v6035, 0.0
  %v6142 = vadd.f32 %v6140, %v6141
  %v6143 = vsel %vm5858, %v6036, 0.0
  %v6144 = vadd.f32 %v6142, %v6143
  %v6145 = vsel %vm5858, %v6037, 0.0
  %v6146 = vadd.f32 %v6144, %v6145
  %v6147 = vsel %vm5858, %v6038, 0.0
  %v6148 = vadd.f32 %v6146, %v6147
  %v6149 = vsel %vm5858, %v6039, 0.0
  %v6150 = vadd.f32 %v6148, %v6149
  %v6151 = vsel %vm5858, %v6040, 0.0
  %v6152 = vadd.f32 %v6150, %v6151
  %v6153 = vsel %vm5858, %v6041, 0.0
  %v6154 = vadd.f32 %v6152, %v6153
  %v6155 = vsel %vm5858, %v6042, 0.0
  %v6156 = vadd.f32 %v6154, %v6155
  %v6157 = vsel %vm5858, %v6043, 0.0
  %v6158 = vadd.f32 %v6156, %v6157
  %v6159 = vsel %vm5858, %v6044, 0.0
  %v6160 = vadd.f32 %v6158, %v6159
  %v6161 = vsel %vm5858, %v6045, 0.0
  %v6162 = vadd.f32 %v6160, %v6161
  %v6163 = vsel %vm5858, %v6046, 0.0
  %v6164 = vadd.f32 %v6162, %v6163
  %v6165 = vsel %vm5858, %v6047, 0.0
  %v6166 = vadd.f32 %v6164, %v6165
  %v6167 = vsel %vm5858, %v6048, 0.0
  %v6168 = vadd.f32 %v6166, %v6167
  %v6169 = vsel %vm5858, %v6049, 0.0
  %v6170 = vadd.f32 %v6168, %v6169
  %v6171 = vsel %vm5858, %v6050, 0.0
  %v6172 = vadd.f32 %v6170, %v6171
  %v6173 = vsel %vm5858, %v6051, 0.0
  %v6174 = vadd.f32 %v6172, %v6173
  %v6175 = vsel %vm5858, %v6052, 0.0
  %v6176 = vadd.f32 %v6174, %v6175
  %v6177 = vsel %vm5858, %v6053, 0.0
  %v6178 = vadd.f32 %v6176, %v6177
  %v6179 = vsel %vm5858, %v6054, 0.0
  %v6180 = vadd.f32 %v6178, %v6179
  %v6181 = vsel %vm5858, %v6055, 0.0
  %v6182 = vadd.f32 %v6180, %v6181
  %v6183 = vrot.slane %v6182, 4
  %v6184 = vadd.f32 %v6182, %v6183
  %v6185 = vrot.slane %v6184, 2
  %v6186 = vadd.f32 %v6184, %v6185
  %v6187 = vrot.slane %v6186, 1
  %v6188 = vadd.f32 %v6186, %v6187
  %v6189 = vmul.f32 %v5991, 0.001953125
  %v6190 = vmul.f32 %v6188, 0.001953125
  %v6191 = vmul.f32 %v6189, %v6189
  %v6192 = vsub.f32 %v6190, %v6191
  %v6193 = vsub.f32 %v5602, %v6189
  %v6194 = vsub.f32 %v5605, %v6189
  %v6195 = vsub.f32 %v5610, %v6189
  %v6196 = vsub.f32 %v5613, %v6189
  %v6197 = vsub.f32 %v5618, %v6189
  %v6198 = vsub.f32 %v5621, %v6189
  %v6199 = vsub.f32 %v5626, %v6189
  %v6200 = vsub.f32 %v5629, %v6189
  %v6201 = vsub.f32 %v5634, %v6189
  %v6202 = vsub.f32 %v5637, %v6189
  %v6203 = vsub.f32 %v5642, %v6189
  %v6204 = vsub.f32 %v5645, %v6189
  %v6205 = vsub.f32 %v5650, %v6189
  %v6206 = vsub.f32 %v5653, %v6189
  %v6207 = vsub.f32 %v5658, %v6189
  %v6208 = vsub.f32 %v5661, %v6189
  %v6209 = vsub.f32 %v5666, %v6189
  %v6210 = vsub.f32 %v5669, %v6189
  %v6211 = vsub.f32 %v5674, %v6189
  %v6212 = vsub.f32 %v5677, %v6189
  %v6213 = vsub.f32 %v5682, %v6189
  %v6214 = vsub.f32 %v5685, %v6189
  %v6215 = vsub.f32 %v5690, %v6189
  %v6216 = vsub.f32 %v5693, %v6189
  %v6217 = vsub.f32 %v5698, %v6189
  %v6218 = vsub.f32 %v5701, %v6189
  %v6219 = vsub.f32 %v5706, %v6189
  %v6220 = vsub.f32 %v5709, %v6189
  %v6221 = vsub.f32 %v5714, %v6189
  %v6222 = vsub.f32 %v5717, %v6189
  %v6223 = vsub.f32 %v5722, %v6189
  %v6224 = vsub.f32 %v5725, %v6189
  %v6225 = vsub.f32 %v5730, %v6189
  %v6226 = vsub.f32 %v5733, %v6189
  %v6227 = vsub.f32 %v5738, %v6189
  %v6228 = vsub.f32 %v5741, %v6189
  %v6229 = vsub.f32 %v5746, %v6189
  %v6230 = vsub.f32 %v5749, %v6189
  %v6231 = vsub.f32 %v5754, %v6189
  %v6232 = vsub.f32 %v5757, %v6189
  %v6233 = vsub.f32 %v5762, %v6189
  %v6234 = vsub.f32 %v5765, %v6189
  %v6235 = vsub.f32 %v5770, %v6189
  %v6236 = vsub.f32 %v5773, %v6189
  %v6237 = vsub.f32 %v5778, %v6189
  %v6238 = vsub.f32 %v5781, %v6189
  %v6239 = vsub.f32 %v5786, %v6189
  %v6240 = vsub.f32 %v5789, %v6189
  %v6241 = vsub.f32 %v5794, %v6189
  %v6242 = vsub.f32 %v5797, %v6189
  %v6243 = vsub.f32 %v5802, %v6189
  %v6244 = vsub.f32 %v5805, %v6189
  %v6245 = vsub.f32 %v5810, %v6189
  %v6246 = vsub.f32 %v5813, %v6189
  %v6247 = vsub.f32 %v5818, %v6189
  %v6248 = vsub.f32 %v5821, %v6189
  %v6249 = vsub.f32 %v5826, %v6189
  %v6250 = vsub.f32 %v5829, %v6189
  %v6251 = vsub.f32 %v5834, %v6189
  %v6252 = vsub.f32 %v5837, %v6189
  %v6253 = vsub.f32 %v5842, %v6189
  %v6254 = vsub.f32 %v5845, %v6189
  %v6255 = vsub.f32 %v5850, %v6189
  %v6256 = vsub.f32 %v5853, %v6189
  %v6257 = vadd.f32 %v6192, 0.8
  %v6258 = vrsqrt.pop %v6257
  %v6259 = vmul.f32 %v6193, %v6258
  %v6260 = vmul.f32 %v6194, %v6258
  %v6261 = vmul.f32 %v6195, %v6258
  %v6262 = vmul.f32 %v6196, %v6258
  %v6263 = vmul.f32 %v6197, %v6258
  %v6264 = vmul.f32 %v6198, %v6258
  %v6265 = vmul.f32 %v6199, %v6258
  %v6266 = vmul.f32 %v6200, %v6258
  %v6267 = vmul.f32 %v6201, %v6258
  %v6268 = vmul.f32 %v6202, %v6258
  %v6269 = vmul.f32 %v6203, %v6258
  %v6270 = vmul.f32 %v6204, %v6258
  %v6271 = vmul.f32 %v6205, %v6258
  %v6272 = vmul.f32 %v6206, %v6258
  %v6273 = vmul.f32 %v6207, %v6258
  %v6274 = vmul.f32 %v6208, %v6258
  %v6275 = vmul.f32 %v6209, %v6258
  %v6276 = vmul.f32 %v6210, %v6258
  %v6277 = vmul.f32 %v6211, %v6258
  %v6278 = vmul.f32 %v6212, %v6258
  %v6279 = vmul.f32 %v6213, %v6258
  %v6280 = vmul.f32 %v6214, %v6258
  %v6281 = vmul.f32 %v6215, %v6258
  %v6282 = vmul.f32 %v6216, %v6258
  %v6283 = vmul.f32 %v6217, %v6258
  %v6284 = vmul.f32 %v6218, %v6258
  %v6285 = vmul.f32 %v6219, %v6258
  %v6286 = vmul.f32 %v6220, %v6258
  %v6287 = vmul.f32 %v6221, %v6258
  %v6288 = vmul.f32 %v6222, %v6258
  %v6289 = vmul.f32 %v6223, %v6258
  %v6290 = vmul.f32 %v6224, %v6258
  %v6291 = vmul.f32 %v6225, %v6258
  %v6292 = vmul.f32 %v6226, %v6258
  %v6293 = vmul.f32 %v6227, %v6258
  %v6294 = vmul.f32 %v6228, %v6258
  %v6295 = vmul.f32 %v6229, %v6258
  %v6296 = vmul.f32 %v6230, %v6258
  %v6297 = vmul.f32 %v6231, %v6258
  %v6298 = vmul.f32 %v6232, %v6258
  %v6299 = vmul.f32 %v6233, %v6258
  %v6300 = vmul.f32 %v6234, %v6258
  %v6301 = vmul.f32 %v6235, %v6258
  %v6302 = vmul.f32 %v6236, %v6258
  %v6303 = vmul.f32 %v6237, %v6258
  %v6304 = vmul.f32 %v6238, %v6258
  %v6305 = vmul.f32 %v6239, %v6258
  %v6306 = vmul.f32 %v6240, %v6258
  %v6307 = vmul.f32 %v6241, %v6258
  %v6308 = vmul.f32 %v6242, %v6258
  %v6309 = vmul.f32 %v6243, %v6258
  %v6310 = vmul.f32 %v6244, %v6258
  %v6311 = vmul.f32 %v6245, %v6258
  %v6312 = vmul.f32 %v6246, %v6258
  %v6313 = vmul.f32 %v6247, %v6258
  %v6314 = vmul.f32 %v6248, %v6258
  %v6315 = vmul.f32 %v6249, %v6258
  %v6316 = vmul.f32 %v6250, %v6258
  %v6317 = vmul.f32 %v6251, %v6258
  %v6318 = vmul.f32 %v6252, %v6258
  %v6319 = vmul.f32 %v6253, %v6258
  %v6320 = vmul.f32 %v6254, %v6258
  %v6321 = vmul.f32 %v6255, %v6258
  %v6322 = vmul.f32 %v6256, %v6258
  %v6324 = vlaneseq
  %v6325 = vshrl.u32 %v6324, 7
  %v6326 = vsub.s32 0, %v6325
  %v6327 = vrot.slane %v5856, %v6326
  %v6329 = vmul.f32 %v6259, %v6327
  %v6330 = vmul.f32 %v6260, %v6327
  %v6331 = vmul.f32 %v6261, %v6327
  %v6332 = vmul.f32 %v6262, %v6327
  %v6333 = vmul.f32 %v6263, %v6327
  %v6334 = vmul.f32 %v6264, %v6327
  %v6335 = vmul.f32 %v6265, %v6327
  %v6336 = vmul.f32 %v6266, %v6327
  %v6337 = vmul.f32 %v6267, %v6327
  %v6338 = vmul.f32 %v6268, %v6327
  %v6339 = vmul.f32 %v6269, %v6327
  %v6340 = vmul.f32 %v6270, %v6327
  %v6341 = vmul.f32 %v6271, %v6327
  %v6342 = vmul.f32 %v6272, %v6327
  %v6343 = vmul.f32 %v6273, %v6327
  %v6344 = vmul.f32 %v6274, %v6327
  %v6345 = vmul.f32 %v6275, %v6327
  %v6346 = vmul.f32 %v6276, %v6327
  %v6347 = vmul.f32 %v6277, %v6327
  %v6348 = vmul.f32 %v6278, %v6327
  %v6349 = vmul.f32 %v6279, %v6327
  %v6350 = vmul.f32 %v6280, %v6327
  %v6351 = vmul.f32 %v6281, %v6327
  %v6352 = vmul.f32 %v6282, %v6327
  %v6353 = vmul.f32 %v6283, %v6327
  %v6354 = vmul.f32 %v6284, %v6327
  %v6355 = vmul.f32 %v6285, %v6327
  %v6356 = vmul.f32 %v6286, %v6327
  %v6357 = vmul.f32 %v6287, %v6327
  %v6358 = vmul.f32 %v6288, %v6327
  %v6359 = vmul.f32 %v6289, %v6327
  %v6360 = vmul.f32 %v6290, %v6327
  %v6361 = vmul.f32 %v6291, %v6327
  %v6362 = vmul.f32 %v6292, %v6327
  %v6363 = vmul.f32 %v6293, %v6327
  %v6364 = vmul.f32 %v6294, %v6327
  %v6365 = vmul.f32 %v6295, %v6327
  %v6366 = vmul.f32 %v6296, %v6327
  %v6367 = vmul.f32 %v6297, %v6327
  %v6368 = vmul.f32 %v6298, %v6327
  %v6369 = vmul.f32 %v6299, %v6327
  %v6370 = vmul.f32 %v6300, %v6327
  %v6371 = vmul.f32 %v6301, %v6327
  %v6372 = vmul.f32 %v6302, %v6327
  %v6373 = vmul.f32 %v6303, %v6327
  %v6374 = vmul.f32 %v6304, %v6327
  %v6375 = vmul.f32 %v6305, %v6327
  %v6376 = vmul.f32 %v6306, %v6327
  %v6377 = vmul.f32 %v6307, %v6327
  %v6378 = vmul.f32 %v6308, %v6327
  %v6379 = vmul.f32 %v6309, %v6327
  %v6380 = vmul.f32 %v6310, %v6327
  %v6381 = vmul.f32 %v6311, %v6327
  %v6382 = vmul.f32 %v6312, %v6327
  %v6383 = vmul.f32 %v6313, %v6327
  %v6384 = vmul.f32 %v6314, %v6327
  %v6385 = vmul.f32 %v6315, %v6327
  %v6386 = vmul.f32 %v6316, %v6327
  %v6387 = vmul.f32 %v6317, %v6327
  %v6388 = vmul.f32 %v6318, %v6327
  %v6389 = vmul.f32 %v6319, %v6327
  %v6390 = vmul.f32 %v6320, %v6327
  %v6391 = vmul.f32 %v6321, %v6327
  %v6392 = vmul.f32 %v6322, %v6327
  %v6394 = vlaneseq
  %v6395 = vshrl.u32 %v6394, 7
  %v6396 = vsub.s32 0, %v6395
  %v6397 = vrot.slane %v5857, %v6396
  %v6399 = vadd.f32 %v6329, %v6397
  %v6400 = vadd.f32 %v6330, %v6397
  %v6401 = vadd.f32 %v6331, %v6397
  %v6402 = vadd.f32 %v6332, %v6397
  %v6403 = vadd.f32 %v6333, %v6397
  %v6404 = vadd.f32 %v6334, %v6397
  %v6405 = vadd.f32 %v6335, %v6397
  %v6406 = vadd.f32 %v6336, %v6397
  %v6407 = vadd.f32 %v6337, %v6397
  %v6408 = vadd.f32 %v6338, %v6397
  %v6409 = vadd.f32 %v6339, %v6397
  %v6410 = vadd.f32 %v6340, %v6397
  %v6411 = vadd.f32 %v6341, %v6397
  %v6412 = vadd.f32 %v6342, %v6397
  %v6413 = vadd.f32 %v6343, %v6397
  %v6414 = vadd.f32 %v6344, %v6397
  %v6415 = vadd.f32 %v6345, %v6397
  %v6416 = vadd.f32 %v6346, %v6397
  %v6417 = vadd.f32 %v6347, %v6397
  %v6418 = vadd.f32 %v6348, %v6397
  %v6419 = vadd.f32 %v6349, %v6397
  %v6420 = vadd.f32 %v6350, %v6397
  %v6421 = vadd.f32 %v6351, %v6397
  %v6422 = vadd.f32 %v6352, %v6397
  %v6423 = vadd.f32 %v6353, %v6397
  %v6424 = vadd.f32 %v6354, %v6397
  %v6425 = vadd.f32 %v6355, %v6397
  %v6426 = vadd.f32 %v6356, %v6397
  %v6427 = vadd.f32 %v6357, %v6397
  %v6428 = vadd.f32 %v6358, %v6397
  %v6429 = vadd.f32 %v6359, %v6397
  %v6430 = vadd.f32 %v6360, %v6397
  %v6431 = vadd.f32 %v6361, %v6397
  %v6432 = vadd.f32 %v6362, %v6397
  %v6433 = vadd.f32 %v6363, %v6397
  %v6434 = vadd.f32 %v6364, %v6397
  %v6435 = vadd.f32 %v6365, %v6397
  %v6436 = vadd.f32 %v6366, %v6397
  %v6437 = vadd.f32 %v6367, %v6397
  %v6438 = vadd.f32 %v6368, %v6397
  %v6439 = vadd.f32 %v6369, %v6397
  %v6440 = vadd.f32 %v6370, %v6397
  %v6441 = vadd.f32 %v6371, %v6397
  %v6442 = vadd.f32 %v6372, %v6397
  %v6443 = vadd.f32 %v6373, %v6397
  %v6444 = vadd.f32 %v6374, %v6397
  %v6445 = vadd.f32 %v6375, %v6397
  %v6446 = vadd.f32 %v6376, %v6397
  %v6447 = vadd.f32 %v6377, %v6397
  %v6448 = vadd.f32 %v6378, %v6397
  %v6449 = vadd.f32 %v6379, %v6397
  %v6450 = vadd.f32 %v6380, %v6397
  %v6451 = vadd.f32 %v6381, %v6397
  %v6452 = vadd.f32 %v6382, %v6397
  %v6453 = vadd.f32 %v6383, %v6397
  %v6454 = vadd.f32 %v6384, %v6397
  %v6455 = vadd.f32 %v6385, %v6397
  %v6456 = vadd.f32 %v6386, %v6397
  %v6457 = vadd.f32 %v6387, %v6397
  %v6458 = vadd.f32 %v6388, %v6397
  %v6459 = vadd.f32 %v6389, %v6397
  %v6460 = vadd.f32 %v6390, %v6397
  %v6461 = vadd.f32 %v6391, %v6397
  %v6462 = vadd.f32 %v6392, %v6397
  %vm6463 = vcmp.gt.f32.partialorder %v6399, 0.0
  %vm6464 = vcmp.gt.f32.partialorder %v6400, 0.0
  %vm6465 = vcmp.gt.f32.partialorder %v6401, 0.0
  %vm6466 = vcmp.gt.f32.partialorder %v6402, 0.0
  %vm6467 = vcmp.gt.f32.partialorder %v6403, 0.0
  %vm6468 = vcmp.gt.f32.partialorder %v6404, 0.0
  %vm6469 = vcmp.gt.f32.partialorder %v6405, 0.0
  %vm6470 = vcmp.gt.f32.partialorder %v6406, 0.0
  %vm6471 = vcmp.gt.f32.partialorder %v6407, 0.0
  %vm6472 = vcmp.gt.f32.partialorder %v6408, 0.0
  %vm6473 = vcmp.gt.f32.partialorder %v6409, 0.0
  %vm6474 = vcmp.gt.f32.partialorder %v6410, 0.0
  %vm6475 = vcmp.gt.f32.partialorder %v6411, 0.0
  %vm6476 = vcmp.gt.f32.partialorder %v6412, 0.0
  %vm6477 = vcmp.gt.f32.partialorder %v6413, 0.0
  %vm6478 = vcmp.gt.f32.partialorder %v6414, 0.0
  %vm6479 = vcmp.gt.f32.partialorder %v6415, 0.0
  %vm6480 = vcmp.gt.f32.partialorder %v6416, 0.0
  %vm6481 = vcmp.gt.f32.partialorder %v6417, 0.0
  %vm6482 = vcmp.gt.f32.partialorder %v6418, 0.0
  %vm6483 = vcmp.gt.f32.partialorder %v6419, 0.0
  %vm6484 = vcmp.gt.f32.partialorder %v6420, 0.0
  %vm6485 = vcmp.gt.f32.partialorder %v6421, 0.0
  %vm6486 = vcmp.gt.f32.partialorder %v6422, 0.0
  %vm6487 = vcmp.gt.f32.partialorder %v6423, 0.0
  %vm6488 = vcmp.gt.f32.partialorder %v6424, 0.0
  %vm6489 = vcmp.gt.f32.partialorder %v6425, 0.0
  %vm6490 = vcmp.gt.f32.partialorder %v6426, 0.0
  %vm6491 = vcmp.gt.f32.partialorder %v6427, 0.0
  %vm6492 = vcmp.gt.f32.partialorder %v6428, 0.0
  %vm6493 = vcmp.gt.f32.partialorder %v6429, 0.0
  %vm6494 = vcmp.gt.f32.partialorder %v6430, 0.0
  %vm6495 = vcmp.gt.f32.partialorder %v6431, 0.0
  %vm6496 = vcmp.gt.f32.partialorder %v6432, 0.0
  %vm6497 = vcmp.gt.f32.partialorder %v6433, 0.0
  %vm6498 = vcmp.gt.f32.partialorder %v6434, 0.0
  %vm6499 = vcmp.gt.f32.partialorder %v6435, 0.0
  %vm6500 = vcmp.gt.f32.partialorder %v6436, 0.0
  %vm6501 = vcmp.gt.f32.partialorder %v6437, 0.0
  %vm6502 = vcmp.gt.f32.partialorder %v6438, 0.0
  %vm6503 = vcmp.gt.f32.partialorder %v6439, 0.0
  %vm6504 = vcmp.gt.f32.partialorder %v6440, 0.0
  %vm6505 = vcmp.gt.f32.partialorder %v6441, 0.0
  %vm6506 = vcmp.gt.f32.partialorder %v6442, 0.0
  %vm6507 = vcmp.gt.f32.partialorder %v6443, 0.0
  %vm6508 = vcmp.gt.f32.partialorder %v6444, 0.0
  %vm6509 = vcmp.gt.f32.partialorder %v6445, 0.0
  %vm6510 = vcmp.gt.f32.partialorder %v6446, 0.0
  %vm6511 = vcmp.gt.f32.partialorder %v6447, 0.0
  %vm6512 = vcmp.gt.f32.partialorder %v6448, 0.0
  %vm6513 = vcmp.gt.f32.partialorder %v6449, 0.0
  %vm6514 = vcmp.gt.f32.partialorder %v6450, 0.0
  %vm6515 = vcmp.gt.f32.partialorder %v6451, 0.0
  %vm6516 = vcmp.gt.f32.partialorder %v6452, 0.0
  %vm6517 = vcmp.gt.f32.partialorder %v6453, 0.0
  %vm6518 = vcmp.gt.f32.partialorder %v6454, 0.0
  %vm6519 = vcmp.gt.f32.partialorder %v6455, 0.0
  %vm6520 = vcmp.gt.f32.partialorder %v6456, 0.0
  %vm6521 = vcmp.gt.f32.partialorder %v6457, 0.0
  %vm6522 = vcmp.gt.f32.partialorder %v6458, 0.0
  %vm6523 = vcmp.gt.f32.partialorder %v6459, 0.0
  %vm6524 = vcmp.gt.f32.partialorder %v6460, 0.0
  %vm6525 = vcmp.gt.f32.partialorder %v6461, 0.0
  %vm6526 = vcmp.gt.f32.partialorder %v6462, 0.0
  %v6527 = vmul.f32 %v6399, 0.2
  %v6528 = vmul.f32 %v6400, 0.2
  %v6529 = vmul.f32 %v6401, 0.2
  %v6530 = vmul.f32 %v6402, 0.2
  %v6531 = vmul.f32 %v6403, 0.2
  %v6532 = vmul.f32 %v6404, 0.2
  %v6533 = vmul.f32 %v6405, 0.2
  %v6534 = vmul.f32 %v6406, 0.2
  %v6535 = vmul.f32 %v6407, 0.2
  %v6536 = vmul.f32 %v6408, 0.2
  %v6537 = vmul.f32 %v6409, 0.2
  %v6538 = vmul.f32 %v6410, 0.2
  %v6539 = vmul.f32 %v6411, 0.2
  %v6540 = vmul.f32 %v6412, 0.2
  %v6541 = vmul.f32 %v6413, 0.2
  %v6542 = vmul.f32 %v6414, 0.2
  %v6543 = vmul.f32 %v6415, 0.2
  %v6544 = vmul.f32 %v6416, 0.2
  %v6545 = vmul.f32 %v6417, 0.2
  %v6546 = vmul.f32 %v6418, 0.2
  %v6547 = vmul.f32 %v6419, 0.2
  %v6548 = vmul.f32 %v6420, 0.2
  %v6549 = vmul.f32 %v6421, 0.2
  %v6550 = vmul.f32 %v6422, 0.2
  %v6551 = vmul.f32 %v6423, 0.2
  %v6552 = vmul.f32 %v6424, 0.2
  %v6553 = vmul.f32 %v6425, 0.2
  %v6554 = vmul.f32 %v6426, 0.2
  %v6555 = vmul.f32 %v6427, 0.2
  %v6556 = vmul.f32 %v6428, 0.2
  %v6557 = vmul.f32 %v6429, 0.2
  %v6558 = vmul.f32 %v6430, 0.2
  %v6559 = vmul.f32 %v6431, 0.2
  %v6560 = vmul.f32 %v6432, 0.2
  %v6561 = vmul.f32 %v6433, 0.2
  %v6562 = vmul.f32 %v6434, 0.2
  %v6563 = vmul.f32 %v6435, 0.2
  %v6564 = vmul.f32 %v6436, 0.2
  %v6565 = vmul.f32 %v6437, 0.2
  %v6566 = vmul.f32 %v6438, 0.2
  %v6567 = vmul.f32 %v6439, 0.2
  %v6568 = vmul.f32 %v6440, 0.2
  %v6569 = vmul.f32 %v6441, 0.2
  %v6570 = vmul.f32 %v6442, 0.2
  %v6571 = vmul.f32 %v6443, 0.2
  %v6572 = vmul.f32 %v6444, 0.2
  %v6573 = vmul.f32 %v6445, 0.2
  %v6574 = vmul.f32 %v6446, 0.2
  %v6575 = vmul.f32 %v6447, 0.2
  %v6576 = vmul.f32 %v6448, 0.2
  %v6577 = vmul.f32 %v6449, 0.2
  %v6578 = vmul.f32 %v6450, 0.2
  %v6579 = vmul.f32 %v6451, 0.2
  %v6580 = vmul.f32 %v6452, 0.2
  %v6581 = vmul.f32 %v6453, 0.2
  %v6582 = vmul.f32 %v6454, 0.2
  %v6583 = vmul.f32 %v6455, 0.2
  %v6584 = vmul.f32 %v6456, 0.2
  %v6585 = vmul.f32 %v6457, 0.2
  %v6586 = vmul.f32 %v6458, 0.2
  %v6587 = vmul.f32 %v6459, 0.2
  %v6588 = vmul.f32 %v6460, 0.2
  %v6589 = vmul.f32 %v6461, 0.2
  %v6590 = vmul.f32 %v6462, 0.2
  %v6591 = vsel %vm6463, %v6399, %v6527
  %v6592 = vsel %vm6464, %v6400, %v6528
  %v6593 = vsel %vm6465, %v6401, %v6529
  %v6594 = vsel %vm6466, %v6402, %v6530
  %v6595 = vsel %vm6467, %v6403, %v6531
  %v6596 = vsel %vm6468, %v6404, %v6532
  %v6597 = vsel %vm6469, %v6405, %v6533
  %v6598 = vsel %vm6470, %v6406, %v6534
  %v6599 = vsel %vm6471, %v6407, %v6535
  %v6600 = vsel %vm6472, %v6408, %v6536
  %v6601 = vsel %vm6473, %v6409, %v6537
  %v6602 = vsel %vm6474, %v6410, %v6538
  %v6603 = vsel %vm6475, %v6411, %v6539
  %v6604 = vsel %vm6476, %v6412, %v6540
  %v6605 = vsel %vm6477, %v6413, %v6541
  %v6606 = vsel %vm6478, %v6414, %v6542
  %v6607 = vsel %vm6479, %v6415, %v6543
  %v6608 = vsel %vm6480, %v6416, %v6544
  %v6609 = vsel %vm6481, %v6417, %v6545
  %v6610 = vsel %vm6482, %v6418, %v6546
  %v6611 = vsel %vm6483, %v6419, %v6547
  %v6612 = vsel %vm6484, %v6420, %v6548
  %v6613 = vsel %vm6485, %v6421, %v6549
  %v6614 = vsel %vm6486, %v6422, %v6550
  %v6615 = vsel %vm6487, %v6423, %v6551
  %v6616 = vsel %vm6488, %v6424, %v6552
  %v6617 = vsel %vm6489, %v6425, %v6553
  %v6618 = vsel %vm6490, %v6426, %v6554
  %v6619 = vsel %vm6491, %v6427, %v6555
  %v6620 = vsel %vm6492, %v6428, %v6556
  %v6621 = vsel %vm6493, %v6429, %v6557
  %v6622 = vsel %vm6494, %v6430, %v6558
  %v6623 = vsel %vm6495, %v6431, %v6559
  %v6624 = vsel %vm6496, %v6432, %v6560
  %v6625 = vsel %vm6497, %v6433, %v6561
  %v6626 = vsel %vm6498, %v6434, %v6562
  %v6627 = vsel %vm6499, %v6435, %v6563
  %v6628 = vsel %vm6500, %v6436, %v6564
  %v6629 = vsel %vm6501, %v6437, %v6565
  %v6630 = vsel %vm6502, %v6438, %v6566
  %v6631 = vsel %vm6503, %v6439, %v6567
  %v6632 = vsel %vm6504, %v6440, %v6568
  %v6633 = vsel %vm6505, %v6441, %v6569
  %v6634 = vsel %vm6506, %v6442, %v6570
  %v6635 = vsel %vm6507, %v6443, %v6571
  %v6636 = vsel %vm6508, %v6444, %v6572
  %v6637 = vsel %vm6509, %v6445, %v6573
  %v6638 = vsel %vm6510, %v6446, %v6574
  %v6639 = vsel %vm6511, %v6447, %v6575
  %v6640 = vsel %vm6512, %v6448, %v6576
  %v6641 = vsel %vm6513, %v6449, %v6577
  %v6642 = vsel %vm6514, %v6450, %v6578
  %v6643 = vsel %vm6515, %v6451, %v6579
  %v6644 = vsel %vm6516, %v6452, %v6580
  %v6645 = vsel %vm6517, %v6453, %v6581
  %v6646 = vsel %vm6518, %v6454, %v6582
  %v6647 = vsel %vm6519, %v6455, %v6583
  %v6648 = vsel %vm6520, %v6456, %v6584
  %v6649 = vsel %vm6521, %v6457, %v6585
  %v6650 = vsel %vm6522, %v6458, %v6586
  %v6651 = vsel %vm6523, %v6459, %v6587
  %v6652 = vsel %vm6524, %v6460, %v6588
  %v6653 = vsel %vm6525, %v6461, %v6589
  %v6654 = vsel %vm6526, %v6462, %v6590
  %6655 = vst.msk [vmem:[#allocation4] sm:$0xff] %vm5858, 0.0
  %6656 = vst.msk [vmem:[#allocation4 + $0x8] sm:$0xff] %vm5858, 0.0
  %vm6657 = vcmask 123904
  %6658 = vst.msk [vmem:[#allocation4 + $0x10] sm:$0x3] %vm6657, 0.0
  %6659 = vst.msk [vmem:[#allocation4 + $0x18] sm:$0xff] %vm5858, 0.0
  %6660 = vst.msk [vmem:[#allocation4 + $0x20] sm:$0xff] %vm5858, 0.0
  %6661 = vst.msk [vmem:[#allocation4 + $0x28] sm:$0x3] %vm6657, 0.0
  %6662 = vst.msk [vmem:[#allocation4 + $0x30] sm:$0xff] %vm5858, 0.0
  %6663 = vst.msk [vmem:[#allocation4 + $0x38] sm:$0xff] %vm5858, 0.0
  %6664 = vst.msk [vmem:[#allocation4 + $0x40] sm:$0x3] %vm6657, 0.0
  %6665 = vst.msk [vmem:[#allocation4 + $0x48] sm:$0xff] %vm5858, 0.0
  %6666 = vst.msk [vmem:[#allocation4 + $0x50] sm:$0xff] %vm5858, 0.0
  %6667 = vst.msk [vmem:[#allocation4 + $0x58] sm:$0x3] %vm6657, 0.0
  %6668 = vst.msk [vmem:[#allocation4 + $0x60] sm:$0xff] %vm5858, 0.0
  %6669 = vst.msk [vmem:[#allocation4 + $0x68] sm:$0xff] %vm5858, 0.0
  %6670 = vst.msk [vmem:[#allocation4 + $0x70] sm:$0x3] %vm6657, 0.0
  %6671 = vst.msk [vmem:[#allocation4 + $0x78] sm:$0xff] %vm5858, 0.0
  %6672 = vst.msk [vmem:[#allocation4 + $0x80] sm:$0xff] %vm5858, 0.0
  %6673 = vst.msk [vmem:[#allocation4 + $0x88] sm:$0x3] %vm6657, 0.0
  %6674 = vst.msk [vmem:[#allocation4 + $0x90] sm:$0xff] %vm5858, 0.0
  %6675 = vst.msk [vmem:[#allocation4 + $0x98] sm:$0xff] %vm5858, 0.0
  %6676 = vst.msk [vmem:[#allocation4 + $0xa0] sm:$0x3] %vm6657, 0.0
  %6677 = vst.msk [vmem:[#allocation4 + $0xa8] sm:$0xff] %vm5858, 0.0
  %6678 = vst.msk [vmem:[#allocation4 + $0xb0] sm:$0xff] %vm5858, 0.0
  %6679 = vst.msk [vmem:[#allocation4 + $0xb8] sm:$0x3] %vm6657, 0.0
  %6680 = vst.msk [vmem:[#allocation4 + $0xc0] sm:$0xff] %vm5858, 0.0
  %6681 = vst.msk [vmem:[#allocation4 + $0xc8] sm:$0xff] %vm5858, 0.0
  %6682 = vst.msk [vmem:[#allocation4 + $0xd0] sm:$0x3] %vm6657, 0.0
  %6683 = vst.msk [vmem:[#allocation4 + $0xd8] sm:$0xff] %vm5858, 0.0
  %6684 = vst.msk [vmem:[#allocation4 + $0xe0] sm:$0xff] %vm5858, 0.0
  %6685 = vst.msk [vmem:[#allocation4 + $0xe8] sm:$0x3] %vm6657, 0.0
  %6686 = vst.msk [vmem:[#allocation4 + $0xf0] sm:$0xff] %vm5858, 0.0
  %6687 = vst.msk [vmem:[#allocation4 + $0xf8] sm:$0xff] %vm5858, 0.0
  %6688 = vst.msk [vmem:[#allocation4 + $0x100] sm:$0x3] %vm6657, 0.0
  %6689 = vst.msk [vmem:[#allocation4 + $0x108] sm:$0xff] %vm5858, 0.0
  %6690 = vst.msk [vmem:[#allocation4 + $0x110] sm:$0xff] %vm5858, 0.0
  %6691 = vst.msk [vmem:[#allocation4 + $0x118] sm:$0x3] %vm6657, 0.0
  %6692 = vst.msk [vmem:[#allocation4 + $0x120] sm:$0xff] %vm5858, 0.0
  %6693 = vst.msk [vmem:[#allocation4 + $0x128] sm:$0xff] %vm5858, 0.0
  %6694 = vst.msk [vmem:[#allocation4 + $0x130] sm:$0x3] %vm6657, 0.0
  %6695 = vst.msk [vmem:[#allocation4 + $0x138] sm:$0xff] %vm5858, 0.0
  %6696 = vst.msk [vmem:[#allocation4 + $0x140] sm:$0xff] %vm5858, 0.0
  %6697 = vst.msk [vmem:[#allocation4 + $0x148] sm:$0x3] %vm6657, 0.0
  %6698 = vst.msk [vmem:[#allocation4 + $0x150] sm:$0xff] %vm5858, 0.0
  %6699 = vst.msk [vmem:[#allocation4 + $0x158] sm:$0xff] %vm5858, 0.0
  %6700 = vst.msk [vmem:[#allocation4 + $0x160] sm:$0x3] %vm6657, 0.0
  %6701 = vst.msk [vmem:[#allocation4 + $0x168] sm:$0xff] %vm5858, 0.0
  %6702 = vst.msk [vmem:[#allocation4 + $0x170] sm:$0xff] %vm5858, 0.0
  %6703 = vst.msk [vmem:[#allocation4 + $0x178] sm:$0x3] %vm6657, 0.0
  %6704 = vst.msk [vmem:[#allocation4 + $0x180] sm:$0xff] %vm5858, 0.0
  %6705 = vst.msk [vmem:[#allocation4 + $0x188] sm:$0xff] %vm5858, 0.0
  %6706 = vst.msk [vmem:[#allocation4 + $0x190] sm:$0x3] %vm6657, 0.0
  %6707 = vst.msk [vmem:[#allocation4 + $0x198] sm:$0xff] %vm5858, 0.0
  %6708 = vst.msk [vmem:[#allocation4 + $0x1a0] sm:$0xff] %vm5858, 0.0
  %6709 = vst.msk [vmem:[#allocation4 + $0x1a8] sm:$0x3] %vm6657, 0.0
  %6710 = vst.msk [vmem:[#allocation4 + $0x1b0] sm:$0xff] %vm5858, 0.0
  %6711 = vst.msk [vmem:[#allocation4 + $0x1b8] sm:$0xff] %vm5858, 0.0
  %6712 = vst.msk [vmem:[#allocation4 + $0x1c0] sm:$0x3] %vm6657, 0.0
  %6713 = vst.msk [vmem:[#allocation4 + $0x1c8] sm:$0xff] %vm5858, 0.0
  %6714 = vst.msk [vmem:[#allocation4 + $0x1d0] sm:$0xff] %vm5858, 0.0
  %6715 = vst.msk [vmem:[#allocation4 + $0x1d8] sm:$0x3] %vm6657, 0.0
  %6716 = vst.msk [vmem:[#allocation4 + $0x1e0] sm:$0xff] %vm5858, 0.0
  %6717 = vst.msk [vmem:[#allocation4 + $0x1e8] sm:$0xff] %vm5858, 0.0
  %6718 = vst.msk [vmem:[#allocation4 + $0x1f0] sm:$0x3] %vm6657, 0.0
  %6719 = vst.msk [vmem:[#allocation4 + $0x1f8] sm:$0xff] %vm5858, 0.0
  %6720 = vst.msk [vmem:[#allocation4 + $0x200] sm:$0xff] %vm5858, 0.0
  %6721 = vst.msk [vmem:[#allocation4 + $0x208] sm:$0x3] %vm6657, 0.0
  %6722 = vst.msk [vmem:[#allocation4 + $0x210] sm:$0xff] %vm5858, 0.0
  %6723 = vst.msk [vmem:[#allocation4 + $0x218] sm:$0xff] %vm5858, 0.0
  %6724 = vst.msk [vmem:[#allocation4 + $0x220] sm:$0x3] %vm6657, 0.0
  %6725 = vst.msk [vmem:[#allocation4 + $0x228] sm:$0xff] %vm5858, 0.0
  %6726 = vst.msk [vmem:[#allocation4 + $0x230] sm:$0xff] %vm5858, 0.0
  %6727 = vst.msk [vmem:[#allocation4 + $0x238] sm:$0x3] %vm6657, 0.0
  %6728 = vst.msk [vmem:[#allocation4 + $0x240] sm:$0xff] %vm5858, 0.0
  %6729 = vst.msk [vmem:[#allocation4 + $0x248] sm:$0xff] %vm5858, 0.0
  %6730 = vst.msk [vmem:[#allocation4 + $0x250] sm:$0x3] %vm6657, 0.0
  %6731 = vst.msk [vmem:[#allocation4 + $0x258] sm:$0xff] %vm5858, 0.0
  %6732 = vst.msk [vmem:[#allocation4 + $0x260] sm:$0xff] %vm5858, 0.0
  %6733 = vst.msk [vmem:[#allocation4 + $0x268] sm:$0x3] %vm6657, 0.0
  %6734 = vst.msk [vmem:[#allocation4 + $0x270] sm:$0xff] %vm5858, 0.0
  %6735 = vst.msk [vmem:[#allocation4 + $0x278] sm:$0xff] %vm5858, 0.0
  %6736 = vst.msk [vmem:[#allocation4 + $0x280] sm:$0x3] %vm6657, 0.0
  %6737 = vst.msk [vmem:[#allocation4 + $0x288] sm:$0xff] %vm5858, 0.0
  %6738 = vst.msk [vmem:[#allocation4 + $0x290] sm:$0xff] %vm5858, 0.0
  %6739 = vst.msk [vmem:[#allocation4 + $0x298] sm:$0x3] %vm6657, 0.0
  %6740 = vst.msk [vmem:[#allocation4 + $0x2a0] sm:$0xff] %vm5858, 0.0
  %6741 = vst.msk [vmem:[#allocation4 + $0x2a8] sm:$0xff] %vm5858, 0.0
  %6742 = vst.msk [vmem:[#allocation4 + $0x2b0] sm:$0x3] %vm6657, 0.0
  %6743 = vst.msk [vmem:[#allocation4 + $0x2b8] sm:$0xff] %vm5858, 0.0
  %6744 = vst.msk [vmem:[#allocation4 + $0x2c0] sm:$0xff] %vm5858, 0.0
  %6745 = vst.msk [vmem:[#allocation4 + $0x2c8] sm:$0x3] %vm6657, 0.0
  %6746 = vst.msk [vmem:[#allocation4 + $0x2d0] sm:$0xff] %vm5858, 0.0
  %6747 = vst.msk [vmem:[#allocation4 + $0x2d8] sm:$0xff] %vm5858, 0.0
  %6748 = vst.msk [vmem:[#allocation4 + $0x2e0] sm:$0x3] %vm6657, 0.0
  %6749 = vst.msk [vmem:[#allocation4 + $0x2e8] sm:$0xff] %vm5858, 0.0
  %6750 = vst.msk [vmem:[#allocation4 + $0x2f0] sm:$0xff] %vm5858, 0.0
  %6751 = vst.msk [vmem:[#allocation4 + $0x2f8] sm:$0x3] %vm6657, 0.0
  %6752 = vst.msk [vmem:[#allocation4 + $0x300] sm:$0xff] %vm5858, 0.0
  %6753 = vst.msk [vmem:[#allocation4 + $0x308] sm:$0xff] %vm5858, 0.0
  %6754 = vst.msk [vmem:[#allocation4 + $0x310] sm:$0x3] %vm6657, 0.0
  %6755 = vst.msk [vmem:[#allocation4 + $0x318] sm:$0xff] %vm5858, 0.0
  %6756 = vst.msk [vmem:[#allocation4 + $0x320] sm:$0xff] %vm5858, 0.0
  %6757 = vst.msk [vmem:[#allocation4 + $0x328] sm:$0x3] %vm6657, 0.0
  %6758 = vst.msk [vmem:[#allocation4 + $0x330] sm:$0xff] %vm5858, 0.0
  %6759 = vst.msk [vmem:[#allocation4 + $0x338] sm:$0xff] %vm5858, 0.0
  %6760 = vst.msk [vmem:[#allocation4 + $0x340] sm:$0x3] %vm6657, 0.0
  %6761 = vst.msk [vmem:[#allocation4 + $0x348] sm:$0xff] %vm5858, 0.0
  %6762 = vst.msk [vmem:[#allocation4 + $0x350] sm:$0xff] %vm5858, 0.0
  %6763 = vst.msk [vmem:[#allocation4 + $0x358] sm:$0x3] %vm6657, 0.0
  %s6764 = scalar_lea.vmem [#allocation4], 24
  %6765 = vst.msk [vmem:[%s6764 + $0x1] sm:$0xff] %vm5858, %v6591
  %6766 = vst.msk [vmem:[%s6764 + $0x9] sm:$0xff] %vm5858, %v6592
  %6767 = vst.msk [vmem:[%s6764 + $0x19] sm:$0xff] %vm5858, %v6593
  %6768 = vst.msk [vmem:[%s6764 + $0x21] sm:$0xff] %vm5858, %v6594
  %6769 = vst.msk [vmem:[%s6764 + $0x31] sm:$0xff] %vm5858, %v6595
  %6770 = vst.msk [vmem:[%s6764 + $0x39] sm:$0xff] %vm5858, %v6596
  %6771 = vst.msk [vmem:[%s6764 + $0x49] sm:$0xff] %vm5858, %v6597
  %6772 = vst.msk [vmem:[%s6764 + $0x51] sm:$0xff] %vm5858, %v6598
  %6773 = vst.msk [vmem:[%s6764 + $0x61] sm:$0xff] %vm5858, %v6599
  %6774 = vst.msk [vmem:[%s6764 + $0x69] sm:$0xff] %vm5858, %v6600
  %6775 = vst.msk [vmem:[%s6764 + $0x79] sm:$0xff] %vm5858, %v6601
  %6776 = vst.msk [vmem:[%s6764 + $0x81] sm:$0xff] %vm5858, %v6602
  %6777 = vst.msk [vmem:[%s6764 + $0x91] sm:$0xff] %vm5858, %v6603
  %6778 = vst.msk [vmem:[%s6764 + $0x99] sm:$0xff] %vm5858, %v6604
  %6779 = vst.msk [vmem:[%s6764 + $0xa9] sm:$0xff] %vm5858, %v6605
  %6780 = vst.msk [vmem:[%s6764 + $0xb1] sm:$0xff] %vm5858, %v6606
  %6781 = vst.msk [vmem:[%s6764 + $0xc1] sm:$0xff] %vm5858, %v6607
  %6782 = vst.msk [vmem:[%s6764 + $0xc9] sm:$0xff] %vm5858, %v6608
  %6783 = vst.msk [vmem:[%s6764 + $0xd9] sm:$0xff] %vm5858, %v6609
  %6784 = vst.msk [vmem:[%s6764 + $0xe1] sm:$0xff] %vm5858, %v6610
  %6785 = vst.msk [vmem:[%s6764 + $0xf1] sm:$0xff] %vm5858, %v6611
  %6786 = vst.msk [vmem:[%s6764 + $0xf9] sm:$0xff] %vm5858, %v6612
  %6787 = vst.msk [vmem:[%s6764 + $0x109] sm:$0xff] %vm5858, %v6613
  %6788 = vst.msk [vmem:[%s6764 + $0x111] sm:$0xff] %vm5858, %v6614
  %6789 = vst.msk [vmem:[%s6764 + $0x121] sm:$0xff] %vm5858, %v6615
  %6790 = vst.msk [vmem:[%s6764 + $0x129] sm:$0xff] %vm5858, %v6616
  %6791 = vst.msk [vmem:[%s6764 + $0x139] sm:$0xff] %vm5858, %v6617
  %6792 = vst.msk [vmem:[%s6764 + $0x141] sm:$0xff] %vm5858, %v6618
  %6793 = vst.msk [vmem:[%s6764 + $0x151] sm:$0xff] %vm5858, %v6619
  %6794 = vst.msk [vmem:[%s6764 + $0x159] sm:$0xff] %vm5858, %v6620
  %6795 = vst.msk [vmem:[%s6764 + $0x169] sm:$0xff] %vm5858, %v6621
  %6796 = vst.msk [vmem:[%s6764 + $0x171] sm:$0xff] %vm5858, %v6622
  %6797 = vst.msk [vmem:[%s6764 + $0x1b1] sm:$0xff] %vm5858, %v6623
  %6798 = vst.msk [vmem:[%s6764 + $0x1b9] sm:$0xff] %vm5858, %v6624
  %6799 = vst.msk [vmem:[%s6764 + $0x1c9] sm:$0xff] %vm5858, %v6625
  %6800 = vst.msk [vmem:[%s6764 + $0x1d1] sm:$0xff] %vm5858, %v6626
  %6801 = vst.msk [vmem:[%s6764 + $0x1e1] sm:$0xff] %vm5858, %v6627
  %6802 = vst.msk [vmem:[%s6764 + $0x1e9] sm:$0xff] %vm5858, %v6628
  %6803 = vst.msk [vmem:[%s6764 + $0x1f9] sm:$0xff] %vm5858, %v6629
  %6804 = vst.msk [vmem:[%s6764 + $0x201] sm:$0xff] %vm5858, %v6630
  %6805 = vst.msk [vmem:[%s6764 + $0x211] sm:$0xff] %vm5858, %v6631
  %6806 = vst.msk [vmem:[%s6764 + $0x219] sm:$0xff] %vm5858, %v6632
  %6807 = vst.msk [vmem:[%s6764 + $0x229] sm:$0xff] %vm5858, %v6633
  %6808 = vst.msk [vmem:[%s6764 + $0x231] sm:$0xff] %vm5858, %v6634
  %6809 = vst.msk [vmem:[%s6764 + $0x241] sm:$0xff] %vm5858, %v6635
  %6810 = vst.msk [vmem:[%s6764 + $0x249] sm:$0xff] %vm5858, %v6636
  %6811 = vst.msk [vmem:[%s6764 + $0x259] sm:$0xff] %vm5858, %v6637
  %6812 = vst.msk [vmem:[%s6764 + $0x261] sm:$0xff] %vm5858, %v6638
  %6813 = vst.msk [vmem:[%s6764 + $0x271] sm:$0xff] %vm5858, %v6639
  %6814 = vst.msk [vmem:[%s6764 + $0x279] sm:$0xff] %vm5858, %v6640
  %6815 = vst.msk [vmem:[%s6764 + $0x289] sm:$0xff] %vm5858, %v6641
  %6816 = vst.msk [vmem:[%s6764 + $0x291] sm:$0xff] %vm5858, %v6642
  %6817 = vst.msk [vmem:[%s6764 + $0x2a1] sm:$0xff] %vm5858, %v6643
  %6818 = vst.msk [vmem:[%s6764 + $0x2a9] sm:$0xff] %vm5858, %v6644
  %6819 = vst.msk [vmem:[%s6764 + $0x2b9] sm:$0xff] %vm5858, %v6645
  %6820 = vst.msk [vmem:[%s6764 + $0x2c1] sm:$0xff] %vm5858, %v6646
  %6821 = vst.msk [vmem:[%s6764 + $0x2d1] sm:$0xff] %vm5858, %v6647
  %6822 = vst.msk [vmem:[%s6764 + $0x2d9] sm:$0xff] %vm5858, %v6648
  %6823 = vst.msk [vmem:[%s6764 + $0x2e9] sm:$0xff] %vm5858, %v6649
  %6824 = vst.msk [vmem:[%s6764 + $0x2f1] sm:$0xff] %vm5858, %v6650
  %6825 = vst.msk [vmem:[%s6764 + $0x301] sm:$0xff] %vm5858, %v6651
  %6826 = vst.msk [vmem:[%s6764 + $0x309] sm:$0xff] %vm5858, %v6652
  %6827 = vst.msk [vmem:[%s6764 + $0x319] sm:$0xff] %vm5858, %v6653
  %6828 = vst.msk [vmem:[%s6764 + $0x321] sm:$0xff] %vm5858, %v6654
  %v6829 = vld [vmem:[#allocation4] sm:$0xff]
  %v6830 = vld [vmem:[#allocation4 + $0x8] sm:$0xff]
  %v6831 = vld [vmem:[#allocation4 + $0x18] sm:$0xff]
  %v6832 = vld [vmem:[#allocation4 + $0x20] sm:$0xff]
  %v6833 = vld [vmem:[#allocation4 + $0x30] sm:$0xff]
  %v6834 = vld [vmem:[#allocation4 + $0x38] sm:$0xff]
  %v6835 = vld [vmem:[#allocation4 + $0x48] sm:$0xff]
  %v6836 = vld [vmem:[#allocation4 + $0x50] sm:$0xff]
  %v6837 = vld [vmem:[#allocation4 + $0x60] sm:$0xff]
  %v6838 = vld [vmem:[#allocation4 + $0x68] sm:$0xff]
  %v6839 = vld [vmem:[#allocation4 + $0x78] sm:$0xff]
  %v6840 = vld [vmem:[#allocation4 + $0x80] sm:$0xff]
  %v6841 = vld [vmem:[#allocation4 + $0x90] sm:$0xff]
  %v6842 = vld [vmem:[#allocation4 + $0x98] sm:$0xff]
  %v6843 = vld [vmem:[#allocation4 + $0xa8] sm:$0xff]
  %v6844 = vld [vmem:[#allocation4 + $0xb0] sm:$0xff]
  %v6845 = vld [vmem:[#allocation4 + $0xc0] sm:$0xff]
  %v6846 = vld [vmem:[#allocation4 + $0xc8] sm:$0xff]
  %v6847 = vld [vmem:[#allocation4 + $0xd8] sm:$0xff]
  %v6848 = vld [vmem:[#allocation4 + $0xe0] sm:$0xff]
  %v6849 = vld [vmem:[#allocation4 + $0xf0] sm:$0xff]
  %v6850 = vld [vmem:[#allocation4 + $0xf8] sm:$0xff]
  %v6851 = vld [vmem:[#allocation4 + $0x108] sm:$0xff]
  %v6852 = vld [vmem:[#allocation4 + $0x110] sm:$0xff]
  %v6853 = vld [vmem:[#allocation4 + $0x120] sm:$0xff]
  %v6854 = vld [vmem:[#allocation4 + $0x128] sm:$0xff]
  %v6855 = vld [vmem:[#allocation4 + $0x138] sm:$0xff]
  %v6856 = vld [vmem:[#allocation4 + $0x140] sm:$0xff]
  %v6857 = vld [vmem:[#allocation4 + $0x150] sm:$0xff]
  %v6858 = vld [vmem:[#allocation4 + $0x158] sm:$0xff]
  %v6859 = vld [vmem:[#allocation4 + $0x168] sm:$0xff]
  %v6860 = vld [vmem:[#allocation4 + $0x170] sm:$0xff]
  %v6861 = vld [vmem:[#allocation4 + $0x1b0] sm:$0xff]
  %v6862 = vld [vmem:[#allocation4 + $0x1b8] sm:$0xff]
  %v6863 = vld [vmem:[#allocation4 + $0x1c8] sm:$0xff]
  %v6864 = vld [vmem:[#allocation4 + $0x1d0] sm:$0xff]
  %v6865 = vld [vmem:[#allocation4 + $0x1e0] sm:$0xff]
  %v6866 = vld [vmem:[#allocation4 + $0x1e8] sm:$0xff]
  %v6867 = vld [vmem:[#allocation4 + $0x1f8] sm:$0xff]
  %v6868 = vld [vmem:[#allocation4 + $0x200] sm:$0xff]
  %v6869 = vld [vmem:[#allocation4 + $0x210] sm:$0xff]
  %v6870 = vld [vmem:[#allocation4 + $0x218] sm:$0xff]
  %v6871 = vld [vmem:[#allocation4 + $0x228] sm:$0xff]
  %v6872 = vld [vmem:[#allocation4 + $0x230] sm:$0xff]
  %v6873 = vld [vmem:[#allocation4 + $0x240] sm:$0xff]
  %v6874 = vld [vmem:[#allocation4 + $0x248] sm:$0xff]
  %v6875 = vld [vmem:[#allocation4 + $0x258] sm:$0xff]
  %v6876 = vld [vmem:[#allocation4 + $0x260] sm:$0xff]
  %v6877 = vld [vmem:[#allocation4 + $0x270] sm:$0xff]
  %v6878 = vld [vmem:[#allocation4 + $0x278] sm:$0xff]
  %v6879 = vld [vmem:[#allocation4 + $0x288] sm:$0xff]
  %v6880 = vld [vmem:[#allocation4 + $0x290] sm:$0xff]
  %v6881 = vld [vmem:[#allocation4 + $0x2a0] sm:$0xff]
  %v6882 = vld [vmem:[#allocation4 + $0x2a8] sm:$0xff]
  %v6883 = vld [vmem:[#allocation4 + $0x2b8] sm:$0xff]
  %v6884 = vld [vmem:[#allocation4 + $0x2c0] sm:$0xff]
  %v6885 = vld [vmem:[#allocation4 + $0x2d0] sm:$0xff]
  %v6886 = vld [vmem:[#allocation4 + $0x2d8] sm:$0xff]
  %v6887 = vld [vmem:[#allocation4 + $0x2e8] sm:$0xff]
  %v6888 = vld [vmem:[#allocation4 + $0x2f0] sm:$0xff]
  %v6889 = vld [vmem:[#allocation4 + $0x300] sm:$0xff]
  %v6890 = vld [vmem:[#allocation4 + $0x308] sm:$0xff]
  %v6891 = vld [vmem:[#allocation4 + $0x318] sm:$0xff]
  %v6892 = vld [vmem:[#allocation4 + $0x320] sm:$0xff]
  %v6893 = vld [vmem:[#allocation4 + $0x1] sm:$0xff]
  %v6894 = vld [vmem:[#allocation4 + $0x9] sm:$0xff]
  %v6895 = vld [vmem:[#allocation4 + $0x19] sm:$0xff]
  %v6896 = vld [vmem:[#allocation4 + $0x21] sm:$0xff]
  %v6897 = vld [vmem:[#allocation4 + $0x31] sm:$0xff]
  %v6898 = vld [vmem:[#allocation4 + $0x39] sm:$0xff]
  %v6899 = vld [vmem:[#allocation4 + $0x49] sm:$0xff]
  %v6900 = vld [vmem:[#allocation4 + $0x51] sm:$0xff]
  %v6901 = vld [vmem:[#allocation4 + $0x61] sm:$0xff]
  %v6902 = vld [vmem:[#allocation4 + $0x69] sm:$0xff]
  %v6903 = vld [vmem:[#allocation4 + $0x79] sm:$0xff]
  %v6904 = vld [vmem:[#allocation4 + $0x81] sm:$0xff]
  %v6905 = vld [vmem:[#allocation4 + $0x91] sm:$0xff]
  %v6906 = vld [vmem:[#allocation4 + $0x99] sm:$0xff]
  %v6907 = vld [vmem:[#allocation4 + $0xa9] sm:$0xff]
  %v6908 = vld [vmem:[#allocation4 + $0xb1] sm:$0xff]
  %v6909 = vld [vmem:[#allocation4 + $0xc1] sm:$0xff]
  %v6910 = vld [vmem:[#allocation4 + $0xc9] sm:$0xff]
  %v6911 = vld [vmem:[#allocation4 + $0xd9] sm:$0xff]
  %v6912 = vld [vmem:[#allocation4 + $0xe1] sm:$0xff]
  %v6913 = vld [vmem:[#allocation4 + $0xf1] sm:$0xff]
  %v6914 = vld [vmem:[#allocation4 + $0xf9] sm:$0xff]
  %v6915 = vld [vmem:[#allocation4 + $0x109] sm:$0xff]
  %v6916 = vld [vmem:[#allocation4 + $0x111] sm:$0xff]
  %v6917 = vld [vmem:[#allocation4 + $0x121] sm:$0xff]
  %v6918 = vld [vmem:[#allocation4 + $0x129] sm:$0xff]
  %v6919 = vld [vmem:[#allocation4 + $0x139] sm:$0xff]
  %v6920 = vld [vmem:[#allocation4 + $0x141] sm:$0xff]
  %v6921 = vld [vmem:[#allocation4 + $0x151] sm:$0xff]
  %v6922 = vld [vmem:[#allocation4 + $0x159] sm:$0xff]
  %v6923 = vld [vmem:[#allocation4 + $0x169] sm:$0xff]
  %v6924 = vld [vmem:[#allocation4 + $0x171] sm:$0xff]
  %v6925 = vld [vmem:[#allocation4 + $0x1b1] sm:$0xff]
  %v6926 = vld [vmem:[#allocation4 + $0x1b9] sm:$0xff]
  %v6927 = vld [vmem:[#allocation4 + $0x1c9] sm:$0xff]
  %v6928 = vld [vmem:[#allocation4 + $0x1d1] sm:$0xff]
  %v6929 = vld [vmem:[#allocation4 + $0x1e1] sm:$0xff]
  %v6930 = vld [vmem:[#allocation4 + $0x1e9] sm:$0xff]
  %v6931 = vld [vmem:[#allocation4 + $0x1f9] sm:$0xff]
  %v6932 = vld [vmem:[#allocation4 + $0x201] sm:$0xff]
  %v6933 = vld [vmem:[#allocation4 + $0x211] sm:$0xff]
  %v6934 = vld [vmem:[#allocation4 + $0x219] sm:$0xff]
  %v6935 = vld [vmem:[#allocation4 + $0x229] sm:$0xff]
  %v6936 = vld [vmem:[#allocation4 + $0x231] sm:$0xff]
  %v6937 = vld [vmem:[#allocation4 + $0x241] sm:$0xff]
  %v6938 = vld [vmem:[#allocation4 + $0x249] sm:$0xff]
  %v6939 = vld [vmem:[#allocation4 + $0x259] sm:$0xff]
  %v6940 = vld [vmem:[#allocation4 + $0x261] sm:$0xff]
  %v6941 = vld [vmem:[#allocation4 + $0x271] sm:$0xff]
  %v6942 = vld [vmem:[#allocation4 + $0x279] sm:$0xff]
  %v6943 = vld [vmem:[#allocation4 + $0x289] sm:$0xff]
  %v6944 = vld [vmem:[#allocation4 + $0x291] sm:$0xff]
  %v6945 = vld [vmem:[#allocation4 + $0x2a1] sm:$0xff]
  %v6946 = vld [vmem:[#allocation4 + $0x2a9] sm:$0xff]
  %v6947 = vld [vmem:[#allocation4 + $0x2b9] sm:$0xff]
  %v6948 = vld [vmem:[#allocation4 + $0x2c1] sm:$0xff]
  %v6949 = vld [vmem:[#allocation4 + $0x2d1] sm:$0xff]
  %v6950 = vld [vmem:[#allocation4 + $0x2d9] sm:$0xff]
  %v6951 = vld [vmem:[#allocation4 + $0x2e9] sm:$0xff]
  %v6952 = vld [vmem:[#allocation4 + $0x2f1] sm:$0xff]
  %v6953 = vld [vmem:[#allocation4 + $0x301] sm:$0xff]
  %v6954 = vld [vmem:[#allocation4 + $0x309] sm:$0xff]
  %v6955 = vld [vmem:[#allocation4 + $0x319] sm:$0xff]
  %v6956 = vld [vmem:[#allocation4 + $0x321] sm:$0xff]
  %v6957 = vld [vmem:[#allocation4 + $0x2] sm:$0xff]
  %v6958 = vld [vmem:[#allocation4 + $0xa] sm:$0xff]
  %v6959 = vld [vmem:[#allocation4 + $0x1a] sm:$0xff]
  %v6960 = vld [vmem:[#allocation4 + $0x22] sm:$0xff]
  %v6961 = vld [vmem:[#allocation4 + $0x32] sm:$0xff]
  %v6962 = vld [vmem:[#allocation4 + $0x3a] sm:$0xff]
  %v6963 = vld [vmem:[#allocation4 + $0x4a] sm:$0xff]
  %v6964 = vld [vmem:[#allocation4 + $0x52] sm:$0xff]
  %v6965 = vld [vmem:[#allocation4 + $0x62] sm:$0xff]
  %v6966 = vld [vmem:[#allocation4 + $0x6a] sm:$0xff]
  %v6967 = vld [vmem:[#allocation4 + $0x7a] sm:$0xff]
  %v6968 = vld [vmem:[#allocation4 + $0x82] sm:$0xff]
  %v6969 = vld [vmem:[#allocation4 + $0x92] sm:$0xff]
  %v6970 = vld [vmem:[#allocation4 + $0x9a] sm:$0xff]
  %v6971 = vld [vmem:[#allocation4 + $0xaa] sm:$0xff]
  %v6972 = vld [vmem:[#allocation4 + $0xb2] sm:$0xff]
  %v6973 = vld [vmem:[#allocation4 + $0xc2] sm:$0xff]
  %v6974 = vld [vmem:[#allocation4 + $0xca] sm:$0xff]
  %v6975 = vld [vmem:[#allocation4 + $0xda] sm:$0xff]
  %v6976 = vld [vmem:[#allocation4 + $0xe2] sm:$0xff]
  %v6977 = vld [vmem:[#allocation4 + $0xf2] sm:$0xff]
  %v6978 = vld [vmem:[#allocation4 + $0xfa] sm:$0xff]
  %v6979 = vld [vmem:[#allocation4 + $0x10a] sm:$0xff]
  %v6980 = vld [vmem:[#allocation4 + $0x112] sm:$0xff]
  %v6981 = vld [vmem:[#allocation4 + $0x122] sm:$0xff]
  %v6982 = vld [vmem:[#allocation4 + $0x12a] sm:$0xff]
  %v6983 = vld [vmem:[#allocation4 + $0x13a] sm:$0xff]
  %v6984 = vld [vmem:[#allocation4 + $0x142] sm:$0xff]
  %v6985 = vld [vmem:[#allocation4 + $0x152] sm:$0xff]
  %v6986 = vld [vmem:[#allocation4 + $0x15a] sm:$0xff]
  %v6987 = vld [vmem:[#allocation4 + $0x16a] sm:$0xff]
  %v6988 = vld [vmem:[#allocation4 + $0x172] sm:$0xff]
  %v6989 = vld [vmem:[#allocation4 + $0x1b2] sm:$0xff]
  %v6990 = vld [vmem:[#allocation4 + $0x1ba] sm:$0xff]
  %v6991 = vld [vmem:[#allocation4 + $0x1ca] sm:$0xff]
  %v6992 = vld [vmem:[#allocation4 + $0x1d2] sm:$0xff]
  %v6993 = vld [vmem:[#allocation4 + $0x1e2] sm:$0xff]
  %v6994 = vld [vmem:[#allocation4 + $0x1ea] sm:$0xff]
  %v6995 = vld [vmem:[#allocation4 + $0x1fa] sm:$0xff]
  %v6996 = vld [vmem:[#allocation4 + $0x202] sm:$0xff]
  %v6997 = vld [vmem:[#allocation4 + $0x212] sm:$0xff]
  %v6998 = vld [vmem:[#allocation4 + $0x21a] sm:$0xff]
  %v6999 = vld [vmem:[#allocation4 + $0x22a] sm:$0xff]
  %v7000 = vld [vmem:[#allocation4 + $0x232] sm:$0xff]
  %v7001 = vld [vmem:[#allocation4 + $0x242] sm:$0xff]
  %v7002 = vld [vmem:[#allocation4 + $0x24a] sm:$0xff]
  %v7003 = vld [vmem:[#allocation4 + $0x25a] sm:$0xff]
  %v7004 = vld [vmem:[#allocation4 + $0x262] sm:$0xff]
  %v7005 = vld [vmem:[#allocation4 + $0x272] sm:$0xff]
  %v7006 = vld [vmem:[#allocation4 + $0x27a] sm:$0xff]
  %v7007 = vld [vmem:[#allocation4 + $0x28a] sm:$0xff]
  %v7008 = vld [vmem:[#allocation4 + $0x292] sm:$0xff]
  %v7009 = vld [vmem:[#allocation4 + $0x2a2] sm:$0xff]
  %v7010 = vld [vmem:[#allocation4 + $0x2aa] sm:$0xff]
  %v7011 = vld [vmem:[#allocation4 + $0x2ba] sm:$0xff]
  %v7012 = vld [vmem:[#allocation4 + $0x2c2] sm:$0xff]
  %v7013 = vld [vmem:[#allocation4 + $0x2d2] sm:$0xff]
  %v7014 = vld [vmem:[#allocation4 + $0x2da] sm:$0xff]
  %v7015 = vld [vmem:[#allocation4 + $0x2ea] sm:$0xff]
  %v7016 = vld [vmem:[#allocation4 + $0x2f2] sm:$0xff]
  %v7017 = vld [vmem:[#allocation4 + $0x302] sm:$0xff]
  %v7018 = vld [vmem:[#allocation4 + $0x30a] sm:$0xff]
  %v7019 = vld [vmem:[#allocation4 + $0x31a] sm:$0xff]
  %v7020 = vld [vmem:[#allocation4 + $0x322] sm:$0xff]
  %v7021 = vld [vmem:[%s6764] sm:$0xff]
  %v7022 = vld [vmem:[%s6764 + $0x8] sm:$0xff]
  %v7023 = vld [vmem:[%s6764 + $0x18] sm:$0xff]
  %v7024 = vld [vmem:[%s6764 + $0x20] sm:$0xff]
  %v7025 = vld [vmem:[%s6764 + $0x30] sm:$0xff]
  %v7026 = vld [vmem:[%s6764 + $0x38] sm:$0xff]
  %v7027 = vld [vmem:[%s6764 + $0x48] sm:$0xff]
  %v7028 = vld [vmem:[%s6764 + $0x50] sm:$0xff]
  %v7029 = vld [vmem:[%s6764 + $0x60] sm:$0xff]
  %v7030 = vld [vmem:[%s6764 + $0x68] sm:$0xff]
  %v7031 = vld [vmem:[%s6764 + $0x78] sm:$0xff]
  %v7032 = vld [vmem:[%s6764 + $0x80] sm:$0xff]
  %v7033 = vld [vmem:[%s6764 + $0x90] sm:$0xff]
  %v7034 = vld [vmem:[%s6764 + $0x98] sm:$0xff]
  %v7035 = vld [vmem:[%s6764 + $0xa8] sm:$0xff]
  %v7036 = vld [vmem:[%s6764 + $0xb0] sm:$0xff]
  %v7037 = vld [vmem:[%s6764 + $0xc0] sm:$0xff]
  %v7038 = vld [vmem:[%s6764 + $0xc8] sm:$0xff]
  %v7039 = vld [vmem:[%s6764 + $0xd8] sm:$0xff]
  %v7040 = vld [vmem:[%s6764 + $0xe0] sm:$0xff]
  %v7041 = vld [vmem:[%s6764 + $0xf0] sm:$0xff]
  %v7042 = vld [vmem:[%s6764 + $0xf8] sm:$0xff]
  %v7043 = vld [vmem:[%s6764 + $0x108] sm:$0xff]
  %v7044 = vld [vmem:[%s6764 + $0x110] sm:$0xff]
  %v7045 = vld [vmem:[%s6764 + $0x120] sm:$0xff]
  %v7046 = vld [vmem:[%s6764 + $0x128] sm:$0xff]
  %v7047 = vld [vmem:[%s6764 + $0x138] sm:$0xff]
  %v7048 = vld [vmem:[%s6764 + $0x140] sm:$0xff]
  %v7049 = vld [vmem:[%s6764 + $0x150] sm:$0xff]
  %v7050 = vld [vmem:[%s6764 + $0x158] sm:$0xff]
  %v7051 = vld [vmem:[%s6764 + $0x168] sm:$0xff]
  %v7052 = vld [vmem:[%s6764 + $0x170] sm:$0xff]
  %v7053 = vld [vmem:[%s6764 + $0x1b0] sm:$0xff]
  %v7054 = vld [vmem:[%s6764 + $0x1b8] sm:$0xff]
  %v7055 = vld [vmem:[%s6764 + $0x1c8] sm:$0xff]
  %v7056 = vld [vmem:[%s6764 + $0x1d0] sm:$0xff]
  %v7057 = vld [vmem:[%s6764 + $0x1e0] sm:$0xff]
  %v7058 = vld [vmem:[%s6764 + $0x1e8] sm:$0xff]
  %v7059 = vld [vmem:[%s6764 + $0x1f8] sm:$0xff]
  %v7060 = vld [vmem:[%s6764 + $0x200] sm:$0xff]
  %v7061 = vld [vmem:[%s6764 + $0x210] sm:$0xff]
  %v7062 = vld [vmem:[%s6764 + $0x218] sm:$0xff]
  %v7063 = vld [vmem:[%s6764 + $0x228] sm:$0xff]
  %v7064 = vld [vmem:[%s6764 + $0x230] sm:$0xff]
  %v7065 = vld [vmem:[%s6764 + $0x240] sm:$0xff]
  %v7066 = vld [vmem:[%s6764 + $0x248] sm:$0xff]
  %v7067 = vld [vmem:[%s6764 + $0x258] sm:$0xff]
  %v7068 = vld [vmem:[%s6764 + $0x260] sm:$0xff]
  %v7069 = vld [vmem:[%s6764 + $0x270] sm:$0xff]
  %v7070 = vld [vmem:[%s6764 + $0x278] sm:$0xff]
  %v7071 = vld [vmem:[%s6764 + $0x288] sm:$0xff]
  %v7072 = vld [vmem:[%s6764 + $0x290] sm:$0xff]
  %v7073 = vld [vmem:[%s6764 + $0x2a0] sm:$0xff]
  %v7074 = vld [vmem:[%s6764 + $0x2a8] sm:$0xff]
  %v7075 = vld [vmem:[%s6764 + $0x2b8] sm:$0xff]
  %v7076 = vld [vmem:[%s6764 + $0x2c0] sm:$0xff]
  %v7077 = vld [vmem:[%s6764 + $0x2d0] sm:$0xff]
  %v7078 = vld [vmem:[%s6764 + $0x2d8] sm:$0xff]
  %v7079 = vld [vmem:[%s6764 + $0x2e8] sm:$0xff]
  %v7080 = vld [vmem:[%s6764 + $0x2f0] sm:$0xff]
  %v7081 = vld [vmem:[%s6764 + $0x300] sm:$0xff]
  %v7082 = vld [vmem:[%s6764 + $0x308] sm:$0xff]
  %v7083 = vld [vmem:[%s6764 + $0x318] sm:$0xff]
  %v7084 = vld [vmem:[%s6764 + $0x320] sm:$0xff]
  %v7085 = vld [vmem:[%s6764 + $0x1] sm:$0xff]
  %v7086 = vld [vmem:[%s6764 + $0x9] sm:$0xff]
  %v7087 = vld [vmem:[%s6764 + $0x19] sm:$0xff]
  %v7088 = vld [vmem:[%s6764 + $0x21] sm:$0xff]
  %v7089 = vld [vmem:[%s6764 + $0x31] sm:$0xff]
  %v7090 = vld [vmem:[%s6764 + $0x39] sm:$0xff]
  %v7091 = vld [vmem:[%s6764 + $0x49] sm:$0xff]
  %v7092 = vld [vmem:[%s6764 + $0x51] sm:$0xff]
  %v7093 = vld [vmem:[%s6764 + $0x61] sm:$0xff]
  %v7094 = vld [vmem:[%s6764 + $0x69] sm:$0xff]
  %v7095 = vld [vmem:[%s6764 + $0x79] sm:$0xff]
  %v7096 = vld [vmem:[%s6764 + $0x81] sm:$0xff]
  %v7097 = vld [vmem:[%s6764 + $0x91] sm:$0xff]
  %v7098 = vld [vmem:[%s6764 + $0x99] sm:$0xff]
  %v7099 = vld [vmem:[%s6764 + $0xa9] sm:$0xff]
  %v7100 = vld [vmem:[%s6764 + $0xb1] sm:$0xff]
  %v7101 = vld [vmem:[%s6764 + $0xc1] sm:$0xff]
  %v7102 = vld [vmem:[%s6764 + $0xc9] sm:$0xff]
  %v7103 = vld [vmem:[%s6764 + $0xd9] sm:$0xff]
  %v7104 = vld [vmem:[%s6764 + $0xe1] sm:$0xff]
  %v7105 = vld [vmem:[%s6764 + $0xf1] sm:$0xff]
  %v7106 = vld [vmem:[%s6764 + $0xf9] sm:$0xff]
  %v7107 = vld [vmem:[%s6764 + $0x109] sm:$0xff]
  %v7108 = vld [vmem:[%s6764 + $0x111] sm:$0xff]
  %v7109 = vld [vmem:[%s6764 + $0x121] sm:$0xff]
  %v7110 = vld [vmem:[%s6764 + $0x129] sm:$0xff]
  %v7111 = vld [vmem:[%s6764 + $0x139] sm:$0xff]
  %v7112 = vld [vmem:[%s6764 + $0x141] sm:$0xff]
  %v7113 = vld [vmem:[%s6764 + $0x151] sm:$0xff]
  %v7114 = vld [vmem:[%s6764 + $0x159] sm:$0xff]
  %v7115 = vld [vmem:[%s6764 + $0x169] sm:$0xff]
  %v7116 = vld [vmem:[%s6764 + $0x171] sm:$0xff]
  %v7117 = vld [vmem:[%s6764 + $0x1b1] sm:$0xff]
  %v7118 = vld [vmem:[%s6764 + $0x1b9] sm:$0xff]
  %v7119 = vld [vmem:[%s6764 + $0x1c9] sm:$0xff]
  %v7120 = vld [vmem:[%s6764 + $0x1d1] sm:$0xff]
  %v7121 = vld [vmem:[%s6764 + $0x1e1] sm:$0xff]
  %v7122 = vld [vmem:[%s6764 + $0x1e9] sm:$0xff]
  %v7123 = vld [vmem:[%s6764 + $0x1f9] sm:$0xff]
  %v7124 = vld [vmem:[%s6764 + $0x201] sm:$0xff]
  %v7125 = vld [vmem:[%s6764 + $0x211] sm:$0xff]
  %v7126 = vld [vmem:[%s6764 + $0x219] sm:$0xff]
  %v7127 = vld [vmem:[%s6764 + $0x229] sm:$0xff]
  %v7128 = vld [vmem:[%s6764 + $0x231] sm:$0xff]
  %v7129 = vld [vmem:[%s6764 + $0x241] sm:$0xff]
  %v7130 = vld [vmem:[%s6764 + $0x249] sm:$0xff]
  %v7131 = vld [vmem:[%s6764 + $0x259] sm:$0xff]
  %v7132 = vld [vmem:[%s6764 + $0x261] sm:$0xff]
  %v7133 = vld [vmem:[%s6764 + $0x271] sm:$0xff]
  %v7134 = vld [vmem:[%s6764 + $0x279] sm:$0xff]
  %v7135 = vld [vmem:[%s6764 + $0x289] sm:$0xff]
  %v7136 = vld [vmem:[%s6764 + $0x291] sm:$0xff]
  %v7137 = vld [vmem:[%s6764 + $0x2a1] sm:$0xff]
  %v7138 = vld [vmem:[%s6764 + $0x2a9] sm:$0xff]
  %v7139 = vld [vmem:[%s6764 + $0x2b9] sm:$0xff]
  %v7140 = vld [vmem:[%s6764 + $0x2c1] sm:$0xff]
  %v7141 = vld [vmem:[%s6764 + $0x2d1] sm:$0xff]
  %v7142 = vld [vmem:[%s6764 + $0x2d9] sm:$0xff]
  %v7143 = vld [vmem:[%s6764 + $0x2e9] sm:$0xff]
  %v7144 = vld [vmem:[%s6764 + $0x2f1] sm:$0xff]
  %v7145 = vld [vmem:[%s6764 + $0x301] sm:$0xff]
  %v7146 = vld [vmem:[%s6764 + $0x309] sm:$0xff]
  %v7147 = vld [vmem:[%s6764 + $0x319] sm:$0xff]
  %v7148 = vld [vmem:[%s6764 + $0x321] sm:$0xff]
  %v7149 = vld [vmem:[%s6764 + $0x2] sm:$0xff]
  %v7150 = vld [vmem:[%s6764 + $0xa] sm:$0xff]
  %v7151 = vld [vmem:[%s6764 + $0x1a] sm:$0xff]
  %v7152 = vld [vmem:[%s6764 + $0x22] sm:$0xff]
  %v7153 = vld [vmem:[%s6764 + $0x32] sm:$0xff]
  %v7154 = vld [vmem:[%s6764 + $0x3a] sm:$0xff]
  %v7155 = vld [vmem:[%s6764 + $0x4a] sm:$0xff]
  %v7156 = vld [vmem:[%s6764 + $0x52] sm:$0xff]
  %v7157 = vld [vmem:[%s6764 + $0x62] sm:$0xff]
  %v7158 = vld [vmem:[%s6764 + $0x6a] sm:$0xff]
  %v7159 = vld [vmem:[%s6764 + $0x7a] sm:$0xff]
  %v7160 = vld [vmem:[%s6764 + $0x82] sm:$0xff]
  %v7161 = vld [vmem:[%s6764 + $0x92] sm:$0xff]
  %v7162 = vld [vmem:[%s6764 + $0x9a] sm:$0xff]
  %v7163 = vld [vmem:[%s6764 + $0xaa] sm:$0xff]
  %v7164 = vld [vmem:[%s6764 + $0xb2] sm:$0xff]
  %v7165 = vld [vmem:[%s6764 + $0xc2] sm:$0xff]
  %v7166 = vld [vmem:[%s6764 + $0xca] sm:$0xff]
  %v7167 = vld [vmem:[%s6764 + $0xda] sm:$0xff]
  %v7168 = vld [vmem:[%s6764 + $0xe2] sm:$0xff]
  %v7169 = vld [vmem:[%s6764 + $0xf2] sm:$0xff]
  %v7170 = vld [vmem:[%s6764 + $0xfa] sm:$0xff]
  %v7171 = vld [vmem:[%s6764 + $0x10a] sm:$0xff]
  %v7172 = vld [vmem:[%s6764 + $0x112] sm:$0xff]
  %v7173 = vld [vmem:[%s6764 + $0x122] sm:$0xff]
  %v7174 = vld [vmem:[%s6764 + $0x12a] sm:$0xff]
  %v7175 = vld [vmem:[%s6764 + $0x13a] sm:$0xff]
  %v7176 = vld [vmem:[%s6764 + $0x142] sm:$0xff]
  %v7177 = vld [vmem:[%s6764 + $0x152] sm:$0xff]
  %v7178 = vld [vmem:[%s6764 + $0x15a] sm:$0xff]
  %v7179 = vld [vmem:[%s6764 + $0x16a] sm:$0xff]
  %v7180 = vld [vmem:[%s6764 + $0x172] sm:$0xff]
  %v7181 = vld [vmem:[%s6764 + $0x1b2] sm:$0xff]
  %v7182 = vld [vmem:[%s6764 + $0x1ba] sm:$0xff]
  %v7183 = vld [vmem:[%s6764 + $0x1ca] sm:$0xff]
  %v7184 = vld [vmem:[%s6764 + $0x1d2] sm:$0xff]
  %v7185 = vld [vmem:[%s6764 + $0x1e2] sm:$0xff]
  %v7186 = vld [vmem:[%s6764 + $0x1ea] sm:$0xff]
  %v7187 = vld [vmem:[%s6764 + $0x1fa] sm:$0xff]
  %v7188 = vld [vmem:[%s6764 + $0x202] sm:$0xff]
  %v7189 = vld [vmem:[%s6764 + $0x212] sm:$0xff]
  %v7190 = vld [vmem:[%s6764 + $0x21a] sm:$0xff]
  %v7191 = vld [vmem:[%s6764 + $0x22a] sm:$0xff]
  %v7192 = vld [vmem:[%s6764 + $0x232] sm:$0xff]
  %v7193 = vld [vmem:[%s6764 + $0x242] sm:$0xff]
  %v7194 = vld [vmem:[%s6764 + $0x24a] sm:$0xff]
  %v7195 = vld [vmem:[%s6764 + $0x25a] sm:$0xff]
  %v7196 = vld [vmem:[%s6764 + $0x262] sm:$0xff]
  %v7197 = vld [vmem:[%s6764 + $0x272] sm:$0xff]
  %v7198 = vld [vmem:[%s6764 + $0x27a] sm:$0xff]
  %v7199 = vld [vmem:[%s6764 + $0x28a] sm:$0xff]
  %v7200 = vld [vmem:[%s6764 + $0x292] sm:$0xff]
  %v7201 = vld [vmem:[%s6764 + $0x2a2] sm:$0xff]
  %v7202 = vld [vmem:[%s6764 + $0x2aa] sm:$0xff]
  %v7203 = vld [vmem:[%s6764 + $0x2ba] sm:$0xff]
  %v7204 = vld [vmem:[%s6764 + $0x2c2] sm:$0xff]
  %v7205 = vld [vmem:[%s6764 + $0x2d2] sm:$0xff]
  %v7206 = vld [vmem:[%s6764 + $0x2da] sm:$0xff]
  %v7207 = vld [vmem:[%s6764 + $0x2ea] sm:$0xff]
  %v7208 = vld [vmem:[%s6764 + $0x2f2] sm:$0xff]
  %v7209 = vld [vmem:[%s6764 + $0x302] sm:$0xff]
  %v7210 = vld [vmem:[%s6764 + $0x30a] sm:$0xff]
  %v7211 = vld [vmem:[%s6764 + $0x31a] sm:$0xff]
  %v7212 = vld [vmem:[%s6764 + $0x322] sm:$0xff]
  %s7213 = scalar_lea.vmem [#allocation4], 48
  %v7214 = vld [vmem:[%s7213] sm:$0xff]
  %v7215 = vld [vmem:[%s7213 + $0x8] sm:$0xff]
  %v7216 = vld [vmem:[%s7213 + $0x18] sm:$0xff]
  %v7217 = vld [vmem:[%s7213 + $0x20] sm:$0xff]
  %v7218 = vld [vmem:[%s7213 + $0x30] sm:$0xff]
  %v7219 = vld [vmem:[%s7213 + $0x38] sm:$0xff]
  %v7220 = vld [vmem:[%s7213 + $0x48] sm:$0xff]
  %v7221 = vld [vmem:[%s7213 + $0x50] sm:$0xff]
  %v7222 = vld [vmem:[%s7213 + $0x60] sm:$0xff]
  %v7223 = vld [vmem:[%s7213 + $0x68] sm:$0xff]
  %v7224 = vld [vmem:[%s7213 + $0x78] sm:$0xff]
  %v7225 = vld [vmem:[%s7213 + $0x80] sm:$0xff]
  %v7226 = vld [vmem:[%s7213 + $0x90] sm:$0xff]
  %v7227 = vld [vmem:[%s7213 + $0x98] sm:$0xff]
  %v7228 = vld [vmem:[%s7213 + $0xa8] sm:$0xff]
  %v7229 = vld [vmem:[%s7213 + $0xb0] sm:$0xff]
  %v7230 = vld [vmem:[%s7213 + $0xc0] sm:$0xff]
  %v7231 = vld [vmem:[%s7213 + $0xc8] sm:$0xff]
  %v7232 = vld [vmem:[%s7213 + $0xd8] sm:$0xff]
  %v7233 = vld [vmem:[%s7213 + $0xe0] sm:$0xff]
  %v7234 = vld [vmem:[%s7213 + $0xf0] sm:$0xff]
  %v7235 = vld [vmem:[%s7213 + $0xf8] sm:$0xff]
  %v7236 = vld [vmem:[%s7213 + $0x108] sm:$0xff]
  %v7237 = vld [vmem:[%s7213 + $0x110] sm:$0xff]
  %v7238 = vld [vmem:[%s7213 + $0x120] sm:$0xff]
  %v7239 = vld [vmem:[%s7213 + $0x128] sm:$0xff]
  %v7240 = vld [vmem:[%s7213 + $0x138] sm:$0xff]
  %v7241 = vld [vmem:[%s7213 + $0x140] sm:$0xff]
  %v7242 = vld [vmem:[%s7213 + $0x150] sm:$0xff]
  %v7243 = vld [vmem:[%s7213 + $0x158] sm:$0xff]
  %v7244 = vld [vmem:[%s7213 + $0x168] sm:$0xff]
  %v7245 = vld [vmem:[%s7213 + $0x170] sm:$0xff]
  %v7246 = vld [vmem:[%s7213 + $0x1b0] sm:$0xff]
  %v7247 = vld [vmem:[%s7213 + $0x1b8] sm:$0xff]
  %v7248 = vld [vmem:[%s7213 + $0x1c8] sm:$0xff]
  %v7249 = vld [vmem:[%s7213 + $0x1d0] sm:$0xff]
  %v7250 = vld [vmem:[%s7213 + $0x1e0] sm:$0xff]
  %v7251 = vld [vmem:[%s7213 + $0x1e8] sm:$0xff]
  %v7252 = vld [vmem:[%s7213 + $0x1f8] sm:$0xff]
  %v7253 = vld [vmem:[%s7213 + $0x200] sm:$0xff]
  %v7254 = vld [vmem:[%s7213 + $0x210] sm:$0xff]
  %v7255 = vld [vmem:[%s7213 + $0x218] sm:$0xff]
  %v7256 = vld [vmem:[%s7213 + $0x228] sm:$0xff]
  %v7257 = vld [vmem:[%s7213 + $0x230] sm:$0xff]
  %v7258 = vld [vmem:[%s7213 + $0x240] sm:$0xff]
  %v7259 = vld [vmem:[%s7213 + $0x248] sm:$0xff]
  %v7260 = vld [vmem:[%s7213 + $0x258] sm:$0xff]
  %v7261 = vld [vmem:[%s7213 + $0x260] sm:$0xff]
  %v7262 = vld [vmem:[%s7213 + $0x270] sm:$0xff]
  %v7263 = vld [vmem:[%s7213 + $0x278] sm:$0xff]
  %v7264 = vld [vmem:[%s7213 + $0x288] sm:$0xff]
  %v7265 = vld [vmem:[%s7213 + $0x290] sm:$0xff]
  %v7266 = vld [vmem:[%s7213 + $0x2a0] sm:$0xff]
  %v7267 = vld [vmem:[%s7213 + $0x2a8] sm:$0xff]
  %v7268 = vld [vmem:[%s7213 + $0x2b8] sm:$0xff]
  %v7269 = vld [vmem:[%s7213 + $0x2c0] sm:$0xff]
  %v7270 = vld [vmem:[%s7213 + $0x2d0] sm:$0xff]
  %v7271 = vld [vmem:[%s7213 + $0x2d8] sm:$0xff]
  %v7272 = vld [vmem:[%s7213 + $0x2e8] sm:$0xff]
  %v7273 = vld [vmem:[%s7213 + $0x2f0] sm:$0xff]
  %v7274 = vld [vmem:[%s7213 + $0x300] sm:$0xff]
  %v7275 = vld [vmem:[%s7213 + $0x308] sm:$0xff]
  %v7276 = vld [vmem:[%s7213 + $0x318] sm:$0xff]
  %v7277 = vld [vmem:[%s7213 + $0x320] sm:$0xff]
  %v7278 = vld [vmem:[%s7213 + $0x1] sm:$0xff]
  %v7279 = vld [vmem:[%s7213 + $0x9] sm:$0xff]
  %v7280 = vld [vmem:[%s7213 + $0x19] sm:$0xff]
  %v7281 = vld [vmem:[%s7213 + $0x21] sm:$0xff]
  %v7282 = vld [vmem:[%s7213 + $0x31] sm:$0xff]
  %v7283 = vld [vmem:[%s7213 + $0x39] sm:$0xff]
  %v7284 = vld [vmem:[%s7213 + $0x49] sm:$0xff]
  %v7285 = vld [vmem:[%s7213 + $0x51] sm:$0xff]
  %v7286 = vld [vmem:[%s7213 + $0x61] sm:$0xff]
  %v7287 = vld [vmem:[%s7213 + $0x69] sm:$0xff]
  %v7288 = vld [vmem:[%s7213 + $0x79] sm:$0xff]
  %v7289 = vld [vmem:[%s7213 + $0x81] sm:$0xff]
  %v7290 = vld [vmem:[%s7213 + $0x91] sm:$0xff]
  %v7291 = vld [vmem:[%s7213 + $0x99] sm:$0xff]
  %v7292 = vld [vmem:[%s7213 + $0xa9] sm:$0xff]
  %v7293 = vld [vmem:[%s7213 + $0xb1] sm:$0xff]
  %v7294 = vld [vmem:[%s7213 + $0xc1] sm:$0xff]
  %v7295 = vld [vmem:[%s7213 + $0xc9] sm:$0xff]
  %v7296 = vld [vmem:[%s7213 + $0xd9] sm:$0xff]
  %v7297 = vld [vmem:[%s7213 + $0xe1] sm:$0xff]
  %v7298 = vld [vmem:[%s7213 + $0xf1] sm:$0xff]
  %v7299 = vld [vmem:[%s7213 + $0xf9] sm:$0xff]
  %v7300 = vld [vmem:[%s7213 + $0x109] sm:$0xff]
  %v7301 = vld [vmem:[%s7213 + $0x111] sm:$0xff]
  %v7302 = vld [vmem:[%s7213 + $0x121] sm:$0xff]
  %v7303 = vld [vmem:[%s7213 + $0x129] sm:$0xff]
  %v7304 = vld [vmem:[%s7213 + $0x139] sm:$0xff]
  %v7305 = vld [vmem:[%s7213 + $0x141] sm:$0xff]
  %v7306 = vld [vmem:[%s7213 + $0x151] sm:$0xff]
  %v7307 = vld [vmem:[%s7213 + $0x159] sm:$0xff]
  %v7308 = vld [vmem:[%s7213 + $0x169] sm:$0xff]
  %v7309 = vld [vmem:[%s7213 + $0x171] sm:$0xff]
  %v7310 = vld [vmem:[%s7213 + $0x1b1] sm:$0xff]
  %v7311 = vld [vmem:[%s7213 + $0x1b9] sm:$0xff]
  %v7312 = vld [vmem:[%s7213 + $0x1c9] sm:$0xff]
  %v7313 = vld [vmem:[%s7213 + $0x1d1] sm:$0xff]
  %v7314 = vld [vmem:[%s7213 + $0x1e1] sm:$0xff]
  %v7315 = vld [vmem:[%s7213 + $0x1e9] sm:$0xff]
  %v7316 = vld [vmem:[%s7213 + $0x1f9] sm:$0xff]
  %v7317 = vld [vmem:[%s7213 + $0x201] sm:$0xff]
  %v7318 = vld [vmem:[%s7213 + $0x211] sm:$0xff]
  %v7319 = vld [vmem:[%s7213 + $0x219] sm:$0xff]
  %v7320 = vld [vmem:[%s7213 + $0x229] sm:$0xff]
  %v7321 = vld [vmem:[%s7213 + $0x231] sm:$0xff]
  %v7322 = vld [vmem:[%s7213 + $0x241] sm:$0xff]
  %v7323 = vld [vmem:[%s7213 + $0x249] sm:$0xff]
  %v7324 = vld [vmem:[%s7213 + $0x259] sm:$0xff]
  %v7325 = vld [vmem:[%s7213 + $0x261] sm:$0xff]
  %v7326 = vld [vmem:[%s7213 + $0x271] sm:$0xff]
  %v7327 = vld [vmem:[%s7213 + $0x279] sm:$0xff]
  %v7328 = vld [vmem:[%s7213 + $0x289] sm:$0xff]
  %v7329 = vld [vmem:[%s7213 + $0x291] sm:$0xff]
  %v7330 = vld [vmem:[%s7213 + $0x2a1] sm:$0xff]
  %v7331 = vld [vmem:[%s7213 + $0x2a9] sm:$0xff]
  %v7332 = vld [vmem:[%s7213 + $0x2b9] sm:$0xff]
  %v7333 = vld [vmem:[%s7213 + $0x2c1] sm:$0xff]
  %v7334 = vld [vmem:[%s7213 + $0x2d1] sm:$0xff]
  %v7335 = vld [vmem:[%s7213 + $0x2d9] sm:$0xff]
  %v7336 = vld [vmem:[%s7213 + $0x2e9] sm:$0xff]
  %v7337 = vld [vmem:[%s7213 + $0x2f1] sm:$0xff]
  %v7338 = vld [vmem:[%s7213 + $0x301] sm:$0xff]
  %v7339 = vld [vmem:[%s7213 + $0x309] sm:$0xff]
  %v7340 = vld [vmem:[%s7213 + $0x319] sm:$0xff]
  %v7341 = vld [vmem:[%s7213 + $0x321] sm:$0xff]
  %v7342 = vld [vmem:[%s7213 + $0x2] sm:$0xff]
  %v7343 = vld [vmem:[%s7213 + $0xa] sm:$0xff]
  %v7344 = vld [vmem:[%s7213 + $0x1a] sm:$0xff]
  %v7345 = vld [vmem:[%s7213 + $0x22] sm:$0xff]
  %v7346 = vld [vmem:[%s7213 + $0x32] sm:$0xff]
  %v7347 = vld [vmem:[%s7213 + $0x3a] sm:$0xff]
  %v7348 = vld [vmem:[%s7213 + $0x4a] sm:$0xff]
  %v7349 = vld [vmem:[%s7213 + $0x52] sm:$0xff]
  %v7350 = vld [vmem:[%s7213 + $0x62] sm:$0xff]
  %v7351 = vld [vmem:[%s7213 + $0x6a] sm:$0xff]
  %v7352 = vld [vmem:[%s7213 + $0x7a] sm:$0xff]
  %v7353 = vld [vmem:[%s7213 + $0x82] sm:$0xff]
  %v7354 = vld [vmem:[%s7213 + $0x92] sm:$0xff]
  %v7355 = vld [vmem:[%s7213 + $0x9a] sm:$0xff]
  %v7356 = vld [vmem:[%s7213 + $0xaa] sm:$0xff]
  %v7357 = vld [vmem:[%s7213 + $0xb2] sm:$0xff]
  %v7358 = vld [vmem:[%s7213 + $0xc2] sm:$0xff]
  %v7359 = vld [vmem:[%s7213 + $0xca] sm:$0xff]
  %v7360 = vld [vmem:[%s7213 + $0xda] sm:$0xff]
  %v7361 = vld [vmem:[%s7213 + $0xe2] sm:$0xff]
  %v7362 = vld [vmem:[%s7213 + $0xf2] sm:$0xff]
  %v7363 = vld [vmem:[%s7213 + $0xfa] sm:$0xff]
  %v7364 = vld [vmem:[%s7213 + $0x10a] sm:$0xff]
  %v7365 = vld [vmem:[%s7213 + $0x112] sm:$0xff]
  %v7366 = vld [vmem:[%s7213 + $0x122] sm:$0xff]
  %v7367 = vld [vmem:[%s7213 + $0x12a] sm:$0xff]
  %v7368 = vld [vmem:[%s7213 + $0x13a] sm:$0xff]
  %v7369 = vld [vmem:[%s7213 + $0x142] sm:$0xff]
  %v7370 = vld [vmem:[%s7213 + $0x152] sm:$0xff]
  %v7371 = vld [vmem:[%s7213 + $0x15a] sm:$0xff]
  %v7372 = vld [vmem:[%s7213 + $0x16a] sm:$0xff]
  %v7373 = vld [vmem:[%s7213 + $0x172] sm:$0xff]
  %v7374 = vld [vmem:[%s7213 + $0x1b2] sm:$0xff]
  %v7375 = vld [vmem:[%s7213 + $0x1ba] sm:$0xff]
  %v7376 = vld [vmem:[%s7213 + $0x1ca] sm:$0xff]
  %v7377 = vld [vmem:[%s7213 + $0x1d2] sm:$0xff]
  %v7378 = vld [vmem:[%s7213 + $0x1e2] sm:$0xff]
  %v7379 = vld [vmem:[%s7213 + $0x1ea] sm:$0xff]
  %v7380 = vld [vmem:[%s7213 + $0x1fa] sm:$0xff]
  %v7381 = vld [vmem:[%s7213 + $0x202] sm:$0xff]
  %v7382 = vld [vmem:[%s7213 + $0x212] sm:$0xff]
  %v7383 = vld [vmem:[%s7213 + $0x21a] sm:$0xff]
  %v7384 = vld [vmem:[%s7213 + $0x22a] sm:$0xff]
  %v7385 = vld [vmem:[%s7213 + $0x232] sm:$0xff]
  %v7386 = vld [vmem:[%s7213 + $0x242] sm:$0xff]
  %v7387 = vld [vmem:[%s7213 + $0x24a] sm:$0xff]
  %v7388 = vld [vmem:[%s7213 + $0x25a] sm:$0xff]
  %v7389 = vld [vmem:[%s7213 + $0x262] sm:$0xff]
  %v7390 = vld [vmem:[%s7213 + $0x272] sm:$0xff]
  %v7391 = vld [vmem:[%s7213 + $0x27a] sm:$0xff]
  %v7392 = vld [vmem:[%s7213 + $0x28a] sm:$0xff]
  %v7393 = vld [vmem:[%s7213 + $0x292] sm:$0xff]
  %v7394 = vld [vmem:[%s7213 + $0x2a2] sm:$0xff]
  %v7395 = vld [vmem:[%s7213 + $0x2aa] sm:$0xff]
  %v7396 = vld [vmem:[%s7213 + $0x2ba] sm:$0xff]
  %v7397 = vld [vmem:[%s7213 + $0x2c2] sm:$0xff]
  %v7398 = vld [vmem:[%s7213 + $0x2d2] sm:$0xff]
  %v7399 = vld [vmem:[%s7213 + $0x2da] sm:$0xff]
  %v7400 = vld [vmem:[%s7213 + $0x2ea] sm:$0xff]
  %v7401 = vld [vmem:[%s7213 + $0x2f2] sm:$0xff]
  %v7402 = vld [vmem:[%s7213 + $0x302] sm:$0xff]
  %v7403 = vld [vmem:[%s7213 + $0x30a] sm:$0xff]
  %v7404 = vld [vmem:[%s7213 + $0x31a] sm:$0xff]
  %v7405 = vld [vmem:[%s7213 + $0x322] sm:$0xff]
  %7470 = vrot.lane.b32.xlu0 %v6893, 16
  %v7471 = vpop.permute.xlu0 %7470
  %7472 = vrot.lane.b32.xlu0 %v6894, 16
  %v7473 = vpop.permute.xlu0 %7472
  %7474 = vrot.lane.b32.xlu0 %v6895, 16
  %v7475 = vpop.permute.xlu0 %7474
  %7476 = vrot.lane.b32.xlu0 %v6896, 16
  %v7477 = vpop.permute.xlu0 %7476
  %7478 = vrot.lane.b32.xlu0 %v6897, 16
  %v7479 = vpop.permute.xlu0 %7478
  %7480 = vrot.lane.b32.xlu0 %v6898, 16
  %v7481 = vpop.permute.xlu0 %7480
  %7482 = vrot.lane.b32.xlu0 %v6899, 16
  %v7483 = vpop.permute.xlu0 %7482
  %7484 = vrot.lane.b32.xlu0 %v6900, 16
  %v7485 = vpop.permute.xlu0 %7484
  %7486 = vrot.lane.b32.xlu0 %v6901, 16
  %v7487 = vpop.permute.xlu0 %7486
  %7488 = vrot.lane.b32.xlu0 %v6902, 16
  %v7489 = vpop.permute.xlu0 %7488
  %7490 = vrot.lane.b32.xlu0 %v6903, 16
  %v7491 = vpop.permute.xlu0 %7490
  %7492 = vrot.lane.b32.xlu0 %v6904, 16
  %v7493 = vpop.permute.xlu0 %7492
  %7494 = vrot.lane.b32.xlu0 %v6905, 16
  %v7495 = vpop.permute.xlu0 %7494
  %7496 = vrot.lane.b32.xlu0 %v6906, 16
  %v7497 = vpop.permute.xlu0 %7496
  %7498 = vrot.lane.b32.xlu0 %v6907, 16
  %v7499 = vpop.permute.xlu0 %7498
  %7500 = vrot.lane.b32.xlu0 %v6908, 16
  %v7501 = vpop.permute.xlu0 %7500
  %7502 = vrot.lane.b32.xlu0 %v6909, 16
  %v7503 = vpop.permute.xlu0 %7502
  %7504 = vrot.lane.b32.xlu0 %v6910, 16
  %v7505 = vpop.permute.xlu0 %7504
  %7506 = vrot.lane.b32.xlu0 %v6911, 16
  %v7507 = vpop.permute.xlu0 %7506
  %7508 = vrot.lane.b32.xlu0 %v6912, 16
  %v7509 = vpop.permute.xlu0 %7508
  %7510 = vrot.lane.b32.xlu0 %v6913, 16
  %v7511 = vpop.permute.xlu0 %7510
  %7512 = vrot.lane.b32.xlu0 %v6914, 16
  %v7513 = vpop.permute.xlu0 %7512
  %7514 = vrot.lane.b32.xlu0 %v6915, 16
  %v7515 = vpop.permute.xlu0 %7514
  %7516 = vrot.lane.b32.xlu0 %v6916, 16
  %v7517 = vpop.permute.xlu0 %7516
  %7518 = vrot.lane.b32.xlu0 %v6917, 16
  %v7519 = vpop.permute.xlu0 %7518
  %7520 = vrot.lane.b32.xlu0 %v6918, 16
  %v7521 = vpop.permute.xlu0 %7520
  %7522 = vrot.lane.b32.xlu0 %v6919, 16
  %v7523 = vpop.permute.xlu0 %7522
  %7524 = vrot.lane.b32.xlu0 %v6920, 16
  %v7525 = vpop.permute.xlu0 %7524
  %7526 = vrot.lane.b32.xlu0 %v6921, 16
  %v7527 = vpop.permute.xlu0 %7526
  %7528 = vrot.lane.b32.xlu0 %v6922, 16
  %v7529 = vpop.permute.xlu0 %7528
  %7530 = vrot.lane.b32.xlu0 %v6923, 16
  %v7531 = vpop.permute.xlu0 %7530
  %7532 = vrot.lane.b32.xlu0 %v6924, 16
  %v7533 = vpop.permute.xlu0 %7532
  %7534 = vrot.lane.b32.xlu0 %v6925, 16
  %v7535 = vpop.permute.xlu0 %7534
  %7536 = vrot.lane.b32.xlu0 %v6926, 16
  %v7537 = vpop.permute.xlu0 %7536
  %7538 = vrot.lane.b32.xlu0 %v6927, 16
  %v7539 = vpop.permute.xlu0 %7538
  %7540 = vrot.lane.b32.xlu0 %v6928, 16
  %v7541 = vpop.permute.xlu0 %7540
  %7542 = vrot.lane.b32.xlu0 %v6929, 16
  %v7543 = vpop.permute.xlu0 %7542
  %7544 = vrot.lane.b32.xlu0 %v6930, 16
  %v7545 = vpop.permute.xlu0 %7544
  %7546 = vrot.lane.b32.xlu0 %v6931, 16
  %v7547 = vpop.permute.xlu0 %7546
  %7548 = vrot.lane.b32.xlu0 %v6932, 16
  %v7549 = vpop.permute.xlu0 %7548
  %7550 = vrot.lane.b32.xlu0 %v6933, 16
  %v7551 = vpop.permute.xlu0 %7550
  %7552 = vrot.lane.b32.xlu0 %v6934, 16
  %v7553 = vpop.permute.xlu0 %7552
  %7554 = vrot.lane.b32.xlu0 %v6935, 16
  %v7555 = vpop.permute.xlu0 %7554
  %7556 = vrot.lane.b32.xlu0 %v6936, 16
  %v7557 = vpop.permute.xlu0 %7556
  %7558 = vrot.lane.b32.xlu0 %v6937, 16
  %v7559 = vpop.permute.xlu0 %7558
  %7560 = vrot.lane.b32.xlu0 %v6938, 16
  %v7561 = vpop.permute.xlu0 %7560
  %7562 = vrot.lane.b32.xlu0 %v6939, 16
  %v7563 = vpop.permute.xlu0 %7562
  %7564 = vrot.lane.b32.xlu0 %v6940, 16
  %v7565 = vpop.permute.xlu0 %7564
  %7566 = vrot.lane.b32.xlu0 %v6941, 16
  %v7567 = vpop.permute.xlu0 %7566
  %7568 = vrot.lane.b32.xlu0 %v6942, 16
  %v7569 = vpop.permute.xlu0 %7568
  %7570 = vrot.lane.b32.xlu0 %v6943, 16
  %v7571 = vpop.permute.xlu0 %7570
  %7572 = vrot.lane.b32.xlu0 %v6944, 16
  %v7573 = vpop.permute.xlu0 %7572
  %7574 = vrot.lane.b32.xlu0 %v6945, 16
  %v7575 = vpop.permute.xlu0 %7574
  %7576 = vrot.lane.b32.xlu0 %v6946, 16
  %v7577 = vpop.permute.xlu0 %7576
  %7578 = vrot.lane.b32.xlu0 %v6947, 16
  %v7579 = vpop.permute.xlu0 %7578
  %7580 = vrot.lane.b32.xlu0 %v6948, 16
  %v7581 = vpop.permute.xlu0 %7580
  %7582 = vrot.lane.b32.xlu0 %v6949, 16
  %v7583 = vpop.permute.xlu0 %7582
  %7584 = vrot.lane.b32.xlu0 %v6950, 16
  %v7585 = vpop.permute.xlu0 %7584
  %7586 = vrot.lane.b32.xlu0 %v6951, 16
  %v7587 = vpop.permute.xlu0 %7586
  %7588 = vrot.lane.b32.xlu0 %v6952, 16
  %v7589 = vpop.permute.xlu0 %7588
  %7590 = vrot.lane.b32.xlu0 %v6953, 16
  %v7591 = vpop.permute.xlu0 %7590
  %7592 = vrot.lane.b32.xlu0 %v6954, 16
  %v7593 = vpop.permute.xlu0 %7592
  %7594 = vrot.lane.b32.xlu0 %v6955, 16
  %v7595 = vpop.permute.xlu0 %7594
  %7596 = vrot.lane.b32.xlu0 %v6956, 16
  %v7597 = vpop.permute.xlu0 %7596
  %7726 = vrot.lane.b32.xlu0 %v6957, 32
  %v7727 = vpop.permute.xlu0 %7726
  %7728 = vrot.lane.b32.xlu0 %v6958, 32
  %v7729 = vpop.permute.xlu0 %7728
  %7730 = vrot.lane.b32.xlu0 %v6959, 32
  %v7731 = vpop.permute.xlu0 %7730
  %7732 = vrot.lane.b32.xlu0 %v6960, 32
  %v7733 = vpop.permute.xlu0 %7732
  %7734 = vrot.lane.b32.xlu0 %v6961, 32
  %v7735 = vpop.permute.xlu0 %7734
  %7736 = vrot.lane.b32.xlu0 %v6962, 32
  %v7737 = vpop.permute.xlu0 %7736
  %7738 = vrot.lane.b32.xlu0 %v6963, 32
  %v7739 = vpop.permute.xlu0 %7738
  %7740 = vrot.lane.b32.xlu0 %v6964, 32
  %v7741 = vpop.permute.xlu0 %7740
  %7742 = vrot.lane.b32.xlu0 %v6965, 32
  %v7743 = vpop.permute.xlu0 %7742
  %7744 = vrot.lane.b32.xlu0 %v6966, 32
  %v7745 = vpop.permute.xlu0 %7744
  %7746 = vrot.lane.b32.xlu0 %v6967, 32
  %v7747 = vpop.permute.xlu0 %7746
  %7748 = vrot.lane.b32.xlu0 %v6968, 32
  %v7749 = vpop.permute.xlu0 %7748
  %7750 = vrot.lane.b32.xlu0 %v6969, 32
  %v7751 = vpop.permute.xlu0 %7750
  %7752 = vrot.lane.b32.xlu0 %v6970, 32
  %v7753 = vpop.permute.xlu0 %7752
  %7754 = vrot.lane.b32.xlu0 %v6971, 32
  %v7755 = vpop.permute.xlu0 %7754
  %7756 = vrot.lane.b32.xlu0 %v6972, 32
  %v7757 = vpop.permute.xlu0 %7756
  %7758 = vrot.lane.b32.xlu0 %v6973, 32
  %v7759 = vpop.permute.xlu0 %7758
  %7760 = vrot.lane.b32.xlu0 %v6974, 32
  %v7761 = vpop.permute.xlu0 %7760
  %7762 = vrot.lane.b32.xlu0 %v6975, 32
  %v7763 = vpop.permute.xlu0 %7762
  %7764 = vrot.lane.b32.xlu0 %v6976, 32
  %v7765 = vpop.permute.xlu0 %7764
  %7766 = vrot.lane.b32.xlu0 %v6977, 32
  %v7767 = vpop.permute.xlu0 %7766
  %7768 = vrot.lane.b32.xlu0 %v6978, 32
  %v7769 = vpop.permute.xlu0 %7768
  %7770 = vrot.lane.b32.xlu0 %v6979, 32
  %v7771 = vpop.permute.xlu0 %7770
  %7772 = vrot.lane.b32.xlu0 %v6980, 32
  %v7773 = vpop.permute.xlu0 %7772
  %7774 = vrot.lane.b32.xlu0 %v6981, 32
  %v7775 = vpop.permute.xlu0 %7774
  %7776 = vrot.lane.b32.xlu0 %v6982, 32
  %v7777 = vpop.permute.xlu0 %7776
  %7778 = vrot.lane.b32.xlu0 %v6983, 32
  %v7779 = vpop.permute.xlu0 %7778
  %7780 = vrot.lane.b32.xlu0 %v6984, 32
  %v7781 = vpop.permute.xlu0 %7780
  %7782 = vrot.lane.b32.xlu0 %v6985, 32
  %v7783 = vpop.permute.xlu0 %7782
  %7784 = vrot.lane.b32.xlu0 %v6986, 32
  %v7785 = vpop.permute.xlu0 %7784
  %7786 = vrot.lane.b32.xlu0 %v6987, 32
  %v7787 = vpop.permute.xlu0 %7786
  %7788 = vrot.lane.b32.xlu0 %v6988, 32
  %v7789 = vpop.permute.xlu0 %7788
  %7790 = vrot.lane.b32.xlu0 %v6989, 32
  %v7791 = vpop.permute.xlu0 %7790
  %7792 = vrot.lane.b32.xlu0 %v6990, 32
  %v7793 = vpop.permute.xlu0 %7792
  %7794 = vrot.lane.b32.xlu0 %v6991, 32
  %v7795 = vpop.permute.xlu0 %7794
  %7796 = vrot.lane.b32.xlu0 %v6992, 32
  %v7797 = vpop.permute.xlu0 %7796
  %7798 = vrot.lane.b32.xlu0 %v6993, 32
  %v7799 = vpop.permute.xlu0 %7798
  %7800 = vrot.lane.b32.xlu0 %v6994, 32
  %v7801 = vpop.permute.xlu0 %7800
  %7802 = vrot.lane.b32.xlu0 %v6995, 32
  %v7803 = vpop.permute.xlu0 %7802
  %7804 = vrot.lane.b32.xlu0 %v6996, 32
  %v7805 = vpop.permute.xlu0 %7804
  %7806 = vrot.lane.b32.xlu0 %v6997, 32
  %v7807 = vpop.permute.xlu0 %7806
  %7808 = vrot.lane.b32.xlu0 %v6998, 32
  %v7809 = vpop.permute.xlu0 %7808
  %7810 = vrot.lane.b32.xlu0 %v6999, 32
  %v7811 = vpop.permute.xlu0 %7810
  %7812 = vrot.lane.b32.xlu0 %v7000, 32
  %v7813 = vpop.permute.xlu0 %7812
  %7814 = vrot.lane.b32.xlu0 %v7001, 32
  %v7815 = vpop.permute.xlu0 %7814
  %7816 = vrot.lane.b32.xlu0 %v7002, 32
  %v7817 = vpop.permute.xlu0 %7816
  %7818 = vrot.lane.b32.xlu0 %v7003, 32
  %v7819 = vpop.permute.xlu0 %7818
  %7820 = vrot.lane.b32.xlu0 %v7004, 32
  %v7821 = vpop.permute.xlu0 %7820
  %7822 = vrot.lane.b32.xlu0 %v7005, 32
  %v7823 = vpop.permute.xlu0 %7822
  %7824 = vrot.lane.b32.xlu0 %v7006, 32
  %v7825 = vpop.permute.xlu0 %7824
  %7826 = vrot.lane.b32.xlu0 %v7007, 32
  %v7827 = vpop.permute.xlu0 %7826
  %7828 = vrot.lane.b32.xlu0 %v7008, 32
  %v7829 = vpop.permute.xlu0 %7828
  %7830 = vrot.lane.b32.xlu0 %v7009, 32
  %v7831 = vpop.permute.xlu0 %7830
  %7832 = vrot.lane.b32.xlu0 %v7010, 32
  %v7833 = vpop.permute.xlu0 %7832
  %7834 = vrot.lane.b32.xlu0 %v7011, 32
  %v7835 = vpop.permute.xlu0 %7834
  %7836 = vrot.lane.b32.xlu0 %v7012, 32
  %v7837 = vpop.permute.xlu0 %7836
  %7838 = vrot.lane.b32.xlu0 %v7013, 32
  %v7839 = vpop.permute.xlu0 %7838
  %7840 = vrot.lane.b32.xlu0 %v7014, 32
  %v7841 = vpop.permute.xlu0 %7840
  %7842 = vrot.lane.b32.xlu0 %v7015, 32
  %v7843 = vpop.permute.xlu0 %7842
  %7844 = vrot.lane.b32.xlu0 %v7016, 32
  %v7845 = vpop.permute.xlu0 %7844
  %7846 = vrot.lane.b32.xlu0 %v7017, 32
  %v7847 = vpop.permute.xlu0 %7846
  %7848 = vrot.lane.b32.xlu0 %v7018, 32
  %v7849 = vpop.permute.xlu0 %7848
  %7850 = vrot.lane.b32.xlu0 %v7019, 32
  %v7851 = vpop.permute.xlu0 %7850
  %7852 = vrot.lane.b32.xlu0 %v7020, 32
  %v7853 = vpop.permute.xlu0 %7852
  %7982 = vrot.lane.b32.xlu0 %v7021, 48
  %v7983 = vpop.permute.xlu0 %7982
  %7984 = vrot.lane.b32.xlu0 %v7022, 48
  %v7985 = vpop.permute.xlu0 %7984
  %7986 = vrot.lane.b32.xlu0 %v7023, 48
  %v7987 = vpop.permute.xlu0 %7986
  %7988 = vrot.lane.b32.xlu0 %v7024, 48
  %v7989 = vpop.permute.xlu0 %7988
  %7990 = vrot.lane.b32.xlu0 %v7025, 48
  %v7991 = vpop.permute.xlu0 %7990
  %7992 = vrot.lane.b32.xlu0 %v7026, 48
  %v7993 = vpop.permute.xlu0 %7992
  %7994 = vrot.lane.b32.xlu0 %v7027, 48
  %v7995 = vpop.permute.xlu0 %7994
  %7996 = vrot.lane.b32.xlu0 %v7028, 48
  %v7997 = vpop.permute.xlu0 %7996
  %7998 = vrot.lane.b32.xlu0 %v7029, 48
  %v7999 = vpop.permute.xlu0 %7998
  %8000 = vrot.lane.b32.xlu0 %v7030, 48
  %v8001 = vpop.permute.xlu0 %8000
  %8002 = vrot.lane.b32.xlu0 %v7031, 48
  %v8003 = vpop.permute.xlu0 %8002
  %8004 = vrot.lane.b32.xlu0 %v7032, 48
  %v8005 = vpop.permute.xlu0 %8004
  %8006 = vrot.lane.b32.xlu0 %v7033, 48
  %v8007 = vpop.permute.xlu0 %8006
  %8008 = vrot.lane.b32.xlu0 %v7034, 48
  %v8009 = vpop.permute.xlu0 %8008
  %8010 = vrot.lane.b32.xlu0 %v7035, 48
  %v8011 = vpop.permute.xlu0 %8010
  %8012 = vrot.lane.b32.xlu0 %v7036, 48
  %v8013 = vpop.permute.xlu0 %8012
  %8014 = vrot.lane.b32.xlu0 %v7037, 48
  %v8015 = vpop.permute.xlu0 %8014
  %8016 = vrot.lane.b32.xlu0 %v7038, 48
  %v8017 = vpop.permute.xlu0 %8016
  %8018 = vrot.lane.b32.xlu0 %v7039, 48
  %v8019 = vpop.permute.xlu0 %8018
  %8020 = vrot.lane.b32.xlu0 %v7040, 48
  %v8021 = vpop.permute.xlu0 %8020
  %8022 = vrot.lane.b32.xlu0 %v7041, 48
  %v8023 = vpop.permute.xlu0 %8022
  %8024 = vrot.lane.b32.xlu0 %v7042, 48
  %v8025 = vpop.permute.xlu0 %8024
  %8026 = vrot.lane.b32.xlu0 %v7043, 48
  %v8027 = vpop.permute.xlu0 %8026
  %8028 = vrot.lane.b32.xlu0 %v7044, 48
  %v8029 = vpop.permute.xlu0 %8028
  %8030 = vrot.lane.b32.xlu0 %v7045, 48
  %v8031 = vpop.permute.xlu0 %8030
  %8032 = vrot.lane.b32.xlu0 %v7046, 48
  %v8033 = vpop.permute.xlu0 %8032
  %8034 = vrot.lane.b32.xlu0 %v7047, 48
  %v8035 = vpop.permute.xlu0 %8034
  %8036 = vrot.lane.b32.xlu0 %v7048, 48
  %v8037 = vpop.permute.xlu0 %8036
  %8038 = vrot.lane.b32.xlu0 %v7049, 48
  %v8039 = vpop.permute.xlu0 %8038
  %8040 = vrot.lane.b32.xlu0 %v7050, 48
  %v8041 = vpop.permute.xlu0 %8040
  %8042 = vrot.lane.b32.xlu0 %v7051, 48
  %v8043 = vpop.permute.xlu0 %8042
  %8044 = vrot.lane.b32.xlu0 %v7052, 48
  %v8045 = vpop.permute.xlu0 %8044
  %8046 = vrot.lane.b32.xlu0 %v7053, 48
  %v8047 = vpop.permute.xlu0 %8046
  %8048 = vrot.lane.b32.xlu0 %v7054, 48
  %v8049 = vpop.permute.xlu0 %8048
  %8050 = vrot.lane.b32.xlu0 %v7055, 48
  %v8051 = vpop.permute.xlu0 %8050
  %8052 = vrot.lane.b32.xlu0 %v7056, 48
  %v8053 = vpop.permute.xlu0 %8052
  %8054 = vrot.lane.b32.xlu0 %v7057, 48
  %v8055 = vpop.permute.xlu0 %8054
  %8056 = vrot.lane.b32.xlu0 %v7058, 48
  %v8057 = vpop.permute.xlu0 %8056
  %8058 = vrot.lane.b32.xlu0 %v7059, 48
  %v8059 = vpop.permute.xlu0 %8058
  %8060 = vrot.lane.b32.xlu0 %v7060, 48
  %v8061 = vpop.permute.xlu0 %8060
  %8062 = vrot.lane.b32.xlu0 %v7061, 48
  %v8063 = vpop.permute.xlu0 %8062
  %8064 = vrot.lane.b32.xlu0 %v7062, 48
  %v8065 = vpop.permute.xlu0 %8064
  %8066 = vrot.lane.b32.xlu0 %v7063, 48
  %v8067 = vpop.permute.xlu0 %8066
  %8068 = vrot.lane.b32.xlu0 %v7064, 48
  %v8069 = vpop.permute.xlu0 %8068
  %8070 = vrot.lane.b32.xlu0 %v7065, 48
  %v8071 = vpop.permute.xlu0 %8070
  %8072 = vrot.lane.b32.xlu0 %v7066, 48
  %v8073 = vpop.permute.xlu0 %8072
  %8074 = vrot.lane.b32.xlu0 %v7067, 48
  %v8075 = vpop.permute.xlu0 %8074
  %8076 = vrot.lane.b32.xlu0 %v7068, 48
  %v8077 = vpop.permute.xlu0 %8076
  %8078 = vrot.lane.b32.xlu0 %v7069, 48
  %v8079 = vpop.permute.xlu0 %8078
  %8080 = vrot.lane.b32.xlu0 %v7070, 48
  %v8081 = vpop.permute.xlu0 %8080
  %8082 = vrot.lane.b32.xlu0 %v7071, 48
  %v8083 = vpop.permute.xlu0 %8082
  %8084 = vrot.lane.b32.xlu0 %v7072, 48
  %v8085 = vpop.permute.xlu0 %8084
  %8086 = vrot.lane.b32.xlu0 %v7073, 48
  %v8087 = vpop.permute.xlu0 %8086
  %8088 = vrot.lane.b32.xlu0 %v7074, 48
  %v8089 = vpop.permute.xlu0 %8088
  %8090 = vrot.lane.b32.xlu0 %v7075, 48
  %v8091 = vpop.permute.xlu0 %8090
  %8092 = vrot.lane.b32.xlu0 %v7076, 48
  %v8093 = vpop.permute.xlu0 %8092
  %8094 = vrot.lane.b32.xlu0 %v7077, 48
  %v8095 = vpop.permute.xlu0 %8094
  %8096 = vrot.lane.b32.xlu0 %v7078, 48
  %v8097 = vpop.permute.xlu0 %8096
  %8098 = vrot.lane.b32.xlu0 %v7079, 48
  %v8099 = vpop.permute.xlu0 %8098
  %8100 = vrot.lane.b32.xlu0 %v7080, 48
  %v8101 = vpop.permute.xlu0 %8100
  %8102 = vrot.lane.b32.xlu0 %v7081, 48
  %v8103 = vpop.permute.xlu0 %8102
  %8104 = vrot.lane.b32.xlu0 %v7082, 48
  %v8105 = vpop.permute.xlu0 %8104
  %8106 = vrot.lane.b32.xlu0 %v7083, 48
  %v8107 = vpop.permute.xlu0 %8106
  %8108 = vrot.lane.b32.xlu0 %v7084, 48
  %v8109 = vpop.permute.xlu0 %8108
  %8238 = vrot.lane.b32.xlu0 %v7085, 64
  %v8239 = vpop.permute.xlu0 %8238
  %8240 = vrot.lane.b32.xlu0 %v7086, 64
  %v8241 = vpop.permute.xlu0 %8240
  %8242 = vrot.lane.b32.xlu0 %v7087, 64
  %v8243 = vpop.permute.xlu0 %8242
  %8244 = vrot.lane.b32.xlu0 %v7088, 64
  %v8245 = vpop.permute.xlu0 %8244
  %8246 = vrot.lane.b32.xlu0 %v7089, 64
  %v8247 = vpop.permute.xlu0 %8246
  %8248 = vrot.lane.b32.xlu0 %v7090, 64
  %v8249 = vpop.permute.xlu0 %8248
  %8250 = vrot.lane.b32.xlu0 %v7091, 64
  %v8251 = vpop.permute.xlu0 %8250
  %8252 = vrot.lane.b32.xlu0 %v7092, 64
  %v8253 = vpop.permute.xlu0 %8252
  %8254 = vrot.lane.b32.xlu0 %v7093, 64
  %v8255 = vpop.permute.xlu0 %8254
  %8256 = vrot.lane.b32.xlu0 %v7094, 64
  %v8257 = vpop.permute.xlu0 %8256
  %8258 = vrot.lane.b32.xlu0 %v7095, 64
  %v8259 = vpop.permute.xlu0 %8258
  %8260 = vrot.lane.b32.xlu0 %v7096, 64
  %v8261 = vpop.permute.xlu0 %8260
  %8262 = vrot.lane.b32.xlu0 %v7097, 64
  %v8263 = vpop.permute.xlu0 %8262
  %8264 = vrot.lane.b32.xlu0 %v7098, 64
  %v8265 = vpop.permute.xlu0 %8264
  %8266 = vrot.lane.b32.xlu0 %v7099, 64
  %v8267 = vpop.permute.xlu0 %8266
  %8268 = vrot.lane.b32.xlu0 %v7100, 64
  %v8269 = vpop.permute.xlu0 %8268
  %8270 = vrot.lane.b32.xlu0 %v7101, 64
  %v8271 = vpop.permute.xlu0 %8270
  %8272 = vrot.lane.b32.xlu0 %v7102, 64
  %v8273 = vpop.permute.xlu0 %8272
  %8274 = vrot.lane.b32.xlu0 %v7103, 64
  %v8275 = vpop.permute.xlu0 %8274
  %8276 = vrot.lane.b32.xlu0 %v7104, 64
  %v8277 = vpop.permute.xlu0 %8276
  %8278 = vrot.lane.b32.xlu0 %v7105, 64
  %v8279 = vpop.permute.xlu0 %8278
  %8280 = vrot.lane.b32.xlu0 %v7106, 64
  %v8281 = vpop.permute.xlu0 %8280
  %8282 = vrot.lane.b32.xlu0 %v7107, 64
  %v8283 = vpop.permute.xlu0 %8282
  %8284 = vrot.lane.b32.xlu0 %v7108, 64
  %v8285 = vpop.permute.xlu0 %8284
  %8286 = vrot.lane.b32.xlu0 %v7109, 64
  %v8287 = vpop.permute.xlu0 %8286
  %8288 = vrot.lane.b32.xlu0 %v7110, 64
  %v8289 = vpop.permute.xlu0 %8288
  %8290 = vrot.lane.b32.xlu0 %v7111, 64
  %v8291 = vpop.permute.xlu0 %8290
  %8292 = vrot.lane.b32.xlu0 %v7112, 64
  %v8293 = vpop.permute.xlu0 %8292
  %8294 = vrot.lane.b32.xlu0 %v7113, 64
  %v8295 = vpop.permute.xlu0 %8294
  %8296 = vrot.lane.b32.xlu0 %v7114, 64
  %v8297 = vpop.permute.xlu0 %8296
  %8298 = vrot.lane.b32.xlu0 %v7115, 64
  %v8299 = vpop.permute.xlu0 %8298
  %8300 = vrot.lane.b32.xlu0 %v7116, 64
  %v8301 = vpop.permute.xlu0 %8300
  %8302 = vrot.lane.b32.xlu0 %v7117, 64
  %v8303 = vpop.permute.xlu0 %8302
  %8304 = vrot.lane.b32.xlu0 %v7118, 64
  %v8305 = vpop.permute.xlu0 %8304
  %8306 = vrot.lane.b32.xlu0 %v7119, 64
  %v8307 = vpop.permute.xlu0 %8306
  %8308 = vrot.lane.b32.xlu0 %v7120, 64
  %v8309 = vpop.permute.xlu0 %8308
  %8310 = vrot.lane.b32.xlu0 %v7121, 64
  %v8311 = vpop.permute.xlu0 %8310
  %8312 = vrot.lane.b32.xlu0 %v7122, 64
  %v8313 = vpop.permute.xlu0 %8312
  %8314 = vrot.lane.b32.xlu0 %v7123, 64
  %v8315 = vpop.permute.xlu0 %8314
  %8316 = vrot.lane.b32.xlu0 %v7124, 64
  %v8317 = vpop.permute.xlu0 %8316
  %8318 = vrot.lane.b32.xlu0 %v7125, 64
  %v8319 = vpop.permute.xlu0 %8318
  %8320 = vrot.lane.b32.xlu0 %v7126, 64
  %v8321 = vpop.permute.xlu0 %8320
  %8322 = vrot.lane.b32.xlu0 %v7127, 64
  %v8323 = vpop.permute.xlu0 %8322
  %8324 = vrot.lane.b32.xlu0 %v7128, 64
  %v8325 = vpop.permute.xlu0 %8324
  %8326 = vrot.lane.b32.xlu0 %v7129, 64
  %v8327 = vpop.permute.xlu0 %8326
  %8328 = vrot.lane.b32.xlu0 %v7130, 64
  %v8329 = vpop.permute.xlu0 %8328
  %8330 = vrot.lane.b32.xlu0 %v7131, 64
  %v8331 = vpop.permute.xlu0 %8330
  %8332 = vrot.lane.b32.xlu0 %v7132, 64
  %v8333 = vpop.permute.xlu0 %8332
  %8334 = vrot.lane.b32.xlu0 %v7133, 64
  %v8335 = vpop.permute.xlu0 %8334
  %8336 = vrot.lane.b32.xlu0 %v7134, 64
  %v8337 = vpop.permute.xlu0 %8336
  %8338 = vrot.lane.b32.xlu0 %v7135, 64
  %v8339 = vpop.permute.xlu0 %8338
  %8340 = vrot.lane.b32.xlu0 %v7136, 64
  %v8341 = vpop.permute.xlu0 %8340
  %8342 = vrot.lane.b32.xlu0 %v7137, 64
  %v8343 = vpop.permute.xlu0 %8342
  %8344 = vrot.lane.b32.xlu0 %v7138, 64
  %v8345 = vpop.permute.xlu0 %8344
  %8346 = vrot.lane.b32.xlu0 %v7139, 64
  %v8347 = vpop.permute.xlu0 %8346
  %8348 = vrot.lane.b32.xlu0 %v7140, 64
  %v8349 = vpop.permute.xlu0 %8348
  %8350 = vrot.lane.b32.xlu0 %v7141, 64
  %v8351 = vpop.permute.xlu0 %8350
  %8352 = vrot.lane.b32.xlu0 %v7142, 64
  %v8353 = vpop.permute.xlu0 %8352
  %8354 = vrot.lane.b32.xlu0 %v7143, 64
  %v8355 = vpop.permute.xlu0 %8354
  %8356 = vrot.lane.b32.xlu0 %v7144, 64
  %v8357 = vpop.permute.xlu0 %8356
  %8358 = vrot.lane.b32.xlu0 %v7145, 64
  %v8359 = vpop.permute.xlu0 %8358
  %8360 = vrot.lane.b32.xlu0 %v7146, 64
  %v8361 = vpop.permute.xlu0 %8360
  %8362 = vrot.lane.b32.xlu0 %v7147, 64
  %v8363 = vpop.permute.xlu0 %8362
  %8364 = vrot.lane.b32.xlu0 %v7148, 64
  %v8365 = vpop.permute.xlu0 %8364
  %8494 = vrot.lane.b32.xlu0 %v7149, 80
  %v8495 = vpop.permute.xlu0 %8494
  %8496 = vrot.lane.b32.xlu0 %v7150, 80
  %v8497 = vpop.permute.xlu0 %8496
  %8498 = vrot.lane.b32.xlu0 %v7151, 80
  %v8499 = vpop.permute.xlu0 %8498
  %8500 = vrot.lane.b32.xlu0 %v7152, 80
  %v8501 = vpop.permute.xlu0 %8500
  %8502 = vrot.lane.b32.xlu0 %v7153, 80
  %v8503 = vpop.permute.xlu0 %8502
  %8504 = vrot.lane.b32.xlu0 %v7154, 80
  %v8505 = vpop.permute.xlu0 %8504
  %8506 = vrot.lane.b32.xlu0 %v7155, 80
  %v8507 = vpop.permute.xlu0 %8506
  %8508 = vrot.lane.b32.xlu0 %v7156, 80
  %v8509 = vpop.permute.xlu0 %8508
  %8510 = vrot.lane.b32.xlu0 %v7157, 80
  %v8511 = vpop.permute.xlu0 %8510
  %8512 = vrot.lane.b32.xlu0 %v7158, 80
  %v8513 = vpop.permute.xlu0 %8512
  %8514 = vrot.lane.b32.xlu0 %v7159, 80
  %v8515 = vpop.permute.xlu0 %8514
  %8516 = vrot.lane.b32.xlu0 %v7160, 80
  %v8517 = vpop.permute.xlu0 %8516
  %8518 = vrot.lane.b32.xlu0 %v7161, 80
  %v8519 = vpop.permute.xlu0 %8518
  %8520 = vrot.lane.b32.xlu0 %v7162, 80
  %v8521 = vpop.permute.xlu0 %8520
  %8522 = vrot.lane.b32.xlu0 %v7163, 80
  %v8523 = vpop.permute.xlu0 %8522
  %8524 = vrot.lane.b32.xlu0 %v7164, 80
  %v8525 = vpop.permute.xlu0 %8524
  %8526 = vrot.lane.b32.xlu0 %v7165, 80
  %v8527 = vpop.permute.xlu0 %8526
  %8528 = vrot.lane.b32.xlu0 %v7166, 80
  %v8529 = vpop.permute.xlu0 %8528
  %8530 = vrot.lane.b32.xlu0 %v7167, 80
  %v8531 = vpop.permute.xlu0 %8530
  %8532 = vrot.lane.b32.xlu0 %v7168, 80
  %v8533 = vpop.permute.xlu0 %8532
  %8534 = vrot.lane.b32.xlu0 %v7169, 80
  %v8535 = vpop.permute.xlu0 %8534
  %8536 = vrot.lane.b32.xlu0 %v7170, 80
  %v8537 = vpop.permute.xlu0 %8536
  %8538 = vrot.lane.b32.xlu0 %v7171, 80
  %v8539 = vpop.permute.xlu0 %8538
  %8540 = vrot.lane.b32.xlu0 %v7172, 80
  %v8541 = vpop.permute.xlu0 %8540
  %8542 = vrot.lane.b32.xlu0 %v7173, 80
  %v8543 = vpop.permute.xlu0 %8542
  %8544 = vrot.lane.b32.xlu0 %v7174, 80
  %v8545 = vpop.permute.xlu0 %8544
  %8546 = vrot.lane.b32.xlu0 %v7175, 80
  %v8547 = vpop.permute.xlu0 %8546
  %8548 = vrot.lane.b32.xlu0 %v7176, 80
  %v8549 = vpop.permute.xlu0 %8548
  %8550 = vrot.lane.b32.xlu0 %v7177, 80
  %v8551 = vpop.permute.xlu0 %8550
  %8552 = vrot.lane.b32.xlu0 %v7178, 80
  %v8553 = vpop.permute.xlu0 %8552
  %8554 = vrot.lane.b32.xlu0 %v7179, 80
  %v8555 = vpop.permute.xlu0 %8554
  %8556 = vrot.lane.b32.xlu0 %v7180, 80
  %v8557 = vpop.permute.xlu0 %8556
  %8558 = vrot.lane.b32.xlu0 %v7181, 80
  %v8559 = vpop.permute.xlu0 %8558
  %8560 = vrot.lane.b32.xlu0 %v7182, 80
  %v8561 = vpop.permute.xlu0 %8560
  %8562 = vrot.lane.b32.xlu0 %v7183, 80
  %v8563 = vpop.permute.xlu0 %8562
  %8564 = vrot.lane.b32.xlu0 %v7184, 80
  %v8565 = vpop.permute.xlu0 %8564
  %8566 = vrot.lane.b32.xlu0 %v7185, 80
  %v8567 = vpop.permute.xlu0 %8566
  %8568 = vrot.lane.b32.xlu0 %v7186, 80
  %v8569 = vpop.permute.xlu0 %8568
  %8570 = vrot.lane.b32.xlu0 %v7187, 80
  %v8571 = vpop.permute.xlu0 %8570
  %8572 = vrot.lane.b32.xlu0 %v7188, 80
  %v8573 = vpop.permute.xlu0 %8572
  %8574 = vrot.lane.b32.xlu0 %v7189, 80
  %v8575 = vpop.permute.xlu0 %8574
  %8576 = vrot.lane.b32.xlu0 %v7190, 80
  %v8577 = vpop.permute.xlu0 %8576
  %8578 = vrot.lane.b32.xlu0 %v7191, 80
  %v8579 = vpop.permute.xlu0 %8578
  %8580 = vrot.lane.b32.xlu0 %v7192, 80
  %v8581 = vpop.permute.xlu0 %8580
  %8582 = vrot.lane.b32.xlu0 %v7193, 80
  %v8583 = vpop.permute.xlu0 %8582
  %8584 = vrot.lane.b32.xlu0 %v7194, 80
  %v8585 = vpop.permute.xlu0 %8584
  %8586 = vrot.lane.b32.xlu0 %v7195, 80
  %v8587 = vpop.permute.xlu0 %8586
  %8588 = vrot.lane.b32.xlu0 %v7196, 80
  %v8589 = vpop.permute.xlu0 %8588
  %8590 = vrot.lane.b32.xlu0 %v7197, 80
  %v8591 = vpop.permute.xlu0 %8590
  %8592 = vrot.lane.b32.xlu0 %v7198, 80
  %v8593 = vpop.permute.xlu0 %8592
  %8594 = vrot.lane.b32.xlu0 %v7199, 80
  %v8595 = vpop.permute.xlu0 %8594
  %8596 = vrot.lane.b32.xlu0 %v7200, 80
  %v8597 = vpop.permute.xlu0 %8596
  %8598 = vrot.lane.b32.xlu0 %v7201, 80
  %v8599 = vpop.permute.xlu0 %8598
  %8600 = vrot.lane.b32.xlu0 %v7202, 80
  %v8601 = vpop.permute.xlu0 %8600
  %8602 = vrot.lane.b32.xlu0 %v7203, 80
  %v8603 = vpop.permute.xlu0 %8602
  %8604 = vrot.lane.b32.xlu0 %v7204, 80
  %v8605 = vpop.permute.xlu0 %8604
  %8606 = vrot.lane.b32.xlu0 %v7205, 80
  %v8607 = vpop.permute.xlu0 %8606
  %8608 = vrot.lane.b32.xlu0 %v7206, 80
  %v8609 = vpop.permute.xlu0 %8608
  %8610 = vrot.lane.b32.xlu0 %v7207, 80
  %v8611 = vpop.permute.xlu0 %8610
  %8612 = vrot.lane.b32.xlu0 %v7208, 80
  %v8613 = vpop.permute.xlu0 %8612
  %8614 = vrot.lane.b32.xlu0 %v7209, 80
  %v8615 = vpop.permute.xlu0 %8614
  %8616 = vrot.lane.b32.xlu0 %v7210, 80
  %v8617 = vpop.permute.xlu0 %8616
  %8618 = vrot.lane.b32.xlu0 %v7211, 80
  %v8619 = vpop.permute.xlu0 %8618
  %8620 = vrot.lane.b32.xlu0 %v7212, 80
  %v8621 = vpop.permute.xlu0 %8620
  %8750 = vrot.lane.b32.xlu0 %v7214, 96
  %v8751 = vpop.permute.xlu0 %8750
  %8752 = vrot.lane.b32.xlu0 %v7215, 96
  %v8753 = vpop.permute.xlu0 %8752
  %8754 = vrot.lane.b32.xlu0 %v7216, 96
  %v8755 = vpop.permute.xlu0 %8754
  %8756 = vrot.lane.b32.xlu0 %v7217, 96
  %v8757 = vpop.permute.xlu0 %8756
  %8758 = vrot.lane.b32.xlu0 %v7218, 96
  %v8759 = vpop.permute.xlu0 %8758
  %8760 = vrot.lane.b32.xlu0 %v7219, 96
  %v8761 = vpop.permute.xlu0 %8760
  %8762 = vrot.lane.b32.xlu0 %v7220, 96
  %v8763 = vpop.permute.xlu0 %8762
  %8764 = vrot.lane.b32.xlu0 %v7221, 96
  %v8765 = vpop.permute.xlu0 %8764
  %8766 = vrot.lane.b32.xlu0 %v7222, 96
  %v8767 = vpop.permute.xlu0 %8766
  %8768 = vrot.lane.b32.xlu0 %v7223, 96
  %v8769 = vpop.permute.xlu0 %8768
  %8770 = vrot.lane.b32.xlu0 %v7224, 96
  %v8771 = vpop.permute.xlu0 %8770
  %8772 = vrot.lane.b32.xlu0 %v7225, 96
  %v8773 = vpop.permute.xlu0 %8772
  %8774 = vrot.lane.b32.xlu0 %v7226, 96
  %v8775 = vpop.permute.xlu0 %8774
  %8776 = vrot.lane.b32.xlu0 %v7227, 96
  %v8777 = vpop.permute.xlu0 %8776
  %8778 = vrot.lane.b32.xlu0 %v7228, 96
  %v8779 = vpop.permute.xlu0 %8778
  %8780 = vrot.lane.b32.xlu0 %v7229, 96
  %v8781 = vpop.permute.xlu0 %8780
  %8782 = vrot.lane.b32.xlu0 %v7230, 96
  %v8783 = vpop.permute.xlu0 %8782
  %8784 = vrot.lane.b32.xlu0 %v7231, 96
  %v8785 = vpop.permute.xlu0 %8784
  %8786 = vrot.lane.b32.xlu0 %v7232, 96
  %v8787 = vpop.permute.xlu0 %8786
  %8788 = vrot.lane.b32.xlu0 %v7233, 96
  %v8789 = vpop.permute.xlu0 %8788
  %8790 = vrot.lane.b32.xlu0 %v7234, 96
  %v8791 = vpop.permute.xlu0 %8790
  %8792 = vrot.lane.b32.xlu0 %v7235, 96
  %v8793 = vpop.permute.xlu0 %8792
  %8794 = vrot.lane.b32.xlu0 %v7236, 96
  %v8795 = vpop.permute.xlu0 %8794
  %8796 = vrot.lane.b32.xlu0 %v7237, 96
  %v8797 = vpop.permute.xlu0 %8796
  %8798 = vrot.lane.b32.xlu0 %v7238, 96
  %v8799 = vpop.permute.xlu0 %8798
  %8800 = vrot.lane.b32.xlu0 %v7239, 96
  %v8801 = vpop.permute.xlu0 %8800
  %8802 = vrot.lane.b32.xlu0 %v7240, 96
  %v8803 = vpop.permute.xlu0 %8802
  %8804 = vrot.lane.b32.xlu0 %v7241, 96
  %v8805 = vpop.permute.xlu0 %8804
  %8806 = vrot.lane.b32.xlu0 %v7242, 96
  %v8807 = vpop.permute.xlu0 %8806
  %8808 = vrot.lane.b32.xlu0 %v7243, 96
  %v8809 = vpop.permute.xlu0 %8808
  %8810 = vrot.lane.b32.xlu0 %v7244, 96
  %v8811 = vpop.permute.xlu0 %8810
  %8812 = vrot.lane.b32.xlu0 %v7245, 96
  %v8813 = vpop.permute.xlu0 %8812
  %8814 = vrot.lane.b32.xlu0 %v7246, 96
  %v8815 = vpop.permute.xlu0 %8814
  %8816 = vrot.lane.b32.xlu0 %v7247, 96
  %v8817 = vpop.permute.xlu0 %8816
  %8818 = vrot.lane.b32.xlu0 %v7248, 96
  %v8819 = vpop.permute.xlu0 %8818
  %8820 = vrot.lane.b32.xlu0 %v7249, 96
  %v8821 = vpop.permute.xlu0 %8820
  %8822 = vrot.lane.b32.xlu0 %v7250, 96
  %v8823 = vpop.permute.xlu0 %8822
  %8824 = vrot.lane.b32.xlu0 %v7251, 96
  %v8825 = vpop.permute.xlu0 %8824
  %8826 = vrot.lane.b32.xlu0 %v7252, 96
  %v8827 = vpop.permute.xlu0 %8826
  %8828 = vrot.lane.b32.xlu0 %v7253, 96
  %v8829 = vpop.permute.xlu0 %8828
  %8830 = vrot.lane.b32.xlu0 %v7254, 96
  %v8831 = vpop.permute.xlu0 %8830
  %8832 = vrot.lane.b32.xlu0 %v7255, 96
  %v8833 = vpop.permute.xlu0 %8832
  %8834 = vrot.lane.b32.xlu0 %v7256, 96
  %v8835 = vpop.permute.xlu0 %8834
  %8836 = vrot.lane.b32.xlu0 %v7257, 96
  %v8837 = vpop.permute.xlu0 %8836
  %8838 = vrot.lane.b32.xlu0 %v7258, 96
  %v8839 = vpop.permute.xlu0 %8838
  %8840 = vrot.lane.b32.xlu0 %v7259, 96
  %v8841 = vpop.permute.xlu0 %8840
  %8842 = vrot.lane.b32.xlu0 %v7260, 96
  %v8843 = vpop.permute.xlu0 %8842
  %8844 = vrot.lane.b32.xlu0 %v7261, 96
  %v8845 = vpop.permute.xlu0 %8844
  %8846 = vrot.lane.b32.xlu0 %v7262, 96
  %v8847 = vpop.permute.xlu0 %8846
  %8848 = vrot.lane.b32.xlu0 %v7263, 96
  %v8849 = vpop.permute.xlu0 %8848
  %8850 = vrot.lane.b32.xlu0 %v7264, 96
  %v8851 = vpop.permute.xlu0 %8850
  %8852 = vrot.lane.b32.xlu0 %v7265, 96
  %v8853 = vpop.permute.xlu0 %8852
  %8854 = vrot.lane.b32.xlu0 %v7266, 96
  %v8855 = vpop.permute.xlu0 %8854
  %8856 = vrot.lane.b32.xlu0 %v7267, 96
  %v8857 = vpop.permute.xlu0 %8856
  %8858 = vrot.lane.b32.xlu0 %v7268, 96
  %v8859 = vpop.permute.xlu0 %8858
  %8860 = vrot.lane.b32.xlu0 %v7269, 96
  %v8861 = vpop.permute.xlu0 %8860
  %8862 = vrot.lane.b32.xlu0 %v7270, 96
  %v8863 = vpop.permute.xlu0 %8862
  %8864 = vrot.lane.b32.xlu0 %v7271, 96
  %v8865 = vpop.permute.xlu0 %8864
  %8866 = vrot.lane.b32.xlu0 %v7272, 96
  %v8867 = vpop.permute.xlu0 %8866
  %8868 = vrot.lane.b32.xlu0 %v7273, 96
  %v8869 = vpop.permute.xlu0 %8868
  %8870 = vrot.lane.b32.xlu0 %v7274, 96
  %v8871 = vpop.permute.xlu0 %8870
  %8872 = vrot.lane.b32.xlu0 %v7275, 96
  %v8873 = vpop.permute.xlu0 %8872
  %8874 = vrot.lane.b32.xlu0 %v7276, 96
  %v8875 = vpop.permute.xlu0 %8874
  %8876 = vrot.lane.b32.xlu0 %v7277, 96
  %v8877 = vpop.permute.xlu0 %8876
  %9006 = vrot.lane.b32.xlu0 %v7278, 112
  %v9007 = vpop.permute.xlu0 %9006
  %9008 = vrot.lane.b32.xlu0 %v7279, 112
  %v9009 = vpop.permute.xlu0 %9008
  %9010 = vrot.lane.b32.xlu0 %v7280, 112
  %v9011 = vpop.permute.xlu0 %9010
  %9012 = vrot.lane.b32.xlu0 %v7281, 112
  %v9013 = vpop.permute.xlu0 %9012
  %9014 = vrot.lane.b32.xlu0 %v7282, 112
  %v9015 = vpop.permute.xlu0 %9014
  %9016 = vrot.lane.b32.xlu0 %v7283, 112
  %v9017 = vpop.permute.xlu0 %9016
  %9018 = vrot.lane.b32.xlu0 %v7284, 112
  %v9019 = vpop.permute.xlu0 %9018
  %9020 = vrot.lane.b32.xlu0 %v7285, 112
  %v9021 = vpop.permute.xlu0 %9020
  %9022 = vrot.lane.b32.xlu0 %v7286, 112
  %v9023 = vpop.permute.xlu0 %9022
  %9024 = vrot.lane.b32.xlu0 %v7287, 112
  %v9025 = vpop.permute.xlu0 %9024
  %9026 = vrot.lane.b32.xlu0 %v7288, 112
  %v9027 = vpop.permute.xlu0 %9026
  %9028 = vrot.lane.b32.xlu0 %v7289, 112
  %v9029 = vpop.permute.xlu0 %9028
  %9030 = vrot.lane.b32.xlu0 %v7290, 112
  %v9031 = vpop.permute.xlu0 %9030
  %9032 = vrot.lane.b32.xlu0 %v7291, 112
  %v9033 = vpop.permute.xlu0 %9032
  %9034 = vrot.lane.b32.xlu0 %v7292, 112
  %v9035 = vpop.permute.xlu0 %9034
  %9036 = vrot.lane.b32.xlu0 %v7293, 112
  %v9037 = vpop.permute.xlu0 %9036
  %9038 = vrot.lane.b32.xlu0 %v7294, 112
  %v9039 = vpop.permute.xlu0 %9038
  %9040 = vrot.lane.b32.xlu0 %v7295, 112
  %v9041 = vpop.permute.xlu0 %9040
  %9042 = vrot.lane.b32.xlu0 %v7296, 112
  %v9043 = vpop.permute.xlu0 %9042
  %9044 = vrot.lane.b32.xlu0 %v7297, 112
  %v9045 = vpop.permute.xlu0 %9044
  %9046 = vrot.lane.b32.xlu0 %v7298, 112
  %v9047 = vpop.permute.xlu0 %9046
  %9048 = vrot.lane.b32.xlu0 %v7299, 112
  %v9049 = vpop.permute.xlu0 %9048
  %9050 = vrot.lane.b32.xlu0 %v7300, 112
  %v9051 = vpop.permute.xlu0 %9050
  %9052 = vrot.lane.b32.xlu0 %v7301, 112
  %v9053 = vpop.permute.xlu0 %9052
  %9054 = vrot.lane.b32.xlu0 %v7302, 112
  %v9055 = vpop.permute.xlu0 %9054
  %9056 = vrot.lane.b32.xlu0 %v7303, 112
  %v9057 = vpop.permute.xlu0 %9056
  %9058 = vrot.lane.b32.xlu0 %v7304, 112
  %v9059 = vpop.permute.xlu0 %9058
  %9060 = vrot.lane.b32.xlu0 %v7305, 112
  %v9061 = vpop.permute.xlu0 %9060
  %9062 = vrot.lane.b32.xlu0 %v7306, 112
  %v9063 = vpop.permute.xlu0 %9062
  %9064 = vrot.lane.b32.xlu0 %v7307, 112
  %v9065 = vpop.permute.xlu0 %9064
  %9066 = vrot.lane.b32.xlu0 %v7308, 112
  %v9067 = vpop.permute.xlu0 %9066
  %9068 = vrot.lane.b32.xlu0 %v7309, 112
  %v9069 = vpop.permute.xlu0 %9068
  %9070 = vrot.lane.b32.xlu0 %v7310, 112
  %v9071 = vpop.permute.xlu0 %9070
  %9072 = vrot.lane.b32.xlu0 %v7311, 112
  %v9073 = vpop.permute.xlu0 %9072
  %9074 = vrot.lane.b32.xlu0 %v7312, 112
  %v9075 = vpop.permute.xlu0 %9074
  %9076 = vrot.lane.b32.xlu0 %v7313, 112
  %v9077 = vpop.permute.xlu0 %9076
  %9078 = vrot.lane.b32.xlu0 %v7314, 112
  %v9079 = vpop.permute.xlu0 %9078
  %9080 = vrot.lane.b32.xlu0 %v7315, 112
  %v9081 = vpop.permute.xlu0 %9080
  %9082 = vrot.lane.b32.xlu0 %v7316, 112
  %v9083 = vpop.permute.xlu0 %9082
  %9084 = vrot.lane.b32.xlu0 %v7317, 112
  %v9085 = vpop.permute.xlu0 %9084
  %9086 = vrot.lane.b32.xlu0 %v7318, 112
  %v9087 = vpop.permute.xlu0 %9086
  %9088 = vrot.lane.b32.xlu0 %v7319, 112
  %v9089 = vpop.permute.xlu0 %9088
  %9090 = vrot.lane.b32.xlu0 %v7320, 112
  %v9091 = vpop.permute.xlu0 %9090
  %9092 = vrot.lane.b32.xlu0 %v7321, 112
  %v9093 = vpop.permute.xlu0 %9092
  %9094 = vrot.lane.b32.xlu0 %v7322, 112
  %v9095 = vpop.permute.xlu0 %9094
  %9096 = vrot.lane.b32.xlu0 %v7323, 112
  %v9097 = vpop.permute.xlu0 %9096
  %9098 = vrot.lane.b32.xlu0 %v7324, 112
  %v9099 = vpop.permute.xlu0 %9098
  %9100 = vrot.lane.b32.xlu0 %v7325, 112
  %v9101 = vpop.permute.xlu0 %9100
  %9102 = vrot.lane.b32.xlu0 %v7326, 112
  %v9103 = vpop.permute.xlu0 %9102
  %9104 = vrot.lane.b32.xlu0 %v7327, 112
  %v9105 = vpop.permute.xlu0 %9104
  %9106 = vrot.lane.b32.xlu0 %v7328, 112
  %v9107 = vpop.permute.xlu0 %9106
  %9108 = vrot.lane.b32.xlu0 %v7329, 112
  %v9109 = vpop.permute.xlu0 %9108
  %9110 = vrot.lane.b32.xlu0 %v7330, 112
  %v9111 = vpop.permute.xlu0 %9110
  %9112 = vrot.lane.b32.xlu0 %v7331, 112
  %v9113 = vpop.permute.xlu0 %9112
  %9114 = vrot.lane.b32.xlu0 %v7332, 112
  %v9115 = vpop.permute.xlu0 %9114
  %9116 = vrot.lane.b32.xlu0 %v7333, 112
  %v9117 = vpop.permute.xlu0 %9116
  %9118 = vrot.lane.b32.xlu0 %v7334, 112
  %v9119 = vpop.permute.xlu0 %9118
  %9120 = vrot.lane.b32.xlu0 %v7335, 112
  %v9121 = vpop.permute.xlu0 %9120
  %9122 = vrot.lane.b32.xlu0 %v7336, 112
  %v9123 = vpop.permute.xlu0 %9122
  %9124 = vrot.lane.b32.xlu0 %v7337, 112
  %v9125 = vpop.permute.xlu0 %9124
  %9126 = vrot.lane.b32.xlu0 %v7338, 112
  %v9127 = vpop.permute.xlu0 %9126
  %9128 = vrot.lane.b32.xlu0 %v7339, 112
  %v9129 = vpop.permute.xlu0 %9128
  %9130 = vrot.lane.b32.xlu0 %v7340, 112
  %v9131 = vpop.permute.xlu0 %9130
  %9132 = vrot.lane.b32.xlu0 %v7341, 112
  %v9133 = vpop.permute.xlu0 %9132
  %v9198 = vsel %vm5858, %v6829, %v7471
  %v9199 = vsel %vm5858, %v6830, %v7473
  %v9200 = vsel %vm5858, %v6831, %v7475
  %v9201 = vsel %vm5858, %v6832, %v7477
  %v9202 = vsel %vm5858, %v6833, %v7479
  %v9203 = vsel %vm5858, %v6834, %v7481
  %v9204 = vsel %vm5858, %v6835, %v7483
  %v9205 = vsel %vm5858, %v6836, %v7485
  %v9206 = vsel %vm5858, %v6837, %v7487
  %v9207 = vsel %vm5858, %v6838, %v7489
  %v9208 = vsel %vm5858, %v6839, %v7491
  %v9209 = vsel %vm5858, %v6840, %v7493
  %v9210 = vsel %vm5858, %v6841, %v7495
  %v9211 = vsel %vm5858, %v6842, %v7497
  %v9212 = vsel %vm5858, %v6843, %v7499
  %v9213 = vsel %vm5858, %v6844, %v7501
  %v9214 = vsel %vm5858, %v6845, %v7503
  %v9215 = vsel %vm5858, %v6846, %v7505
  %v9216 = vsel %vm5858, %v6847, %v7507
  %v9217 = vsel %vm5858, %v6848, %v7509
  %v9218 = vsel %vm5858, %v6849, %v7511
  %v9219 = vsel %vm5858, %v6850, %v7513
  %v9220 = vsel %vm5858, %v6851, %v7515
  %v9221 = vsel %vm5858, %v6852, %v7517
  %v9222 = vsel %vm5858, %v6853, %v7519
  %v9223 = vsel %vm5858, %v6854, %v7521
  %v9224 = vsel %vm5858, %v6855, %v7523
  %v9225 = vsel %vm5858, %v6856, %v7525
  %v9226 = vsel %vm5858, %v6857, %v7527
  %v9227 = vsel %vm5858, %v6858, %v7529
  %v9228 = vsel %vm5858, %v6859, %v7531
  %v9229 = vsel %vm5858, %v6860, %v7533
  %v9230 = vsel %vm5858, %v6861, %v7535
  %v9231 = vsel %vm5858, %v6862, %v7537
  %v9232 = vsel %vm5858, %v6863, %v7539
  %v9233 = vsel %vm5858, %v6864, %v7541
  %v9234 = vsel %vm5858, %v6865, %v7543
  %v9235 = vsel %vm5858, %v6866, %v7545
  %v9236 = vsel %vm5858, %v6867, %v7547
  %v9237 = vsel %vm5858, %v6868, %v7549
  %v9238 = vsel %vm5858, %v6869, %v7551
  %v9239 = vsel %vm5858, %v6870, %v7553
  %v9240 = vsel %vm5858, %v6871, %v7555
  %v9241 = vsel %vm5858, %v6872, %v7557
  %v9242 = vsel %vm5858, %v6873, %v7559
  %v9243 = vsel %vm5858, %v6874, %v7561
  %v9244 = vsel %vm5858, %v6875, %v7563
  %v9245 = vsel %vm5858, %v6876, %v7565
  %v9246 = vsel %vm5858, %v6877, %v7567
  %v9247 = vsel %vm5858, %v6878, %v7569
  %v9248 = vsel %vm5858, %v6879, %v7571
  %v9249 = vsel %vm5858, %v6880, %v7573
  %v9250 = vsel %vm5858, %v6881, %v7575
  %v9251 = vsel %vm5858, %v6882, %v7577
  %v9252 = vsel %vm5858, %v6883, %v7579
  %v9253 = vsel %vm5858, %v6884, %v7581
  %v9254 = vsel %vm5858, %v6885, %v7583
  %v9255 = vsel %vm5858, %v6886, %v7585
  %v9256 = vsel %vm5858, %v6887, %v7587
  %v9257 = vsel %vm5858, %v6888, %v7589
  %v9258 = vsel %vm5858, %v6889, %v7591
  %v9259 = vsel %vm5858, %v6890, %v7593
  %v9260 = vsel %vm5858, %v6891, %v7595
  %v9261 = vsel %vm5858, %v6892, %v7597
  %v9262 = vsel %vm93, %v9198, %v7727
  %v9263 = vsel %vm93, %v9199, %v7729
  %v9264 = vsel %vm93, %v9200, %v7731
  %v9265 = vsel %vm93, %v9201, %v7733
  %v9266 = vsel %vm93, %v9202, %v7735
  %v9267 = vsel %vm93, %v9203, %v7737
  %v9268 = vsel %vm93, %v9204, %v7739
  %v9269 = vsel %vm93, %v9205, %v7741
  %v9270 = vsel %vm93, %v9206, %v7743
  %v9271 = vsel %vm93, %v9207, %v7745
  %v9272 = vsel %vm93, %v9208, %v7747
  %v9273 = vsel %vm93, %v9209, %v7749
  %v9274 = vsel %vm93, %v9210, %v7751
  %v9275 = vsel %vm93, %v9211, %v7753
  %v9276 = vsel %vm93, %v9212, %v7755
  %v9277 = vsel %vm93, %v9213, %v7757
  %v9278 = vsel %vm93, %v9214, %v7759
  %v9279 = vsel %vm93, %v9215, %v7761
  %v9280 = vsel %vm93, %v9216, %v7763
  %v9281 = vsel %vm93, %v9217, %v7765
  %v9282 = vsel %vm93, %v9218, %v7767
  %v9283 = vsel %vm93, %v9219, %v7769
  %v9284 = vsel %vm93, %v9220, %v7771
  %v9285 = vsel %vm93, %v9221, %v7773
  %v9286 = vsel %vm93, %v9222, %v7775
  %v9287 = vsel %vm93, %v9223, %v7777
  %v9288 = vsel %vm93, %v9224, %v7779
  %v9289 = vsel %vm93, %v9225, %v7781
  %v9290 = vsel %vm93, %v9226, %v7783
  %v9291 = vsel %vm93, %v9227, %v7785
  %v9292 = vsel %vm93, %v9228, %v7787
  %v9293 = vsel %vm93, %v9229, %v7789
  %v9294 = vsel %vm93, %v9230, %v7791
  %v9295 = vsel %vm93, %v9231, %v7793
  %v9296 = vsel %vm93, %v9232, %v7795
  %v9297 = vsel %vm93, %v9233, %v7797
  %v9298 = vsel %vm93, %v9234, %v7799
  %v9299 = vsel %vm93, %v9235, %v7801
  %v9300 = vsel %vm93, %v9236, %v7803
  %v9301 = vsel %vm93, %v9237, %v7805
  %v9302 = vsel %vm93, %v9238, %v7807
  %v9303 = vsel %vm93, %v9239, %v7809
  %v9304 = vsel %vm93, %v9240, %v7811
  %v9305 = vsel %vm93, %v9241, %v7813
  %v9306 = vsel %vm93, %v9242, %v7815
  %v9307 = vsel %vm93, %v9243, %v7817
  %v9308 = vsel %vm93, %v9244, %v7819
  %v9309 = vsel %vm93, %v9245, %v7821
  %v9310 = vsel %vm93, %v9246, %v7823
  %v9311 = vsel %vm93, %v9247, %v7825
  %v9312 = vsel %vm93, %v9248, %v7827
  %v9313 = vsel %vm93, %v9249, %v7829
  %v9314 = vsel %vm93, %v9250, %v7831
  %v9315 = vsel %vm93, %v9251, %v7833
  %v9316 = vsel %vm93, %v9252, %v7835
  %v9317 = vsel %vm93, %v9253, %v7837
  %v9318 = vsel %vm93, %v9254, %v7839
  %v9319 = vsel %vm93, %v9255, %v7841
  %v9320 = vsel %vm93, %v9256, %v7843
  %v9321 = vsel %vm93, %v9257, %v7845
  %v9322 = vsel %vm93, %v9258, %v7847
  %v9323 = vsel %vm93, %v9259, %v7849
  %v9324 = vsel %vm93, %v9260, %v7851
  %v9325 = vsel %vm93, %v9261, %v7853
  %vm9326 = vcmask 392192
  %v9327 = vsel %vm9326, %v9262, %v7983
  %v9328 = vsel %vm9326, %v9263, %v7985
  %v9329 = vsel %vm9326, %v9264, %v7987
  %v9330 = vsel %vm9326, %v9265, %v7989
  %v9331 = vsel %vm9326, %v9266, %v7991
  %v9332 = vsel %vm9326, %v9267, %v7993
  %v9333 = vsel %vm9326, %v9268, %v7995
  %v9334 = vsel %vm9326, %v9269, %v7997
  %v9335 = vsel %vm9326, %v9270, %v7999
  %v9336 = vsel %vm9326, %v9271, %v8001
  %v9337 = vsel %vm9326, %v9272, %v8003
  %v9338 = vsel %vm9326, %v9273, %v8005
  %v9339 = vsel %vm9326, %v9274, %v8007
  %v9340 = vsel %vm9326, %v9275, %v8009
  %v9341 = vsel %vm9326, %v9276, %v8011
  %v9342 = vsel %vm9326, %v9277, %v8013
  %v9343 = vsel %vm9326, %v9278, %v8015
  %v9344 = vsel %vm9326, %v9279, %v8017
  %v9345 = vsel %vm9326, %v9280, %v8019
  %v9346 = vsel %vm9326, %v9281, %v8021
  %v9347 = vsel %vm9326, %v9282, %v8023
  %v9348 = vsel %vm9326, %v9283, %v8025
  %v9349 = vsel %vm9326, %v9284, %v8027
  %v9350 = vsel %vm9326, %v9285, %v8029
  %v9351 = vsel %vm9326, %v9286, %v8031
  %v9352 = vsel %vm9326, %v9287, %v8033
  %v9353 = vsel %vm9326, %v9288, %v8035
  %v9354 = vsel %vm9326, %v9289, %v8037
  %v9355 = vsel %vm9326, %v9290, %v8039
  %v9356 = vsel %vm9326, %v9291, %v8041
  %v9357 = vsel %vm9326, %v9292, %v8043
  %v9358 = vsel %vm9326, %v9293, %v8045
  %v9359 = vsel %vm9326, %v9294, %v8047
  %v9360 = vsel %vm9326, %v9295, %v8049
  %v9361 = vsel %vm9326, %v9296, %v8051
  %v9362 = vsel %vm9326, %v9297, %v8053
  %v9363 = vsel %vm9326, %v9298, %v8055
  %v9364 = vsel %vm9326, %v9299, %v8057
  %v9365 = vsel %vm9326, %v9300, %v8059
  %v9366 = vsel %vm9326, %v9301, %v8061
  %v9367 = vsel %vm9326, %v9302, %v8063
  %v9368 = vsel %vm9326, %v9303, %v8065
  %v9369 = vsel %vm9326, %v9304, %v8067
  %v9370 = vsel %vm9326, %v9305, %v8069
  %v9371 = vsel %vm9326, %v9306, %v8071
  %v9372 = vsel %vm9326, %v9307, %v8073
  %v9373 = vsel %vm9326, %v9308, %v8075
  %v9374 = vsel %vm9326, %v9309, %v8077
  %v9375 = vsel %vm9326, %v9310, %v8079
  %v9376 = vsel %vm9326, %v9311, %v8081
  %v9377 = vsel %vm9326, %v9312, %v8083
  %v9378 = vsel %vm9326, %v9313, %v8085
  %v9379 = vsel %vm9326, %v9314, %v8087
  %v9380 = vsel %vm9326, %v9315, %v8089
  %v9381 = vsel %vm9326, %v9316, %v8091
  %v9382 = vsel %vm9326, %v9317, %v8093
  %v9383 = vsel %vm9326, %v9318, %v8095
  %v9384 = vsel %vm9326, %v9319, %v8097
  %v9385 = vsel %vm9326, %v9320, %v8099
  %v9386 = vsel %vm9326, %v9321, %v8101
  %v9387 = vsel %vm9326, %v9322, %v8103
  %v9388 = vsel %vm9326, %v9323, %v8105
  %v9389 = vsel %vm9326, %v9324, %v8107
  %v9390 = vsel %vm9326, %v9325, %v8109
  %v9391 = vsel %vm1037, %v9327, %v8239
  %v9392 = vsel %vm1037, %v9328, %v8241
  %v9393 = vsel %vm1037, %v9329, %v8243
  %v9394 = vsel %vm1037, %v9330, %v8245
  %v9395 = vsel %vm1037, %v9331, %v8247
  %v9396 = vsel %vm1037, %v9332, %v8249
  %v9397 = vsel %vm1037, %v9333, %v8251
  %v9398 = vsel %vm1037, %v9334, %v8253
  %v9399 = vsel %vm1037, %v9335, %v8255
  %v9400 = vsel %vm1037, %v9336, %v8257
  %v9401 = vsel %vm1037, %v9337, %v8259
  %v9402 = vsel %vm1037, %v9338, %v8261
  %v9403 = vsel %vm1037, %v9339, %v8263
  %v9404 = vsel %vm1037, %v9340, %v8265
  %v9405 = vsel %vm1037, %v9341, %v8267
  %v9406 = vsel %vm1037, %v9342, %v8269
  %v9407 = vsel %vm1037, %v9343, %v8271
  %v9408 = vsel %vm1037, %v9344, %v8273
  %v9409 = vsel %vm1037, %v9345, %v8275
  %v9410 = vsel %vm1037, %v9346, %v8277
  %v9411 = vsel %vm1037, %v9347, %v8279
  %v9412 = vsel %vm1037, %v9348, %v8281
  %v9413 = vsel %vm1037, %v9349, %v8283
  %v9414 = vsel %vm1037, %v9350, %v8285
  %v9415 = vsel %vm1037, %v9351, %v8287
  %v9416 = vsel %vm1037, %v9352, %v8289
  %v9417 = vsel %vm1037, %v9353, %v8291
  %v9418 = vsel %vm1037, %v9354, %v8293
  %v9419 = vsel %vm1037, %v9355, %v8295
  %v9420 = vsel %vm1037, %v9356, %v8297
  %v9421 = vsel %vm1037, %v9357, %v8299
  %v9422 = vsel %vm1037, %v9358, %v8301
  %v9423 = vsel %vm1037, %v9359, %v8303
  %v9424 = vsel %vm1037, %v9360, %v8305
  %v9425 = vsel %vm1037, %v9361, %v8307
  %v9426 = vsel %vm1037, %v9362, %v8309
  %v9427 = vsel %vm1037, %v9363, %v8311
  %v9428 = vsel %vm1037, %v9364, %v8313
  %v9429 = vsel %vm1037, %v9365, %v8315
  %v9430 = vsel %vm1037, %v9366, %v8317
  %v9431 = vsel %vm1037, %v9367, %v8319
  %v9432 = vsel %vm1037, %v9368, %v8321
  %v9433 = vsel %vm1037, %v9369, %v8323
  %v9434 = vsel %vm1037, %v9370, %v8325
  %v9435 = vsel %vm1037, %v9371, %v8327
  %v9436 = vsel %vm1037, %v9372, %v8329
  %v9437 = vsel %vm1037, %v9373, %v8331
  %v9438 = vsel %vm1037, %v9374, %v8333
  %v9439 = vsel %vm1037, %v9375, %v8335
  %v9440 = vsel %vm1037, %v9376, %v8337
  %v9441 = vsel %vm1037, %v9377, %v8339
  %v9442 = vsel %vm1037, %v9378, %v8341
  %v9443 = vsel %vm1037, %v9379, %v8343
  %v9444 = vsel %vm1037, %v9380, %v8345
  %v9445 = vsel %vm1037, %v9381, %v8347
  %v9446 = vsel %vm1037, %v9382, %v8349
  %v9447 = vsel %vm1037, %v9383, %v8351
  %v9448 = vsel %vm1037, %v9384, %v8353
  %v9449 = vsel %vm1037, %v9385, %v8355
  %v9450 = vsel %vm1037, %v9386, %v8357
  %v9451 = vsel %vm1037, %v9387, %v8359
  %v9452 = vsel %vm1037, %v9388, %v8361
  %v9453 = vsel %vm1037, %v9389, %v8363
  %v9454 = vsel %vm1037, %v9390, %v8365
  %vm9455 = vcmask 654336
  %v9456 = vsel %vm9455, %v9391, %v8495
  %v9457 = vsel %vm9455, %v9392, %v8497
  %v9458 = vsel %vm9455, %v9393, %v8499
  %v9459 = vsel %vm9455, %v9394, %v8501
  %v9460 = vsel %vm9455, %v9395, %v8503
  %v9461 = vsel %vm9455, %v9396, %v8505
  %v9462 = vsel %vm9455, %v9397, %v8507
  %v9463 = vsel %vm9455, %v9398, %v8509
  %v9464 = vsel %vm9455, %v9399, %v8511
  %v9465 = vsel %vm9455, %v9400, %v8513
  %v9466 = vsel %vm9455, %v9401, %v8515
  %v9467 = vsel %vm9455, %v9402, %v8517
  %v9468 = vsel %vm9455, %v9403, %v8519
  %v9469 = vsel %vm9455, %v9404, %v8521
  %v9470 = vsel %vm9455, %v9405, %v8523
  %v9471 = vsel %vm9455, %v9406, %v8525
  %v9472 = vsel %vm9455, %v9407, %v8527
  %v9473 = vsel %vm9455, %v9408, %v8529
  %v9474 = vsel %vm9455, %v9409, %v8531
  %v9475 = vsel %vm9455, %v9410, %v8533
  %v9476 = vsel %vm9455, %v9411, %v8535
  %v9477 = vsel %vm9455, %v9412, %v8537
  %v9478 = vsel %vm9455, %v9413, %v8539
  %v9479 = vsel %vm9455, %v9414, %v8541
  %v9480 = vsel %vm9455, %v9415, %v8543
  %v9481 = vsel %vm9455, %v9416, %v8545
  %v9482 = vsel %vm9455, %v9417, %v8547
  %v9483 = vsel %vm9455, %v9418, %v8549
  %v9484 = vsel %vm9455, %v9419, %v8551
  %v9485 = vsel %vm9455, %v9420, %v8553
  %v9486 = vsel %vm9455, %v9421, %v8555
  %v9487 = vsel %vm9455, %v9422, %v8557
  %v9488 = vsel %vm9455, %v9423, %v8559
  %v9489 = vsel %vm9455, %v9424, %v8561
  %v9490 = vsel %vm9455, %v9425, %v8563
  %v9491 = vsel %vm9455, %v9426, %v8565
  %v9492 = vsel %vm9455, %v9427, %v8567
  %v9493 = vsel %vm9455, %v9428, %v8569
  %v9494 = vsel %vm9455, %v9429, %v8571
  %v9495 = vsel %vm9455, %v9430, %v8573
  %v9496 = vsel %vm9455, %v9431, %v8575
  %v9497 = vsel %vm9455, %v9432, %v8577
  %v9498 = vsel %vm9455, %v9433, %v8579
  %v9499 = vsel %vm9455, %v9434, %v8581
  %v9500 = vsel %vm9455, %v9435, %v8583
  %v9501 = vsel %vm9455, %v9436, %v8585
  %v9502 = vsel %vm9455, %v9437, %v8587
  %v9503 = vsel %vm9455, %v9438, %v8589
  %v9504 = vsel %vm9455, %v9439, %v8591
  %v9505 = vsel %vm9455, %v9440, %v8593
  %v9506 = vsel %vm9455, %v9441, %v8595
  %v9507 = vsel %vm9455, %v9442, %v8597
  %v9508 = vsel %vm9455, %v9443, %v8599
  %v9509 = vsel %vm9455, %v9444, %v8601
  %v9510 = vsel %vm9455, %v9445, %v8603
  %v9511 = vsel %vm9455, %v9446, %v8605
  %v9512 = vsel %vm9455, %v9447, %v8607
  %v9513 = vsel %vm9455, %v9448, %v8609
  %v9514 = vsel %vm9455, %v9449, %v8611
  %v9515 = vsel %vm9455, %v9450, %v8613
  %v9516 = vsel %vm9455, %v9451, %v8615
  %v9517 = vsel %vm9455, %v9452, %v8617
  %v9518 = vsel %vm9455, %v9453, %v8619
  %v9519 = vsel %vm9455, %v9454, %v8621
  %v9520 = vsel %vm1054, %v9456, %v8751
  %v9521 = vsel %vm1054, %v9457, %v8753
  %v9522 = vsel %vm1054, %v9458, %v8755
  %v9523 = vsel %vm1054, %v9459, %v8757
  %v9524 = vsel %vm1054, %v9460, %v8759
  %v9525 = vsel %vm1054, %v9461, %v8761
  %v9526 = vsel %vm1054, %v9462, %v8763
  %v9527 = vsel %vm1054, %v9463, %v8765
  %v9528 = vsel %vm1054, %v9464, %v8767
  %v9529 = vsel %vm1054, %v9465, %v8769
  %v9530 = vsel %vm1054, %v9466, %v8771
  %v9531 = vsel %vm1054, %v9467, %v8773
  %v9532 = vsel %vm1054, %v9468, %v8775
  %v9533 = vsel %vm1054, %v9469, %v8777
  %v9534 = vsel %vm1054, %v9470, %v8779
  %v9535 = vsel %vm1054, %v9471, %v8781
  %v9536 = vsel %vm1054, %v9472, %v8783
  %v9537 = vsel %vm1054, %v9473, %v8785
  %v9538 = vsel %vm1054, %v9474, %v8787
  %v9539 = vsel %vm1054, %v9475, %v8789
  %v9540 = vsel %vm1054, %v9476, %v8791
  %v9541 = vsel %vm1054, %v9477, %v8793
  %v9542 = vsel %vm1054, %v9478, %v8795
  %v9543 = vsel %vm1054, %v9479, %v8797
  %v9544 = vsel %vm1054, %v9480, %v8799
  %v9545 = vsel %vm1054, %v9481, %v8801
  %v9546 = vsel %vm1054, %v9482, %v8803
  %v9547 = vsel %vm1054, %v9483, %v8805
  %v9548 = vsel %vm1054, %v9484, %v8807
  %v9549 = vsel %vm1054, %v9485, %v8809
  %v9550 = vsel %vm1054, %v9486, %v8811
  %v9551 = vsel %vm1054, %v9487, %v8813
  %v9552 = vsel %vm1054, %v9488, %v8815
  %v9553 = vsel %vm1054, %v9489, %v8817
  %v9554 = vsel %vm1054, %v9490, %v8819
  %v9555 = vsel %vm1054, %v9491, %v8821
  %v9556 = vsel %vm1054, %v9492, %v8823
  %v9557 = vsel %vm1054, %v9493, %v8825
  %v9558 = vsel %vm1054, %v9494, %v8827
  %v9559 = vsel %vm1054, %v9495, %v8829
  %v9560 = vsel %vm1054, %v9496, %v8831
  %v9561 = vsel %vm1054, %v9497, %v8833
  %v9562 = vsel %vm1054, %v9498, %v8835
  %v9563 = vsel %vm1054, %v9499, %v8837
  %v9564 = vsel %vm1054, %v9500, %v8839
  %v9565 = vsel %vm1054, %v9501, %v8841
  %v9566 = vsel %vm1054, %v9502, %v8843
  %v9567 = vsel %vm1054, %v9503, %v8845
  %v9568 = vsel %vm1054, %v9504, %v8847
  %v9569 = vsel %vm1054, %v9505, %v8849
  %v9570 = vsel %vm1054, %v9506, %v8851
  %v9571 = vsel %vm1054, %v9507, %v8853
  %v9572 = vsel %vm1054, %v9508, %v8855
  %v9573 = vsel %vm1054, %v9509, %v8857
  %v9574 = vsel %vm1054, %v9510, %v8859
  %v9575 = vsel %vm1054, %v9511, %v8861
  %v9576 = vsel %vm1054, %v9512, %v8863
  %v9577 = vsel %vm1054, %v9513, %v8865
  %v9578 = vsel %vm1054, %v9514, %v8867
  %v9579 = vsel %vm1054, %v9515, %v8869
  %v9580 = vsel %vm1054, %v9516, %v8871
  %v9581 = vsel %vm1054, %v9517, %v8873
  %v9582 = vsel %vm1054, %v9518, %v8875
  %v9583 = vsel %vm1054, %v9519, %v8877
  %vm9584 = vcmask 916480
  %v9585 = vsel %vm9584, %v9520, %v9007
  %v9586 = vsel %vm9584, %v9521, %v9009
  %v9587 = vsel %vm9584, %v9522, %v9011
  %v9588 = vsel %vm9584, %v9523, %v9013
  %v9589 = vsel %vm9584, %v9524, %v9015
  %v9590 = vsel %vm9584, %v9525, %v9017
  %v9591 = vsel %vm9584, %v9526, %v9019
  %v9592 = vsel %vm9584, %v9527, %v9021
  %v9593 = vsel %vm9584, %v9528, %v9023
  %v9594 = vsel %vm9584, %v9529, %v9025
  %v9595 = vsel %vm9584, %v9530, %v9027
  %v9596 = vsel %vm9584, %v9531, %v9029
  %v9597 = vsel %vm9584, %v9532, %v9031
  %v9598 = vsel %vm9584, %v9533, %v9033
  %v9599 = vsel %vm9584, %v9534, %v9035
  %v9600 = vsel %vm9584, %v9535, %v9037
  %v9601 = vsel %vm9584, %v9536, %v9039
  %v9602 = vsel %vm9584, %v9537, %v9041
  %v9603 = vsel %vm9584, %v9538, %v9043
  %v9604 = vsel %vm9584, %v9539, %v9045
  %v9605 = vsel %vm9584, %v9540, %v9047
  %v9606 = vsel %vm9584, %v9541, %v9049
  %v9607 = vsel %vm9584, %v9542, %v9051
  %v9608 = vsel %vm9584, %v9543, %v9053
  %v9609 = vsel %vm9584, %v9544, %v9055
  %v9610 = vsel %vm9584, %v9545, %v9057
  %v9611 = vsel %vm9584, %v9546, %v9059
  %v9612 = vsel %vm9584, %v9547, %v9061
  %v9613 = vsel %vm9584, %v9548, %v9063
  %v9614 = vsel %vm9584, %v9549, %v9065
  %v9615 = vsel %vm9584, %v9550, %v9067
  %v9616 = vsel %vm9584, %v9551, %v9069
  %v9617 = vsel %vm9584, %v9552, %v9071
  %v9618 = vsel %vm9584, %v9553, %v9073
  %v9619 = vsel %vm9584, %v9554, %v9075
  %v9620 = vsel %vm9584, %v9555, %v9077
  %v9621 = vsel %vm9584, %v9556, %v9079
  %v9622 = vsel %vm9584, %v9557, %v9081
  %v9623 = vsel %vm9584, %v9558, %v9083
  %v9624 = vsel %vm9584, %v9559, %v9085
  %v9625 = vsel %vm9584, %v9560, %v9087
  %v9626 = vsel %vm9584, %v9561, %v9089
  %v9627 = vsel %vm9584, %v9562, %v9091
  %v9628 = vsel %vm9584, %v9563, %v9093
  %v9629 = vsel %vm9584, %v9564, %v9095
  %v9630 = vsel %vm9584, %v9565, %v9097
  %v9631 = vsel %vm9584, %v9566, %v9099
  %v9632 = vsel %vm9584, %v9567, %v9101
  %v9633 = vsel %vm9584, %v9568, %v9103
  %v9634 = vsel %vm9584, %v9569, %v9105
  %v9635 = vsel %vm9584, %v9570, %v9107
  %v9636 = vsel %vm9584, %v9571, %v9109
  %v9637 = vsel %vm9584, %v9572, %v9111
  %v9638 = vsel %vm9584, %v9573, %v9113
  %v9639 = vsel %vm9584, %v9574, %v9115
  %v9640 = vsel %vm9584, %v9575, %v9117
  %v9641 = vsel %vm9584, %v9576, %v9119
  %v9642 = vsel %vm9584, %v9577, %v9121
  %v9643 = vsel %vm9584, %v9578, %v9123
  %v9644 = vsel %vm9584, %v9579, %v9125
  %v9645 = vsel %vm9584, %v9580, %v9127
  %v9646 = vsel %vm9584, %v9581, %v9129
  %v9647 = vsel %vm9584, %v9582, %v9131
  %v9648 = vsel %vm9584, %v9583, %v9133
  %v9649 = vld [vmem:[%s11] sm:$0x77]
  %v9651 = vcombine.high %v9649, %v9649
  %v9653 = vpack.c.bf16 %v9649, %v9649
  %v9654 = vpack.c.bf16 %v9651, %v9651
  %v9655 = vpack.c.bf16 %v9586, %v9585
  %v9656 = vpack.c.bf16 %v7343, %v7342
  %v9657 = vpack.c.bf16 %v9588, %v9587
  %v9658 = vpack.c.bf16 %v7345, %v7344
  %v9659 = vpack.c.bf16 %v9590, %v9589
  %v9660 = vpack.c.bf16 %v7347, %v7346
  %v9661 = vpack.c.bf16 %v9592, %v9591
  %v9662 = vpack.c.bf16 %v7349, %v7348
  %v9663 = vpack.c.bf16 %v9594, %v9593
  %v9664 = vpack.c.bf16 %v7351, %v7350
  %v9665 = vpack.c.bf16 %v9596, %v9595
  %v9666 = vpack.c.bf16 %v7353, %v7352
  %v9667 = vpack.c.bf16 %v9598, %v9597
  %v9668 = vpack.c.bf16 %v7355, %v7354
  %v9669 = vpack.c.bf16 %v9600, %v9599
  %v9670 = vpack.c.bf16 %v7357, %v7356
  %v9671 = vpack.c.bf16 %v9602, %v9601
  %v9672 = vpack.c.bf16 %v7359, %v7358
  %v9673 = vpack.c.bf16 %v9604, %v9603
  %v9674 = vpack.c.bf16 %v7361, %v7360
  %v9675 = vpack.c.bf16 %v9606, %v9605
  %v9676 = vpack.c.bf16 %v7363, %v7362
  %v9677 = vpack.c.bf16 %v9608, %v9607
  %v9678 = vpack.c.bf16 %v7365, %v7364
  %v9679 = vpack.c.bf16 %v9610, %v9609
  %v9680 = vpack.c.bf16 %v7367, %v7366
  %v9681 = vpack.c.bf16 %v9612, %v9611
  %v9682 = vpack.c.bf16 %v7369, %v7368
  %v9683 = vpack.c.bf16 %v9614, %v9613
  %v9684 = vpack.c.bf16 %v7371, %v7370
  %v9685 = vpack.c.bf16 %v9616, %v9615
  %v9686 = vpack.c.bf16 %v7373, %v7372
  %v9687 = vpack.c.bf16 %v9618, %v9617
  %v9688 = vpack.c.bf16 %v7375, %v7374
  %v9689 = vpack.c.bf16 %v9620, %v9619
  %v9690 = vpack.c.bf16 %v7377, %v7376
  %v9691 = vpack.c.bf16 %v9622, %v9621
  %v9692 = vpack.c.bf16 %v7379, %v7378
  %v9693 = vpack.c.bf16 %v9624, %v9623
  %v9694 = vpack.c.bf16 %v7381, %v7380
  %v9695 = vpack.c.bf16 %v9626, %v9625
  %v9696 = vpack.c.bf16 %v7383, %v7382
  %v9697 = vpack.c.bf16 %v9628, %v9627
  %v9698 = vpack.c.bf16 %v7385, %v7384
  %v9699 = vpack.c.bf16 %v9630, %v9629
  %v9700 = vpack.c.bf16 %v7387, %v7386
  %v9701 = vpack.c.bf16 %v9632, %v9631
  %v9702 = vpack.c.bf16 %v7389, %v7388
  %v9703 = vpack.c.bf16 %v9634, %v9633
  %v9704 = vpack.c.bf16 %v7391, %v7390
  %v9705 = vpack.c.bf16 %v9636, %v9635
  %v9706 = vpack.c.bf16 %v7393, %v7392
  %v9707 = vpack.c.bf16 %v9638, %v9637
  %v9708 = vpack.c.bf16 %v7395, %v7394
  %v9709 = vpack.c.bf16 %v9640, %v9639
  %v9710 = vpack.c.bf16 %v7397, %v7396
  %v9711 = vpack.c.bf16 %v9642, %v9641
  %v9712 = vpack.c.bf16 %v7399, %v7398
  %v9713 = vpack.c.bf16 %v9644, %v9643
  %v9714 = vpack.c.bf16 %v7401, %v7400
  %v9715 = vpack.c.bf16 %v9646, %v9645
  %v9716 = vpack.c.bf16 %v7403, %v7402
  %v9717 = vpack.c.bf16 %v9648, %v9647
  %v9718 = vpack.c.bf16 %v7405, %v7404
  %v9719 = vld [vmem:[%s12] sm:$0x7]
  %9721 = vset.pattern.permute.xlu0 0
  %9722 = vperm.xlu0 %9721, %v9719
  %v9723 = vpop.permute.xlu0 %9722
  %v9726 = vsel %vm5858, %v9654, 0
  %v9729 = vsel %vm5858, %v9656, 0
  %v9732 = vsel %vm5858, %v9658, 0
  %v9735 = vsel %vm5858, %v9660, 0
  %v9738 = vsel %vm5858, %v9662, 0
  %v9741 = vsel %vm5858, %v9664, 0
  %v9744 = vsel %vm5858, %v9666, 0
  %v9747 = vsel %vm5858, %v9668, 0
  %v9750 = vsel %vm5858, %v9670, 0
  %v9753 = vsel %vm5858, %v9672, 0
  %v9756 = vsel %vm5858, %v9674, 0
  %v9759 = vsel %vm5858, %v9676, 0
  %v9762 = vsel %vm5858, %v9678, 0
  %v9765 = vsel %vm5858, %v9680, 0
  %v9768 = vsel %vm5858, %v9682, 0
  %v9771 = vsel %vm5858, %v9684, 0
  %v9774 = vsel %vm5858, %v9686, 0
  %v9777 = vsel %vm5858, %v9688, 0
  %v9780 = vsel %vm5858, %v9690, 0
  %v9783 = vsel %vm5858, %v9692, 0
  %v9786 = vsel %vm5858, %v9694, 0
  %v9789 = vsel %vm5858, %v9696, 0
  %v9792 = vsel %vm5858, %v9698, 0
  %v9795 = vsel %vm5858, %v9700, 0
  %v9798 = vsel %vm5858, %v9702, 0
  %v9801 = vsel %vm5858, %v9704, 0
  %v9804 = vsel %vm5858, %v9706, 0
  %v9807 = vsel %vm5858, %v9708, 0
  %v9810 = vsel %vm5858, %v9710, 0
  %v9813 = vsel %vm5858, %v9712, 0
  %v9816 = vsel %vm5858, %v9714, 0
  %v9819 = vsel %vm5858, %v9716, 0
  %v9822 = vsel %vm5858, %v9718, 0
  %9824 = vmatprep.subr.bf16.mxu0 %v9729
  %9825 = vmatpush1.bf16.xpose.msra.mxu0 %v9655
  %9826 = vmatprep.subr.bf16.mxu0 %v9732
  %9827 = vmatpush1.bf16.xpose.msra.mxu0 %v9657
  %9828 = vmatprep.subr.bf16.mxu0 %v9735
  %9829 = vmatpush1.bf16.xpose.msra.mxu0 %v9659
  %9830 = vmatprep.subr.bf16.mxu0 %v9738
  %9831 = vmatpush1.bf16.xpose.msra.mxu0 %v9661
  %9832 = vmatprep.subr.bf16.mxu0 %v9741
  %9833 = vmatpush1.bf16.xpose.msra.mxu0 %v9663
  %9834 = vmatprep.subr.bf16.mxu0 %v9744
  %9835 = vmatpush1.bf16.xpose.msra.mxu0 %v9665
  %9836 = vmatprep.subr.bf16.mxu0 %v9747
  %9837 = vmatpush1.bf16.xpose.msra.mxu0 %v9667
  %9838 = vmatprep.subr.bf16.mxu0 %v9750
  %9839 = vmatpush1.bf16.xpose.msra.mxu0 %v9669
  %9840 = vmatprep.subr.bf16.mxu0 %v9753
  %9841 = vmatpush1.bf16.xpose.msra.mxu0 %v9671
  %9842 = vmatprep.subr.bf16.mxu0 %v9756
  %9843 = vmatpush1.bf16.xpose.msra.mxu0 %v9673
  %9844 = vmatprep.subr.bf16.mxu0 %v9759
  %9845 = vmatpush1.bf16.xpose.msra.mxu0 %v9675
  %9846 = vmatprep.subr.bf16.mxu0 %v9762
  %9847 = vmatpush1.bf16.xpose.msra.mxu0 %v9677
  %9848 = vmatprep.subr.bf16.mxu0 %v9765
  %9849 = vmatpush1.bf16.xpose.msra.mxu0 %v9679
  %9850 = vmatprep.subr.bf16.mxu0 %v9768
  %9851 = vmatpush1.bf16.xpose.msra.mxu0 %v9681
  %9852 = vmatprep.subr.bf16.mxu0 %v9771
  %9853 = vmatpush1.bf16.xpose.msra.mxu0 %v9683
  %9854 = vmatprep.subr.bf16.mxu0 %v9774
  %9855 = vmatpush1.bf16.xpose.msra.mxu0 %v9685
  %9856 = vmatprep.mubr.bf16.mxu0 %v9726
  %9857 = vmatmul.mubr.bf16.gmra.mrb[0].mxu0 %v9653
  %v9858 = vpop.f32.mrb[0].mxu0
  %v9859 = vadd.f32 %v9723, %v9858
  %v9860 = vpop.f32.mrb[0].mxu0
  %v9861 = vadd.f32 %v9723, %v9860
  %v9862 = vpop.f32.mrb[0].mxu0
  %v9863 = vpop.f32.mrb[0].mxu0
  %9864 = vdwg.mxu0
  %9865 = vmatprep.subr.bf16.mxu0 %v9777
  %9866 = vmatpush1.bf16.xpose.msra.mxu0 %v9687
  %9867 = vmatprep.subr.bf16.mxu0 %v9780
  %9868 = vmatpush1.bf16.xpose.msra.mxu0 %v9689
  %9869 = vmatprep.subr.bf16.mxu0 %v9783
  %9870 = vmatpush1.bf16.xpose.msra.mxu0 %v9691
  %9871 = vmatprep.subr.bf16.mxu0 %v9786
  %9872 = vmatpush1.bf16.xpose.msra.mxu0 %v9693
  %9873 = vmatprep.subr.bf16.mxu0 %v9789
  %9874 = vmatpush1.bf16.xpose.msra.mxu0 %v9695
  %9875 = vmatprep.subr.bf16.mxu0 %v9792
  %9876 = vmatpush1.bf16.xpose.msra.mxu0 %v9697
  %9877 = vmatprep.subr.bf16.mxu0 %v9795
  %9878 = vmatpush1.bf16.xpose.msra.mxu0 %v9699
  %9879 = vmatprep.subr.bf16.mxu0 %v9798
  %9880 = vmatpush1.bf16.xpose.msra.mxu0 %v9701
  %9881 = vmatprep.subr.bf16.mxu0 %v9801
  %9882 = vmatpush1.bf16.xpose.msra.mxu0 %v9703
  %9883 = vmatprep.subr.bf16.mxu0 %v9804
  %9884 = vmatpush1.bf16.xpose.msra.mxu0 %v9705
  %9885 = vmatprep.subr.bf16.mxu0 %v9807
  %9886 = vmatpush1.bf16.xpose.msra.mxu0 %v9707
  %9887 = vmatprep.subr.bf16.mxu0 %v9810
  %9888 = vmatpush1.bf16.xpose.msra.mxu0 %v9709
  %9889 = vmatprep.subr.bf16.mxu0 %v9813
  %9890 = vmatpush1.bf16.xpose.msra.mxu0 %v9711
  %9891 = vmatprep.subr.bf16.mxu0 %v9816
  %9892 = vmatpush1.bf16.xpose.msra.mxu0 %v9713
  %9893 = vmatprep.subr.bf16.mxu0 %v9819
  %9894 = vmatpush1.bf16.xpose.msra.mxu0 %v9715
  %9895 = vmatprep.subr.bf16.mxu0 %v9822
  %9896 = vmatpush1.bf16.xpose.msra.mxu0 %v9717
  %9897 = vmatprep.mubr.bf16.mxu0 %v9726
  %9898 = vmatmul.mubr.bf16.gmra.mrb[0].mxu0 %v9653
  %v9899 = vpop.f32.mrb[0].mxu0
  %v9900 = vadd.f32 %v9723, %v9899
  %v9901 = vpop.f32.mrb[0].mxu0
  %v9902 = vadd.f32 %v9723, %v9901
  %v9903 = vpop.f32.mrb[0].mxu0
  %v9904 = vpop.f32.mrb[0].mxu0
  %9905 = vdwg.mxu0
  %v9906 = vtanh.pop %v9859
  %v9907 = vtanh.pop %v9861
  %v9908 = vtanh.pop %v9900
  %v9909 = vtanh.pop %v9902
  %v9912 = vcombine.low %v9906, %v9907
  %9914 = vst [vmem:[%s13] sm:$0x77] %v9912
  %v9917 = vcombine.low %v9908, %v9909
  %s9919 = scalar_lea.vmem %s13, 8
  %9920 = vst [vmem:[%s9919] sm:$0x77] %v9917
  // Predicated region
  $region54: #{generator_forward.1} parent=0 // pred_check
    _
  $region55: #{generator_forward.1} parent=0 // pred_check_branch
    %9922 = sbr.rel (0) target = $region57
  $region56: #{generator_forward.1} parent=0 // pred_region
    _
  $region57: #{generator_forward.1} parent=0 // pred_fallthru
    _
  // Predicated region
  $region58: #{generator_forward.1} parent=0 // pred_check
    _
  $region59: #{generator_forward.1} parent=0 // pred_check_branch
    %9924 = sbr.rel (0) target = $region61
  $region60: #{generator_forward.1} parent=0 // pred_region
    _
  $region61: #{generator_forward.1} parent=0 // pred_fallthru
    _

</llo_original>
